<compile_context>
chip_gen: v7x
topology: tpu7x:2x2x1
jax: 0.10.0
libtpu: 0.0.40
codegen_flags: <defaults>
</compile_context>

<pallas_src>
import functools
import math

import numpy as np
import jax
import jax.numpy as jnp
from jax import lax
from jax.experimental import pallas as pl
from jax.experimental.pallas import tpu as pltpu


_COMPUTE_DTYPE = jnp.bfloat16   # MXU input dtype; accumulation is always f32.


# ----------------------------- small helpers ----------------------------------

def _tpu_vmem_capacity():
    try:
        return int(pltpu.get_tpu_info().vmem_capacity_bytes)
    except Exception:
        return 64 << 20            # conservative (v7x-sized) fallback


def _vmem_limit_bytes(capacity):
    # Generation-aware scoped-VMEM budget: generous on 128-MiB parts (v5e/v6e),
    # conservative on v7x (64 MiB physical).
    return (100 << 20) if capacity >= (120 << 20) else (48 << 20)


def _pick_row_tiles(H, W, N, big_vmem):
    """Rows-per-tile & number of row tiles.

    rows*W stays a multiple of 8 (sublane rule for the flattened (spatial, channel)
    blocks), tiles target ~1-2K spatial positions (GEMM rows), and the grid is split
    until there are >= 4 'parallel' steps so both v7x TensorCores get work."""
    g = 8 // math.gcd(W, 8)                     # row granularity
    target = 2048 if big_vmem else 1024         # spatial positions per tile
    tmr = max(g, (max(target // max(W, 1), 1) // g) * g)
    tmr = min(tmr, (-(-H // g)) * g)
    n_t = -(-H // tmr)
    while N * n_t < 4 and tmr > g:
        tmr = max(g, (-(-(tmr // 2) // g)) * g)
        n_t = -(-H // tmr)
    return tmr, n_t


# ----------------------------- Pallas kernels ---------------------------------

def _stage1_kernel(tmr, W, x_ref, w1_ref, w2_ref, w3_ref, s_ref, b_ref, o_ref):
    """Fused concat[conv1_1(d=1), conv1_2(d=2), conv1_3(d=3)] -> BN1 -> ReLU.

    x_ref : (1, Hp, Wp, Cin) bf16 whole zero-padded image (pad=3), VMEM-resident and
            reused across the row-tile grid axis (constant index_map).
    w*_ref: (9, Cin, Pc) bf16 per-tap weights of the d=1/2/3 branch.
    s_ref, b_ref: (1, P) f32 folded BatchNorm1 scale / bias.
    o_ref : (1, tmr*W, P) bf16, this row tile flattened over (rows, W).

    The 9 taps of each dilated 3x3 conv are built in-kernel from shifted slices of the
    VMEM-resident image (no HBM im2col); one small GEMM per tap, f32 accumulation;
    per-branch results go straight into channel slices of the output (no concat)."""
    cin = x_ref.shape[-1]
    r0 = pl.program_id(1) * tmr                  # first output row of this tile
    off = 0
    for w_ref, d in ((w1_ref, 1), (w2_ref, 2), (w3_ref, 3)):
        pc = w_ref.shape[-1]
        acc = jnp.zeros((tmr * W, pc), jnp.float32)
        for kh in range(3):
            for kw in range(3):
                tap = x_ref[0, pl.ds(r0 + 3 + (kh - 1) * d, tmr),
                            pl.ds(3 + (kw - 1) * d, W), :]
                acc = acc + jnp.dot(tap.reshape(tmr * W, cin), w_ref[kh * 3 + kw],
                                    preferred_element_type=jnp.float32)
        res = jnp.maximum(acc * s_ref[:, off:off + pc] + b_ref[:, off:off + pc], 0.0)
        o_ref[0, :, off:off + pc] = res.astype(o_ref.dtype)
        off += pc


def _stage2_conv_kernel(tmr, Wo, sh, sw, hph, y_ref, w_ref, s_ref, b_ref,
                        xs_ref, ws_ref, ss_ref, bs_ref, o_ref):
    """Fused conv2 (3x3, stride) -> BN2, + (1x1-conv -> BN) shortcut, + ReLU.

    y_ref : (1, sh*sw*hph, Wph, P) bf16 stage-1 activation, zero-padded and stride-phase
            decomposed so every tap read is a contiguous slice.
    xs_ref: (1, tmr*Wo, Cin) bf16 strided input pixels for the 1x1 shortcut GEMM."""
    P = w_ref.shape[-1]
    r0 = pl.program_id(1) * tmr
    acc = jnp.zeros((tmr * Wo, P), jnp.float32)
    for kh in range(3):
        for kw in range(3):
            ph = (kh % sh) * sw + (kw % sw)
            tap = y_ref[0, pl.ds(ph * hph + r0 + kh // sh, tmr),
                        pl.ds(kw // sw, Wo), :]
            acc = acc + jnp.dot(tap.reshape(tmr * Wo, P), w_ref[kh * 3 + kw],
                                preferred_element_type=jnp.float32)
    out = acc * s_ref[...] + b_ref[...]
    sc = jnp.dot(xs_ref[0], ws_ref[...], preferred_element_type=jnp.float32)
    out = out + (sc * ss_ref[...] + bs_ref[...])
    o_ref[0] = jnp.maximum(out, 0.0).astype(o_ref.dtype)


def _stage2_identity_kernel(tmr, Wo, y_ref, w_ref, s_ref, b_ref, xs_ref, o_ref):
    """Fused conv2 (3x3, stride 1) -> BN2, + identity shortcut (direct add), + ReLU."""
    P = w_ref.shape[-1]
    r0 = pl.program_id(1) * tmr
    acc = jnp.zeros((tmr * Wo, P), jnp.float32)
    for kh in range(3):
        for kw in range(3):
            tap = y_ref[0, pl.ds(r0 + kh, tmr), pl.ds(kw, Wo), :]
            acc = acc + jnp.dot(tap.reshape(tmr * Wo, P), w_ref[kh * 3 + kw],
                                preferred_element_type=jnp.float32)
    out = acc * s_ref[...] + b_ref[...] + xs_ref[0].astype(jnp.float32)
    o_ref[0] = jnp.maximum(out, 0.0).astype(o_ref.dtype)


# ----------------------------- pallas_call wrappers ----------------------------

def _call_stage1(xp, w11, w12, w13, s1, b1, tmr, n_t, W, vmem_limit):
    N, Hp, Wp, Cin = xp.shape
    P = s1.shape[1]
    return pl.pallas_call(
        functools.partial(_stage1_kernel, tmr, W),
        out_shape=jax.ShapeDtypeStruct((N, n_t * tmr * W, P), jnp.bfloat16),
        grid=(N, n_t),
        in_specs=[
            pl.BlockSpec((1, Hp, Wp, Cin), lambda n, m: (n, 0, 0, 0)),
            pl.BlockSpec(w11.shape, lambda n, m: (0, 0, 0)),
            pl.BlockSpec(w12.shape, lambda n, m: (0, 0, 0)),
            pl.BlockSpec(w13.shape, lambda n, m: (0, 0, 0)),
            pl.BlockSpec((1, P), lambda n, m: (0, 0)),
            pl.BlockSpec((1, P), lambda n, m: (0, 0)),
        ],
        out_specs=pl.BlockSpec((1, tmr * W, P), lambda n, m: (n, m, 0)),
        compiler_params=pltpu.CompilerParams(
            dimension_semantics=("parallel", "parallel"),
            vmem_limit_bytes=vmem_limit),
    )(xp, w11, w12, w13, s1, b1)


def _call_stage2_conv(yph, w2, s2, b2, xs, ws, ss, bs, tmr, n_t, Wo, sh, sw, hph,
                      vmem_limit):
    N, R, Wph, P = yph.shape
    Cin = xs.shape[-1]
    return pl.pallas_call(
        functools.partial(_stage2_conv_kernel, tmr, Wo, sh, sw, hph),
        out_shape=jax.ShapeDtypeStruct((N, n_t * tmr * Wo, P), jnp.float32),
        grid=(N, n_t),
        in_specs=[
            pl.BlockSpec((1, R, Wph, P), lambda n, m: (n, 0, 0, 0)),
            pl.BlockSpec(w2.shape, lambda n, m: (0, 0, 0)),
            pl.BlockSpec((1, P), lambda n, m: (0, 0)),
            pl.BlockSpec((1, P), lambda n, m: (0, 0)),
            pl.BlockSpec((1, tmr * Wo, Cin), lambda n, m: (n, m, 0)),
            pl.BlockSpec(ws.shape, lambda n, m: (0, 0)),
            pl.BlockSpec((1, P), lambda n, m: (0, 0)),
            pl.BlockSpec((1, P), lambda n, m: (0, 0)),
        ],
        out_specs=pl.BlockSpec((1, tmr * Wo, P), lambda n, m: (n, m, 0)),
        compiler_params=pltpu.CompilerParams(
            dimension_semantics=("parallel", "parallel"),
            vmem_limit_bytes=vmem_limit),
    )(yph, w2, s2, b2, xs, ws, ss, bs)


def _call_stage2_identity(yph, w2, s2, b2, xs, tmr, n_t, Wo, vmem_limit):
    N, R, Wph, P = yph.shape
    Cin = xs.shape[-1]
    return pl.pallas_call(
        functools.partial(_stage2_identity_kernel, tmr, Wo),
        out_shape=jax.ShapeDtypeStruct((N, n_t * tmr * Wo, P), jnp.float32),
        grid=(N, n_t),
        in_specs=[
            pl.BlockSpec((1, R, Wph, P), lambda n, m: (n, 0, 0, 0)),
            pl.BlockSpec(w2.shape, lambda n, m: (0, 0, 0)),
            pl.BlockSpec((1, P), lambda n, m: (0, 0)),
            pl.BlockSpec((1, P), lambda n, m: (0, 0)),
            pl.BlockSpec((1, tmr * Wo, Cin), lambda n, m: (n, m, 0)),
        ],
        out_specs=pl.BlockSpec((1, tmr * Wo, P), lambda n, m: (n, m, 0)),
        compiler_params=pltpu.CompilerParams(
            dimension_semantics=("parallel", "parallel"),
            vmem_limit_bytes=vmem_limit),
    )(yph, w2, s2, b2, xs)


# --------------------------------- forward ------------------------------------

def dilate_block_forward(x_nchw, params, stride=(1, 1), out_format="NCHW"):
    x = jnp.transpose(x_nchw, (0, 2, 3, 1)).astype(jnp.float32)      # NHWC
    N, H, W, Cin = x.shape
    P = params["w2"].shape[-1]
    sh, sw = stride
    Ho, Wo = (H - 1) // sh + 1, (W - 1) // sw + 1
    cdt = _COMPUTE_DTYPE

    cap = _tpu_vmem_capacity()
    big = cap >= (120 << 20)
    vmem_limit = _vmem_limit_bytes(cap)

    # --- stage 1: three dilated 3x3 convs + BN1 + ReLU (one Pallas kernel) ------
    tmr1, nt1 = _pick_row_tiles(H, W, N, big)
    Ht1 = tmr1 * nt1
    xp1 = jnp.pad(x.astype(cdt), ((0, 0), (3, Ht1 + 3 - H), (3, 3), (0, 0)))
    w11 = params["w1_1"].reshape(9, Cin, -1).astype(cdt)
    w12 = params["w1_2"].reshape(9, Cin, -1).astype(cdt)
    w13 = params["w1_3"].reshape(9, Cin, -1).astype(cdt)

    y = _call_stage1(xp1, w11, w12, w13, params["s1"], params["b1"],
                     tmr1, nt1, W, vmem_limit)
    y = y[:, :H * W, :].reshape(N, H, W, P)          # drop padded rows (bf16 activation)

    # --- stage 2: conv2 + BN2 + shortcut + ReLU (one Pallas kernel) -------------
    tmr2, nt2 = _pick_row_tiles(Ho, Wo, N, big)
    Ht2 = tmr2 * nt2
    hph, wph = Ht2 + 2, Wo + 2
    # zero-pad ("SAME") and stride-phase decompose so every in-kernel tap is contiguous;
    # for stride (1,1) this is just the padded activation itself.
    yp = jnp.pad(y, ((0, 0), (1, hph * sh - 1 - H), (1, wph * sw - 1 - W), (0, 0)))
    yph = (yp.reshape(N, hph, sh, wph, sw, P)
             .transpose(0, 2, 4, 1, 3, 5)
             .reshape(N, sh * sw * hph, wph, P))
    w2 = params["w2"].reshape(9, P, P).astype(cdt)

    if "ws" in params:                               # conv1x1 + BN shortcut
        xs = x[:, ::sh, ::sw, :].astype(cdt)         # (N, Ho, Wo, Cin)
        xs = jnp.pad(xs, ((0, 0), (0, Ht2 - Ho), (0, 0), (0, 0))).reshape(N, Ht2 * Wo, Cin)
        ws = params["ws"].reshape(Cin, P).astype(cdt)
        out = _call_stage2_conv(yph, w2, params["s2"], params["b2"],
                                xs, ws, params["ss"], params["bs"],
                                tmr2, nt2, Wo, sh, sw, hph, vmem_limit)
    else:                                            # identity shortcut (Cin == P, stride 1)
        xs = jnp.pad(x, ((0, 0), (0, Ht2 - H), (0, 0), (0, 0))).reshape(N, Ht2 * W, Cin)
        out = _call_stage2_identity(yph, w2, params["s2"], params["b2"],
                                    xs, tmr2, nt2, Wo, vmem_limit)

    out = out[:, :Ho * Wo, :].reshape(N, Ho, Wo, P)
    if out_format == "NHWC":                         # skip the layout pass if the chain stays NHWC
        return out
    return jnp.transpose(out, (0, 3, 1, 2))          # back to NCHW (PyTorch semantics)


# --------------------------- params & reference --------------------------------

def init_params(key, in_planes, planes, stride):
    ks = jax.random.split(key, 8)

    def w(k, shape):
        return 0.1 * jax.random.normal(k, shape, jnp.float32)

    def bn(k, c, eps=1e-5):
        k1, k2, k3, k4 = jax.random.split(k, 4)
        gamma = 1.0 + 0.1 * jax.random.normal(k1, (c,), jnp.float32)
        beta = 0.1 * jax.random.normal(k2, (c,), jnp.float32)
        mean = 0.1 * jax.random.normal(k3, (c,), jnp.float32)
        var = 1.0 + 0.1 * jax.random.uniform(k4, (c,), jnp.float32)
        scale = gamma / jnp.sqrt(var + eps)
        bias = beta - mean * scale
        return scale.reshape(1, c), bias.reshape(1, c)

    p = {
        "w1_1": w(ks[0], (3, 3, in_planes, planes // 2)),   # HWIO
        "w1_2": w(ks[1], (3, 3, in_planes, planes // 4)),
        "w1_3": w(ks[2], (3, 3, in_planes, planes // 4)),
        "w2":   w(ks[3], (3, 3, planes, planes)),
    }
    p["s1"], p["b1"] = bn(ks[4], planes)
    p["s2"], p["b2"] = bn(ks[5], planes)
    if stride != (1, 1) or in_planes != planes:
        p["ws"] = w(ks[6], (1, 1, in_planes, planes))
        p["ss"], p["bs"] = bn(ks[7], planes)
    return p


def _reference_forward(x_nchw, p, stride):
    x = jnp.transpose(x_nchw, (0, 2, 3, 1)).astype(jnp.float32)
    hp = jax.lax.Precision.HIGHEST

    def conv(v, wt, d, s, pad):
        return lax.conv_general_dilated(
            v, wt, window_strides=s, padding=[(pad, pad), (pad, pad)],
            rhs_dilation=(d, d), dimension_numbers=("NHWC", "HWIO", "NHWC"),
            precision=hp)

    out = jnp.concatenate([conv(x, p["w1_1"], 1, (1, 1), 1),
                           conv(x, p["w1_2"], 2, (1, 1), 2),
                           conv(x, p["w1_3"], 3, (1, 1), 3)], axis=-1)
    out = jax.nn.relu(out * p["s1"].reshape(1, 1, 1, -1) + p["b1"].reshape(1, 1, 1, -1))
    out = conv(out, p["w2"], 1, stride, 1)
    out = out * p["s2"].reshape(1, 1, 1, -1) + p["b2"].reshape(1, 1, 1, -1)
    if "ws" in p:
        sc = lax.conv_general_dilated(x, p["ws"], stride, padding=[(0, 0), (0, 0)],
                                      dimension_numbers=("NHWC", "HWIO", "NHWC"),
                                      precision=hp)
        sc = sc * p["ss"].reshape(1, 1, 1, -1) + p["bs"].reshape(1, 1, 1, -1)
    else:
        sc = x
    out = jax.nn.relu(out + sc)
    return jnp.transpose(out, (0, 3, 1, 2))


# ----------------------------------- main --------------------------------------

if __name__ == "__main__":
    key = jax.random.PRNGKey(0)
    N, H, W = 2, 16, 16
    configs = [
        dict(in_planes=4, planes=8, stride=(1, 1)),   # conv1x1 + BN shortcut
        dict(in_planes=8, planes=8, stride=(1, 1)),   # identity shortcut fast path
        dict(in_planes=4, planes=8, stride=(2, 2)),   # strided conv shortcut (phase path)
    ]
    for cfg in configs:
        kx, kp, key = jax.random.split(key, 3)
        x = jax.random.normal(kx, (N, cfg["in_planes"], H, W), jnp.float32)
        params = init_params(kp, cfg["in_planes"], cfg["planes"], cfg["stride"])

        out = dilate_block_forward(x, params, stride=cfg["stride"])
        out = jax.block_until_ready(out)
        sh, sw = cfg["stride"]
        expected = (N, cfg["planes"], (H - 1) // sh + 1, (W - 1) // sw + 1)
        assert out.shape == expected, (out.shape, expected)

        ref = jax.block_until_ready(_reference_forward(x, params, cfg["stride"]))
        # bf16 MXU inputs / bf16 stage-1 activation with f32 accumulation.
        np.testing.assert_allclose(np.asarray(out), np.asarray(ref), rtol=2e-2, atol=2e-2)

    print("KERNEL_OK")
</pallas_src>

<mosaic_0001>
module attributes {stable_mosaic.version = 11 : i64} {
  func.func @_stage1_kernel(%arg0: i32, %arg1: i32, %arg2: memref<1x22x22x4xbf16, #tpu.memory_space<vmem>>, %arg3: memref<9x4x4xbf16, #tpu.memory_space<vmem>>, %arg4: memref<9x4x2xbf16, #tpu.memory_space<vmem>>, %arg5: memref<9x4x2xbf16, #tpu.memory_space<vmem>>, %arg6: memref<1x8xf32, #tpu.memory_space<vmem>>, %arg7: memref<1x8xf32, #tpu.memory_space<vmem>>, %arg8: memref<1x128x8xbf16, #tpu.memory_space<vmem>>) attributes {dimension_semantics = [#tpu.dimension_semantics<parallel>, #tpu.dimension_semantics<parallel>], iteration_bounds = array<i64: 2, 2>, scalar_prefetch = 0 : i64, scratch_operands = 0 : i64, tpu.core_type = #tpu.core_type<tc>, window_params = [{transform_indices = @transform_0, window_bounds = array<i64: 1, 22, 22, 4>}, {pipeline_mode = #tpu.pipeline_mode<synchronous>, transform_indices = @transform_1, window_bounds = array<i64: 9, 4, 4>}, {pipeline_mode = #tpu.pipeline_mode<synchronous>, transform_indices = @transform_2, window_bounds = array<i64: 9, 4, 2>}, {pipeline_mode = #tpu.pipeline_mode<synchronous>, transform_indices = @transform_3, window_bounds = array<i64: 9, 4, 2>}, {pipeline_mode = #tpu.pipeline_mode<synchronous>, transform_indices = @transform_4, window_bounds = array<i64: 1, 8>}, {pipeline_mode = #tpu.pipeline_mode<synchronous>, transform_indices = @transform_5, window_bounds = array<i64: 1, 8>}, {transform_indices = @transform_6, window_bounds = array<i64: 1, 128, 8>}]} {
    %c8_i32 = arith.constant 8 : i32
    %0 = arith.muli %arg1, %c8_i32 : i32
    %cst = arith.constant 0.000000e+00 : f32
    %1 = vector.broadcast %cst : f32 to vector<128x4xf32>
    %c3_i32 = arith.constant 3 : i32
    %2 = arith.addi %0, %c3_i32 : i32
    %c-1_i32 = arith.constant -1 : i32
    %3 = arith.addi %2, %c-1_i32 : i32
    %c0 = arith.constant 0 : index
    %4 = arith.index_cast %3 : i32 to index
    %c2 = arith.constant 2 : index
    %c0_0 = arith.constant 0 : index
    %5 = vector.load %arg2[%c0, %4, %c2, %c0_0] : memref<1x22x22x4xbf16, #tpu.memory_space<vmem>>, vector<1x8x16x4xbf16>
    %6 = vector.shape_cast %5 : vector<1x8x16x4xbf16> to vector<8x16x4xbf16>
    %7 = vector.shape_cast %6 : vector<8x16x4xbf16> to vector<128x4xbf16>
    %c0_1 = arith.constant 0 : index
    %c0_2 = arith.constant 0 : index
    %c0_3 = arith.constant 0 : index
    %8 = vector.load %arg3[%c0_1, %c0_2, %c0_3] : memref<9x4x4xbf16, #tpu.memory_space<vmem>>, vector<1x4x4xbf16>
    %9 = vector.shape_cast %8 : vector<1x4x4xbf16> to vector<4x4xbf16>
    %cst_4 = arith.constant dense<0.000000e+00> : vector<128x4xf32>
    %10 = tpu.matmul %7, %9, %cst_4 {dimension_numbers = #tpu.dot_dimension_numbers<[1], [0], [0], [1], [0, 0, 1, 1], [], []>} : vector<128x4xbf16>, vector<4x4xbf16>, vector<128x4xf32> -> vector<128x4xf32>
    %11 = arith.addf %1, %10 : vector<128x4xf32>
    %c3_i32_5 = arith.constant 3 : i32
    %12 = arith.addi %0, %c3_i32_5 : i32
    %c-1_i32_6 = arith.constant -1 : i32
    %13 = arith.addi %12, %c-1_i32_6 : i32
    %c0_7 = arith.constant 0 : index
    %14 = arith.index_cast %13 : i32 to index
    %c3 = arith.constant 3 : index
    %c0_8 = arith.constant 0 : index
    %15 = vector.load %arg2[%c0_7, %14, %c3, %c0_8] : memref<1x22x22x4xbf16, #tpu.memory_space<vmem>>, vector<1x8x16x4xbf16>
    %16 = vector.shape_cast %15 : vector<1x8x16x4xbf16> to vector<8x16x4xbf16>
    %17 = vector.shape_cast %16 : vector<8x16x4xbf16> to vector<128x4xbf16>
    %c1 = arith.constant 1 : index
    %c0_9 = arith.constant 0 : index
    %c0_10 = arith.constant 0 : index
    %18 = vector.load %arg3[%c1, %c0_9, %c0_10] : memref<9x4x4xbf16, #tpu.memory_space<vmem>>, vector<1x4x4xbf16>
    %19 = vector.shape_cast %18 : vector<1x4x4xbf16> to vector<4x4xbf16>
    %cst_11 = arith.constant dense<0.000000e+00> : vector<128x4xf32>
    %20 = tpu.matmul %17, %19, %cst_11 {dimension_numbers = #tpu.dot_dimension_numbers<[1], [0], [0], [1], [0, 0, 1, 1], [], []>} : vector<128x4xbf16>, vector<4x4xbf16>, vector<128x4xf32> -> vector<128x4xf32>
    %21 = arith.addf %11, %20 : vector<128x4xf32>
    %c3_i32_12 = arith.constant 3 : i32
    %22 = arith.addi %0, %c3_i32_12 : i32
    %c-1_i32_13 = arith.constant -1 : i32
    %23 = arith.addi %22, %c-1_i32_13 : i32
    %c0_14 = arith.constant 0 : index
    %24 = arith.index_cast %23 : i32 to index
    %c4 = arith.constant 4 : index
    %c0_15 = arith.constant 0 : index
    %25 = vector.load %arg2[%c0_14, %24, %c4, %c0_15] : memref<1x22x22x4xbf16, #tpu.memory_space<vmem>>, vector<1x8x16x4xbf16>
    %26 = vector.shape_cast %25 : vector<1x8x16x4xbf16> to vector<8x16x4xbf16>
    %27 = vector.shape_cast %26 : vector<8x16x4xbf16> to vector<128x4xbf16>
    %c2_16 = arith.constant 2 : index
    %c0_17 = arith.constant 0 : index
    %c0_18 = arith.constant 0 : index
    %28 = vector.load %arg3[%c2_16, %c0_17, %c0_18] : memref<9x4x4xbf16, #tpu.memory_space<vmem>>, vector<1x4x4xbf16>
    %29 = vector.shape_cast %28 : vector<1x4x4xbf16> to vector<4x4xbf16>
    %cst_19 = arith.constant dense<0.000000e+00> : vector<128x4xf32>
    %30 = tpu.matmul %27, %29, %cst_19 {dimension_numbers = #tpu.dot_dimension_numbers<[1], [0], [0], [1], [0, 0, 1, 1], [], []>} : vector<128x4xbf16>, vector<4x4xbf16>, vector<128x4xf32> -> vector<128x4xf32>
    %31 = arith.addf %21, %30 : vector<128x4xf32>
    %c3_i32_20 = arith.constant 3 : i32
    %32 = arith.addi %0, %c3_i32_20 : i32
    %c0_i32 = arith.constant 0 : i32
    %33 = arith.addi %32, %c0_i32 : i32
    %c0_21 = arith.constant 0 : index
    %34 = arith.index_cast %33 : i32 to index
    %c2_22 = arith.constant 2 : index
    %c0_23 = arith.constant 0 : index
    %35 = vector.load %arg2[%c0_21, %34, %c2_22, %c0_23] : memref<1x22x22x4xbf16, #tpu.memory_space<vmem>>, vector<1x8x16x4xbf16>
    %36 = vector.shape_cast %35 : vector<1x8x16x4xbf16> to vector<8x16x4xbf16>
    %37 = vector.shape_cast %36 : vector<8x16x4xbf16> to vector<128x4xbf16>
    %c3_24 = arith.constant 3 : index
    %c0_25 = arith.constant 0 : index
    %c0_26 = arith.constant 0 : index
    %38 = vector.load %arg3[%c3_24, %c0_25, %c0_26] : memref<9x4x4xbf16, #tpu.memory_space<vmem>>, vector<1x4x4xbf16>
    %39 = vector.shape_cast %38 : vector<1x4x4xbf16> to vector<4x4xbf16>
    %cst_27 = arith.constant dense<0.000000e+00> : vector<128x4xf32>
    %40 = tpu.matmul %37, %39, %cst_27 {dimension_numbers = #tpu.dot_dimension_numbers<[1], [0], [0], [1], [0, 0, 1, 1], [], []>} : vector<128x4xbf16>, vector<4x4xbf16>, vector<128x4xf32> -> vector<128x4xf32>
    %41 = arith.addf %31, %40 : vector<128x4xf32>
    %c3_i32_28 = arith.constant 3 : i32
    %42 = arith.addi %0, %c3_i32_28 : i32
    %c0_i32_29 = arith.constant 0 : i32
    %43 = arith.addi %42, %c0_i32_29 : i32
    %c0_30 = arith.constant 0 : index
    %44 = arith.index_cast %43 : i32 to index
    %c3_31 = arith.constant 3 : index
    %c0_32 = arith.constant 0 : index
    %45 = vector.load %arg2[%c0_30, %44, %c3_31, %c0_32] : memref<1x22x22x4xbf16, #tpu.memory_space<vmem>>, vector<1x8x16x4xbf16>
    %46 = vector.shape_cast %45 : vector<1x8x16x4xbf16> to vector<8x16x4xbf16>
    %47 = vector.shape_cast %46 : vector<8x16x4xbf16> to vector<128x4xbf16>
    %c4_33 = arith.constant 4 : index
    %c0_34 = arith.constant 0 : index
    %c0_35 = arith.constant 0 : index
    %48 = vector.load %arg3[%c4_33, %c0_34, %c0_35] : memref<9x4x4xbf16, #tpu.memory_space<vmem>>, vector<1x4x4xbf16>
    %49 = vector.shape_cast %48 : vector<1x4x4xbf16> to vector<4x4xbf16>
    %cst_36 = arith.constant dense<0.000000e+00> : vector<128x4xf32>
    %50 = tpu.matmul %47, %49, %cst_36 {dimension_numbers = #tpu.dot_dimension_numbers<[1], [0], [0], [1], [0, 0, 1, 1], [], []>} : vector<128x4xbf16>, vector<4x4xbf16>, vector<128x4xf32> -> vector<128x4xf32>
    %51 = arith.addf %41, %50 : vector<128x4xf32>
    %c3_i32_37 = arith.constant 3 : i32
    %52 = arith.addi %0, %c3_i32_37 : i32
    %c0_i32_38 = arith.constant 0 : i32
    %53 = arith.addi %52, %c0_i32_38 : i32
    %c0_39 = arith.constant 0 : index
    %54 = arith.index_cast %53 : i32 to index
    %c4_40 = arith.constant 4 : index
    %c0_41 = arith.constant 0 : index
    %55 = vector.load %arg2[%c0_39, %54, %c4_40, %c0_41] : memref<1x22x22x4xbf16, #tpu.memory_space<vmem>>, vector<1x8x16x4xbf16>
    %56 = vector.shape_cast %55 : vector<1x8x16x4xbf16> to vector<8x16x4xbf16>
    %57 = vector.shape_cast %56 : vector<8x16x4xbf16> to vector<128x4xbf16>
    %c5 = arith.constant 5 : index
    %c0_42 = arith.constant 0 : index
    %c0_43 = arith.constant 0 : index
    %58 = vector.load %arg3[%c5, %c0_42, %c0_43] : memref<9x4x4xbf16, #tpu.memory_space<vmem>>, vector<1x4x4xbf16>
    %59 = vector.shape_cast %58 : vector<1x4x4xbf16> to vector<4x4xbf16>
    %cst_44 = arith.constant dense<0.000000e+00> : vector<128x4xf32>
    %60 = tpu.matmul %57, %59, %cst_44 {dimension_numbers = #tpu.dot_dimension_numbers<[1], [0], [0], [1], [0, 0, 1, 1], [], []>} : vector<128x4xbf16>, vector<4x4xbf16>, vector<128x4xf32> -> vector<128x4xf32>
    %61 = arith.addf %51, %60 : vector<128x4xf32>
    %c3_i32_45 = arith.constant 3 : i32
    %62 = arith.addi %0, %c3_i32_45 : i32
    %c1_i32 = arith.constant 1 : i32
    %63 = arith.addi %62, %c1_i32 : i32
    %c0_46 = arith.constant 0 : index
    %64 = arith.index_cast %63 : i32 to index
    %c2_47 = arith.constant 2 : index
    %c0_48 = arith.constant 0 : index
    %65 = vector.load %arg2[%c0_46, %64, %c2_47, %c0_48] : memref<1x22x22x4xbf16, #tpu.memory_space<vmem>>, vector<1x8x16x4xbf16>
    %66 = vector.shape_cast %65 : vector<1x8x16x4xbf16> to vector<8x16x4xbf16>
    %67 = vector.shape_cast %66 : vector<8x16x4xbf16> to vector<128x4xbf16>
    %c6 = arith.constant 6 : index
    %c0_49 = arith.constant 0 : index
    %c0_50 = arith.constant 0 : index
    %68 = vector.load %arg3[%c6, %c0_49, %c0_50] : memref<9x4x4xbf16, #tpu.memory_space<vmem>>, vector<1x4x4xbf16>
    %69 = vector.shape_cast %68 : vector<1x4x4xbf16> to vector<4x4xbf16>
    %cst_51 = arith.constant dense<0.000000e+00> : vector<128x4xf32>
    %70 = tpu.matmul %67, %69, %cst_51 {dimension_numbers = #tpu.dot_dimension_numbers<[1], [0], [0], [1], [0, 0, 1, 1], [], []>} : vector<128x4xbf16>, vector<4x4xbf16>, vector<128x4xf32> -> vector<128x4xf32>
    %71 = arith.addf %61, %70 : vector<128x4xf32>
    %c3_i32_52 = arith.constant 3 : i32
    %72 = arith.addi %0, %c3_i32_52 : i32
    %c1_i32_53 = arith.constant 1 : i32
    %73 = arith.addi %72, %c1_i32_53 : i32
    %c0_54 = arith.constant 0 : index
    %74 = arith.index_cast %73 : i32 to index
    %c3_55 = arith.constant 3 : index
    %c0_56 = arith.constant 0 : index
    %75 = vector.load %arg2[%c0_54, %74, %c3_55, %c0_56] : memref<1x22x22x4xbf16, #tpu.memory_space<vmem>>, vector<1x8x16x4xbf16>
    %76 = vector.shape_cast %75 : vector<1x8x16x4xbf16> to vector<8x16x4xbf16>
    %77 = vector.shape_cast %76 : vector<8x16x4xbf16> to vector<128x4xbf16>
    %c7 = arith.constant 7 : index
    %c0_57 = arith.constant 0 : index
    %c0_58 = arith.constant 0 : index
    %78 = vector.load %arg3[%c7, %c0_57, %c0_58] : memref<9x4x4xbf16, #tpu.memory_space<vmem>>, vector<1x4x4xbf16>
    %79 = vector.shape_cast %78 : vector<1x4x4xbf16> to vector<4x4xbf16>
    %cst_59 = arith.constant dense<0.000000e+00> : vector<128x4xf32>
    %80 = tpu.matmul %77, %79, %cst_59 {dimension_numbers = #tpu.dot_dimension_numbers<[1], [0], [0], [1], [0, 0, 1, 1], [], []>} : vector<128x4xbf16>, vector<4x4xbf16>, vector<128x4xf32> -> vector<128x4xf32>
    %81 = arith.addf %71, %80 : vector<128x4xf32>
    %c3_i32_60 = arith.constant 3 : i32
    %82 = arith.addi %0, %c3_i32_60 : i32
    %c1_i32_61 = arith.constant 1 : i32
    %83 = arith.addi %82, %c1_i32_61 : i32
    %c0_62 = arith.constant 0 : index
    %84 = arith.index_cast %83 : i32 to index
    %c4_63 = arith.constant 4 : index
    %c0_64 = arith.constant 0 : index
    %85 = vector.load %arg2[%c0_62, %84, %c4_63, %c0_64] : memref<1x22x22x4xbf16, #tpu.memory_space<vmem>>, vector<1x8x16x4xbf16>
    %86 = vector.shape_cast %85 : vector<1x8x16x4xbf16> to vector<8x16x4xbf16>
    %87 = vector.shape_cast %86 : vector<8x16x4xbf16> to vector<128x4xbf16>
    %c8 = arith.constant 8 : index
    %c0_65 = arith.constant 0 : index
    %c0_66 = arith.constant 0 : index
    %88 = vector.load %arg3[%c8, %c0_65, %c0_66] : memref<9x4x4xbf16, #tpu.memory_space<vmem>>, vector<1x4x4xbf16>
    %89 = vector.shape_cast %88 : vector<1x4x4xbf16> to vector<4x4xbf16>
    %cst_67 = arith.constant dense<0.000000e+00> : vector<128x4xf32>
    %90 = tpu.matmul %87, %89, %cst_67 {dimension_numbers = #tpu.dot_dimension_numbers<[1], [0], [0], [1], [0, 0, 1, 1], [], []>} : vector<128x4xbf16>, vector<4x4xbf16>, vector<128x4xf32> -> vector<128x4xf32>
    %91 = arith.addf %81, %90 : vector<128x4xf32>
    %c0_68 = arith.constant 0 : index
    %c0_69 = arith.constant 0 : index
    %92 = vector.load %arg6[%c0_68, %c0_69] : memref<1x8xf32, #tpu.memory_space<vmem>>, vector<1x4xf32>
    %93 = vector.broadcast %92 : vector<1x4xf32> to vector<128x4xf32>
    %94 = arith.mulf %91, %93 : vector<128x4xf32>
    %c0_70 = arith.constant 0 : index
    %c0_71 = arith.constant 0 : index
    %95 = vector.load %arg7[%c0_70, %c0_71] : memref<1x8xf32, #tpu.memory_space<vmem>>, vector<1x4xf32>
    %96 = vector.broadcast %95 : vector<1x4xf32> to vector<128x4xf32>
    %97 = arith.addf %94, %96 : vector<128x4xf32>
    %cst_72 = arith.constant 0.000000e+00 : f32
    %98 = vector.broadcast %cst_72 : f32 to vector<128x4xf32>
    %99 = arith.maximumf %97, %98 : vector<128x4xf32>
    %100 = arith.truncf %99 : vector<128x4xf32> to vector<128x4xbf16>
    %c0_73 = arith.constant 0 : index
    %c0_74 = arith.constant 0 : index
    %c0_75 = arith.constant 0 : index
    %101 = vector.load %arg8[%c0_73, %c0_74, %c0_75] : memref<1x128x8xbf16, #tpu.memory_space<vmem>>, vector<1x128x4xbf16>
    %102 = vector.shape_cast %101 : vector<1x128x4xbf16> to vector<128x4xbf16>
    %103 = vector.shape_cast %100 : vector<128x4xbf16> to vector<1x128x4xbf16>
    tpu.vector_store %arg8[%c0_73, %c0_74, %c0_75], %103 {strides = array<i32>} : memref<1x128x8xbf16, #tpu.memory_space<vmem>>, vector<1x128x4xbf16>,
    %cst_76 = arith.constant 0.000000e+00 : f32
    %104 = vector.broadcast %cst_76 : f32 to vector<128x2xf32>
    %c3_i32_77 = arith.constant 3 : i32
    %105 = arith.addi %0, %c3_i32_77 : i32
    %c-2_i32 = arith.constant -2 : i32
    %106 = arith.addi %105, %c-2_i32 : i32
    %c0_78 = arith.constant 0 : index
    %107 = arith.index_cast %106 : i32 to index
    %c1_79 = arith.constant 1 : index
    %c0_80 = arith.constant 0 : index
    %108 = vector.load %arg2[%c0_78, %107, %c1_79, %c0_80] : memref<1x22x22x4xbf16, #tpu.memory_space<vmem>>, vector<1x8x16x4xbf16>
    %109 = vector.shape_cast %108 : vector<1x8x16x4xbf16> to vector<8x16x4xbf16>
    %110 = vector.shape_cast %109 : vector<8x16x4xbf16> to vector<128x4xbf16>
    %c0_81 = arith.constant 0 : index
    %c0_82 = arith.constant 0 : index
    %c0_83 = arith.constant 0 : index
    %111 = vector.load %arg4[%c0_81, %c0_82, %c0_83] : memref<9x4x2xbf16, #tpu.memory_space<vmem>>, vector<1x4x2xbf16>
    %112 = vector.shape_cast %111 : vector<1x4x2xbf16> to vector<4x2xbf16>
    %cst_84 = arith.constant dense<0.000000e+00> : vector<128x2xf32>
    %113 = tpu.matmul %110, %112, %cst_84 {dimension_numbers = #tpu.dot_dimension_numbers<[1], [0], [0], [1], [0, 0, 1, 1], [], []>} : vector<128x4xbf16>, vector<4x2xbf16>, vector<128x2xf32> -> vector<128x2xf32>
    %114 = arith.addf %104, %113 : vector<128x2xf32>
    %c3_i32_85 = arith.constant 3 : i32
    %115 = arith.addi %0, %c3_i32_85 : i32
    %c-2_i32_86 = arith.constant -2 : i32
    %116 = arith.addi %115, %c-2_i32_86 : i32
    %c0_87 = arith.constant 0 : index
    %117 = arith.index_cast %116 : i32 to index
    %c3_88 = arith.constant 3 : index
    %c0_89 = arith.constant 0 : index
    %118 = vector.load %arg2[%c0_87, %117, %c3_88, %c0_89] : memref<1x22x22x4xbf16, #tpu.memory_space<vmem>>, vector<1x8x16x4xbf16>
    %119 = vector.shape_cast %118 : vector<1x8x16x4xbf16> to vector<8x16x4xbf16>
    %120 = vector.shape_cast %119 : vector<8x16x4xbf16> to vector<128x4xbf16>
    %c1_90 = arith.constant 1 : index
    %c0_91 = arith.constant 0 : index
    %c0_92 = arith.constant 0 : index
    %121 = vector.load %arg4[%c1_90, %c0_91, %c0_92] : memref<9x4x2xbf16, #tpu.memory_space<vmem>>, vector<1x4x2xbf16>
    %122 = vector.shape_cast %121 : vector<1x4x2xbf16> to vector<4x2xbf16>
    %cst_93 = arith.constant dense<0.000000e+00> : vector<128x2xf32>
    %123 = tpu.matmul %120, %122, %cst_93 {dimension_numbers = #tpu.dot_dimension_numbers<[1], [0], [0], [1], [0, 0, 1, 1], [], []>} : vector<128x4xbf16>, vector<4x2xbf16>, vector<128x2xf32> -> vector<128x2xf32>
    %124 = arith.addf %114, %123 : vector<128x2xf32>
    %c3_i32_94 = arith.constant 3 : i32
    %125 = arith.addi %0, %c3_i32_94 : i32
    %c-2_i32_95 = arith.constant -2 : i32
    %126 = arith.addi %125, %c-2_i32_95 : i32
    %c0_96 = arith.constant 0 : index
    %127 = arith.index_cast %126 : i32 to index
    %c5_97 = arith.constant 5 : index
    %c0_98 = arith.constant 0 : index
    %128 = vector.load %arg2[%c0_96, %127, %c5_97, %c0_98] : memref<1x22x22x4xbf16, #tpu.memory_space<vmem>>, vector<1x8x16x4xbf16>
    %129 = vector.shape_cast %128 : vector<1x8x16x4xbf16> to vector<8x16x4xbf16>
    %130 = vector.shape_cast %129 : vector<8x16x4xbf16> to vector<128x4xbf16>
    %c2_99 = arith.constant 2 : index
    %c0_100 = arith.constant 0 : index
    %c0_101 = arith.constant 0 : index
    %131 = vector.load %arg4[%c2_99, %c0_100, %c0_101] : memref<9x4x2xbf16, #tpu.memory_space<vmem>>, vector<1x4x2xbf16>
    %132 = vector.shape_cast %131 : vector<1x4x2xbf16> to vector<4x2xbf16>
    %cst_102 = arith.constant dense<0.000000e+00> : vector<128x2xf32>
    %133 = tpu.matmul %130, %132, %cst_102 {dimension_numbers = #tpu.dot_dimension_numbers<[1], [0], [0], [1], [0, 0, 1, 1], [], []>} : vector<128x4xbf16>, vector<4x2xbf16>, vector<128x2xf32> -> vector<128x2xf32>
    %134 = arith.addf %124, %133 : vector<128x2xf32>
    %c3_i32_103 = arith.constant 3 : i32
    %135 = arith.addi %0, %c3_i32_103 : i32
    %c0_i32_104 = arith.constant 0 : i32
    %136 = arith.addi %135, %c0_i32_104 : i32
    %c0_105 = arith.constant 0 : index
    %137 = arith.index_cast %136 : i32 to index
    %c1_106 = arith.constant 1 : index
    %c0_107 = arith.constant 0 : index
    %138 = vector.load %arg2[%c0_105, %137, %c1_106, %c0_107] : memref<1x22x22x4xbf16, #tpu.memory_space<vmem>>, vector<1x8x16x4xbf16>
    %139 = vector.shape_cast %138 : vector<1x8x16x4xbf16> to vector<8x16x4xbf16>
    %140 = vector.shape_cast %139 : vector<8x16x4xbf16> to vector<128x4xbf16>
    %c3_108 = arith.constant 3 : index
    %c0_109 = arith.constant 0 : index
    %c0_110 = arith.constant 0 : index
    %141 = vector.load %arg4[%c3_108, %c0_109, %c0_110] : memref<9x4x2xbf16, #tpu.memory_space<vmem>>, vector<1x4x2xbf16>
    %142 = vector.shape_cast %141 : vector<1x4x2xbf16> to vector<4x2xbf16>
    %cst_111 = arith.constant dense<0.000000e+00> : vector<128x2xf32>
    %143 = tpu.matmul %140, %142, %cst_111 {dimension_numbers = #tpu.dot_dimension_numbers<[1], [0], [0], [1], [0, 0, 1, 1], [], []>} : vector<128x4xbf16>, vector<4x2xbf16>, vector<128x2xf32> -> vector<128x2xf32>
    %144 = arith.addf %134, %143 : vector<128x2xf32>
    %c3_i32_112 = arith.constant 3 : i32
    %145 = arith.addi %0, %c3_i32_112 : i32
    %c0_i32_113 = arith.constant 0 : i32
    %146 = arith.addi %145, %c0_i32_113 : i32
    %c0_114 = arith.constant 0 : index
    %147 = arith.index_cast %146 : i32 to index
    %c3_115 = arith.constant 3 : index
    %c0_116 = arith.constant 0 : index
    %148 = vector.load %arg2[%c0_114, %147, %c3_115, %c0_116] : memref<1x22x22x4xbf16, #tpu.memory_space<vmem>>, vector<1x8x16x4xbf16>
    %149 = vector.shape_cast %148 : vector<1x8x16x4xbf16> to vector<8x16x4xbf16>
    %150 = vector.shape_cast %149 : vector<8x16x4xbf16> to vector<128x4xbf16>
    %c4_117 = arith.constant 4 : index
    %c0_118 = arith.constant 0 : index
    %c0_119 = arith.constant 0 : index
    %151 = vector.load %arg4[%c4_117, %c0_118, %c0_119] : memref<9x4x2xbf16, #tpu.memory_space<vmem>>, vector<1x4x2xbf16>
    %152 = vector.shape_cast %151 : vector<1x4x2xbf16> to vector<4x2xbf16>
    %cst_120 = arith.constant dense<0.000000e+00> : vector<128x2xf32>
    %153 = tpu.matmul %150, %152, %cst_120 {dimension_numbers = #tpu.dot_dimension_numbers<[1], [0], [0], [1], [0, 0, 1, 1], [], []>} : vector<128x4xbf16>, vector<4x2xbf16>, vector<128x2xf32> -> vector<128x2xf32>
    %154 = arith.addf %144, %153 : vector<128x2xf32>
    %c3_i32_121 = arith.constant 3 : i32
    %155 = arith.addi %0, %c3_i32_121 : i32
    %c0_i32_122 = arith.constant 0 : i32
    %156 = arith.addi %155, %c0_i32_122 : i32
    %c0_123 = arith.constant 0 : index
    %157 = arith.index_cast %156 : i32 to index
    %c5_124 = arith.constant 5 : index
    %c0_125 = arith.constant 0 : index
    %158 = vector.load %arg2[%c0_123, %157, %c5_124, %c0_125] : memref<1x22x22x4xbf16, #tpu.memory_space<vmem>>, vector<1x8x16x4xbf16>
    %159 = vector.shape_cast %158 : vector<1x8x16x4xbf16> to vector<8x16x4xbf16>
    %160 = vector.shape_cast %159 : vector<8x16x4xbf16> to vector<128x4xbf16>
    %c5_126 = arith.constant 5 : index
    %c0_127 = arith.constant 0 : index
    %c0_128 = arith.constant 0 : index
    %161 = vector.load %arg4[%c5_126, %c0_127, %c0_128] : memref<9x4x2xbf16, #tpu.memory_space<vmem>>, vector<1x4x2xbf16>
    %162 = vector.shape_cast %161 : vector<1x4x2xbf16> to vector<4x2xbf16>
    %cst_129 = arith.constant dense<0.000000e+00> : vector<128x2xf32>
    %163 = tpu.matmul %160, %162, %cst_129 {dimension_numbers = #tpu.dot_dimension_numbers<[1], [0], [0], [1], [0, 0, 1, 1], [], []>} : vector<128x4xbf16>, vector<4x2xbf16>, vector<128x2xf32> -> vector<128x2xf32>
    %164 = arith.addf %154, %163 : vector<128x2xf32>
    %c3_i32_130 = arith.constant 3 : i32
    %165 = arith.addi %0, %c3_i32_130 : i32
    %c2_i32 = arith.constant 2 : i32
    %166 = arith.addi %165, %c2_i32 : i32
    %c0_131 = arith.constant 0 : index
    %167 = arith.index_cast %166 : i32 to index
    %c1_132 = arith.constant 1 : index
    %c0_133 = arith.constant 0 : index
    %168 = vector.load %arg2[%c0_131, %167, %c1_132, %c0_133] : memref<1x22x22x4xbf16, #tpu.memory_space<vmem>>, vector<1x8x16x4xbf16>
    %169 = vector.shape_cast %168 : vector<1x8x16x4xbf16> to vector<8x16x4xbf16>
    %170 = vector.shape_cast %169 : vector<8x16x4xbf16> to vector<128x4xbf16>
    %c6_134 = arith.constant 6 : index
    %c0_135 = arith.constant 0 : index
    %c0_136 = arith.constant 0 : index
    %171 = vector.load %arg4[%c6_134, %c0_135, %c0_136] : memref<9x4x2xbf16, #tpu.memory_space<vmem>>, vector<1x4x2xbf16>
    %172 = vector.shape_cast %171 : vector<1x4x2xbf16> to vector<4x2xbf16>
    %cst_137 = arith.constant dense<0.000000e+00> : vector<128x2xf32>
    %173 = tpu.matmul %170, %172, %cst_137 {dimension_numbers = #tpu.dot_dimension_numbers<[1], [0], [0], [1], [0, 0, 1, 1], [], []>} : vector<128x4xbf16>, vector<4x2xbf16>, vector<128x2xf32> -> vector<128x2xf32>
    %174 = arith.addf %164, %173 : vector<128x2xf32>
    %c3_i32_138 = arith.constant 3 : i32
    %175 = arith.addi %0, %c3_i32_138 : i32
    %c2_i32_139 = arith.constant 2 : i32
    %176 = arith.addi %175, %c2_i32_139 : i32
    %c0_140 = arith.constant 0 : index
    %177 = arith.index_cast %176 : i32 to index
    %c3_141 = arith.constant 3 : index
    %c0_142 = arith.constant 0 : index
    %178 = vector.load %arg2[%c0_140, %177, %c3_141, %c0_142] : memref<1x22x22x4xbf16, #tpu.memory_space<vmem>>, vector<1x8x16x4xbf16>
    %179 = vector.shape_cast %178 : vector<1x8x16x4xbf16> to vector<8x16x4xbf16>
    %180 = vector.shape_cast %179 : vector<8x16x4xbf16> to vector<128x4xbf16>
    %c7_143 = arith.constant 7 : index
    %c0_144 = arith.constant 0 : index
    %c0_145 = arith.constant 0 : index
    %181 = vector.load %arg4[%c7_143, %c0_144, %c0_145] : memref<9x4x2xbf16, #tpu.memory_space<vmem>>, vector<1x4x2xbf16>
    %182 = vector.shape_cast %181 : vector<1x4x2xbf16> to vector<4x2xbf16>
    %cst_146 = arith.constant dense<0.000000e+00> : vector<128x2xf32>
    %183 = tpu.matmul %180, %182, %cst_146 {dimension_numbers = #tpu.dot_dimension_numbers<[1], [0], [0], [1], [0, 0, 1, 1], [], []>} : vector<128x4xbf16>, vector<4x2xbf16>, vector<128x2xf32> -> vector<128x2xf32>
    %184 = arith.addf %174, %183 : vector<128x2xf32>
    %c3_i32_147 = arith.constant 3 : i32
    %185 = arith.addi %0, %c3_i32_147 : i32
    %c2_i32_148 = arith.constant 2 : i32
    %186 = arith.addi %185, %c2_i32_148 : i32
    %c0_149 = arith.constant 0 : index
    %187 = arith.index_cast %186 : i32 to index
    %c5_150 = arith.constant 5 : index
    %c0_151 = arith.constant 0 : index
    %188 = vector.load %arg2[%c0_149, %187, %c5_150, %c0_151] : memref<1x22x22x4xbf16, #tpu.memory_space<vmem>>, vector<1x8x16x4xbf16>
    %189 = vector.shape_cast %188 : vector<1x8x16x4xbf16> to vector<8x16x4xbf16>
    %190 = vector.shape_cast %189 : vector<8x16x4xbf16> to vector<128x4xbf16>
    %c8_152 = arith.constant 8 : index
    %c0_153 = arith.constant 0 : index
    %c0_154 = arith.constant 0 : index
    %191 = vector.load %arg4[%c8_152, %c0_153, %c0_154] : memref<9x4x2xbf16, #tpu.memory_space<vmem>>, vector<1x4x2xbf16>
    %192 = vector.shape_cast %191 : vector<1x4x2xbf16> to vector<4x2xbf16>
    %cst_155 = arith.constant dense<0.000000e+00> : vector<128x2xf32>
    %193 = tpu.matmul %190, %192, %cst_155 {dimension_numbers = #tpu.dot_dimension_numbers<[1], [0], [0], [1], [0, 0, 1, 1], [], []>} : vector<128x4xbf16>, vector<4x2xbf16>, vector<128x2xf32> -> vector<128x2xf32>
    %194 = arith.addf %184, %193 : vector<128x2xf32>
    %c0_156 = arith.constant 0 : index
    %c4_157 = arith.constant 4 : index
    %195 = vector.load %arg6[%c0_156, %c4_157] : memref<1x8xf32, #tpu.memory_space<vmem>>, vector<1x2xf32>
    %196 = vector.broadcast %195 : vector<1x2xf32> to vector<128x2xf32>
    %197 = arith.mulf %194, %196 : vector<128x2xf32>
    %c0_158 = arith.constant 0 : index
    %c4_159 = arith.constant 4 : index
    %198 = vector.load %arg7[%c0_158, %c4_159] : memref<1x8xf32, #tpu.memory_space<vmem>>, vector<1x2xf32>
    %199 = vector.broadcast %198 : vector<1x2xf32> to vector<128x2xf32>
    %200 = arith.addf %197, %199 : vector<128x2xf32>
    %cst_160 = arith.constant 0.000000e+00 : f32
    %201 = vector.broadcast %cst_160 : f32 to vector<128x2xf32>
    %202 = arith.maximumf %200, %201 : vector<128x2xf32>
    %203 = arith.truncf %202 : vector<128x2xf32> to vector<128x2xbf16>
    %c0_161 = arith.constant 0 : index
    %c0_162 = arith.constant 0 : index
    %c4_163 = arith.constant 4 : index
    %204 = vector.load %arg8[%c0_161, %c0_162, %c4_163] : memref<1x128x8xbf16, #tpu.memory_space<vmem>>, vector<1x128x2xbf16>
    %205 = vector.shape_cast %204 : vector<1x128x2xbf16> to vector<128x2xbf16>
    %206 = vector.shape_cast %203 : vector<128x2xbf16> to vector<1x128x2xbf16>
    tpu.vector_store %arg8[%c0_161, %c0_162, %c4_163], %206 {strides = array<i32>} : memref<1x128x8xbf16, #tpu.memory_space<vmem>>, vector<1x128x2xbf16>,
    %cst_164 = arith.constant 0.000000e+00 : f32
    %207 = vector.broadcast %cst_164 : f32 to vector<128x2xf32>
    %c3_i32_165 = arith.constant 3 : i32
    %208 = arith.addi %0, %c3_i32_165 : i32
    %c-3_i32 = arith.constant -3 : i32
    %209 = arith.addi %208, %c-3_i32 : i32
    %c0_166 = arith.constant 0 : index
    %210 = arith.index_cast %209 : i32 to index
    %c0_167 = arith.constant 0 : index
    %c0_168 = arith.constant 0 : index
    %211 = vector.load %arg2[%c0_166, %210, %c0_167, %c0_168] : memref<1x22x22x4xbf16, #tpu.memory_space<vmem>>, vector<1x8x16x4xbf16>
    %212 = vector.shape_cast %211 : vector<1x8x16x4xbf16> to vector<8x16x4xbf16>
    %213 = vector.shape_cast %212 : vector<8x16x4xbf16> to vector<128x4xbf16>
    %c0_169 = arith.constant 0 : index
    %c0_170 = arith.constant 0 : index
    %c0_171 = arith.constant 0 : index
    %214 = vector.load %arg5[%c0_169, %c0_170, %c0_171] : memref<9x4x2xbf16, #tpu.memory_space<vmem>>, vector<1x4x2xbf16>
    %215 = vector.shape_cast %214 : vector<1x4x2xbf16> to vector<4x2xbf16>
    %cst_172 = arith.constant dense<0.000000e+00> : vector<128x2xf32>
    %216 = tpu.matmul %213, %215, %cst_172 {dimension_numbers = #tpu.dot_dimension_numbers<[1], [0], [0], [1], [0, 0, 1, 1], [], []>} : vector<128x4xbf16>, vector<4x2xbf16>, vector<128x2xf32> -> vector<128x2xf32>
    %217 = arith.addf %207, %216 : vector<128x2xf32>
    %c3_i32_173 = arith.constant 3 : i32
    %218 = arith.addi %0, %c3_i32_173 : i32
    %c-3_i32_174 = arith.constant -3 : i32
    %219 = arith.addi %218, %c-3_i32_174 : i32
    %c0_175 = arith.constant 0 : index
    %220 = arith.index_cast %219 : i32 to index
    %c3_176 = arith.constant 3 : index
    %c0_177 = arith.constant 0 : index
    %221 = vector.load %arg2[%c0_175, %220, %c3_176, %c0_177] : memref<1x22x22x4xbf16, #tpu.memory_space<vmem>>, vector<1x8x16x4xbf16>
    %222 = vector.shape_cast %221 : vector<1x8x16x4xbf16> to vector<8x16x4xbf16>
    %223 = vector.shape_cast %222 : vector<8x16x4xbf16> to vector<128x4xbf16>
    %c1_178 = arith.constant 1 : index
    %c0_179 = arith.constant 0 : index
    %c0_180 = arith.constant 0 : index
    %224 = vector.load %arg5[%c1_178, %c0_179, %c0_180] : memref<9x4x2xbf16, #tpu.memory_space<vmem>>, vector<1x4x2xbf16>
    %225 = vector.shape_cast %224 : vector<1x4x2xbf16> to vector<4x2xbf16>
    %cst_181 = arith.constant dense<0.000000e+00> : vector<128x2xf32>
    %226 = tpu.matmul %223, %225, %cst_181 {dimension_numbers = #tpu.dot_dimension_numbers<[1], [0], [0], [1], [0, 0, 1, 1], [], []>} : vector<128x4xbf16>, vector<4x2xbf16>, vector<128x2xf32> -> vector<128x2xf32>
    %227 = arith.addf %217, %226 : vector<128x2xf32>
    %c3_i32_182 = arith.constant 3 : i32
    %228 = arith.addi %0, %c3_i32_182 : i32
    %c-3_i32_183 = arith.constant -3 : i32
    %229 = arith.addi %228, %c-3_i32_183 : i32
    %c0_184 = arith.constant 0 : index
    %230 = arith.index_cast %229 : i32 to index
    %c6_185 = arith.constant 6 : index
    %c0_186 = arith.constant 0 : index
    %231 = vector.load %arg2[%c0_184, %230, %c6_185, %c0_186] : memref<1x22x22x4xbf16, #tpu.memory_space<vmem>>, vector<1x8x16x4xbf16>
    %232 = vector.shape_cast %231 : vector<1x8x16x4xbf16> to vector<8x16x4xbf16>
    %233 = vector.shape_cast %232 : vector<8x16x4xbf16> to vector<128x4xbf16>
    %c2_187 = arith.constant 2 : index
    %c0_188 = arith.constant 0 : index
    %c0_189 = arith.constant 0 : index
    %234 = vector.load %arg5[%c2_187, %c0_188, %c0_189] : memref<9x4x2xbf16, #tpu.memory_space<vmem>>, vector<1x4x2xbf16>
    %235 = vector.shape_cast %234 : vector<1x4x2xbf16> to vector<4x2xbf16>
    %cst_190 = arith.constant dense<0.000000e+00> : vector<128x2xf32>
    %236 = tpu.matmul %233, %235, %cst_190 {dimension_numbers = #tpu.dot_dimension_numbers<[1], [0], [0], [1], [0, 0, 1, 1], [], []>} : vector<128x4xbf16>, vector<4x2xbf16>, vector<128x2xf32> -> vector<128x2xf32>
    %237 = arith.addf %227, %236 : vector<128x2xf32>
    %c3_i32_191 = arith.constant 3 : i32
    %238 = arith.addi %0, %c3_i32_191 : i32
    %c0_i32_192 = arith.constant 0 : i32
    %239 = arith.addi %238, %c0_i32_192 : i32
    %c0_193 = arith.constant 0 : index
    %240 = arith.index_cast %239 : i32 to index
    %c0_194 = arith.constant 0 : index
    %c0_195 = arith.constant 0 : index
    %241 = vector.load %arg2[%c0_193, %240, %c0_194, %c0_195] : memref<1x22x22x4xbf16, #tpu.memory_space<vmem>>, vector<1x8x16x4xbf16>
    %242 = vector.shape_cast %241 : vector<1x8x16x4xbf16> to vector<8x16x4xbf16>
    %243 = vector.shape_cast %242 : vector<8x16x4xbf16> to vector<128x4xbf16>
    %c3_196 = arith.constant 3 : index
    %c0_197 = arith.constant 0 : index
    %c0_198 = arith.constant 0 : index
    %244 = vector.load %arg5[%c3_196, %c0_197, %c0_198] : memref<9x4x2xbf16, #tpu.memory_space<vmem>>, vector<1x4x2xbf16>
    %245 = vector.shape_cast %244 : vector<1x4x2xbf16> to vector<4x2xbf16>
    %cst_199 = arith.constant dense<0.000000e+00> : vector<128x2xf32>
    %246 = tpu.matmul %243, %245, %cst_199 {dimension_numbers = #tpu.dot_dimension_numbers<[1], [0], [0], [1], [0, 0, 1, 1], [], []>} : vector<128x4xbf16>, vector<4x2xbf16>, vector<128x2xf32> -> vector<128x2xf32>
    %247 = arith.addf %237, %246 : vector<128x2xf32>
    %c3_i32_200 = arith.constant 3 : i32
    %248 = arith.addi %0, %c3_i32_200 : i32
    %c0_i32_201 = arith.constant 0 : i32
    %249 = arith.addi %248, %c0_i32_201 : i32
    %c0_202 = arith.constant 0 : index
    %250 = arith.index_cast %249 : i32 to index
    %c3_203 = arith.constant 3 : index
    %c0_204 = arith.constant 0 : index
    %251 = vector.load %arg2[%c0_202, %250, %c3_203, %c0_204] : memref<1x22x22x4xbf16, #tpu.memory_space<vmem>>, vector<1x8x16x4xbf16>
    %252 = vector.shape_cast %251 : vector<1x8x16x4xbf16> to vector<8x16x4xbf16>
    %253 = vector.shape_cast %252 : vector<8x16x4xbf16> to vector<128x4xbf16>
    %c4_205 = arith.constant 4 : index
    %c0_206 = arith.constant 0 : index
    %c0_207 = arith.constant 0 : index
    %254 = vector.load %arg5[%c4_205, %c0_206, %c0_207] : memref<9x4x2xbf16, #tpu.memory_space<vmem>>, vector<1x4x2xbf16>
    %255 = vector.shape_cast %254 : vector<1x4x2xbf16> to vector<4x2xbf16>
    %cst_208 = arith.constant dense<0.000000e+00> : vector<128x2xf32>
    %256 = tpu.matmul %253, %255, %cst_208 {dimension_numbers = #tpu.dot_dimension_numbers<[1], [0], [0], [1], [0, 0, 1, 1], [], []>} : vector<128x4xbf16>, vector<4x2xbf16>, vector<128x2xf32> -> vector<128x2xf32>
    %257 = arith.addf %247, %256 : vector<128x2xf32>
    %c3_i32_209 = arith.constant 3 : i32
    %258 = arith.addi %0, %c3_i32_209 : i32
    %c0_i32_210 = arith.constant 0 : i32
    %259 = arith.addi %258, %c0_i32_210 : i32
    %c0_211 = arith.constant 0 : index
    %260 = arith.index_cast %259 : i32 to index
    %c6_212 = arith.constant 6 : index
    %c0_213 = arith.constant 0 : index
    %261 = vector.load %arg2[%c0_211, %260, %c6_212, %c0_213] : memref<1x22x22x4xbf16, #tpu.memory_space<vmem>>, vector<1x8x16x4xbf16>
    %262 = vector.shape_cast %261 : vector<1x8x16x4xbf16> to vector<8x16x4xbf16>
    %263 = vector.shape_cast %262 : vector<8x16x4xbf16> to vector<128x4xbf16>
    %c5_214 = arith.constant 5 : index
    %c0_215 = arith.constant 0 : index
    %c0_216 = arith.constant 0 : index
    %264 = vector.load %arg5[%c5_214, %c0_215, %c0_216] : memref<9x4x2xbf16, #tpu.memory_space<vmem>>, vector<1x4x2xbf16>
    %265 = vector.shape_cast %264 : vector<1x4x2xbf16> to vector<4x2xbf16>
    %cst_217 = arith.constant dense<0.000000e+00> : vector<128x2xf32>
    %266 = tpu.matmul %263, %265, %cst_217 {dimension_numbers = #tpu.dot_dimension_numbers<[1], [0], [0], [1], [0, 0, 1, 1], [], []>} : vector<128x4xbf16>, vector<4x2xbf16>, vector<128x2xf32> -> vector<128x2xf32>
    %267 = arith.addf %257, %266 : vector<128x2xf32>
    %c3_i32_218 = arith.constant 3 : i32
    %268 = arith.addi %0, %c3_i32_218 : i32
    %c3_i32_219 = arith.constant 3 : i32
    %269 = arith.addi %268, %c3_i32_219 : i32
    %c0_220 = arith.constant 0 : index
    %270 = arith.index_cast %269 : i32 to index
    %c0_221 = arith.constant 0 : index
    %c0_222 = arith.constant 0 : index
    %271 = vector.load %arg2[%c0_220, %270, %c0_221, %c0_222] : memref<1x22x22x4xbf16, #tpu.memory_space<vmem>>, vector<1x8x16x4xbf16>
    %272 = vector.shape_cast %271 : vector<1x8x16x4xbf16> to vector<8x16x4xbf16>
    %273 = vector.shape_cast %272 : vector<8x16x4xbf16> to vector<128x4xbf16>
    %c6_223 = arith.constant 6 : index
    %c0_224 = arith.constant 0 : index
    %c0_225 = arith.constant 0 : index
    %274 = vector.load %arg5[%c6_223, %c0_224, %c0_225] : memref<9x4x2xbf16, #tpu.memory_space<vmem>>, vector<1x4x2xbf16>
    %275 = vector.shape_cast %274 : vector<1x4x2xbf16> to vector<4x2xbf16>
    %cst_226 = arith.constant dense<0.000000e+00> : vector<128x2xf32>
    %276 = tpu.matmul %273, %275, %cst_226 {dimension_numbers = #tpu.dot_dimension_numbers<[1], [0], [0], [1], [0, 0, 1, 1], [], []>} : vector<128x4xbf16>, vector<4x2xbf16>, vector<128x2xf32> -> vector<128x2xf32>
    %277 = arith.addf %267, %276 : vector<128x2xf32>
    %c3_i32_227 = arith.constant 3 : i32
    %278 = arith.addi %0, %c3_i32_227 : i32
    %c3_i32_228 = arith.constant 3 : i32
    %279 = arith.addi %278, %c3_i32_228 : i32
    %c0_229 = arith.constant 0 : index
    %280 = arith.index_cast %279 : i32 to index
    %c3_230 = arith.constant 3 : index
    %c0_231 = arith.constant 0 : index
    %281 = vector.load %arg2[%c0_229, %280, %c3_230, %c0_231] : memref<1x22x22x4xbf16, #tpu.memory_space<vmem>>, vector<1x8x16x4xbf16>
    %282 = vector.shape_cast %281 : vector<1x8x16x4xbf16> to vector<8x16x4xbf16>
    %283 = vector.shape_cast %282 : vector<8x16x4xbf16> to vector<128x4xbf16>
    %c7_232 = arith.constant 7 : index
    %c0_233 = arith.constant 0 : index
    %c0_234 = arith.constant 0 : index
    %284 = vector.load %arg5[%c7_232, %c0_233, %c0_234] : memref<9x4x2xbf16, #tpu.memory_space<vmem>>, vector<1x4x2xbf16>
    %285 = vector.shape_cast %284 : vector<1x4x2xbf16> to vector<4x2xbf16>
    %cst_235 = arith.constant dense<0.000000e+00> : vector<128x2xf32>
    %286 = tpu.matmul %283, %285, %cst_235 {dimension_numbers = #tpu.dot_dimension_numbers<[1], [0], [0], [1], [0, 0, 1, 1], [], []>} : vector<128x4xbf16>, vector<4x2xbf16>, vector<128x2xf32> -> vector<128x2xf32>
    %287 = arith.addf %277, %286 : vector<128x2xf32>
    %c3_i32_236 = arith.constant 3 : i32
    %288 = arith.addi %0, %c3_i32_236 : i32
    %c3_i32_237 = arith.constant 3 : i32
    %289 = arith.addi %288, %c3_i32_237 : i32
    %c0_238 = arith.constant 0 : index
    %290 = arith.index_cast %289 : i32 to index
    %c6_239 = arith.constant 6 : index
    %c0_240 = arith.constant 0 : index
    %291 = vector.load %arg2[%c0_238, %290, %c6_239, %c0_240] : memref<1x22x22x4xbf16, #tpu.memory_space<vmem>>, vector<1x8x16x4xbf16>
    %292 = vector.shape_cast %291 : vector<1x8x16x4xbf16> to vector<8x16x4xbf16>
    %293 = vector.shape_cast %292 : vector<8x16x4xbf16> to vector<128x4xbf16>
    %c8_241 = arith.constant 8 : index
    %c0_242 = arith.constant 0 : index
    %c0_243 = arith.constant 0 : index
    %294 = vector.load %arg5[%c8_241, %c0_242, %c0_243] : memref<9x4x2xbf16, #tpu.memory_space<vmem>>, vector<1x4x2xbf16>
    %295 = vector.shape_cast %294 : vector<1x4x2xbf16> to vector<4x2xbf16>
    %cst_244 = arith.constant dense<0.000000e+00> : vector<128x2xf32>
    %296 = tpu.matmul %293, %295, %cst_244 {dimension_numbers = #tpu.dot_dimension_numbers<[1], [0], [0], [1], [0, 0, 1, 1], [], []>} : vector<128x4xbf16>, vector<4x2xbf16>, vector<128x2xf32> -> vector<128x2xf32>
    %297 = arith.addf %287, %296 : vector<128x2xf32>
    %c0_245 = arith.constant 0 : index
    %c6_246 = arith.constant 6 : index
    %298 = vector.load %arg6[%c0_245, %c6_246] : memref<1x8xf32, #tpu.memory_space<vmem>>, vector<1x2xf32>
    %299 = vector.broadcast %298 : vector<1x2xf32> to vector<128x2xf32>
    %300 = arith.mulf %297, %299 : vector<128x2xf32>
    %c0_247 = arith.constant 0 : index
    %c6_248 = arith.constant 6 : index
    %301 = vector.load %arg7[%c0_247, %c6_248] : memref<1x8xf32, #tpu.memory_space<vmem>>, vector<1x2xf32>
    %302 = vector.broadcast %301 : vector<1x2xf32> to vector<128x2xf32>
    %303 = arith.addf %300, %302 : vector<128x2xf32>
    %cst_249 = arith.constant 0.000000e+00 : f32
    %304 = vector.broadcast %cst_249 : f32 to vector<128x2xf32>
    %305 = arith.maximumf %303, %304 : vector<128x2xf32>
    %306 = arith.truncf %305 : vector<128x2xf32> to vector<128x2xbf16>
    %c0_250 = arith.constant 0 : index
    %c0_251 = arith.constant 0 : index
    %c6_252 = arith.constant 6 : index
    %307 = vector.load %arg8[%c0_250, %c0_251, %c6_252] : memref<1x128x8xbf16, #tpu.memory_space<vmem>>, vector<1x128x2xbf16>
    %308 = vector.shape_cast %307 : vector<1x128x2xbf16> to vector<128x2xbf16>
    %309 = vector.shape_cast %306 : vector<128x2xbf16> to vector<1x128x2xbf16>
    tpu.vector_store %arg8[%c0_250, %c0_251, %c6_252], %309 {strides = array<i32>} : memref<1x128x8xbf16, #tpu.memory_space<vmem>>, vector<1x128x2xbf16>,
    return
  }
  func.func @transform_0(%arg0: i32, %arg1: i32) -> (i32, i32, i32, i32) {
    %c0_i32 = arith.constant 0 : i32
    %c0_i32_0 = arith.constant 0 : i32
    %c0_i32_1 = arith.constant 0 : i32
    %c0_i32_2 = arith.constant 0 : i32
    return %arg0, %c0_i32, %c0_i32_0, %c0_i32_1 : i32, i32, i32, i32
  }
  func.func @transform_1(%arg0: i32, %arg1: i32) -> (i32, i32, i32) {
    %c0_i32 = arith.constant 0 : i32
    %c0_i32_0 = arith.constant 0 : i32
    %c0_i32_1 = arith.constant 0 : i32
    %c0_i32_2 = arith.constant 0 : i32
    return %c0_i32, %c0_i32_0, %c0_i32_1 : i32, i32, i32
  }
  func.func @transform_2(%arg0: i32, %arg1: i32) -> (i32, i32, i32) {
    %c0_i32 = arith.constant 0 : i32
    %c0_i32_0 = arith.constant 0 : i32
    %c0_i32_1 = arith.constant 0 : i32
    %c0_i32_2 = arith.constant 0 : i32
    return %c0_i32, %c0_i32_0, %c0_i32_1 : i32, i32, i32
  }
  func.func @transform_3(%arg0: i32, %arg1: i32) -> (i32, i32, i32) {
    %c0_i32 = arith.constant 0 : i32
    %c0_i32_0 = arith.constant 0 : i32
    %c0_i32_1 = arith.constant 0 : i32
    %c0_i32_2 = arith.constant 0 : i32
    return %c0_i32, %c0_i32_0, %c0_i32_1 : i32, i32, i32
  }
  func.func @transform_4(%arg0: i32, %arg1: i32) -> (i32, i32) {
    %c0_i32 = arith.constant 0 : i32
    %c0_i32_0 = arith.constant 0 : i32
    %c0_i32_1 = arith.constant 0 : i32
    return %c0_i32, %c0_i32_0 : i32, i32
  }
  func.func @transform_5(%arg0: i32, %arg1: i32) -> (i32, i32) {
    %c0_i32 = arith.constant 0 : i32
    %c0_i32_0 = arith.constant 0 : i32
    %c0_i32_1 = arith.constant 0 : i32
    return %c0_i32, %c0_i32_0 : i32, i32
  }
  func.func @transform_6(%arg0: i32, %arg1: i32) -> (i32, i32, i32) {
    %c0_i32 = arith.constant 0 : i32
    %c0_i32_0 = arith.constant 0 : i32
    return %arg0, %arg1, %c0_i32 : i32, i32, i32
  }
}

</mosaic_0001>

<llo_original>
// kernel: tpu_custom_call.1
$region0: #{tpu_custom_call.1}
  #allocation0 [shape = 'u32[]', space=smem, size = 0x4, offset = 0x4, fixed_abs, tag = 'smem constant byte address 0x4 - core index']
  #allocation1 [shape = 'u32[144,128]{1,0:T(1,128)}', space=vmem, size = 0x12000, scoped, tag = 'internal scratch']
  %s0 = inlined_call_operand.vmem [shape: bf16[2,22,22,4], index: 0, kind: input, shape index: {}]
  %s1 = inlined_call_operand.vmem [shape: bf16[9,4,4], index: 1, kind: input, shape index: {}]
  %s2 = inlined_call_operand.vmem [shape: bf16[9,4,2], index: 2, kind: input, shape index: {}]
  %s3 = inlined_call_operand.vmem [shape: bf16[9,4,2], index: 3, kind: input, shape index: {}]
  %s4 = inlined_call_operand.vmem [shape: f32[1,8], index: 4, kind: input, shape index: {}]
  %s5 = inlined_call_operand.vmem [shape: f32[1,8], index: 5, kind: input, shape index: {}]
  %s6 = inlined_call_operand.vmem [shape: bf16[2,256,8], index: 6, kind: output, shape index: {}]
  %s7 = sld [smem:[#allocation0]]
  $region57: #{tpu_custom_call.1} parent=0
    _
  %s9 = ssub.s32 1, %s7
  %s10 = scalar_select 0, %s9, %s7
  loop: start=0, step=1, limit=6
  $region2: #{tpu_custom_call.1} parent=0 // loop_pre_header
    _
  $region3: #{tpu_custom_call.1} parent=0 // loop_header
    %s12 = sphi 0, %s16
    %p13 = scmp.ge.s32.totalorder %s12, 6
    %s19 = sphi 0, %s31
    %s20 = sphi 0, %s27
    %s21 = sphi 0, %s19
    %s22 = sphi 0, %s20
    %s23 = sphi 0, %s21
    %s24 = sphi 0, %s22
    %s34 = sphi 0, %s36
    %s37 = sphi 0, %s34
    %s38 = sphi 0, %s37
    %s54 = sphi 0, %s38
    %s58 = sphi 0, %s58
    %s60 = sphi 0, %s58
    %s61 = sphi 0, %s60
    %s75 = sphi 0, %s61
    %s79 = sphi 0, %s79
    %s81 = sphi 0, %s79
    %s82 = sphi 0, %s81
    %s96 = sphi 0, %s82
    %s100 = sphi 0, %s100
    %s102 = sphi 0, %s100
    %s103 = sphi 0, %s102
    %s117 = sphi 0, %s103
    %s121 = sphi 0, %s121
    %s123 = sphi 0, %s121
    %s124 = sphi 0, %s123
    %s138 = sphi 0, %s124
    %s142 = sphi 0, %s142
    %s144 = sphi 0, %s142
    %s145 = sphi 0, %s144
    %s159 = sphi 0, %s145
    %s167 = sphi 0, %s169
    %s170 = sphi 0, %s167
    %s171 = sphi 0, %s170
    %s187 = sphi 0, %s171
  $region4: #{tpu_custom_call.1} parent=0 // loop_header_branch
    %15 = sbr.rel (%p13) target = $region8
  $region5: #{tpu_custom_call.1} parent=0 // loop_body
    %s17 = ssub.s32 %s12, 1
    %s18 = ssub.s32 %s12, 2
    %s25 = sadd.s32 1, %s20
    %p26 = scmp.ge.s32.totalorder %s25, 2
    %s27 = scalar_select %p26, 0, %s25
    %s28 = sadd.s32 1, %s19
    %s29 = scalar_select %p26, %s28, %s19
    %p30 = scmp.ge.s32.totalorder %s29, 2
    %s31 = scalar_select %p30, 0, %s29
    %s32 = ssub.s32 %s19, %s31
    %p33 = scmp.eq.s32.totalorder %s32, 0
    %s35 = sadd.s32 %s34, 1
    %s36 = scalar_select %p33, %s34, %s35
    %p39 = pneg %p33
    %p40 = scmp.eq.s32.totalorder %s12, 3
    %p41 = por %p39, %p40
    %p42 = scmp.ne.s32.totalorder %s34, %s37
    %p43 = scmp.eq.s32.totalorder %s12, 0
    %p44 = por %p42, %p43
    %p45 = scmp.ne.s32.totalorder %s34, %s37
    %p46 = scmp.eq.s32.totalorder %s17, 3
    %p47 = por %p45, %p46
    %p48 = scmp.ne.s32.totalorder %s37, %s38
    %p49 = scmp.eq.s32.totalorder %s17, 0
    %p50 = por %p48, %p49
    %p51 = scmp.ne.s32.totalorder %s37, %s38
    %p52 = scmp.eq.s32.totalorder %s18, 3
    %p53 = por %p51, %p52
    %p55 = scmp.ne.s32.totalorder %s38, %s54
    %p56 = scmp.eq.s32.totalorder %s18, 0
    %p57 = por %p55, %p56
    %s59 = sadd.s32 %s58, 1
    %p62 = scmp.eq.s32.totalorder %s12, 3
    %p63 = scmp.ne.s32.totalorder %s58, %s60
    %p64 = scmp.eq.s32.totalorder %s12, 0
    %p65 = por %p63, %p64
    %p66 = scmp.ne.s32.totalorder %s58, %s60
    %p67 = scmp.eq.s32.totalorder %s17, 3
    %p68 = por %p66, %p67
    %p69 = scmp.ne.s32.totalorder %s60, %s61
    %p70 = scmp.eq.s32.totalorder %s17, 0
    %p71 = por %p69, %p70
    %p72 = scmp.ne.s32.totalorder %s60, %s61
    %p73 = scmp.eq.s32.totalorder %s18, 3
    %p74 = por %p72, %p73
    %p76 = scmp.ne.s32.totalorder %s61, %s75
    %p77 = scmp.eq.s32.totalorder %s18, 0
    %p78 = por %p76, %p77
    %s80 = sadd.s32 %s79, 1
    %p83 = scmp.eq.s32.totalorder %s12, 3
    %p84 = scmp.ne.s32.totalorder %s79, %s81
    %p85 = scmp.eq.s32.totalorder %s12, 0
    %p86 = por %p84, %p85
    %p87 = scmp.ne.s32.totalorder %s79, %s81
    %p88 = scmp.eq.s32.totalorder %s17, 3
    %p89 = por %p87, %p88
    %p90 = scmp.ne.s32.totalorder %s81, %s82
    %p91 = scmp.eq.s32.totalorder %s17, 0
    %p92 = por %p90, %p91
    %p93 = scmp.ne.s32.totalorder %s81, %s82
    %p94 = scmp.eq.s32.totalorder %s18, 3
    %p95 = por %p93, %p94
    %p97 = scmp.ne.s32.totalorder %s82, %s96
    %p98 = scmp.eq.s32.totalorder %s18, 0
    %p99 = por %p97, %p98
    %s101 = sadd.s32 %s100, 1
    %p104 = scmp.eq.s32.totalorder %s12, 3
    %p105 = scmp.ne.s32.totalorder %s100, %s102
    %p106 = scmp.eq.s32.totalorder %s12, 0
    %p107 = por %p105, %p106
    %p108 = scmp.ne.s32.totalorder %s100, %s102
    %p109 = scmp.eq.s32.totalorder %s17, 3
    %p110 = por %p108, %p109
    %p111 = scmp.ne.s32.totalorder %s102, %s103
    %p112 = scmp.eq.s32.totalorder %s17, 0
    %p113 = por %p111, %p112
    %p114 = scmp.ne.s32.totalorder %s102, %s103
    %p115 = scmp.eq.s32.totalorder %s18, 3
    %p116 = por %p114, %p115
    %p118 = scmp.ne.s32.totalorder %s103, %s117
    %p119 = scmp.eq.s32.totalorder %s18, 0
    %p120 = por %p118, %p119
    %s122 = sadd.s32 %s121, 1
    %p125 = scmp.eq.s32.totalorder %s12, 3
    %p126 = scmp.ne.s32.totalorder %s121, %s123
    %p127 = scmp.eq.s32.totalorder %s12, 0
    %p128 = por %p126, %p127
    %p129 = scmp.ne.s32.totalorder %s121, %s123
    %p130 = scmp.eq.s32.totalorder %s17, 3
    %p131 = por %p129, %p130
    %p132 = scmp.ne.s32.totalorder %s123, %s124
    %p133 = scmp.eq.s32.totalorder %s17, 0
    %p134 = por %p132, %p133
    %p135 = scmp.ne.s32.totalorder %s123, %s124
    %p136 = scmp.eq.s32.totalorder %s18, 3
    %p137 = por %p135, %p136
    %p139 = scmp.ne.s32.totalorder %s124, %s138
    %p140 = scmp.eq.s32.totalorder %s18, 0
    %p141 = por %p139, %p140
    %s143 = sadd.s32 %s142, 1
    %p146 = scmp.eq.s32.totalorder %s12, 3
    %p147 = scmp.ne.s32.totalorder %s142, %s144
    %p148 = scmp.eq.s32.totalorder %s12, 0
    %p149 = por %p147, %p148
    %p150 = scmp.ne.s32.totalorder %s142, %s144
    %p151 = scmp.eq.s32.totalorder %s17, 3
    %p152 = por %p150, %p151
    %p153 = scmp.ne.s32.totalorder %s144, %s145
    %p154 = scmp.eq.s32.totalorder %s17, 0
    %p155 = por %p153, %p154
    %p156 = scmp.ne.s32.totalorder %s144, %s145
    %p157 = scmp.eq.s32.totalorder %s18, 3
    %p158 = por %p156, %p157
    %p160 = scmp.ne.s32.totalorder %s145, %s159
    %p161 = scmp.eq.s32.totalorder %s18, 0
    %p162 = por %p160, %p161
    %s163 = ssub.s32 %s19, %s31
    %s164 = ssub.s32 %s20, %s27
    %s165 = sor.u32 %s163, %s164
    %p166 = scmp.eq.s32.totalorder %s165, 0
    %s168 = sadd.s32 %s167, 1
    %s169 = scalar_select %p166, %s167, %s168
    %p172 = pneg %p166
    %p173 = scmp.eq.s32.totalorder %s12, 3
    %p174 = por %p172, %p173
    %p175 = scmp.ne.s32.totalorder %s167, %s170
    %p176 = scmp.eq.s32.totalorder %s12, 0
    %p177 = por %p175, %p176
    %p178 = scmp.ne.s32.totalorder %s167, %s170
    %p179 = scmp.eq.s32.totalorder %s17, 3
    %p180 = por %p178, %p179
    %p181 = scmp.ne.s32.totalorder %s170, %s171
    %p182 = scmp.eq.s32.totalorder %s17, 0
    %p183 = por %p181, %p182
    %p184 = scmp.ne.s32.totalorder %s170, %s171
    %p185 = scmp.eq.s32.totalorder %s18, 3
    %p186 = por %p184, %p185
    %p188 = scmp.ne.s32.totalorder %s171, %s187
    %p189 = scmp.eq.s32.totalorder %s18, 0
    %p190 = por %p188, %p189
    %p191 = scmp.le.s32.totalorder 1, %s12
    %p192 = scmp.lt.s32.totalorder %s12, 5
    %p193 = pnand %p191, %p192
    %p194 = pneg %p193
    // Predicated region
    $region9: #{tpu_custom_call.1} parent=5 // pred_check
      _
    $region10: #{tpu_custom_call.1} parent=5 // pred_check_branch
      %196 = sbr.rel (%p193) target = $region12
    $region11: #{tpu_custom_call.1} parent=5 // pred_region
      %s197 = ssub.s32 %s12, 1
      // Predicated region
      $region13: #{tpu_custom_call.1} parent=11 // pred_check
        %p198 = pneg %p71
      $region14: #{tpu_custom_call.1} parent=11 // pred_check_branch
        %200 = sbr.rel (%p198) target = $region16
      $region15: #{tpu_custom_call.1} parent=11 // pred_region
        _
      $region16: #{tpu_custom_call.1} parent=11 // pred_fallthru
        _
      // Predicated region
      $region17: #{tpu_custom_call.1} parent=11 // pred_check
        %p201 = pneg %p92
      $region18: #{tpu_custom_call.1} parent=11 // pred_check_branch
        %203 = sbr.rel (%p201) target = $region20
      $region19: #{tpu_custom_call.1} parent=11 // pred_region
        _
      $region20: #{tpu_custom_call.1} parent=11 // pred_fallthru
        _
      // Predicated region
      $region21: #{tpu_custom_call.1} parent=11 // pred_check
        %p204 = pneg %p113
      $region22: #{tpu_custom_call.1} parent=11 // pred_check_branch
        %206 = sbr.rel (%p204) target = $region24
      $region23: #{tpu_custom_call.1} parent=11 // pred_region
        _
      $region24: #{tpu_custom_call.1} parent=11 // pred_fallthru
        _
      // Predicated region
      $region25: #{tpu_custom_call.1} parent=11 // pred_check
        %p207 = pneg %p134
      $region26: #{tpu_custom_call.1} parent=11 // pred_check_branch
        %209 = sbr.rel (%p207) target = $region28
      $region27: #{tpu_custom_call.1} parent=11 // pred_region
        _
      $region28: #{tpu_custom_call.1} parent=11 // pred_fallthru
        _
      // Predicated region
      $region29: #{tpu_custom_call.1} parent=11 // pred_check
        %p210 = pneg %p155
      $region30: #{tpu_custom_call.1} parent=11 // pred_check_branch
        %212 = sbr.rel (%p210) target = $region32
      $region31: #{tpu_custom_call.1} parent=11 // pred_region
        _
      $region32: #{tpu_custom_call.1} parent=11 // pred_fallthru
        _
    $region12: #{tpu_custom_call.1} parent=5 // pred_fallthru
      _
    %p213 = scmp.lt.s32.totalorder %s12, 4
    // Predicated region
    $region33: #{tpu_custom_call.1} parent=5 // pred_check
      %p214 = pneg %p213
    $region34: #{tpu_custom_call.1} parent=5 // pred_check_branch
      %216 = sbr.rel (%p214) target = $region36
    $region35: #{tpu_custom_call.1} parent=5 // pred_region
      // Predicated region
      $region37: #{tpu_custom_call.1} parent=35 // pred_check
        %p217 = pneg %p44
      $region38: #{tpu_custom_call.1} parent=35 // pred_check_branch
        %219 = sbr.rel (%p217) target = $region40
      $region39: #{tpu_custom_call.1} parent=35 // pred_region
        %p220 = scmp.lt.s32.totalorder %s19, 1
        %s221 = scalar_select %p220, %s19, 1
        %s222 = smul.addr %s221, 66
        %s223 = smul.addr %s222, 4
        %s224 = scalar_lea.vmem %s0, %s223
      $region40: #{tpu_custom_call.1} parent=35 // pred_fallthru
        _
    $region36: #{tpu_custom_call.1} parent=5 // pred_fallthru
      _
    %p225 = scmp.le.s32.totalorder 1, %s12
    %p226 = scmp.lt.s32.totalorder %s12, 5
    %p227 = pnand %p225, %p226
    %p228 = pneg %p227
    // Predicated region
    $region41: #{tpu_custom_call.1} parent=5 // pred_check
      _
    $region42: #{tpu_custom_call.1} parent=5 // pred_check_branch
      %230 = sbr.rel (%p227) target = $region44
    $region43: #{tpu_custom_call.1} parent=5 // pred_region
      %s231 = ssub.s32 %s12, 1
      %p232 = scmp.lt.s32.totalorder %s21, 1
      %s233 = scalar_select %p232, %s21, 1
      %s234 = smul.addr %s233, 66
      %s235 = smul.addr %s234, 4
      %s236 = scalar_lea.vmem %s0, %s235
      %p237 = pneg %p50
      %p238 = pneg %p47
      %p239 = pneg %p71
      %p240 = pneg %p68
      %p241 = pneg %p92
      %p242 = pneg %p89
      %p243 = pneg %p113
      %p244 = pneg %p110
      %p245 = pneg %p134
      %p246 = pneg %p131
      %p247 = pneg %p155
      %p248 = pneg %p152
      %p249 = pneg %p183
      %p250 = pneg %p180
      %s251 = smul.u32 16, %s22
      %p252 = scmp.lt.s32.totalorder %s21, 1
      %s253 = scalar_select %p252, %s21, 1
      %p254 = scmp.lt.s32.totalorder %s251, 31
      %s255 = scalar_select %p254, %s251, 31
      %s256 = smul.addr %s253, 32
      %s257 = sadd.s32 %s255, %s256
      %s258 = smul.addr %s257, 4
      %s259 = scalar_lea.vmem %s6, %s258
      %p260 = scmp.lt.s32.totalorder %s21, 1
      %s261 = scalar_select %p260, %s21, 1
      %s262 = smul.addr %s261, 66
      %s263 = smul.addr %s262, 4
      %s264 = scalar_lea.vmem %s0, %s263
      %s265 = smul.u32 16, %s22
      %p266 = scmp.lt.s32.totalorder %s21, 1
      %s267 = scalar_select %p266, %s21, 1
      %p268 = scmp.lt.s32.totalorder %s265, 31
      %s269 = scalar_select %p268, %s265, 31
      %s270 = smul.addr %s267, 32
      %s271 = sadd.s32 %s269, %s270
      %s272 = smul.addr %s271, 4
      %s273 = scalar_lea.vmem %s6, %s272
      %s274 = smul.u32 16, %s22
      %s276 = smul.u32 %s22, 8
      %s277 = sadd.s32 %s276, 2
      %s278 = smul.u32 %s277, 3
      %s279 = smul.addr %s278, 4
      %s280 = scalar_lea.vmem %s264, %s279
      %v281 = vld [vmem:[%s280] sm:$0xe]
      %v282 = vld [vmem:[%s280 + $0x4] sm:$0xf]
      %v283 = vld [vmem:[%s280 + $0x8] sm:$0x1]
      %v284 = vld [vmem:[%s280 + $0xc] sm:$0xe]
      %v285 = vld [vmem:[%s280 + $0x10] sm:$0xf]
      %v286 = vld [vmem:[%s280 + $0x14] sm:$0x1]
      %v287 = vld [vmem:[%s280 + $0x18] sm:$0xe]
      %v288 = vld [vmem:[%s280 + $0x1c] sm:$0xf]
      %v289 = vld [vmem:[%s280 + $0x20] sm:$0x1]
      %v290 = vld [vmem:[%s280 + $0x24] sm:$0xe]
      %v291 = vld [vmem:[%s280 + $0x28] sm:$0xf]
      %v292 = vld [vmem:[%s280 + $0x2c] sm:$0x1]
      %v293 = vld [vmem:[%s280 + $0x30] sm:$0xe]
      %v294 = vld [vmem:[%s280 + $0x34] sm:$0xf]
      %v295 = vld [vmem:[%s280 + $0x38] sm:$0x1]
      %v296 = vld [vmem:[%s280 + $0x3c] sm:$0xe]
      %v297 = vld [vmem:[%s280 + $0x40] sm:$0xf]
      %v298 = vld [vmem:[%s280 + $0x44] sm:$0x1]
      %v299 = vld [vmem:[%s280 + $0x48] sm:$0xe]
      %v300 = vld [vmem:[%s280 + $0x4c] sm:$0xf]
      %v301 = vld [vmem:[%s280 + $0x50] sm:$0x1]
      %v302 = vld [vmem:[%s280 + $0x54] sm:$0xe]
      %v303 = vld [vmem:[%s280 + $0x58] sm:$0xf]
      %v304 = vld [vmem:[%s280 + $0x5c] sm:$0x1]
      %vm329 = vcmask 1042432
      %vm330 = vcmask 1046532
      %vm331 = vmor %vm329, %vm330
      %v332 = vrot.slane %v281, 5
      %v333 = vrot.slane %v332, 4
      %v334 = vrot.slane %v282, 5
      %v335 = vsel %vm331, %v333, %v334
      %v336 = vrot.slane %v334, 4
      %v337 = vrot.slane %v283, 5
      %v338 = vsel %vm331, %v336, %v337
      %v339 = vrot.slane %v284, 5
      %v340 = vrot.slane %v339, 4
      %v341 = vrot.slane %v285, 5
      %v342 = vsel %vm331, %v340, %v341
      %v343 = vrot.slane %v341, 4
      %v344 = vrot.slane %v286, 5
      %v345 = vsel %vm331, %v343, %v344
      %v346 = vrot.slane %v287, 5
      %v347 = vrot.slane %v346, 4
      %v348 = vrot.slane %v288, 5
      %v349 = vsel %vm331, %v347, %v348
      %v350 = vrot.slane %v348, 4
      %v351 = vrot.slane %v289, 5
      %v352 = vsel %vm331, %v350, %v351
      %v353 = vrot.slane %v290, 5
      %v354 = vrot.slane %v353, 4
      %v355 = vrot.slane %v291, 5
      %v356 = vsel %vm331, %v354, %v355
      %v357 = vrot.slane %v355, 4
      %v358 = vrot.slane %v292, 5
      %v359 = vsel %vm331, %v357, %v358
      %v360 = vrot.slane %v293, 5
      %v361 = vrot.slane %v360, 4
      %v362 = vrot.slane %v294, 5
      %v363 = vsel %vm331, %v361, %v362
      %v364 = vrot.slane %v362, 4
      %v365 = vrot.slane %v295, 5
      %v366 = vsel %vm331, %v364, %v365
      %v367 = vrot.slane %v296, 5
      %v368 = vrot.slane %v367, 4
      %v369 = vrot.slane %v297, 5
      %v370 = vsel %vm331, %v368, %v369
      %v371 = vrot.slane %v369, 4
      %v372 = vrot.slane %v298, 5
      %v373 = vsel %vm331, %v371, %v372
      %v374 = vrot.slane %v299, 5
      %v375 = vrot.slane %v374, 4
      %v376 = vrot.slane %v300, 5
      %v377 = vsel %vm331, %v375, %v376
      %v378 = vrot.slane %v376, 4
      %v379 = vrot.slane %v301, 5
      %v380 = vsel %vm331, %v378, %v379
      %v381 = vrot.slane %v302, 5
      %v382 = vrot.slane %v381, 4
      %v383 = vrot.slane %v303, 5
      %v384 = vsel %vm331, %v382, %v383
      %v385 = vrot.slane %v383, 4
      %v386 = vrot.slane %v304, 5
      %v387 = vsel %vm331, %v385, %v386
      %v388 = vld [vmem:[%s1] sm:$0x3]
      %v389 = vld [vmem:[%s280 + $0x8] sm:$0x3]
      %v390 = vld [vmem:[%s280 + $0x14] sm:$0x3]
      %v391 = vld [vmem:[%s280 + $0x20] sm:$0x3]
      %v392 = vld [vmem:[%s280 + $0x2c] sm:$0x3]
      %v393 = vld [vmem:[%s280 + $0x38] sm:$0x3]
      %v394 = vld [vmem:[%s280 + $0x44] sm:$0x3]
      %v395 = vld [vmem:[%s280 + $0x50] sm:$0x3]
      %v396 = vld [vmem:[%s280 + $0x5c] sm:$0x3]
      %vm397 = vsmask.f32 2304
      %vm398 = vsmask.f32 6416
      %vm399 = vmor %vm397, %vm398
      %v401 = vshrl.u32 %v281, 16
      %v403 = vrot.slane %v401, 5
      %v404 = vshll.u32 %v281, 16
      %v406 = vrot.slane %v404, 6
      %v407 = vor.u32 %v403, %v406
      %v408 = vrot.slane %v407, 4
      %v410 = vshrl.u32 %v282, 16
      %v412 = vrot.slane %v410, 5
      %v413 = vshll.u32 %v282, 16
      %v415 = vrot.slane %v413, 6
      %v416 = vor.u32 %v412, %v415
      %v417 = vsel %vm399, %v408, %v416
      %v418 = vrot.slane %v416, 4
      %v420 = vshrl.u32 %v389, 16
      %v422 = vrot.slane %v420, 5
      %v423 = vshll.u32 %v389, 16
      %v425 = vrot.slane %v423, 6
      %v426 = vor.u32 %v422, %v425
      %v427 = vsel %vm399, %v418, %v426
      %v429 = vshrl.u32 %v284, 16
      %v431 = vrot.slane %v429, 5
      %v432 = vshll.u32 %v284, 16
      %v434 = vrot.slane %v432, 6
      %v435 = vor.u32 %v431, %v434
      %v436 = vrot.slane %v435, 4
      %v438 = vshrl.u32 %v285, 16
      %v440 = vrot.slane %v438, 5
      %v441 = vshll.u32 %v285, 16
      %v443 = vrot.slane %v441, 6
      %v444 = vor.u32 %v440, %v443
      %v445 = vsel %vm399, %v436, %v444
      %v446 = vrot.slane %v444, 4
      %v448 = vshrl.u32 %v390, 16
      %v450 = vrot.slane %v448, 5
      %v451 = vshll.u32 %v390, 16
      %v453 = vrot.slane %v451, 6
      %v454 = vor.u32 %v450, %v453
      %v455 = vsel %vm399, %v446, %v454
      %v457 = vshrl.u32 %v287, 16
      %v459 = vrot.slane %v457, 5
      %v460 = vshll.u32 %v287, 16
      %v462 = vrot.slane %v460, 6
      %v463 = vor.u32 %v459, %v462
      %v464 = vrot.slane %v463, 4
      %v466 = vshrl.u32 %v288, 16
      %v468 = vrot.slane %v466, 5
      %v469 = vshll.u32 %v288, 16
      %v471 = vrot.slane %v469, 6
      %v472 = vor.u32 %v468, %v471
      %v473 = vsel %vm399, %v464, %v472
      %v474 = vrot.slane %v472, 4
      %v476 = vshrl.u32 %v391, 16
      %v478 = vrot.slane %v476, 5
      %v479 = vshll.u32 %v391, 16
      %v481 = vrot.slane %v479, 6
      %v482 = vor.u32 %v478, %v481
      %v483 = vsel %vm399, %v474, %v482
      %v485 = vshrl.u32 %v290, 16
      %v487 = vrot.slane %v485, 5
      %v488 = vshll.u32 %v290, 16
      %v490 = vrot.slane %v488, 6
      %v491 = vor.u32 %v487, %v490
      %v492 = vrot.slane %v491, 4
      %v494 = vshrl.u32 %v291, 16
      %v496 = vrot.slane %v494, 5
      %v497 = vshll.u32 %v291, 16
      %v499 = vrot.slane %v497, 6
      %v500 = vor.u32 %v496, %v499
      %v501 = vsel %vm399, %v492, %v500
      %v502 = vrot.slane %v500, 4
      %v504 = vshrl.u32 %v392, 16
      %v506 = vrot.slane %v504, 5
      %v507 = vshll.u32 %v392, 16
      %v509 = vrot.slane %v507, 6
      %v510 = vor.u32 %v506, %v509
      %v511 = vsel %vm399, %v502, %v510
      %v513 = vshrl.u32 %v293, 16
      %v515 = vrot.slane %v513, 5
      %v516 = vshll.u32 %v293, 16
      %v518 = vrot.slane %v516, 6
      %v519 = vor.u32 %v515, %v518
      %v520 = vrot.slane %v519, 4
      %v522 = vshrl.u32 %v294, 16
      %v524 = vrot.slane %v522, 5
      %v525 = vshll.u32 %v294, 16
      %v527 = vrot.slane %v525, 6
      %v528 = vor.u32 %v524, %v527
      %v529 = vsel %vm399, %v520, %v528
      %v530 = vrot.slane %v528, 4
      %v532 = vshrl.u32 %v393, 16
      %v534 = vrot.slane %v532, 5
      %v535 = vshll.u32 %v393, 16
      %v537 = vrot.slane %v535, 6
      %v538 = vor.u32 %v534, %v537
      %v539 = vsel %vm399, %v530, %v538
      %v541 = vshrl.u32 %v296, 16
      %v543 = vrot.slane %v541, 5
      %v544 = vshll.u32 %v296, 16
      %v546 = vrot.slane %v544, 6
      %v547 = vor.u32 %v543, %v546
      %v548 = vrot.slane %v547, 4
      %v550 = vshrl.u32 %v297, 16
      %v552 = vrot.slane %v550, 5
      %v553 = vshll.u32 %v297, 16
      %v555 = vrot.slane %v553, 6
      %v556 = vor.u32 %v552, %v555
      %v557 = vsel %vm399, %v548, %v556
      %v558 = vrot.slane %v556, 4
      %v560 = vshrl.u32 %v394, 16
      %v562 = vrot.slane %v560, 5
      %v563 = vshll.u32 %v394, 16
      %v565 = vrot.slane %v563, 6
      %v566 = vor.u32 %v562, %v565
      %v567 = vsel %vm399, %v558, %v566
      %v569 = vshrl.u32 %v299, 16
      %v571 = vrot.slane %v569, 5
      %v572 = vshll.u32 %v299, 16
      %v574 = vrot.slane %v572, 6
      %v575 = vor.u32 %v571, %v574
      %v576 = vrot.slane %v575, 4
      %v578 = vshrl.u32 %v300, 16
      %v580 = vrot.slane %v578, 5
      %v581 = vshll.u32 %v300, 16
      %v583 = vrot.slane %v581, 6
      %v584 = vor.u32 %v580, %v583
      %v585 = vsel %vm399, %v576, %v584
      %v586 = vrot.slane %v584, 4
      %v588 = vshrl.u32 %v395, 16
      %v590 = vrot.slane %v588, 5
      %v591 = vshll.u32 %v395, 16
      %v593 = vrot.slane %v591, 6
      %v594 = vor.u32 %v590, %v593
      %v595 = vsel %vm399, %v586, %v594
      %v597 = vshrl.u32 %v302, 16
      %v599 = vrot.slane %v597, 5
      %v600 = vshll.u32 %v302, 16
      %v602 = vrot.slane %v600, 6
      %v603 = vor.u32 %v599, %v602
      %v604 = vrot.slane %v603, 4
      %v606 = vshrl.u32 %v303, 16
      %v608 = vrot.slane %v606, 5
      %v609 = vshll.u32 %v303, 16
      %v611 = vrot.slane %v609, 6
      %v612 = vor.u32 %v608, %v611
      %v613 = vsel %vm399, %v604, %v612
      %v614 = vrot.slane %v612, 4
      %v616 = vshrl.u32 %v396, 16
      %v618 = vrot.slane %v616, 5
      %v619 = vshll.u32 %v396, 16
      %v621 = vrot.slane %v619, 6
      %v622 = vor.u32 %v618, %v621
      %v623 = vsel %vm399, %v614, %v622
      %s624 = scalar_lea.vmem %s1, 2
      %v625 = vld [vmem:[%s624] sm:$0x3]
      %v626 = vunpack.c.l.b16 %v417
      %v627 = vunpack.c.l.b16 %v427
      %v628 = vunpack.c.l.b16 %v445
      %v629 = vunpack.c.l.b16 %v455
      %v630 = vunpack.c.l.b16 %v473
      %v631 = vunpack.c.l.b16 %v483
      %v632 = vunpack.c.l.b16 %v501
      %v633 = vunpack.c.l.b16 %v511
      %v634 = vunpack.c.l.b16 %v529
      %v635 = vunpack.c.l.b16 %v539
      %v636 = vunpack.c.l.b16 %v557
      %v637 = vunpack.c.l.b16 %v567
      %v638 = vunpack.c.l.b16 %v585
      %v639 = vunpack.c.l.b16 %v595
      %v640 = vunpack.c.l.b16 %v613
      %v641 = vunpack.c.l.b16 %v623
      %v642 = vpack.c.b16 %v627, %v626
      %v643 = vpack.c.b16 %v629, %v628
      %v644 = vpack.c.b16 %v631, %v630
      %v645 = vpack.c.b16 %v633, %v632
      %v646 = vpack.c.b16 %v635, %v634
      %v647 = vpack.c.b16 %v637, %v636
      %v648 = vpack.c.b16 %v639, %v638
      %v649 = vpack.c.b16 %v641, %v640
      %vm650 = vcmask 31744
      %v652 = vsel %vm650, %v642, 0
      %v655 = vsel %vm650, %v643, 0
      %v658 = vsel %vm650, %v644, 0
      %v661 = vsel %vm650, %v645, 0
      %v664 = vsel %vm650, %v646, 0
      %v667 = vsel %vm650, %v647, 0
      %v670 = vsel %vm650, %v648, 0
      %v673 = vsel %vm650, %v649, 0
      %vm675 = vcmask 1041408
      %v677 = vsel %vm675, %v625, 0
      %679 = vmatprep.subr.bf16.mxu0 0
      %680 = vmatpush1.bf16.msra.mxu0 %v677
      %681 = vmatprep.subr.bf16.mxu0 0
      %682 = vmatpush1.bf16.msra.mxu0 0
      %683 = vmatprep.subr.bf16.mxu0 0
      %684 = vmatpush1.bf16.msra.mxu0 0
      %685 = vmatprep.subr.bf16.mxu0 0
      %686 = vmatpush1.bf16.msra.mxu0 0
      %687 = vmatprep.subr.bf16.mxu0 0
      %688 = vmatpush1.bf16.msra.mxu0 0
      %689 = vmatprep.subr.bf16.mxu0 0
      %690 = vmatpush1.bf16.msra.mxu0 0
      %691 = vmatprep.subr.bf16.mxu0 0
      %692 = vmatpush1.bf16.msra.mxu0 0
      %693 = vmatprep.subr.bf16.mxu0 0
      %694 = vmatpush1.bf16.msra.mxu0 0
      %695 = vmatprep.subr.bf16.mxu0 0
      %696 = vmatpush1.bf16.msra.mxu0 0
      %697 = vmatprep.subr.bf16.mxu0 0
      %698 = vmatpush1.bf16.msra.mxu0 0
      %699 = vmatprep.subr.bf16.mxu0 0
      %700 = vmatpush1.bf16.msra.mxu0 0
      %701 = vmatprep.subr.bf16.mxu0 0
      %702 = vmatpush1.bf16.msra.mxu0 0
      %703 = vmatprep.subr.bf16.mxu0 0
      %704 = vmatpush1.bf16.msra.mxu0 0
      %705 = vmatprep.subr.bf16.mxu0 0
      %706 = vmatpush1.bf16.msra.mxu0 0
      %707 = vmatprep.subr.bf16.mxu0 0
      %708 = vmatpush1.bf16.msra.mxu0 0
      %709 = vmatprep.subr.bf16.mxu0 0
      %710 = vmatpush1.bf16.msra.mxu0 0
      %711 = vmatprep.mubr.bf16.mxu0 0
      %712 = vmatmul.mubr.bf16.gmra.mrb[0].mxu0 %v652
      %v713 = vpop.f32.mrb[0].mxu0
      %v714 = vadd.f32 0.0, %v713
      %v715 = vpop.f32.mrb[0].mxu0
      %v716 = vpop.f32.mrb[0].mxu0
      %v717 = vadd.f32 0.0, %v716
      %v718 = vpop.f32.mrb[0].mxu0
      %719 = vmatprep.mubr.bf16.mxu0 0
      %720 = vmatmul.mubr.bf16.gmra.mrb[0].mxu0 %v655
      %v721 = vpop.f32.mrb[0].mxu0
      %v722 = vadd.f32 0.0, %v721
      %v723 = vpop.f32.mrb[0].mxu0
      %v724 = vpop.f32.mrb[0].mxu0
      %v725 = vadd.f32 0.0, %v724
      %v726 = vpop.f32.mrb[0].mxu0
      %727 = vmatprep.mubr.bf16.mxu0 0
      %728 = vmatmul.mubr.bf16.gmra.mrb[0].mxu0 %v658
      %v729 = vpop.f32.mrb[0].mxu0
      %v730 = vadd.f32 0.0, %v729
      %v731 = vpop.f32.mrb[0].mxu0
      %v732 = vpop.f32.mrb[0].mxu0
      %v733 = vadd.f32 0.0, %v732
      %v734 = vpop.f32.mrb[0].mxu0
      %735 = vmatprep.mubr.bf16.mxu0 0
      %736 = vmatmul.mubr.bf16.gmra.mrb[0].mxu0 %v661
      %v737 = vpop.f32.mrb[0].mxu0
      %v738 = vadd.f32 0.0, %v737
      %v739 = vpop.f32.mrb[0].mxu0
      %v740 = vpop.f32.mrb[0].mxu0
      %v741 = vadd.f32 0.0, %v740
      %v742 = vpop.f32.mrb[0].mxu0
      %743 = vmatprep.mubr.bf16.mxu0 0
      %744 = vmatmul.mubr.bf16.gmra.mrb[0].mxu0 %v664
      %v745 = vpop.f32.mrb[0].mxu0
      %v746 = vadd.f32 0.0, %v745
      %v747 = vpop.f32.mrb[0].mxu0
      %v748 = vpop.f32.mrb[0].mxu0
      %v749 = vadd.f32 0.0, %v748
      %v750 = vpop.f32.mrb[0].mxu0
      %751 = vmatprep.mubr.bf16.mxu0 0
      %752 = vmatmul.mubr.bf16.gmra.mrb[0].mxu0 %v667
      %v753 = vpop.f32.mrb[0].mxu0
      %v754 = vadd.f32 0.0, %v753
      %v755 = vpop.f32.mrb[0].mxu0
      %v756 = vpop.f32.mrb[0].mxu0
      %v757 = vadd.f32 0.0, %v756
      %v758 = vpop.f32.mrb[0].mxu0
      %759 = vmatprep.mubr.bf16.mxu0 0
      %760 = vmatmul.mubr.bf16.gmra.mrb[0].mxu0 %v670
      %v761 = vpop.f32.mrb[0].mxu0
      %v762 = vadd.f32 0.0, %v761
      %v763 = vpop.f32.mrb[0].mxu0
      %v764 = vpop.f32.mrb[0].mxu0
      %v765 = vadd.f32 0.0, %v764
      %v766 = vpop.f32.mrb[0].mxu0
      %767 = vmatprep.mubr.bf16.mxu0 0
      %768 = vmatmul.mubr.bf16.gmra.mrb[0].mxu0 %v673
      %v769 = vpop.f32.mrb[0].mxu0
      %v770 = vadd.f32 0.0, %v769
      %v771 = vpop.f32.mrb[0].mxu0
      %v772 = vpop.f32.mrb[0].mxu0
      %v773 = vadd.f32 0.0, %v772
      %v774 = vpop.f32.mrb[0].mxu0
      %775 = vdwg.mxu0
      %v776 = vunpack.c.l.b16 %v335
      %v777 = vunpack.c.l.b16 %v338
      %v778 = vunpack.c.l.b16 %v342
      %v779 = vunpack.c.l.b16 %v345
      %v780 = vunpack.c.l.b16 %v349
      %v781 = vunpack.c.l.b16 %v352
      %v782 = vunpack.c.l.b16 %v356
      %v783 = vunpack.c.l.b16 %v359
      %v784 = vunpack.c.l.b16 %v363
      %v785 = vunpack.c.l.b16 %v366
      %v786 = vunpack.c.l.b16 %v370
      %v787 = vunpack.c.l.b16 %v373
      %v788 = vunpack.c.l.b16 %v377
      %v789 = vunpack.c.l.b16 %v380
      %v790 = vunpack.c.l.b16 %v384
      %v791 = vunpack.c.l.b16 %v387
      %v792 = vpack.c.b16 %v777, %v776
      %v793 = vpack.c.b16 %v779, %v778
      %v794 = vpack.c.b16 %v781, %v780
      %v795 = vpack.c.b16 %v783, %v782
      %v796 = vpack.c.b16 %v785, %v784
      %v797 = vpack.c.b16 %v787, %v786
      %v798 = vpack.c.b16 %v789, %v788
      %v799 = vpack.c.b16 %v791, %v790
      %v801 = vsel %vm650, %v792, 0
      %v804 = vsel %vm650, %v793, 0
      %v807 = vsel %vm650, %v794, 0
      %v810 = vsel %vm650, %v795, 0
      %v813 = vsel %vm650, %v796, 0
      %v816 = vsel %vm650, %v797, 0
      %v819 = vsel %vm650, %v798, 0
      %v822 = vsel %vm650, %v799, 0
      %v825 = vsel %vm675, %v388, 0
      %827 = vmatprep.subr.bf16.mxu0 0
      %828 = vmatpush1.bf16.msra.mxu0 %v825
      %829 = vmatprep.subr.bf16.mxu0 0
      %830 = vmatpush1.bf16.msra.mxu0 0
      %831 = vmatprep.subr.bf16.mxu0 0
      %832 = vmatpush1.bf16.msra.mxu0 0
      %833 = vmatprep.subr.bf16.mxu0 0
      %834 = vmatpush1.bf16.msra.mxu0 0
      %835 = vmatprep.subr.bf16.mxu0 0
      %836 = vmatpush1.bf16.msra.mxu0 0
      %837 = vmatprep.subr.bf16.mxu0 0
      %838 = vmatpush1.bf16.msra.mxu0 0
      %839 = vmatprep.subr.bf16.mxu0 0
      %840 = vmatpush1.bf16.msra.mxu0 0
      %841 = vmatprep.subr.bf16.mxu0 0
      %842 = vmatpush1.bf16.msra.mxu0 0
      %843 = vmatprep.subr.bf16.mxu0 0
      %844 = vmatpush1.bf16.msra.mxu0 0
      %845 = vmatprep.subr.bf16.mxu0 0
      %846 = vmatpush1.bf16.msra.mxu0 0
      %847 = vmatprep.subr.bf16.mxu0 0
      %848 = vmatpush1.bf16.msra.mxu0 0
      %849 = vmatprep.subr.bf16.mxu0 0
      %850 = vmatpush1.bf16.msra.mxu0 0
      %851 = vmatprep.subr.bf16.mxu0 0
      %852 = vmatpush1.bf16.msra.mxu0 0
      %853 = vmatprep.subr.bf16.mxu0 0
      %854 = vmatpush1.bf16.msra.mxu0 0
      %855 = vmatprep.subr.bf16.mxu0 0
      %856 = vmatpush1.bf16.msra.mxu0 0
      %857 = vmatprep.subr.bf16.mxu0 0
      %858 = vmatpush1.bf16.msra.mxu0 0
      %859 = vmatprep.mubr.bf16.mxu0 0
      %860 = vmatmul.mubr.bf16.gmra.mrb[0].mxu0 %v801
      %v861 = vpop.f32.mrb[0].mxu0
      %v862 = vadd.f32 %v714, %v861
      %v863 = vpop.f32.mrb[0].mxu0
      %v864 = vpop.f32.mrb[0].mxu0
      %v865 = vadd.f32 %v717, %v864
      %v866 = vpop.f32.mrb[0].mxu0
      %867 = vmatprep.mubr.bf16.mxu0 0
      %868 = vmatmul.mubr.bf16.gmra.mrb[0].mxu0 %v804
      %v869 = vpop.f32.mrb[0].mxu0
      %v870 = vadd.f32 %v722, %v869
      %v871 = vpop.f32.mrb[0].mxu0
      %v872 = vpop.f32.mrb[0].mxu0
      %v873 = vadd.f32 %v725, %v872
      %v874 = vpop.f32.mrb[0].mxu0
      %875 = vmatprep.mubr.bf16.mxu0 0
      %876 = vmatmul.mubr.bf16.gmra.mrb[0].mxu0 %v807
      %v877 = vpop.f32.mrb[0].mxu0
      %v878 = vadd.f32 %v730, %v877
      %v879 = vpop.f32.mrb[0].mxu0
      %v880 = vpop.f32.mrb[0].mxu0
      %v881 = vadd.f32 %v733, %v880
      %v882 = vpop.f32.mrb[0].mxu0
      %883 = vmatprep.mubr.bf16.mxu0 0
      %884 = vmatmul.mubr.bf16.gmra.mrb[0].mxu0 %v810
      %v885 = vpop.f32.mrb[0].mxu0
      %v886 = vadd.f32 %v738, %v885
      %v887 = vpop.f32.mrb[0].mxu0
      %v888 = vpop.f32.mrb[0].mxu0
      %v889 = vadd.f32 %v741, %v888
      %v890 = vpop.f32.mrb[0].mxu0
      %891 = vmatprep.mubr.bf16.mxu0 0
      %892 = vmatmul.mubr.bf16.gmra.mrb[0].mxu0 %v813
      %v893 = vpop.f32.mrb[0].mxu0
      %v894 = vadd.f32 %v746, %v893
      %v895 = vpop.f32.mrb[0].mxu0
      %v896 = vpop.f32.mrb[0].mxu0
      %v897 = vadd.f32 %v749, %v896
      %v898 = vpop.f32.mrb[0].mxu0
      %899 = vmatprep.mubr.bf16.mxu0 0
      %900 = vmatmul.mubr.bf16.gmra.mrb[0].mxu0 %v816
      %v901 = vpop.f32.mrb[0].mxu0
      %v902 = vadd.f32 %v754, %v901
      %v903 = vpop.f32.mrb[0].mxu0
      %v904 = vpop.f32.mrb[0].mxu0
      %v905 = vadd.f32 %v757, %v904
      %v906 = vpop.f32.mrb[0].mxu0
      %907 = vmatprep.mubr.bf16.mxu0 0
      %908 = vmatmul.mubr.bf16.gmra.mrb[0].mxu0 %v819
      %v909 = vpop.f32.mrb[0].mxu0
      %v910 = vadd.f32 %v762, %v909
      %v911 = vpop.f32.mrb[0].mxu0
      %v912 = vpop.f32.mrb[0].mxu0
      %v913 = vadd.f32 %v765, %v912
      %v914 = vpop.f32.mrb[0].mxu0
      %915 = vmatprep.mubr.bf16.mxu0 0
      %916 = vmatmul.mubr.bf16.gmra.mrb[0].mxu0 %v822
      %v917 = vpop.f32.mrb[0].mxu0
      %v918 = vadd.f32 %v770, %v917
      %v919 = vpop.f32.mrb[0].mxu0
      %v920 = vpop.f32.mrb[0].mxu0
      %v921 = vadd.f32 %v773, %v920
      %v922 = vpop.f32.mrb[0].mxu0
      %923 = vdwg.mxu0
      %v924 = vld [vmem:[%s280] sm:$0xc]
      %v925 = vld [vmem:[%s280 + $0xc] sm:$0xc]
      %v926 = vld [vmem:[%s280 + $0x18] sm:$0xc]
      %v927 = vld [vmem:[%s280 + $0x24] sm:$0xc]
      %v928 = vld [vmem:[%s280 + $0x30] sm:$0xc]
      %v929 = vld [vmem:[%s280 + $0x3c] sm:$0xc]
      %v930 = vld [vmem:[%s280 + $0x48] sm:$0xc]
      %v931 = vld [vmem:[%s280 + $0x54] sm:$0xc]
      %vm948 = vcmask 1041408
      %vm949 = vcmask 1045508
      %vm950 = vmor %vm948, %vm949
      %v951 = vrot.slane %v924, 6
      %v952 = vrot.slane %v951, 4
      %v953 = vrot.slane %v282, 6
      %v954 = vsel %vm950, %v952, %v953
      %v955 = vrot.slane %v953, 4
      %v956 = vrot.slane %v389, 6
      %v957 = vsel %vm950, %v955, %v956
      %v958 = vrot.slane %v925, 6
      %v959 = vrot.slane %v958, 4
      %v960 = vrot.slane %v285, 6
      %v961 = vsel %vm950, %v959, %v960
      %v962 = vrot.slane %v960, 4
      %v963 = vrot.slane %v390, 6
      %v964 = vsel %vm950, %v962, %v963
      %v965 = vrot.slane %v926, 6
      %v966 = vrot.slane %v965, 4
      %v967 = vrot.slane %v288, 6
      %v968 = vsel %vm950, %v966, %v967
      %v969 = vrot.slane %v967, 4
      %v970 = vrot.slane %v391, 6
      %v971 = vsel %vm950, %v969, %v970
      %v972 = vrot.slane %v927, 6
      %v973 = vrot.slane %v972, 4
      %v974 = vrot.slane %v291, 6
      %v975 = vsel %vm950, %v973, %v974
      %v976 = vrot.slane %v974, 4
      %v977 = vrot.slane %v392, 6
      %v978 = vsel %vm950, %v976, %v977
      %v979 = vrot.slane %v928, 6
      %v980 = vrot.slane %v979, 4
      %v981 = vrot.slane %v294, 6
      %v982 = vsel %vm950, %v980, %v981
      %v983 = vrot.slane %v981, 4
      %v984 = vrot.slane %v393, 6
      %v985 = vsel %vm950, %v983, %v984
      %v986 = vrot.slane %v929, 6
      %v987 = vrot.slane %v986, 4
      %v988 = vrot.slane %v297, 6
      %v989 = vsel %vm950, %v987, %v988
      %v990 = vrot.slane %v988, 4
      %v991 = vrot.slane %v394, 6
      %v992 = vsel %vm950, %v990, %v991
      %v993 = vrot.slane %v930, 6
      %v994 = vrot.slane %v993, 4
      %v995 = vrot.slane %v300, 6
      %v996 = vsel %vm950, %v994, %v995
      %v997 = vrot.slane %v995, 4
      %v998 = vrot.slane %v395, 6
      %v999 = vsel %vm950, %v997, %v998
      %v1000 = vrot.slane %v931, 6
      %v1001 = vrot.slane %v1000, 4
      %v1002 = vrot.slane %v303, 6
      %v1003 = vsel %vm950, %v1001, %v1002
      %v1004 = vrot.slane %v1002, 4
      %v1005 = vrot.slane %v396, 6
      %v1006 = vsel %vm950, %v1004, %v1005
      %s1007 = scalar_lea.vmem %s1, 4
      %v1008 = vld [vmem:[%s1007] sm:$0x3]
      %v1009 = vunpack.c.l.b16 %v954
      %v1010 = vunpack.c.l.b16 %v957
      %v1011 = vunpack.c.l.b16 %v961
      %v1012 = vunpack.c.l.b16 %v964
      %v1013 = vunpack.c.l.b16 %v968
      %v1014 = vunpack.c.l.b16 %v971
      %v1015 = vunpack.c.l.b16 %v975
      %v1016 = vunpack.c.l.b16 %v978
      %v1017 = vunpack.c.l.b16 %v982
      %v1018 = vunpack.c.l.b16 %v985
      %v1019 = vunpack.c.l.b16 %v989
      %v1020 = vunpack.c.l.b16 %v992
      %v1021 = vunpack.c.l.b16 %v996
      %v1022 = vunpack.c.l.b16 %v999
      %v1023 = vunpack.c.l.b16 %v1003
      %v1024 = vunpack.c.l.b16 %v1006
      %v1025 = vpack.c.b16 %v1010, %v1009
      %v1026 = vpack.c.b16 %v1012, %v1011
      %v1027 = vpack.c.b16 %v1014, %v1013
      %v1028 = vpack.c.b16 %v1016, %v1015
      %v1029 = vpack.c.b16 %v1018, %v1017
      %v1030 = vpack.c.b16 %v1020, %v1019
      %v1031 = vpack.c.b16 %v1022, %v1021
      %v1032 = vpack.c.b16 %v1024, %v1023
      %v1034 = vsel %vm650, %v1025, 0
      %v1037 = vsel %vm650, %v1026, 0
      %v1040 = vsel %vm650, %v1027, 0
      %v1043 = vsel %vm650, %v1028, 0
      %v1046 = vsel %vm650, %v1029, 0
      %v1049 = vsel %vm650, %v1030, 0
      %v1052 = vsel %vm650, %v1031, 0
      %v1055 = vsel %vm650, %v1032, 0
      %v1058 = vsel %vm675, %v1008, 0
      %1060 = vmatprep.subr.bf16.mxu0 0
      %1061 = vmatpush1.bf16.msra.mxu0 %v1058
      %1062 = vmatprep.subr.bf16.mxu0 0
      %1063 = vmatpush1.bf16.msra.mxu0 0
      %1064 = vmatprep.subr.bf16.mxu0 0
      %1065 = vmatpush1.bf16.msra.mxu0 0
      %1066 = vmatprep.subr.bf16.mxu0 0
      %1067 = vmatpush1.bf16.msra.mxu0 0
      %1068 = vmatprep.subr.bf16.mxu0 0
      %1069 = vmatpush1.bf16.msra.mxu0 0
      %1070 = vmatprep.subr.bf16.mxu0 0
      %1071 = vmatpush1.bf16.msra.mxu0 0
      %1072 = vmatprep.subr.bf16.mxu0 0
      %1073 = vmatpush1.bf16.msra.mxu0 0
      %1074 = vmatprep.subr.bf16.mxu0 0
      %1075 = vmatpush1.bf16.msra.mxu0 0
      %1076 = vmatprep.subr.bf16.mxu0 0
      %1077 = vmatpush1.bf16.msra.mxu0 0
      %1078 = vmatprep.subr.bf16.mxu0 0
      %1079 = vmatpush1.bf16.msra.mxu0 0
      %1080 = vmatprep.subr.bf16.mxu0 0
      %1081 = vmatpush1.bf16.msra.mxu0 0
      %1082 = vmatprep.subr.bf16.mxu0 0
      %1083 = vmatpush1.bf16.msra.mxu0 0
      %1084 = vmatprep.subr.bf16.mxu0 0
      %1085 = vmatpush1.bf16.msra.mxu0 0
      %1086 = vmatprep.subr.bf16.mxu0 0
      %1087 = vmatpush1.bf16.msra.mxu0 0
      %1088 = vmatprep.subr.bf16.mxu0 0
      %1089 = vmatpush1.bf16.msra.mxu0 0
      %1090 = vmatprep.subr.bf16.mxu0 0
      %1091 = vmatpush1.bf16.msra.mxu0 0
      %1092 = vmatprep.mubr.bf16.mxu0 0
      %1093 = vmatmul.mubr.bf16.gmra.mrb[0].mxu0 %v1034
      %v1094 = vpop.f32.mrb[0].mxu0
      %v1095 = vadd.f32 0.0, %v1094
      %v1096 = vpop.f32.mrb[0].mxu0
      %v1097 = vpop.f32.mrb[0].mxu0
      %v1098 = vadd.f32 0.0, %v1097
      %v1099 = vpop.f32.mrb[0].mxu0
      %1100 = vmatprep.mubr.bf16.mxu0 0
      %1101 = vmatmul.mubr.bf16.gmra.mrb[0].mxu0 %v1037
      %v1102 = vpop.f32.mrb[0].mxu0
      %v1103 = vadd.f32 0.0, %v1102
      %v1104 = vpop.f32.mrb[0].mxu0
      %v1105 = vpop.f32.mrb[0].mxu0
      %v1106 = vadd.f32 0.0, %v1105
      %v1107 = vpop.f32.mrb[0].mxu0
      %1108 = vmatprep.mubr.bf16.mxu0 0
      %1109 = vmatmul.mubr.bf16.gmra.mrb[0].mxu0 %v1040
      %v1110 = vpop.f32.mrb[0].mxu0
      %v1111 = vadd.f32 0.0, %v1110
      %v1112 = vpop.f32.mrb[0].mxu0
      %v1113 = vpop.f32.mrb[0].mxu0
      %v1114 = vadd.f32 0.0, %v1113
      %v1115 = vpop.f32.mrb[0].mxu0
      %1116 = vmatprep.mubr.bf16.mxu0 0
      %1117 = vmatmul.mubr.bf16.gmra.mrb[0].mxu0 %v1043
      %v1118 = vpop.f32.mrb[0].mxu0
      %v1119 = vadd.f32 0.0, %v1118
      %v1120 = vpop.f32.mrb[0].mxu0
      %v1121 = vpop.f32.mrb[0].mxu0
      %v1122 = vadd.f32 0.0, %v1121
      %v1123 = vpop.f32.mrb[0].mxu0
      %1124 = vmatprep.mubr.bf16.mxu0 0
      %1125 = vmatmul.mubr.bf16.gmra.mrb[0].mxu0 %v1046
      %v1126 = vpop.f32.mrb[0].mxu0
      %v1127 = vadd.f32 0.0, %v1126
      %v1128 = vpop.f32.mrb[0].mxu0
      %v1129 = vpop.f32.mrb[0].mxu0
      %v1130 = vadd.f32 0.0, %v1129
      %v1131 = vpop.f32.mrb[0].mxu0
      %1132 = vmatprep.mubr.bf16.mxu0 0
      %1133 = vmatmul.mubr.bf16.gmra.mrb[0].mxu0 %v1049
      %v1134 = vpop.f32.mrb[0].mxu0
      %v1135 = vadd.f32 0.0, %v1134
      %v1136 = vpop.f32.mrb[0].mxu0
      %v1137 = vpop.f32.mrb[0].mxu0
      %v1138 = vadd.f32 0.0, %v1137
      %v1139 = vpop.f32.mrb[0].mxu0
      %1140 = vmatprep.mubr.bf16.mxu0 0
      %1141 = vmatmul.mubr.bf16.gmra.mrb[0].mxu0 %v1052
      %v1142 = vpop.f32.mrb[0].mxu0
      %v1143 = vadd.f32 0.0, %v1142
      %v1144 = vpop.f32.mrb[0].mxu0
      %v1145 = vpop.f32.mrb[0].mxu0
      %v1146 = vadd.f32 0.0, %v1145
      %v1147 = vpop.f32.mrb[0].mxu0
      %1148 = vmatprep.mubr.bf16.mxu0 0
      %1149 = vmatmul.mubr.bf16.gmra.mrb[0].mxu0 %v1055
      %v1150 = vpop.f32.mrb[0].mxu0
      %v1151 = vadd.f32 0.0, %v1150
      %v1152 = vpop.f32.mrb[0].mxu0
      %v1153 = vpop.f32.mrb[0].mxu0
      %v1154 = vadd.f32 0.0, %v1153
      %v1155 = vpop.f32.mrb[0].mxu0
      %1156 = vdwg.mxu0
      %v1157 = vadd.f32 %v862, %v1095
      %v1158 = vadd.f32 %v865, %v1098
      %v1159 = vadd.f32 %v870, %v1103
      %v1160 = vadd.f32 %v873, %v1106
      %v1161 = vadd.f32 %v878, %v1111
      %v1162 = vadd.f32 %v881, %v1114
      %v1163 = vadd.f32 %v886, %v1119
      %v1164 = vadd.f32 %v889, %v1122
      %v1165 = vadd.f32 %v894, %v1127
      %v1166 = vadd.f32 %v897, %v1130
      %v1167 = vadd.f32 %v902, %v1135
      %v1168 = vadd.f32 %v905, %v1138
      %v1169 = vadd.f32 %v910, %v1143
      %v1170 = vadd.f32 %v913, %v1146
      %v1171 = vadd.f32 %v918, %v1151
      %v1172 = vadd.f32 %v921, %v1154
      %s1173 = sadd.s32 %s276, 3
      %s1174 = smul.u32 %s1173, 3
      %s1175 = smul.addr %s1174, 4
      %s1176 = scalar_lea.vmem %s264, %s1175
      %v1177 = vld [vmem:[%s1176] sm:$0xe]
      %v1178 = vld [vmem:[%s1176 + $0x4] sm:$0xf]
      %v1179 = vld [vmem:[%s1176 + $0x8] sm:$0x1]
      %v1180 = vld [vmem:[%s1176 + $0xc] sm:$0xe]
      %v1181 = vld [vmem:[%s1176 + $0x10] sm:$0xf]
      %v1182 = vld [vmem:[%s1176 + $0x14] sm:$0x1]
      %v1183 = vld [vmem:[%s1176 + $0x18] sm:$0xe]
      %v1184 = vld [vmem:[%s1176 + $0x1c] sm:$0xf]
      %v1185 = vld [vmem:[%s1176 + $0x20] sm:$0x1]
      %v1186 = vld [vmem:[%s1176 + $0x24] sm:$0xe]
      %v1187 = vld [vmem:[%s1176 + $0x28] sm:$0xf]
      %v1188 = vld [vmem:[%s1176 + $0x2c] sm:$0x1]
      %v1189 = vld [vmem:[%s1176 + $0x30] sm:$0xe]
      %v1190 = vld [vmem:[%s1176 + $0x34] sm:$0xf]
      %v1191 = vld [vmem:[%s1176 + $0x38] sm:$0x1]
      %v1192 = vld [vmem:[%s1176 + $0x3c] sm:$0xe]
      %v1193 = vld [vmem:[%s1176 + $0x40] sm:$0xf]
      %v1194 = vld [vmem:[%s1176 + $0x44] sm:$0x1]
      %v1195 = vld [vmem:[%s1176 + $0x48] sm:$0xe]
      %v1196 = vld [vmem:[%s1176 + $0x4c] sm:$0xf]
      %v1197 = vld [vmem:[%s1176 + $0x50] sm:$0x1]
      %v1198 = vld [vmem:[%s1176 + $0x54] sm:$0xe]
      %v1199 = vld [vmem:[%s1176 + $0x58] sm:$0xf]
      %v1200 = vld [vmem:[%s1176 + $0x5c] sm:$0x1]
      %v1225 = vrot.slane %v1177, 5
      %v1226 = vrot.slane %v1225, 4
      %v1227 = vrot.slane %v1178, 5
      %v1228 = vsel %vm331, %v1226, %v1227
      %v1229 = vrot.slane %v1227, 4
      %v1230 = vrot.slane %v1179, 5
      %v1231 = vsel %vm331, %v1229, %v1230
      %v1232 = vrot.slane %v1180, 5
      %v1233 = vrot.slane %v1232, 4
      %v1234 = vrot.slane %v1181, 5
      %v1235 = vsel %vm331, %v1233, %v1234
      %v1236 = vrot.slane %v1234, 4
      %v1237 = vrot.slane %v1182, 5
      %v1238 = vsel %vm331, %v1236, %v1237
      %v1239 = vrot.slane %v1183, 5
      %v1240 = vrot.slane %v1239, 4
      %v1241 = vrot.slane %v1184, 5
      %v1242 = vsel %vm331, %v1240, %v1241
      %v1243 = vrot.slane %v1241, 4
      %v1244 = vrot.slane %v1185, 5
      %v1245 = vsel %vm331, %v1243, %v1244
      %v1246 = vrot.slane %v1186, 5
      %v1247 = vrot.slane %v1246, 4
      %v1248 = vrot.slane %v1187, 5
      %v1249 = vsel %vm331, %v1247, %v1248
      %v1250 = vrot.slane %v1248, 4
      %v1251 = vrot.slane %v1188, 5
      %v1252 = vsel %vm331, %v1250, %v1251
      %v1253 = vrot.slane %v1189, 5
      %v1254 = vrot.slane %v1253, 4
      %v1255 = vrot.slane %v1190, 5
      %v1256 = vsel %vm331, %v1254, %v1255
      %v1257 = vrot.slane %v1255, 4
      %v1258 = vrot.slane %v1191, 5
      %v1259 = vsel %vm331, %v1257, %v1258
      %v1260 = vrot.slane %v1192, 5
      %v1261 = vrot.slane %v1260, 4
      %v1262 = vrot.slane %v1193, 5
      %v1263 = vsel %vm331, %v1261, %v1262
      %v1264 = vrot.slane %v1262, 4
      %v1265 = vrot.slane %v1194, 5
      %v1266 = vsel %vm331, %v1264, %v1265
      %v1267 = vrot.slane %v1195, 5
      %v1268 = vrot.slane %v1267, 4
      %v1269 = vrot.slane %v1196, 5
      %v1270 = vsel %vm331, %v1268, %v1269
      %v1271 = vrot.slane %v1269, 4
      %v1272 = vrot.slane %v1197, 5
      %v1273 = vsel %vm331, %v1271, %v1272
      %v1274 = vrot.slane %v1198, 5
      %v1275 = vrot.slane %v1274, 4
      %v1276 = vrot.slane %v1199, 5
      %v1277 = vsel %vm331, %v1275, %v1276
      %v1278 = vrot.slane %v1276, 4
      %v1279 = vrot.slane %v1200, 5
      %v1280 = vsel %vm331, %v1278, %v1279
      %s1281 = scalar_lea.vmem %s1, 6
      %v1282 = vld [vmem:[%s1281] sm:$0x3]
      %v1283 = vunpack.c.l.b16 %v1228
      %v1284 = vunpack.c.l.b16 %v1231
      %v1285 = vunpack.c.l.b16 %v1235
      %v1286 = vunpack.c.l.b16 %v1238
      %v1287 = vunpack.c.l.b16 %v1242
      %v1288 = vunpack.c.l.b16 %v1245
      %v1289 = vunpack.c.l.b16 %v1249
      %v1290 = vunpack.c.l.b16 %v1252
      %v1291 = vunpack.c.l.b16 %v1256
      %v1292 = vunpack.c.l.b16 %v1259
      %v1293 = vunpack.c.l.b16 %v1263
      %v1294 = vunpack.c.l.b16 %v1266
      %v1295 = vunpack.c.l.b16 %v1270
      %v1296 = vunpack.c.l.b16 %v1273
      %v1297 = vunpack.c.l.b16 %v1277
      %v1298 = vunpack.c.l.b16 %v1280
      %v1299 = vpack.c.b16 %v1284, %v1283
      %v1300 = vpack.c.b16 %v1286, %v1285
      %v1301 = vpack.c.b16 %v1288, %v1287
      %v1302 = vpack.c.b16 %v1290, %v1289
      %v1303 = vpack.c.b16 %v1292, %v1291
      %v1304 = vpack.c.b16 %v1294, %v1293
      %v1305 = vpack.c.b16 %v1296, %v1295
      %v1306 = vpack.c.b16 %v1298, %v1297
      %v1308 = vsel %vm650, %v1299, 0
      %v1311 = vsel %vm650, %v1300, 0
      %v1314 = vsel %vm650, %v1301, 0
      %v1317 = vsel %vm650, %v1302, 0
      %v1320 = vsel %vm650, %v1303, 0
      %v1323 = vsel %vm650, %v1304, 0
      %v1326 = vsel %vm650, %v1305, 0
      %v1329 = vsel %vm650, %v1306, 0
      %v1332 = vsel %vm675, %v1282, 0
      %1334 = vmatprep.subr.bf16.mxu0 0
      %1335 = vmatpush1.bf16.msra.mxu0 %v1332
      %1336 = vmatprep.subr.bf16.mxu0 0
      %1337 = vmatpush1.bf16.msra.mxu0 0
      %1338 = vmatprep.subr.bf16.mxu0 0
      %1339 = vmatpush1.bf16.msra.mxu0 0
      %1340 = vmatprep.subr.bf16.mxu0 0
      %1341 = vmatpush1.bf16.msra.mxu0 0
      %1342 = vmatprep.subr.bf16.mxu0 0
      %1343 = vmatpush1.bf16.msra.mxu0 0
      %1344 = vmatprep.subr.bf16.mxu0 0
      %1345 = vmatpush1.bf16.msra.mxu0 0
      %1346 = vmatprep.subr.bf16.mxu0 0
      %1347 = vmatpush1.bf16.msra.mxu0 0
      %1348 = vmatprep.subr.bf16.mxu0 0
      %1349 = vmatpush1.bf16.msra.mxu0 0
      %1350 = vmatprep.subr.bf16.mxu0 0
      %1351 = vmatpush1.bf16.msra.mxu0 0
      %1352 = vmatprep.subr.bf16.mxu0 0
      %1353 = vmatpush1.bf16.msra.mxu0 0
      %1354 = vmatprep.subr.bf16.mxu0 0
      %1355 = vmatpush1.bf16.msra.mxu0 0
      %1356 = vmatprep.subr.bf16.mxu0 0
      %1357 = vmatpush1.bf16.msra.mxu0 0
      %1358 = vmatprep.subr.bf16.mxu0 0
      %1359 = vmatpush1.bf16.msra.mxu0 0
      %1360 = vmatprep.subr.bf16.mxu0 0
      %1361 = vmatpush1.bf16.msra.mxu0 0
      %1362 = vmatprep.subr.bf16.mxu0 0
      %1363 = vmatpush1.bf16.msra.mxu0 0
      %1364 = vmatprep.subr.bf16.mxu0 0
      %1365 = vmatpush1.bf16.msra.mxu0 0
      %1366 = vmatprep.mubr.bf16.mxu0 0
      %1367 = vmatmul.mubr.bf16.gmra.mrb[0].mxu0 %v1308
      %v1368 = vpop.f32.mrb[0].mxu0
      %v1369 = vadd.f32 0.0, %v1368
      %v1370 = vpop.f32.mrb[0].mxu0
      %v1371 = vpop.f32.mrb[0].mxu0
      %v1372 = vadd.f32 0.0, %v1371
      %v1373 = vpop.f32.mrb[0].mxu0
      %1374 = vmatprep.mubr.bf16.mxu0 0
      %1375 = vmatmul.mubr.bf16.gmra.mrb[0].mxu0 %v1311
      %v1376 = vpop.f32.mrb[0].mxu0
      %v1377 = vadd.f32 0.0, %v1376
      %v1378 = vpop.f32.mrb[0].mxu0
      %v1379 = vpop.f32.mrb[0].mxu0
      %v1380 = vadd.f32 0.0, %v1379
      %v1381 = vpop.f32.mrb[0].mxu0
      %1382 = vmatprep.mubr.bf16.mxu0 0
      %1383 = vmatmul.mubr.bf16.gmra.mrb[0].mxu0 %v1314
      %v1384 = vpop.f32.mrb[0].mxu0
      %v1385 = vadd.f32 0.0, %v1384
      %v1386 = vpop.f32.mrb[0].mxu0
      %v1387 = vpop.f32.mrb[0].mxu0
      %v1388 = vadd.f32 0.0, %v1387
      %v1389 = vpop.f32.mrb[0].mxu0
      %1390 = vmatprep.mubr.bf16.mxu0 0
      %1391 = vmatmul.mubr.bf16.gmra.mrb[0].mxu0 %v1317
      %v1392 = vpop.f32.mrb[0].mxu0
      %v1393 = vadd.f32 0.0, %v1392
      %v1394 = vpop.f32.mrb[0].mxu0
      %v1395 = vpop.f32.mrb[0].mxu0
      %v1396 = vadd.f32 0.0, %v1395
      %v1397 = vpop.f32.mrb[0].mxu0
      %1398 = vmatprep.mubr.bf16.mxu0 0
      %1399 = vmatmul.mubr.bf16.gmra.mrb[0].mxu0 %v1320
      %v1400 = vpop.f32.mrb[0].mxu0
      %v1401 = vadd.f32 0.0, %v1400
      %v1402 = vpop.f32.mrb[0].mxu0
      %v1403 = vpop.f32.mrb[0].mxu0
      %v1404 = vadd.f32 0.0, %v1403
      %v1405 = vpop.f32.mrb[0].mxu0
      %1406 = vmatprep.mubr.bf16.mxu0 0
      %1407 = vmatmul.mubr.bf16.gmra.mrb[0].mxu0 %v1323
      %v1408 = vpop.f32.mrb[0].mxu0
      %v1409 = vadd.f32 0.0, %v1408
      %v1410 = vpop.f32.mrb[0].mxu0
      %v1411 = vpop.f32.mrb[0].mxu0
      %v1412 = vadd.f32 0.0, %v1411
      %v1413 = vpop.f32.mrb[0].mxu0
      %1414 = vmatprep.mubr.bf16.mxu0 0
      %1415 = vmatmul.mubr.bf16.gmra.mrb[0].mxu0 %v1326
      %v1416 = vpop.f32.mrb[0].mxu0
      %v1417 = vadd.f32 0.0, %v1416
      %v1418 = vpop.f32.mrb[0].mxu0
      %v1419 = vpop.f32.mrb[0].mxu0
      %v1420 = vadd.f32 0.0, %v1419
      %v1421 = vpop.f32.mrb[0].mxu0
      %1422 = vmatprep.mubr.bf16.mxu0 0
      %1423 = vmatmul.mubr.bf16.gmra.mrb[0].mxu0 %v1329
      %v1424 = vpop.f32.mrb[0].mxu0
      %v1425 = vadd.f32 0.0, %v1424
      %v1426 = vpop.f32.mrb[0].mxu0
      %v1427 = vpop.f32.mrb[0].mxu0
      %v1428 = vadd.f32 0.0, %v1427
      %v1429 = vpop.f32.mrb[0].mxu0
      %1430 = vdwg.mxu0
      %v1431 = vadd.f32 %v1157, %v1369
      %v1432 = vadd.f32 %v1158, %v1372
      %v1433 = vadd.f32 %v1159, %v1377
      %v1434 = vadd.f32 %v1160, %v1380
      %v1435 = vadd.f32 %v1161, %v1385
      %v1436 = vadd.f32 %v1162, %v1388
      %v1437 = vadd.f32 %v1163, %v1393
      %v1438 = vadd.f32 %v1164, %v1396
      %v1439 = vadd.f32 %v1165, %v1401
      %v1440 = vadd.f32 %v1166, %v1404
      %v1441 = vadd.f32 %v1167, %v1409
      %v1442 = vadd.f32 %v1168, %v1412
      %v1443 = vadd.f32 %v1169, %v1417
      %v1444 = vadd.f32 %v1170, %v1420
      %v1445 = vadd.f32 %v1171, %v1425
      %v1446 = vadd.f32 %v1172, %v1428
      %v1447 = vld [vmem:[%s1176 + $0x8] sm:$0x3]
      %v1448 = vld [vmem:[%s1176 + $0x14] sm:$0x3]
      %v1449 = vld [vmem:[%s1176 + $0x20] sm:$0x3]
      %v1450 = vld [vmem:[%s1176 + $0x2c] sm:$0x3]
      %v1451 = vld [vmem:[%s1176 + $0x38] sm:$0x3]
      %v1452 = vld [vmem:[%s1176 + $0x44] sm:$0x3]
      %v1453 = vld [vmem:[%s1176 + $0x50] sm:$0x3]
      %v1454 = vld [vmem:[%s1176 + $0x5c] sm:$0x3]
      %v1456 = vshrl.u32 %v1177, 16
      %v1458 = vrot.slane %v1456, 5
      %v1459 = vshll.u32 %v1177, 16
      %v1461 = vrot.slane %v1459, 6
      %v1462 = vor.u32 %v1458, %v1461
      %v1463 = vrot.slane %v1462, 4
      %v1465 = vshrl.u32 %v1178, 16
      %v1467 = vrot.slane %v1465, 5
      %v1468 = vshll.u32 %v1178, 16
      %v1470 = vrot.slane %v1468, 6
      %v1471 = vor.u32 %v1467, %v1470
      %v1472 = vsel %vm399, %v1463, %v1471
      %v1473 = vrot.slane %v1471, 4
      %v1475 = vshrl.u32 %v1447, 16
      %v1477 = vrot.slane %v1475, 5
      %v1478 = vshll.u32 %v1447, 16
      %v1480 = vrot.slane %v1478, 6
      %v1481 = vor.u32 %v1477, %v1480
      %v1482 = vsel %vm399, %v1473, %v1481
      %v1484 = vshrl.u32 %v1180, 16
      %v1486 = vrot.slane %v1484, 5
      %v1487 = vshll.u32 %v1180, 16
      %v1489 = vrot.slane %v1487, 6
      %v1490 = vor.u32 %v1486, %v1489
      %v1491 = vrot.slane %v1490, 4
      %v1493 = vshrl.u32 %v1181, 16
      %v1495 = vrot.slane %v1493, 5
      %v1496 = vshll.u32 %v1181, 16
      %v1498 = vrot.slane %v1496, 6
      %v1499 = vor.u32 %v1495, %v1498
      %v1500 = vsel %vm399, %v1491, %v1499
      %v1501 = vrot.slane %v1499, 4
      %v1503 = vshrl.u32 %v1448, 16
      %v1505 = vrot.slane %v1503, 5
      %v1506 = vshll.u32 %v1448, 16
      %v1508 = vrot.slane %v1506, 6
      %v1509 = vor.u32 %v1505, %v1508
      %v1510 = vsel %vm399, %v1501, %v1509
      %v1512 = vshrl.u32 %v1183, 16
      %v1514 = vrot.slane %v1512, 5
      %v1515 = vshll.u32 %v1183, 16
      %v1517 = vrot.slane %v1515, 6
      %v1518 = vor.u32 %v1514, %v1517
      %v1519 = vrot.slane %v1518, 4
      %v1521 = vshrl.u32 %v1184, 16
      %v1523 = vrot.slane %v1521, 5
      %v1524 = vshll.u32 %v1184, 16
      %v1526 = vrot.slane %v1524, 6
      %v1527 = vor.u32 %v1523, %v1526
      %v1528 = vsel %vm399, %v1519, %v1527
      %v1529 = vrot.slane %v1527, 4
      %v1531 = vshrl.u32 %v1449, 16
      %v1533 = vrot.slane %v1531, 5
      %v1534 = vshll.u32 %v1449, 16
      %v1536 = vrot.slane %v1534, 6
      %v1537 = vor.u32 %v1533, %v1536
      %v1538 = vsel %vm399, %v1529, %v1537
      %v1540 = vshrl.u32 %v1186, 16
      %v1542 = vrot.slane %v1540, 5
      %v1543 = vshll.u32 %v1186, 16
      %v1545 = vrot.slane %v1543, 6
      %v1546 = vor.u32 %v1542, %v1545
      %v1547 = vrot.slane %v1546, 4
      %v1549 = vshrl.u32 %v1187, 16
      %v1551 = vrot.slane %v1549, 5
      %v1552 = vshll.u32 %v1187, 16
      %v1554 = vrot.slane %v1552, 6
      %v1555 = vor.u32 %v1551, %v1554
      %v1556 = vsel %vm399, %v1547, %v1555
      %v1557 = vrot.slane %v1555, 4
      %v1559 = vshrl.u32 %v1450, 16
      %v1561 = vrot.slane %v1559, 5
      %v1562 = vshll.u32 %v1450, 16
      %v1564 = vrot.slane %v1562, 6
      %v1565 = vor.u32 %v1561, %v1564
      %v1566 = vsel %vm399, %v1557, %v1565
      %v1568 = vshrl.u32 %v1189, 16
      %v1570 = vrot.slane %v1568, 5
      %v1571 = vshll.u32 %v1189, 16
      %v1573 = vrot.slane %v1571, 6
      %v1574 = vor.u32 %v1570, %v1573
      %v1575 = vrot.slane %v1574, 4
      %v1577 = vshrl.u32 %v1190, 16
      %v1579 = vrot.slane %v1577, 5
      %v1580 = vshll.u32 %v1190, 16
      %v1582 = vrot.slane %v1580, 6
      %v1583 = vor.u32 %v1579, %v1582
      %v1584 = vsel %vm399, %v1575, %v1583
      %v1585 = vrot.slane %v1583, 4
      %v1587 = vshrl.u32 %v1451, 16
      %v1589 = vrot.slane %v1587, 5
      %v1590 = vshll.u32 %v1451, 16
      %v1592 = vrot.slane %v1590, 6
      %v1593 = vor.u32 %v1589, %v1592
      %v1594 = vsel %vm399, %v1585, %v1593
      %v1596 = vshrl.u32 %v1192, 16
      %v1598 = vrot.slane %v1596, 5
      %v1599 = vshll.u32 %v1192, 16
      %v1601 = vrot.slane %v1599, 6
      %v1602 = vor.u32 %v1598, %v1601
      %v1603 = vrot.slane %v1602, 4
      %v1605 = vshrl.u32 %v1193, 16
      %v1607 = vrot.slane %v1605, 5
      %v1608 = vshll.u32 %v1193, 16
      %v1610 = vrot.slane %v1608, 6
      %v1611 = vor.u32 %v1607, %v1610
      %v1612 = vsel %vm399, %v1603, %v1611
      %v1613 = vrot.slane %v1611, 4
      %v1615 = vshrl.u32 %v1452, 16
      %v1617 = vrot.slane %v1615, 5
      %v1618 = vshll.u32 %v1452, 16
      %v1620 = vrot.slane %v1618, 6
      %v1621 = vor.u32 %v1617, %v1620
      %v1622 = vsel %vm399, %v1613, %v1621
      %v1624 = vshrl.u32 %v1195, 16
      %v1626 = vrot.slane %v1624, 5
      %v1627 = vshll.u32 %v1195, 16
      %v1629 = vrot.slane %v1627, 6
      %v1630 = vor.u32 %v1626, %v1629
      %v1631 = vrot.slane %v1630, 4
      %v1633 = vshrl.u32 %v1196, 16
      %v1635 = vrot.slane %v1633, 5
      %v1636 = vshll.u32 %v1196, 16
      %v1638 = vrot.slane %v1636, 6
      %v1639 = vor.u32 %v1635, %v1638
      %v1640 = vsel %vm399, %v1631, %v1639
      %v1641 = vrot.slane %v1639, 4
      %v1643 = vshrl.u32 %v1453, 16
      %v1645 = vrot.slane %v1643, 5
      %v1646 = vshll.u32 %v1453, 16
      %v1648 = vrot.slane %v1646, 6
      %v1649 = vor.u32 %v1645, %v1648
      %v1650 = vsel %vm399, %v1641, %v1649
      %v1652 = vshrl.u32 %v1198, 16
      %v1654 = vrot.slane %v1652, 5
      %v1655 = vshll.u32 %v1198, 16
      %v1657 = vrot.slane %v1655, 6
      %v1658 = vor.u32 %v1654, %v1657
      %v1659 = vrot.slane %v1658, 4
      %v1661 = vshrl.u32 %v1199, 16
      %v1663 = vrot.slane %v1661, 5
      %v1664 = vshll.u32 %v1199, 16
      %v1666 = vrot.slane %v1664, 6
      %v1667 = vor.u32 %v1663, %v1666
      %v1668 = vsel %vm399, %v1659, %v1667
      %v1669 = vrot.slane %v1667, 4
      %v1671 = vshrl.u32 %v1454, 16
      %v1673 = vrot.slane %v1671, 5
      %v1674 = vshll.u32 %v1454, 16
      %v1676 = vrot.slane %v1674, 6
      %v1677 = vor.u32 %v1673, %v1676
      %v1678 = vsel %vm399, %v1669, %v1677
      %s1679 = scalar_lea.vmem %s1, 8
      %v1680 = vld [vmem:[%s1679] sm:$0x3]
      %v1681 = vunpack.c.l.b16 %v1472
      %v1682 = vunpack.c.l.b16 %v1482
      %v1683 = vunpack.c.l.b16 %v1500
      %v1684 = vunpack.c.l.b16 %v1510
      %v1685 = vunpack.c.l.b16 %v1528
      %v1686 = vunpack.c.l.b16 %v1538
      %v1687 = vunpack.c.l.b16 %v1556
      %v1688 = vunpack.c.l.b16 %v1566
      %v1689 = vunpack.c.l.b16 %v1584
      %v1690 = vunpack.c.l.b16 %v1594
      %v1691 = vunpack.c.l.b16 %v1612
      %v1692 = vunpack.c.l.b16 %v1622
      %v1693 = vunpack.c.l.b16 %v1640
      %v1694 = vunpack.c.l.b16 %v1650
      %v1695 = vunpack.c.l.b16 %v1668
      %v1696 = vunpack.c.l.b16 %v1678
      %v1697 = vpack.c.b16 %v1682, %v1681
      %v1698 = vpack.c.b16 %v1684, %v1683
      %v1699 = vpack.c.b16 %v1686, %v1685
      %v1700 = vpack.c.b16 %v1688, %v1687
      %v1701 = vpack.c.b16 %v1690, %v1689
      %v1702 = vpack.c.b16 %v1692, %v1691
      %v1703 = vpack.c.b16 %v1694, %v1693
      %v1704 = vpack.c.b16 %v1696, %v1695
      %v1706 = vsel %vm650, %v1697, 0
      %v1709 = vsel %vm650, %v1698, 0
      %v1712 = vsel %vm650, %v1699, 0
      %v1715 = vsel %vm650, %v1700, 0
      %v1718 = vsel %vm650, %v1701, 0
      %v1721 = vsel %vm650, %v1702, 0
      %v1724 = vsel %vm650, %v1703, 0
      %v1727 = vsel %vm650, %v1704, 0
      %v1730 = vsel %vm675, %v1680, 0
      %1732 = vmatprep.subr.bf16.mxu0 0
      %1733 = vmatpush1.bf16.msra.mxu0 %v1730
      %1734 = vmatprep.subr.bf16.mxu0 0
      %1735 = vmatpush1.bf16.msra.mxu0 0
      %1736 = vmatprep.subr.bf16.mxu0 0
      %1737 = vmatpush1.bf16.msra.mxu0 0
      %1738 = vmatprep.subr.bf16.mxu0 0
      %1739 = vmatpush1.bf16.msra.mxu0 0
      %1740 = vmatprep.subr.bf16.mxu0 0
      %1741 = vmatpush1.bf16.msra.mxu0 0
      %1742 = vmatprep.subr.bf16.mxu0 0
      %1743 = vmatpush1.bf16.msra.mxu0 0
      %1744 = vmatprep.subr.bf16.mxu0 0
      %1745 = vmatpush1.bf16.msra.mxu0 0
      %1746 = vmatprep.subr.bf16.mxu0 0
      %1747 = vmatpush1.bf16.msra.mxu0 0
      %1748 = vmatprep.subr.bf16.mxu0 0
      %1749 = vmatpush1.bf16.msra.mxu0 0
      %1750 = vmatprep.subr.bf16.mxu0 0
      %1751 = vmatpush1.bf16.msra.mxu0 0
      %1752 = vmatprep.subr.bf16.mxu0 0
      %1753 = vmatpush1.bf16.msra.mxu0 0
      %1754 = vmatprep.subr.bf16.mxu0 0
      %1755 = vmatpush1.bf16.msra.mxu0 0
      %1756 = vmatprep.subr.bf16.mxu0 0
      %1757 = vmatpush1.bf16.msra.mxu0 0
      %1758 = vmatprep.subr.bf16.mxu0 0
      %1759 = vmatpush1.bf16.msra.mxu0 0
      %1760 = vmatprep.subr.bf16.mxu0 0
      %1761 = vmatpush1.bf16.msra.mxu0 0
      %1762 = vmatprep.subr.bf16.mxu0 0
      %1763 = vmatpush1.bf16.msra.mxu0 0
      %1764 = vmatprep.mubr.bf16.mxu0 0
      %1765 = vmatmul.mubr.bf16.gmra.mrb[0].mxu0 %v1706
      %v1766 = vpop.f32.mrb[0].mxu0
      %v1767 = vadd.f32 0.0, %v1766
      %v1768 = vpop.f32.mrb[0].mxu0
      %v1769 = vpop.f32.mrb[0].mxu0
      %v1770 = vadd.f32 0.0, %v1769
      %v1771 = vpop.f32.mrb[0].mxu0
      %1772 = vmatprep.mubr.bf16.mxu0 0
      %1773 = vmatmul.mubr.bf16.gmra.mrb[0].mxu0 %v1709
      %v1774 = vpop.f32.mrb[0].mxu0
      %v1775 = vadd.f32 0.0, %v1774
      %v1776 = vpop.f32.mrb[0].mxu0
      %v1777 = vpop.f32.mrb[0].mxu0
      %v1778 = vadd.f32 0.0, %v1777
      %v1779 = vpop.f32.mrb[0].mxu0
      %1780 = vmatprep.mubr.bf16.mxu0 0
      %1781 = vmatmul.mubr.bf16.gmra.mrb[0].mxu0 %v1712
      %v1782 = vpop.f32.mrb[0].mxu0
      %v1783 = vadd.f32 0.0, %v1782
      %v1784 = vpop.f32.mrb[0].mxu0
      %v1785 = vpop.f32.mrb[0].mxu0
      %v1786 = vadd.f32 0.0, %v1785
      %v1787 = vpop.f32.mrb[0].mxu0
      %1788 = vmatprep.mubr.bf16.mxu0 0
      %1789 = vmatmul.mubr.bf16.gmra.mrb[0].mxu0 %v1715
      %v1790 = vpop.f32.mrb[0].mxu0
      %v1791 = vadd.f32 0.0, %v1790
      %v1792 = vpop.f32.mrb[0].mxu0
      %v1793 = vpop.f32.mrb[0].mxu0
      %v1794 = vadd.f32 0.0, %v1793
      %v1795 = vpop.f32.mrb[0].mxu0
      %1796 = vmatprep.mubr.bf16.mxu0 0
      %1797 = vmatmul.mubr.bf16.gmra.mrb[0].mxu0 %v1718
      %v1798 = vpop.f32.mrb[0].mxu0
      %v1799 = vadd.f32 0.0, %v1798
      %v1800 = vpop.f32.mrb[0].mxu0
      %v1801 = vpop.f32.mrb[0].mxu0
      %v1802 = vadd.f32 0.0, %v1801
      %v1803 = vpop.f32.mrb[0].mxu0
      %1804 = vmatprep.mubr.bf16.mxu0 0
      %1805 = vmatmul.mubr.bf16.gmra.mrb[0].mxu0 %v1721
      %v1806 = vpop.f32.mrb[0].mxu0
      %v1807 = vadd.f32 0.0, %v1806
      %v1808 = vpop.f32.mrb[0].mxu0
      %v1809 = vpop.f32.mrb[0].mxu0
      %v1810 = vadd.f32 0.0, %v1809
      %v1811 = vpop.f32.mrb[0].mxu0
      %1812 = vmatprep.mubr.bf16.mxu0 0
      %1813 = vmatmul.mubr.bf16.gmra.mrb[0].mxu0 %v1724
      %v1814 = vpop.f32.mrb[0].mxu0
      %v1815 = vadd.f32 0.0, %v1814
      %v1816 = vpop.f32.mrb[0].mxu0
      %v1817 = vpop.f32.mrb[0].mxu0
      %v1818 = vadd.f32 0.0, %v1817
      %v1819 = vpop.f32.mrb[0].mxu0
      %1820 = vmatprep.mubr.bf16.mxu0 0
      %1821 = vmatmul.mubr.bf16.gmra.mrb[0].mxu0 %v1727
      %v1822 = vpop.f32.mrb[0].mxu0
      %v1823 = vadd.f32 0.0, %v1822
      %v1824 = vpop.f32.mrb[0].mxu0
      %v1825 = vpop.f32.mrb[0].mxu0
      %v1826 = vadd.f32 0.0, %v1825
      %v1827 = vpop.f32.mrb[0].mxu0
      %1828 = vdwg.mxu0
      %v1829 = vadd.f32 %v1431, %v1767
      %v1830 = vadd.f32 %v1432, %v1770
      %v1831 = vadd.f32 %v1433, %v1775
      %v1832 = vadd.f32 %v1434, %v1778
      %v1833 = vadd.f32 %v1435, %v1783
      %v1834 = vadd.f32 %v1436, %v1786
      %v1835 = vadd.f32 %v1437, %v1791
      %v1836 = vadd.f32 %v1438, %v1794
      %v1837 = vadd.f32 %v1439, %v1799
      %v1838 = vadd.f32 %v1440, %v1802
      %v1839 = vadd.f32 %v1441, %v1807
      %v1840 = vadd.f32 %v1442, %v1810
      %v1841 = vadd.f32 %v1443, %v1815
      %v1842 = vadd.f32 %v1444, %v1818
      %v1843 = vadd.f32 %v1445, %v1823
      %v1844 = vadd.f32 %v1446, %v1826
      %v1845 = vld [vmem:[%s1176] sm:$0xc]
      %v1846 = vld [vmem:[%s1176 + $0xc] sm:$0xc]
      %v1847 = vld [vmem:[%s1176 + $0x18] sm:$0xc]
      %v1848 = vld [vmem:[%s1176 + $0x24] sm:$0xc]
      %v1849 = vld [vmem:[%s1176 + $0x30] sm:$0xc]
      %v1850 = vld [vmem:[%s1176 + $0x3c] sm:$0xc]
      %v1851 = vld [vmem:[%s1176 + $0x48] sm:$0xc]
      %v1852 = vld [vmem:[%s1176 + $0x54] sm:$0xc]
      %v1869 = vrot.slane %v1845, 6
      %v1870 = vrot.slane %v1869, 4
      %v1871 = vrot.slane %v1178, 6
      %v1872 = vsel %vm950, %v1870, %v1871
      %v1873 = vrot.slane %v1871, 4
      %v1874 = vrot.slane %v1447, 6
      %v1875 = vsel %vm950, %v1873, %v1874
      %v1876 = vrot.slane %v1846, 6
      %v1877 = vrot.slane %v1876, 4
      %v1878 = vrot.slane %v1181, 6
      %v1879 = vsel %vm950, %v1877, %v1878
      %v1880 = vrot.slane %v1878, 4
      %v1881 = vrot.slane %v1448, 6
      %v1882 = vsel %vm950, %v1880, %v1881
      %v1883 = vrot.slane %v1847, 6
      %v1884 = vrot.slane %v1883, 4
      %v1885 = vrot.slane %v1184, 6
      %v1886 = vsel %vm950, %v1884, %v1885
      %v1887 = vrot.slane %v1885, 4
      %v1888 = vrot.slane %v1449, 6
      %v1889 = vsel %vm950, %v1887, %v1888
      %v1890 = vrot.slane %v1848, 6
      %v1891 = vrot.slane %v1890, 4
      %v1892 = vrot.slane %v1187, 6
      %v1893 = vsel %vm950, %v1891, %v1892
      %v1894 = vrot.slane %v1892, 4
      %v1895 = vrot.slane %v1450, 6
      %v1896 = vsel %vm950, %v1894, %v1895
      %v1897 = vrot.slane %v1849, 6
      %v1898 = vrot.slane %v1897, 4
      %v1899 = vrot.slane %v1190, 6
      %v1900 = vsel %vm950, %v1898, %v1899
      %v1901 = vrot.slane %v1899, 4
      %v1902 = vrot.slane %v1451, 6
      %v1903 = vsel %vm950, %v1901, %v1902
      %v1904 = vrot.slane %v1850, 6
      %v1905 = vrot.slane %v1904, 4
      %v1906 = vrot.slane %v1193, 6
      %v1907 = vsel %vm950, %v1905, %v1906
      %v1908 = vrot.slane %v1906, 4
      %v1909 = vrot.slane %v1452, 6
      %v1910 = vsel %vm950, %v1908, %v1909
      %v1911 = vrot.slane %v1851, 6
      %v1912 = vrot.slane %v1911, 4
      %v1913 = vrot.slane %v1196, 6
      %v1914 = vsel %vm950, %v1912, %v1913
      %v1915 = vrot.slane %v1913, 4
      %v1916 = vrot.slane %v1453, 6
      %v1917 = vsel %vm950, %v1915, %v1916
      %v1918 = vrot.slane %v1852, 6
      %v1919 = vrot.slane %v1918, 4
      %v1920 = vrot.slane %v1199, 6
      %v1921 = vsel %vm950, %v1919, %v1920
      %v1922 = vrot.slane %v1920, 4
      %v1923 = vrot.slane %v1454, 6
      %v1924 = vsel %vm950, %v1922, %v1923
      %s1925 = scalar_lea.vmem %s1, 10
      %v1926 = vld [vmem:[%s1925] sm:$0x3]
      %v1927 = vunpack.c.l.b16 %v1872
      %v1928 = vunpack.c.l.b16 %v1875
      %v1929 = vunpack.c.l.b16 %v1879
      %v1930 = vunpack.c.l.b16 %v1882
      %v1931 = vunpack.c.l.b16 %v1886
      %v1932 = vunpack.c.l.b16 %v1889
      %v1933 = vunpack.c.l.b16 %v1893
      %v1934 = vunpack.c.l.b16 %v1896
      %v1935 = vunpack.c.l.b16 %v1900
      %v1936 = vunpack.c.l.b16 %v1903
      %v1937 = vunpack.c.l.b16 %v1907
      %v1938 = vunpack.c.l.b16 %v1910
      %v1939 = vunpack.c.l.b16 %v1914
      %v1940 = vunpack.c.l.b16 %v1917
      %v1941 = vunpack.c.l.b16 %v1921
      %v1942 = vunpack.c.l.b16 %v1924
      %v1943 = vpack.c.b16 %v1928, %v1927
      %v1944 = vpack.c.b16 %v1930, %v1929
      %v1945 = vpack.c.b16 %v1932, %v1931
      %v1946 = vpack.c.b16 %v1934, %v1933
      %v1947 = vpack.c.b16 %v1936, %v1935
      %v1948 = vpack.c.b16 %v1938, %v1937
      %v1949 = vpack.c.b16 %v1940, %v1939
      %v1950 = vpack.c.b16 %v1942, %v1941
      %v1952 = vsel %vm650, %v1943, 0
      %v1955 = vsel %vm650, %v1944, 0
      %v1958 = vsel %vm650, %v1945, 0
      %v1961 = vsel %vm650, %v1946, 0
      %v1964 = vsel %vm650, %v1947, 0
      %v1967 = vsel %vm650, %v1948, 0
      %v1970 = vsel %vm650, %v1949, 0
      %v1973 = vsel %vm650, %v1950, 0
      %v1976 = vsel %vm675, %v1926, 0
      %1978 = vmatprep.subr.bf16.mxu0 0
      %1979 = vmatpush1.bf16.msra.mxu0 %v1976
      %1980 = vmatprep.subr.bf16.mxu0 0
      %1981 = vmatpush1.bf16.msra.mxu0 0
      %1982 = vmatprep.subr.bf16.mxu0 0
      %1983 = vmatpush1.bf16.msra.mxu0 0
      %1984 = vmatprep.subr.bf16.mxu0 0
      %1985 = vmatpush1.bf16.msra.mxu0 0
      %1986 = vmatprep.subr.bf16.mxu0 0
      %1987 = vmatpush1.bf16.msra.mxu0 0
      %1988 = vmatprep.subr.bf16.mxu0 0
      %1989 = vmatpush1.bf16.msra.mxu0 0
      %1990 = vmatprep.subr.bf16.mxu0 0
      %1991 = vmatpush1.bf16.msra.mxu0 0
      %1992 = vmatprep.subr.bf16.mxu0 0
      %1993 = vmatpush1.bf16.msra.mxu0 0
      %1994 = vmatprep.subr.bf16.mxu0 0
      %1995 = vmatpush1.bf16.msra.mxu0 0
      %1996 = vmatprep.subr.bf16.mxu0 0
      %1997 = vmatpush1.bf16.msra.mxu0 0
      %1998 = vmatprep.subr.bf16.mxu0 0
      %1999 = vmatpush1.bf16.msra.mxu0 0
      %2000 = vmatprep.subr.bf16.mxu0 0
      %2001 = vmatpush1.bf16.msra.mxu0 0
      %2002 = vmatprep.subr.bf16.mxu0 0
      %2003 = vmatpush1.bf16.msra.mxu0 0
      %2004 = vmatprep.subr.bf16.mxu0 0
      %2005 = vmatpush1.bf16.msra.mxu0 0
      %2006 = vmatprep.subr.bf16.mxu0 0
      %2007 = vmatpush1.bf16.msra.mxu0 0
      %2008 = vmatprep.subr.bf16.mxu0 0
      %2009 = vmatpush1.bf16.msra.mxu0 0
      %2010 = vmatprep.mubr.bf16.mxu0 0
      %2011 = vmatmul.mubr.bf16.gmra.mrb[0].mxu0 %v1952
      %v2012 = vpop.f32.mrb[0].mxu0
      %v2013 = vadd.f32 0.0, %v2012
      %v2014 = vpop.f32.mrb[0].mxu0
      %v2015 = vpop.f32.mrb[0].mxu0
      %v2016 = vadd.f32 0.0, %v2015
      %v2017 = vpop.f32.mrb[0].mxu0
      %2018 = vmatprep.mubr.bf16.mxu0 0
      %2019 = vmatmul.mubr.bf16.gmra.mrb[0].mxu0 %v1955
      %v2020 = vpop.f32.mrb[0].mxu0
      %v2021 = vadd.f32 0.0, %v2020
      %v2022 = vpop.f32.mrb[0].mxu0
      %v2023 = vpop.f32.mrb[0].mxu0
      %v2024 = vadd.f32 0.0, %v2023
      %v2025 = vpop.f32.mrb[0].mxu0
      %2026 = vmatprep.mubr.bf16.mxu0 0
      %2027 = vmatmul.mubr.bf16.gmra.mrb[0].mxu0 %v1958
      %v2028 = vpop.f32.mrb[0].mxu0
      %v2029 = vadd.f32 0.0, %v2028
      %v2030 = vpop.f32.mrb[0].mxu0
      %v2031 = vpop.f32.mrb[0].mxu0
      %v2032 = vadd.f32 0.0, %v2031
      %v2033 = vpop.f32.mrb[0].mxu0
      %2034 = vmatprep.mubr.bf16.mxu0 0
      %2035 = vmatmul.mubr.bf16.gmra.mrb[0].mxu0 %v1961
      %v2036 = vpop.f32.mrb[0].mxu0
      %v2037 = vadd.f32 0.0, %v2036
      %v2038 = vpop.f32.mrb[0].mxu0
      %v2039 = vpop.f32.mrb[0].mxu0
      %v2040 = vadd.f32 0.0, %v2039
      %v2041 = vpop.f32.mrb[0].mxu0
      %2042 = vmatprep.mubr.bf16.mxu0 0
      %2043 = vmatmul.mubr.bf16.gmra.mrb[0].mxu0 %v1964
      %v2044 = vpop.f32.mrb[0].mxu0
      %v2045 = vadd.f32 0.0, %v2044
      %v2046 = vpop.f32.mrb[0].mxu0
      %v2047 = vpop.f32.mrb[0].mxu0
      %v2048 = vadd.f32 0.0, %v2047
      %v2049 = vpop.f32.mrb[0].mxu0
      %2050 = vmatprep.mubr.bf16.mxu0 0
      %2051 = vmatmul.mubr.bf16.gmra.mrb[0].mxu0 %v1967
      %v2052 = vpop.f32.mrb[0].mxu0
      %v2053 = vadd.f32 0.0, %v2052
      %v2054 = vpop.f32.mrb[0].mxu0
      %v2055 = vpop.f32.mrb[0].mxu0
      %v2056 = vadd.f32 0.0, %v2055
      %v2057 = vpop.f32.mrb[0].mxu0
      %2058 = vmatprep.mubr.bf16.mxu0 0
      %2059 = vmatmul.mubr.bf16.gmra.mrb[0].mxu0 %v1970
      %v2060 = vpop.f32.mrb[0].mxu0
      %v2061 = vadd.f32 0.0, %v2060
      %v2062 = vpop.f32.mrb[0].mxu0
      %v2063 = vpop.f32.mrb[0].mxu0
      %v2064 = vadd.f32 0.0, %v2063
      %v2065 = vpop.f32.mrb[0].mxu0
      %2066 = vmatprep.mubr.bf16.mxu0 0
      %2067 = vmatmul.mubr.bf16.gmra.mrb[0].mxu0 %v1973
      %v2068 = vpop.f32.mrb[0].mxu0
      %v2069 = vadd.f32 0.0, %v2068
      %v2070 = vpop.f32.mrb[0].mxu0
      %v2071 = vpop.f32.mrb[0].mxu0
      %v2072 = vadd.f32 0.0, %v2071
      %v2073 = vpop.f32.mrb[0].mxu0
      %2074 = vdwg.mxu0
      %v2075 = vadd.f32 %v1829, %v2013
      %v2076 = vadd.f32 %v1830, %v2016
      %v2077 = vadd.f32 %v1831, %v2021
      %v2078 = vadd.f32 %v1832, %v2024
      %v2079 = vadd.f32 %v1833, %v2029
      %v2080 = vadd.f32 %v1834, %v2032
      %v2081 = vadd.f32 %v1835, %v2037
      %v2082 = vadd.f32 %v1836, %v2040
      %v2083 = vadd.f32 %v1837, %v2045
      %v2084 = vadd.f32 %v1838, %v2048
      %v2085 = vadd.f32 %v1839, %v2053
      %v2086 = vadd.f32 %v1840, %v2056
      %v2087 = vadd.f32 %v1841, %v2061
      %v2088 = vadd.f32 %v1842, %v2064
      %v2089 = vadd.f32 %v1843, %v2069
      %v2090 = vadd.f32 %v1844, %v2072
      %s2091 = sadd.s32 %s276, 4
      %s2092 = smul.u32 %s2091, 3
      %s2093 = smul.addr %s2092, 4
      %s2094 = scalar_lea.vmem %s264, %s2093
      %v2095 = vld [vmem:[%s2094] sm:$0xe]
      %v2096 = vld [vmem:[%s2094 + $0x4] sm:$0xf]
      %v2097 = vld [vmem:[%s2094 + $0x8] sm:$0x1]
      %v2098 = vld [vmem:[%s2094 + $0xc] sm:$0xe]
      %v2099 = vld [vmem:[%s2094 + $0x10] sm:$0xf]
      %v2100 = vld [vmem:[%s2094 + $0x14] sm:$0x1]
      %v2101 = vld [vmem:[%s2094 + $0x18] sm:$0xe]
      %v2102 = vld [vmem:[%s2094 + $0x1c] sm:$0xf]
      %v2103 = vld [vmem:[%s2094 + $0x20] sm:$0x1]
      %v2104 = vld [vmem:[%s2094 + $0x24] sm:$0xe]
      %v2105 = vld [vmem:[%s2094 + $0x28] sm:$0xf]
      %v2106 = vld [vmem:[%s2094 + $0x2c] sm:$0x1]
      %v2107 = vld [vmem:[%s2094 + $0x30] sm:$0xe]
      %v2108 = vld [vmem:[%s2094 + $0x34] sm:$0xf]
      %v2109 = vld [vmem:[%s2094 + $0x38] sm:$0x1]
      %v2110 = vld [vmem:[%s2094 + $0x3c] sm:$0xe]
      %v2111 = vld [vmem:[%s2094 + $0x40] sm:$0xf]
      %v2112 = vld [vmem:[%s2094 + $0x44] sm:$0x1]
      %v2113 = vld [vmem:[%s2094 + $0x48] sm:$0xe]
      %v2114 = vld [vmem:[%s2094 + $0x4c] sm:$0xf]
      %v2115 = vld [vmem:[%s2094 + $0x50] sm:$0x1]
      %v2116 = vld [vmem:[%s2094 + $0x54] sm:$0xe]
      %v2117 = vld [vmem:[%s2094 + $0x58] sm:$0xf]
      %v2118 = vld [vmem:[%s2094 + $0x5c] sm:$0x1]
      %v2143 = vrot.slane %v2095, 5
      %v2144 = vrot.slane %v2143, 4
      %v2145 = vrot.slane %v2096, 5
      %v2146 = vsel %vm331, %v2144, %v2145
      %v2147 = vrot.slane %v2145, 4
      %v2148 = vrot.slane %v2097, 5
      %v2149 = vsel %vm331, %v2147, %v2148
      %v2150 = vrot.slane %v2098, 5
      %v2151 = vrot.slane %v2150, 4
      %v2152 = vrot.slane %v2099, 5
      %v2153 = vsel %vm331, %v2151, %v2152
      %v2154 = vrot.slane %v2152, 4
      %v2155 = vrot.slane %v2100, 5
      %v2156 = vsel %vm331, %v2154, %v2155
      %v2157 = vrot.slane %v2101, 5
      %v2158 = vrot.slane %v2157, 4
      %v2159 = vrot.slane %v2102, 5
      %v2160 = vsel %vm331, %v2158, %v2159
      %v2161 = vrot.slane %v2159, 4
      %v2162 = vrot.slane %v2103, 5
      %v2163 = vsel %vm331, %v2161, %v2162
      %v2164 = vrot.slane %v2104, 5
      %v2165 = vrot.slane %v2164, 4
      %v2166 = vrot.slane %v2105, 5
      %v2167 = vsel %vm331, %v2165, %v2166
      %v2168 = vrot.slane %v2166, 4
      %v2169 = vrot.slane %v2106, 5
      %v2170 = vsel %vm331, %v2168, %v2169
      %v2171 = vrot.slane %v2107, 5
      %v2172 = vrot.slane %v2171, 4
      %v2173 = vrot.slane %v2108, 5
      %v2174 = vsel %vm331, %v2172, %v2173
      %v2175 = vrot.slane %v2173, 4
      %v2176 = vrot.slane %v2109, 5
      %v2177 = vsel %vm331, %v2175, %v2176
      %v2178 = vrot.slane %v2110, 5
      %v2179 = vrot.slane %v2178, 4
      %v2180 = vrot.slane %v2111, 5
      %v2181 = vsel %vm331, %v2179, %v2180
      %v2182 = vrot.slane %v2180, 4
      %v2183 = vrot.slane %v2112, 5
      %v2184 = vsel %vm331, %v2182, %v2183
      %v2185 = vrot.slane %v2113, 5
      %v2186 = vrot.slane %v2185, 4
      %v2187 = vrot.slane %v2114, 5
      %v2188 = vsel %vm331, %v2186, %v2187
      %v2189 = vrot.slane %v2187, 4
      %v2190 = vrot.slane %v2115, 5
      %v2191 = vsel %vm331, %v2189, %v2190
      %v2192 = vrot.slane %v2116, 5
      %v2193 = vrot.slane %v2192, 4
      %v2194 = vrot.slane %v2117, 5
      %v2195 = vsel %vm331, %v2193, %v2194
      %v2196 = vrot.slane %v2194, 4
      %v2197 = vrot.slane %v2118, 5
      %v2198 = vsel %vm331, %v2196, %v2197
      %s2199 = scalar_lea.vmem %s1, 12
      %v2200 = vld [vmem:[%s2199] sm:$0x3]
      %v2201 = vunpack.c.l.b16 %v2146
      %v2202 = vunpack.c.l.b16 %v2149
      %v2203 = vunpack.c.l.b16 %v2153
      %v2204 = vunpack.c.l.b16 %v2156
      %v2205 = vunpack.c.l.b16 %v2160
      %v2206 = vunpack.c.l.b16 %v2163
      %v2207 = vunpack.c.l.b16 %v2167
      %v2208 = vunpack.c.l.b16 %v2170
      %v2209 = vunpack.c.l.b16 %v2174
      %v2210 = vunpack.c.l.b16 %v2177
      %v2211 = vunpack.c.l.b16 %v2181
      %v2212 = vunpack.c.l.b16 %v2184
      %v2213 = vunpack.c.l.b16 %v2188
      %v2214 = vunpack.c.l.b16 %v2191
      %v2215 = vunpack.c.l.b16 %v2195
      %v2216 = vunpack.c.l.b16 %v2198
      %v2217 = vpack.c.b16 %v2202, %v2201
      %v2218 = vpack.c.b16 %v2204, %v2203
      %v2219 = vpack.c.b16 %v2206, %v2205
      %v2220 = vpack.c.b16 %v2208, %v2207
      %v2221 = vpack.c.b16 %v2210, %v2209
      %v2222 = vpack.c.b16 %v2212, %v2211
      %v2223 = vpack.c.b16 %v2214, %v2213
      %v2224 = vpack.c.b16 %v2216, %v2215
      %v2226 = vsel %vm650, %v2217, 0
      %v2229 = vsel %vm650, %v2218, 0
      %v2232 = vsel %vm650, %v2219, 0
      %v2235 = vsel %vm650, %v2220, 0
      %v2238 = vsel %vm650, %v2221, 0
      %v2241 = vsel %vm650, %v2222, 0
      %v2244 = vsel %vm650, %v2223, 0
      %v2247 = vsel %vm650, %v2224, 0
      %v2250 = vsel %vm675, %v2200, 0
      %2252 = vmatprep.subr.bf16.mxu0 0
      %2253 = vmatpush1.bf16.msra.mxu0 %v2250
      %2254 = vmatprep.subr.bf16.mxu0 0
      %2255 = vmatpush1.bf16.msra.mxu0 0
      %2256 = vmatprep.subr.bf16.mxu0 0
      %2257 = vmatpush1.bf16.msra.mxu0 0
      %2258 = vmatprep.subr.bf16.mxu0 0
      %2259 = vmatpush1.bf16.msra.mxu0 0
      %2260 = vmatprep.subr.bf16.mxu0 0
      %2261 = vmatpush1.bf16.msra.mxu0 0
      %2262 = vmatprep.subr.bf16.mxu0 0
      %2263 = vmatpush1.bf16.msra.mxu0 0
      %2264 = vmatprep.subr.bf16.mxu0 0
      %2265 = vmatpush1.bf16.msra.mxu0 0
      %2266 = vmatprep.subr.bf16.mxu0 0
      %2267 = vmatpush1.bf16.msra.mxu0 0
      %2268 = vmatprep.subr.bf16.mxu0 0
      %2269 = vmatpush1.bf16.msra.mxu0 0
      %2270 = vmatprep.subr.bf16.mxu0 0
      %2271 = vmatpush1.bf16.msra.mxu0 0
      %2272 = vmatprep.subr.bf16.mxu0 0
      %2273 = vmatpush1.bf16.msra.mxu0 0
      %2274 = vmatprep.subr.bf16.mxu0 0
      %2275 = vmatpush1.bf16.msra.mxu0 0
      %2276 = vmatprep.subr.bf16.mxu0 0
      %2277 = vmatpush1.bf16.msra.mxu0 0
      %2278 = vmatprep.subr.bf16.mxu0 0
      %2279 = vmatpush1.bf16.msra.mxu0 0
      %2280 = vmatprep.subr.bf16.mxu0 0
      %2281 = vmatpush1.bf16.msra.mxu0 0
      %2282 = vmatprep.subr.bf16.mxu0 0
      %2283 = vmatpush1.bf16.msra.mxu0 0
      %2284 = vmatprep.mubr.bf16.mxu0 0
      %2285 = vmatmul.mubr.bf16.gmra.mrb[0].mxu0 %v2226
      %v2286 = vpop.f32.mrb[0].mxu0
      %v2287 = vadd.f32 0.0, %v2286
      %v2288 = vpop.f32.mrb[0].mxu0
      %v2289 = vpop.f32.mrb[0].mxu0
      %v2290 = vadd.f32 0.0, %v2289
      %v2291 = vpop.f32.mrb[0].mxu0
      %2292 = vmatprep.mubr.bf16.mxu0 0
      %2293 = vmatmul.mubr.bf16.gmra.mrb[0].mxu0 %v2229
      %v2294 = vpop.f32.mrb[0].mxu0
      %v2295 = vadd.f32 0.0, %v2294
      %v2296 = vpop.f32.mrb[0].mxu0
      %v2297 = vpop.f32.mrb[0].mxu0
      %v2298 = vadd.f32 0.0, %v2297
      %v2299 = vpop.f32.mrb[0].mxu0
      %2300 = vmatprep.mubr.bf16.mxu0 0
      %2301 = vmatmul.mubr.bf16.gmra.mrb[0].mxu0 %v2232
      %v2302 = vpop.f32.mrb[0].mxu0
      %v2303 = vadd.f32 0.0, %v2302
      %v2304 = vpop.f32.mrb[0].mxu0
      %v2305 = vpop.f32.mrb[0].mxu0
      %v2306 = vadd.f32 0.0, %v2305
      %v2307 = vpop.f32.mrb[0].mxu0
      %2308 = vmatprep.mubr.bf16.mxu0 0
      %2309 = vmatmul.mubr.bf16.gmra.mrb[0].mxu0 %v2235
      %v2310 = vpop.f32.mrb[0].mxu0
      %v2311 = vadd.f32 0.0, %v2310
      %v2312 = vpop.f32.mrb[0].mxu0
      %v2313 = vpop.f32.mrb[0].mxu0
      %v2314 = vadd.f32 0.0, %v2313
      %v2315 = vpop.f32.mrb[0].mxu0
      %2316 = vmatprep.mubr.bf16.mxu0 0
      %2317 = vmatmul.mubr.bf16.gmra.mrb[0].mxu0 %v2238
      %v2318 = vpop.f32.mrb[0].mxu0
      %v2319 = vadd.f32 0.0, %v2318
      %v2320 = vpop.f32.mrb[0].mxu0
      %v2321 = vpop.f32.mrb[0].mxu0
      %v2322 = vadd.f32 0.0, %v2321
      %v2323 = vpop.f32.mrb[0].mxu0
      %2324 = vmatprep.mubr.bf16.mxu0 0
      %2325 = vmatmul.mubr.bf16.gmra.mrb[0].mxu0 %v2241
      %v2326 = vpop.f32.mrb[0].mxu0
      %v2327 = vadd.f32 0.0, %v2326
      %v2328 = vpop.f32.mrb[0].mxu0
      %v2329 = vpop.f32.mrb[0].mxu0
      %v2330 = vadd.f32 0.0, %v2329
      %v2331 = vpop.f32.mrb[0].mxu0
      %2332 = vmatprep.mubr.bf16.mxu0 0
      %2333 = vmatmul.mubr.bf16.gmra.mrb[0].mxu0 %v2244
      %v2334 = vpop.f32.mrb[0].mxu0
      %v2335 = vadd.f32 0.0, %v2334
      %v2336 = vpop.f32.mrb[0].mxu0
      %v2337 = vpop.f32.mrb[0].mxu0
      %v2338 = vadd.f32 0.0, %v2337
      %v2339 = vpop.f32.mrb[0].mxu0
      %2340 = vmatprep.mubr.bf16.mxu0 0
      %2341 = vmatmul.mubr.bf16.gmra.mrb[0].mxu0 %v2247
      %v2342 = vpop.f32.mrb[0].mxu0
      %v2343 = vadd.f32 0.0, %v2342
      %v2344 = vpop.f32.mrb[0].mxu0
      %v2345 = vpop.f32.mrb[0].mxu0
      %v2346 = vadd.f32 0.0, %v2345
      %v2347 = vpop.f32.mrb[0].mxu0
      %2348 = vdwg.mxu0
      %v2349 = vadd.f32 %v2075, %v2287
      %v2350 = vadd.f32 %v2076, %v2290
      %v2351 = vadd.f32 %v2077, %v2295
      %v2352 = vadd.f32 %v2078, %v2298
      %v2353 = vadd.f32 %v2079, %v2303
      %v2354 = vadd.f32 %v2080, %v2306
      %v2355 = vadd.f32 %v2081, %v2311
      %v2356 = vadd.f32 %v2082, %v2314
      %v2357 = vadd.f32 %v2083, %v2319
      %v2358 = vadd.f32 %v2084, %v2322
      %v2359 = vadd.f32 %v2085, %v2327
      %v2360 = vadd.f32 %v2086, %v2330
      %v2361 = vadd.f32 %v2087, %v2335
      %v2362 = vadd.f32 %v2088, %v2338
      %v2363 = vadd.f32 %v2089, %v2343
      %v2364 = vadd.f32 %v2090, %v2346
      %v2365 = vld [vmem:[%s2094 + $0x8] sm:$0x3]
      %v2366 = vld [vmem:[%s2094 + $0x14] sm:$0x3]
      %v2367 = vld [vmem:[%s2094 + $0x20] sm:$0x3]
      %v2368 = vld [vmem:[%s2094 + $0x2c] sm:$0x3]
      %v2369 = vld [vmem:[%s2094 + $0x38] sm:$0x3]
      %v2370 = vld [vmem:[%s2094 + $0x44] sm:$0x3]
      %v2371 = vld [vmem:[%s2094 + $0x50] sm:$0x3]
      %v2372 = vld [vmem:[%s2094 + $0x5c] sm:$0x3]
      %v2374 = vshrl.u32 %v2095, 16
      %v2376 = vrot.slane %v2374, 5
      %v2377 = vshll.u32 %v2095, 16
      %v2379 = vrot.slane %v2377, 6
      %v2380 = vor.u32 %v2376, %v2379
      %v2381 = vrot.slane %v2380, 4
      %v2383 = vshrl.u32 %v2096, 16
      %v2385 = vrot.slane %v2383, 5
      %v2386 = vshll.u32 %v2096, 16
      %v2388 = vrot.slane %v2386, 6
      %v2389 = vor.u32 %v2385, %v2388
      %v2390 = vsel %vm399, %v2381, %v2389
      %v2391 = vrot.slane %v2389, 4
      %v2393 = vshrl.u32 %v2365, 16
      %v2395 = vrot.slane %v2393, 5
      %v2396 = vshll.u32 %v2365, 16
      %v2398 = vrot.slane %v2396, 6
      %v2399 = vor.u32 %v2395, %v2398
      %v2400 = vsel %vm399, %v2391, %v2399
      %v2402 = vshrl.u32 %v2098, 16
      %v2404 = vrot.slane %v2402, 5
      %v2405 = vshll.u32 %v2098, 16
      %v2407 = vrot.slane %v2405, 6
      %v2408 = vor.u32 %v2404, %v2407
      %v2409 = vrot.slane %v2408, 4
      %v2411 = vshrl.u32 %v2099, 16
      %v2413 = vrot.slane %v2411, 5
      %v2414 = vshll.u32 %v2099, 16
      %v2416 = vrot.slane %v2414, 6
      %v2417 = vor.u32 %v2413, %v2416
      %v2418 = vsel %vm399, %v2409, %v2417
      %v2419 = vrot.slane %v2417, 4
      %v2421 = vshrl.u32 %v2366, 16
      %v2423 = vrot.slane %v2421, 5
      %v2424 = vshll.u32 %v2366, 16
      %v2426 = vrot.slane %v2424, 6
      %v2427 = vor.u32 %v2423, %v2426
      %v2428 = vsel %vm399, %v2419, %v2427
      %v2430 = vshrl.u32 %v2101, 16
      %v2432 = vrot.slane %v2430, 5
      %v2433 = vshll.u32 %v2101, 16
      %v2435 = vrot.slane %v2433, 6
      %v2436 = vor.u32 %v2432, %v2435
      %v2437 = vrot.slane %v2436, 4
      %v2439 = vshrl.u32 %v2102, 16
      %v2441 = vrot.slane %v2439, 5
      %v2442 = vshll.u32 %v2102, 16
      %v2444 = vrot.slane %v2442, 6
      %v2445 = vor.u32 %v2441, %v2444
      %v2446 = vsel %vm399, %v2437, %v2445
      %v2447 = vrot.slane %v2445, 4
      %v2449 = vshrl.u32 %v2367, 16
      %v2451 = vrot.slane %v2449, 5
      %v2452 = vshll.u32 %v2367, 16
      %v2454 = vrot.slane %v2452, 6
      %v2455 = vor.u32 %v2451, %v2454
      %v2456 = vsel %vm399, %v2447, %v2455
      %v2458 = vshrl.u32 %v2104, 16
      %v2460 = vrot.slane %v2458, 5
      %v2461 = vshll.u32 %v2104, 16
      %v2463 = vrot.slane %v2461, 6
      %v2464 = vor.u32 %v2460, %v2463
      %v2465 = vrot.slane %v2464, 4
      %v2467 = vshrl.u32 %v2105, 16
      %v2469 = vrot.slane %v2467, 5
      %v2470 = vshll.u32 %v2105, 16
      %v2472 = vrot.slane %v2470, 6
      %v2473 = vor.u32 %v2469, %v2472
      %v2474 = vsel %vm399, %v2465, %v2473
      %v2475 = vrot.slane %v2473, 4
      %v2477 = vshrl.u32 %v2368, 16
      %v2479 = vrot.slane %v2477, 5
      %v2480 = vshll.u32 %v2368, 16
      %v2482 = vrot.slane %v2480, 6
      %v2483 = vor.u32 %v2479, %v2482
      %v2484 = vsel %vm399, %v2475, %v2483
      %v2486 = vshrl.u32 %v2107, 16
      %v2488 = vrot.slane %v2486, 5
      %v2489 = vshll.u32 %v2107, 16
      %v2491 = vrot.slane %v2489, 6
      %v2492 = vor.u32 %v2488, %v2491
      %v2493 = vrot.slane %v2492, 4
      %v2495 = vshrl.u32 %v2108, 16
      %v2497 = vrot.slane %v2495, 5
      %v2498 = vshll.u32 %v2108, 16
      %v2500 = vrot.slane %v2498, 6
      %v2501 = vor.u32 %v2497, %v2500
      %v2502 = vsel %vm399, %v2493, %v2501
      %v2503 = vrot.slane %v2501, 4
      %v2505 = vshrl.u32 %v2369, 16
      %v2507 = vrot.slane %v2505, 5
      %v2508 = vshll.u32 %v2369, 16
      %v2510 = vrot.slane %v2508, 6
      %v2511 = vor.u32 %v2507, %v2510
      %v2512 = vsel %vm399, %v2503, %v2511
      %v2514 = vshrl.u32 %v2110, 16
      %v2516 = vrot.slane %v2514, 5
      %v2517 = vshll.u32 %v2110, 16
      %v2519 = vrot.slane %v2517, 6
      %v2520 = vor.u32 %v2516, %v2519
      %v2521 = vrot.slane %v2520, 4
      %v2523 = vshrl.u32 %v2111, 16
      %v2525 = vrot.slane %v2523, 5
      %v2526 = vshll.u32 %v2111, 16
      %v2528 = vrot.slane %v2526, 6
      %v2529 = vor.u32 %v2525, %v2528
      %v2530 = vsel %vm399, %v2521, %v2529
      %v2531 = vrot.slane %v2529, 4
      %v2533 = vshrl.u32 %v2370, 16
      %v2535 = vrot.slane %v2533, 5
      %v2536 = vshll.u32 %v2370, 16
      %v2538 = vrot.slane %v2536, 6
      %v2539 = vor.u32 %v2535, %v2538
      %v2540 = vsel %vm399, %v2531, %v2539
      %v2542 = vshrl.u32 %v2113, 16
      %v2544 = vrot.slane %v2542, 5
      %v2545 = vshll.u32 %v2113, 16
      %v2547 = vrot.slane %v2545, 6
      %v2548 = vor.u32 %v2544, %v2547
      %v2549 = vrot.slane %v2548, 4
      %v2551 = vshrl.u32 %v2114, 16
      %v2553 = vrot.slane %v2551, 5
      %v2554 = vshll.u32 %v2114, 16
      %v2556 = vrot.slane %v2554, 6
      %v2557 = vor.u32 %v2553, %v2556
      %v2558 = vsel %vm399, %v2549, %v2557
      %v2559 = vrot.slane %v2557, 4
      %v2561 = vshrl.u32 %v2371, 16
      %v2563 = vrot.slane %v2561, 5
      %v2564 = vshll.u32 %v2371, 16
      %v2566 = vrot.slane %v2564, 6
      %v2567 = vor.u32 %v2563, %v2566
      %v2568 = vsel %vm399, %v2559, %v2567
      %v2570 = vshrl.u32 %v2116, 16
      %v2572 = vrot.slane %v2570, 5
      %v2573 = vshll.u32 %v2116, 16
      %v2575 = vrot.slane %v2573, 6
      %v2576 = vor.u32 %v2572, %v2575
      %v2577 = vrot.slane %v2576, 4
      %v2579 = vshrl.u32 %v2117, 16
      %v2581 = vrot.slane %v2579, 5
      %v2582 = vshll.u32 %v2117, 16
      %v2584 = vrot.slane %v2582, 6
      %v2585 = vor.u32 %v2581, %v2584
      %v2586 = vsel %vm399, %v2577, %v2585
      %v2587 = vrot.slane %v2585, 4
      %v2589 = vshrl.u32 %v2372, 16
      %v2591 = vrot.slane %v2589, 5
      %v2592 = vshll.u32 %v2372, 16
      %v2594 = vrot.slane %v2592, 6
      %v2595 = vor.u32 %v2591, %v2594
      %v2596 = vsel %vm399, %v2587, %v2595
      %s2597 = scalar_lea.vmem %s1, 14
      %v2598 = vld [vmem:[%s2597] sm:$0x3]
      %v2599 = vunpack.c.l.b16 %v2390
      %v2600 = vunpack.c.l.b16 %v2400
      %v2601 = vunpack.c.l.b16 %v2418
      %v2602 = vunpack.c.l.b16 %v2428
      %v2603 = vunpack.c.l.b16 %v2446
      %v2604 = vunpack.c.l.b16 %v2456
      %v2605 = vunpack.c.l.b16 %v2474
      %v2606 = vunpack.c.l.b16 %v2484
      %v2607 = vunpack.c.l.b16 %v2502
      %v2608 = vunpack.c.l.b16 %v2512
      %v2609 = vunpack.c.l.b16 %v2530
      %v2610 = vunpack.c.l.b16 %v2540
      %v2611 = vunpack.c.l.b16 %v2558
      %v2612 = vunpack.c.l.b16 %v2568
      %v2613 = vunpack.c.l.b16 %v2586
      %v2614 = vunpack.c.l.b16 %v2596
      %v2615 = vpack.c.b16 %v2600, %v2599
      %v2616 = vpack.c.b16 %v2602, %v2601
      %v2617 = vpack.c.b16 %v2604, %v2603
      %v2618 = vpack.c.b16 %v2606, %v2605
      %v2619 = vpack.c.b16 %v2608, %v2607
      %v2620 = vpack.c.b16 %v2610, %v2609
      %v2621 = vpack.c.b16 %v2612, %v2611
      %v2622 = vpack.c.b16 %v2614, %v2613
      %v2624 = vsel %vm650, %v2615, 0
      %v2627 = vsel %vm650, %v2616, 0
      %v2630 = vsel %vm650, %v2617, 0
      %v2633 = vsel %vm650, %v2618, 0
      %v2636 = vsel %vm650, %v2619, 0
      %v2639 = vsel %vm650, %v2620, 0
      %v2642 = vsel %vm650, %v2621, 0
      %v2645 = vsel %vm650, %v2622, 0
      %v2648 = vsel %vm675, %v2598, 0
      %2650 = vmatprep.subr.bf16.mxu0 0
      %2651 = vmatpush1.bf16.msra.mxu0 %v2648
      %2652 = vmatprep.subr.bf16.mxu0 0
      %2653 = vmatpush1.bf16.msra.mxu0 0
      %2654 = vmatprep.subr.bf16.mxu0 0
      %2655 = vmatpush1.bf16.msra.mxu0 0
      %2656 = vmatprep.subr.bf16.mxu0 0
      %2657 = vmatpush1.bf16.msra.mxu0 0
      %2658 = vmatprep.subr.bf16.mxu0 0
      %2659 = vmatpush1.bf16.msra.mxu0 0
      %2660 = vmatprep.subr.bf16.mxu0 0
      %2661 = vmatpush1.bf16.msra.mxu0 0
      %2662 = vmatprep.subr.bf16.mxu0 0
      %2663 = vmatpush1.bf16.msra.mxu0 0
      %2664 = vmatprep.subr.bf16.mxu0 0
      %2665 = vmatpush1.bf16.msra.mxu0 0
      %2666 = vmatprep.subr.bf16.mxu0 0
      %2667 = vmatpush1.bf16.msra.mxu0 0
      %2668 = vmatprep.subr.bf16.mxu0 0
      %2669 = vmatpush1.bf16.msra.mxu0 0
      %2670 = vmatprep.subr.bf16.mxu0 0
      %2671 = vmatpush1.bf16.msra.mxu0 0
      %2672 = vmatprep.subr.bf16.mxu0 0
      %2673 = vmatpush1.bf16.msra.mxu0 0
      %2674 = vmatprep.subr.bf16.mxu0 0
      %2675 = vmatpush1.bf16.msra.mxu0 0
      %2676 = vmatprep.subr.bf16.mxu0 0
      %2677 = vmatpush1.bf16.msra.mxu0 0
      %2678 = vmatprep.subr.bf16.mxu0 0
      %2679 = vmatpush1.bf16.msra.mxu0 0
      %2680 = vmatprep.subr.bf16.mxu0 0
      %2681 = vmatpush1.bf16.msra.mxu0 0
      %2682 = vmatprep.mubr.bf16.mxu0 0
      %2683 = vmatmul.mubr.bf16.gmra.mrb[0].mxu0 %v2624
      %v2684 = vpop.f32.mrb[0].mxu0
      %v2685 = vadd.f32 0.0, %v2684
      %v2686 = vpop.f32.mrb[0].mxu0
      %v2687 = vpop.f32.mrb[0].mxu0
      %v2688 = vadd.f32 0.0, %v2687
      %v2689 = vpop.f32.mrb[0].mxu0
      %2690 = vmatprep.mubr.bf16.mxu0 0
      %2691 = vmatmul.mubr.bf16.gmra.mrb[0].mxu0 %v2627
      %v2692 = vpop.f32.mrb[0].mxu0
      %v2693 = vadd.f32 0.0, %v2692
      %v2694 = vpop.f32.mrb[0].mxu0
      %v2695 = vpop.f32.mrb[0].mxu0
      %v2696 = vadd.f32 0.0, %v2695
      %v2697 = vpop.f32.mrb[0].mxu0
      %2698 = vmatprep.mubr.bf16.mxu0 0
      %2699 = vmatmul.mubr.bf16.gmra.mrb[0].mxu0 %v2630
      %v2700 = vpop.f32.mrb[0].mxu0
      %v2701 = vadd.f32 0.0, %v2700
      %v2702 = vpop.f32.mrb[0].mxu0
      %v2703 = vpop.f32.mrb[0].mxu0
      %v2704 = vadd.f32 0.0, %v2703
      %v2705 = vpop.f32.mrb[0].mxu0
      %2706 = vmatprep.mubr.bf16.mxu0 0
      %2707 = vmatmul.mubr.bf16.gmra.mrb[0].mxu0 %v2633
      %v2708 = vpop.f32.mrb[0].mxu0
      %v2709 = vadd.f32 0.0, %v2708
      %v2710 = vpop.f32.mrb[0].mxu0
      %v2711 = vpop.f32.mrb[0].mxu0
      %v2712 = vadd.f32 0.0, %v2711
      %v2713 = vpop.f32.mrb[0].mxu0
      %2714 = vmatprep.mubr.bf16.mxu0 0
      %2715 = vmatmul.mubr.bf16.gmra.mrb[0].mxu0 %v2636
      %v2716 = vpop.f32.mrb[0].mxu0
      %v2717 = vadd.f32 0.0, %v2716
      %v2718 = vpop.f32.mrb[0].mxu0
      %v2719 = vpop.f32.mrb[0].mxu0
      %v2720 = vadd.f32 0.0, %v2719
      %v2721 = vpop.f32.mrb[0].mxu0
      %2722 = vmatprep.mubr.bf16.mxu0 0
      %2723 = vmatmul.mubr.bf16.gmra.mrb[0].mxu0 %v2639
      %v2724 = vpop.f32.mrb[0].mxu0
      %v2725 = vadd.f32 0.0, %v2724
      %v2726 = vpop.f32.mrb[0].mxu0
      %v2727 = vpop.f32.mrb[0].mxu0
      %v2728 = vadd.f32 0.0, %v2727
      %v2729 = vpop.f32.mrb[0].mxu0
      %2730 = vmatprep.mubr.bf16.mxu0 0
      %2731 = vmatmul.mubr.bf16.gmra.mrb[0].mxu0 %v2642
      %v2732 = vpop.f32.mrb[0].mxu0
      %v2733 = vadd.f32 0.0, %v2732
      %v2734 = vpop.f32.mrb[0].mxu0
      %v2735 = vpop.f32.mrb[0].mxu0
      %v2736 = vadd.f32 0.0, %v2735
      %v2737 = vpop.f32.mrb[0].mxu0
      %2738 = vmatprep.mubr.bf16.mxu0 0
      %2739 = vmatmul.mubr.bf16.gmra.mrb[0].mxu0 %v2645
      %v2740 = vpop.f32.mrb[0].mxu0
      %v2741 = vadd.f32 0.0, %v2740
      %v2742 = vpop.f32.mrb[0].mxu0
      %v2743 = vpop.f32.mrb[0].mxu0
      %v2744 = vadd.f32 0.0, %v2743
      %v2745 = vpop.f32.mrb[0].mxu0
      %2746 = vdwg.mxu0
      %v2747 = vadd.f32 %v2349, %v2685
      %v2748 = vadd.f32 %v2350, %v2688
      %v2749 = vadd.f32 %v2351, %v2693
      %v2750 = vadd.f32 %v2352, %v2696
      %v2751 = vadd.f32 %v2353, %v2701
      %v2752 = vadd.f32 %v2354, %v2704
      %v2753 = vadd.f32 %v2355, %v2709
      %v2754 = vadd.f32 %v2356, %v2712
      %v2755 = vadd.f32 %v2357, %v2717
      %v2756 = vadd.f32 %v2358, %v2720
      %v2757 = vadd.f32 %v2359, %v2725
      %v2758 = vadd.f32 %v2360, %v2728
      %v2759 = vadd.f32 %v2361, %v2733
      %v2760 = vadd.f32 %v2362, %v2736
      %v2761 = vadd.f32 %v2363, %v2741
      %v2762 = vadd.f32 %v2364, %v2744
      %v2763 = vld [vmem:[%s2094] sm:$0xc]
      %v2764 = vld [vmem:[%s2094 + $0xc] sm:$0xc]
      %v2765 = vld [vmem:[%s2094 + $0x18] sm:$0xc]
      %v2766 = vld [vmem:[%s2094 + $0x24] sm:$0xc]
      %v2767 = vld [vmem:[%s2094 + $0x30] sm:$0xc]
      %v2768 = vld [vmem:[%s2094 + $0x3c] sm:$0xc]
      %v2769 = vld [vmem:[%s2094 + $0x48] sm:$0xc]
      %v2770 = vld [vmem:[%s2094 + $0x54] sm:$0xc]
      %v2787 = vrot.slane %v2763, 6
      %v2788 = vrot.slane %v2787, 4
      %v2789 = vrot.slane %v2096, 6
      %v2790 = vsel %vm950, %v2788, %v2789
      %v2791 = vrot.slane %v2789, 4
      %v2792 = vrot.slane %v2365, 6
      %v2793 = vsel %vm950, %v2791, %v2792
      %v2794 = vrot.slane %v2764, 6
      %v2795 = vrot.slane %v2794, 4
      %v2796 = vrot.slane %v2099, 6
      %v2797 = vsel %vm950, %v2795, %v2796
      %v2798 = vrot.slane %v2796, 4
      %v2799 = vrot.slane %v2366, 6
      %v2800 = vsel %vm950, %v2798, %v2799
      %v2801 = vrot.slane %v2765, 6
      %v2802 = vrot.slane %v2801, 4
      %v2803 = vrot.slane %v2102, 6
      %v2804 = vsel %vm950, %v2802, %v2803
      %v2805 = vrot.slane %v2803, 4
      %v2806 = vrot.slane %v2367, 6
      %v2807 = vsel %vm950, %v2805, %v2806
      %v2808 = vrot.slane %v2766, 6
      %v2809 = vrot.slane %v2808, 4
      %v2810 = vrot.slane %v2105, 6
      %v2811 = vsel %vm950, %v2809, %v2810
      %v2812 = vrot.slane %v2810, 4
      %v2813 = vrot.slane %v2368, 6
      %v2814 = vsel %vm950, %v2812, %v2813
      %v2815 = vrot.slane %v2767, 6
      %v2816 = vrot.slane %v2815, 4
      %v2817 = vrot.slane %v2108, 6
      %v2818 = vsel %vm950, %v2816, %v2817
      %v2819 = vrot.slane %v2817, 4
      %v2820 = vrot.slane %v2369, 6
      %v2821 = vsel %vm950, %v2819, %v2820
      %v2822 = vrot.slane %v2768, 6
      %v2823 = vrot.slane %v2822, 4
      %v2824 = vrot.slane %v2111, 6
      %v2825 = vsel %vm950, %v2823, %v2824
      %v2826 = vrot.slane %v2824, 4
      %v2827 = vrot.slane %v2370, 6
      %v2828 = vsel %vm950, %v2826, %v2827
      %v2829 = vrot.slane %v2769, 6
      %v2830 = vrot.slane %v2829, 4
      %v2831 = vrot.slane %v2114, 6
      %v2832 = vsel %vm950, %v2830, %v2831
      %v2833 = vrot.slane %v2831, 4
      %v2834 = vrot.slane %v2371, 6
      %v2835 = vsel %vm950, %v2833, %v2834
      %v2836 = vrot.slane %v2770, 6
      %v2837 = vrot.slane %v2836, 4
      %v2838 = vrot.slane %v2117, 6
      %v2839 = vsel %vm950, %v2837, %v2838
      %v2840 = vrot.slane %v2838, 4
      %v2841 = vrot.slane %v2372, 6
      %v2842 = vsel %vm950, %v2840, %v2841
      %s2843 = scalar_lea.vmem %s1, 16
      %v2844 = vld [vmem:[%s2843] sm:$0x3]
      %v2845 = vunpack.c.l.b16 %v2790
      %v2846 = vunpack.c.l.b16 %v2793
      %v2847 = vunpack.c.l.b16 %v2797
      %v2848 = vunpack.c.l.b16 %v2800
      %v2849 = vunpack.c.l.b16 %v2804
      %v2850 = vunpack.c.l.b16 %v2807
      %v2851 = vunpack.c.l.b16 %v2811
      %v2852 = vunpack.c.l.b16 %v2814
      %v2853 = vunpack.c.l.b16 %v2818
      %v2854 = vunpack.c.l.b16 %v2821
      %v2855 = vunpack.c.l.b16 %v2825
      %v2856 = vunpack.c.l.b16 %v2828
      %v2857 = vunpack.c.l.b16 %v2832
      %v2858 = vunpack.c.l.b16 %v2835
      %v2859 = vunpack.c.l.b16 %v2839
      %v2860 = vunpack.c.l.b16 %v2842
      %v2861 = vpack.c.b16 %v2846, %v2845
      %v2862 = vpack.c.b16 %v2848, %v2847
      %v2863 = vpack.c.b16 %v2850, %v2849
      %v2864 = vpack.c.b16 %v2852, %v2851
      %v2865 = vpack.c.b16 %v2854, %v2853
      %v2866 = vpack.c.b16 %v2856, %v2855
      %v2867 = vpack.c.b16 %v2858, %v2857
      %v2868 = vpack.c.b16 %v2860, %v2859
      %v2870 = vsel %vm650, %v2861, 0
      %v2873 = vsel %vm650, %v2862, 0
      %v2876 = vsel %vm650, %v2863, 0
      %v2879 = vsel %vm650, %v2864, 0
      %v2882 = vsel %vm650, %v2865, 0
      %v2885 = vsel %vm650, %v2866, 0
      %v2888 = vsel %vm650, %v2867, 0
      %v2891 = vsel %vm650, %v2868, 0
      %v2894 = vsel %vm675, %v2844, 0
      %2896 = vmatprep.subr.bf16.mxu0 0
      %2897 = vmatpush1.bf16.msra.mxu0 %v2894
      %2898 = vmatprep.subr.bf16.mxu0 0
      %2899 = vmatpush1.bf16.msra.mxu0 0
      %2900 = vmatprep.subr.bf16.mxu0 0
      %2901 = vmatpush1.bf16.msra.mxu0 0
      %2902 = vmatprep.subr.bf16.mxu0 0
      %2903 = vmatpush1.bf16.msra.mxu0 0
      %2904 = vmatprep.subr.bf16.mxu0 0
      %2905 = vmatpush1.bf16.msra.mxu0 0
      %2906 = vmatprep.subr.bf16.mxu0 0
      %2907 = vmatpush1.bf16.msra.mxu0 0
      %2908 = vmatprep.subr.bf16.mxu0 0
      %2909 = vmatpush1.bf16.msra.mxu0 0
      %2910 = vmatprep.subr.bf16.mxu0 0
      %2911 = vmatpush1.bf16.msra.mxu0 0
      %2912 = vmatprep.subr.bf16.mxu0 0
      %2913 = vmatpush1.bf16.msra.mxu0 0
      %2914 = vmatprep.subr.bf16.mxu0 0
      %2915 = vmatpush1.bf16.msra.mxu0 0
      %2916 = vmatprep.subr.bf16.mxu0 0
      %2917 = vmatpush1.bf16.msra.mxu0 0
      %2918 = vmatprep.subr.bf16.mxu0 0
      %2919 = vmatpush1.bf16.msra.mxu0 0
      %2920 = vmatprep.subr.bf16.mxu0 0
      %2921 = vmatpush1.bf16.msra.mxu0 0
      %2922 = vmatprep.subr.bf16.mxu0 0
      %2923 = vmatpush1.bf16.msra.mxu0 0
      %2924 = vmatprep.subr.bf16.mxu0 0
      %2925 = vmatpush1.bf16.msra.mxu0 0
      %2926 = vmatprep.subr.bf16.mxu0 0
      %2927 = vmatpush1.bf16.msra.mxu0 0
      %2928 = vmatprep.mubr.bf16.mxu0 0
      %2929 = vmatmul.mubr.bf16.gmra.mrb[0].mxu0 %v2870
      %v2930 = vpop.f32.mrb[0].mxu0
      %v2931 = vadd.f32 0.0, %v2930
      %v2932 = vpop.f32.mrb[0].mxu0
      %v2933 = vpop.f32.mrb[0].mxu0
      %v2934 = vadd.f32 0.0, %v2933
      %v2935 = vpop.f32.mrb[0].mxu0
      %2936 = vmatprep.mubr.bf16.mxu0 0
      %2937 = vmatmul.mubr.bf16.gmra.mrb[0].mxu0 %v2873
      %v2938 = vpop.f32.mrb[0].mxu0
      %v2939 = vadd.f32 0.0, %v2938
      %v2940 = vpop.f32.mrb[0].mxu0
      %v2941 = vpop.f32.mrb[0].mxu0
      %v2942 = vadd.f32 0.0, %v2941
      %v2943 = vpop.f32.mrb[0].mxu0
      %2944 = vmatprep.mubr.bf16.mxu0 0
      %2945 = vmatmul.mubr.bf16.gmra.mrb[0].mxu0 %v2876
      %v2946 = vpop.f32.mrb[0].mxu0
      %v2947 = vadd.f32 0.0, %v2946
      %v2948 = vpop.f32.mrb[0].mxu0
      %v2949 = vpop.f32.mrb[0].mxu0
      %v2950 = vadd.f32 0.0, %v2949
      %v2951 = vpop.f32.mrb[0].mxu0
      %2952 = vmatprep.mubr.bf16.mxu0 0
      %2953 = vmatmul.mubr.bf16.gmra.mrb[0].mxu0 %v2879
      %v2954 = vpop.f32.mrb[0].mxu0
      %v2955 = vadd.f32 0.0, %v2954
      %v2956 = vpop.f32.mrb[0].mxu0
      %v2957 = vpop.f32.mrb[0].mxu0
      %v2958 = vadd.f32 0.0, %v2957
      %v2959 = vpop.f32.mrb[0].mxu0
      %2960 = vmatprep.mubr.bf16.mxu0 0
      %2961 = vmatmul.mubr.bf16.gmra.mrb[0].mxu0 %v2882
      %v2962 = vpop.f32.mrb[0].mxu0
      %v2963 = vadd.f32 0.0, %v2962
      %v2964 = vpop.f32.mrb[0].mxu0
      %v2965 = vpop.f32.mrb[0].mxu0
      %v2966 = vadd.f32 0.0, %v2965
      %v2967 = vpop.f32.mrb[0].mxu0
      %2968 = vmatprep.mubr.bf16.mxu0 0
      %2969 = vmatmul.mubr.bf16.gmra.mrb[0].mxu0 %v2885
      %v2970 = vpop.f32.mrb[0].mxu0
      %v2971 = vadd.f32 0.0, %v2970
      %v2972 = vpop.f32.mrb[0].mxu0
      %v2973 = vpop.f32.mrb[0].mxu0
      %v2974 = vadd.f32 0.0, %v2973
      %v2975 = vpop.f32.mrb[0].mxu0
      %2976 = vmatprep.mubr.bf16.mxu0 0
      %2977 = vmatmul.mubr.bf16.gmra.mrb[0].mxu0 %v2888
      %v2978 = vpop.f32.mrb[0].mxu0
      %v2979 = vadd.f32 0.0, %v2978
      %v2980 = vpop.f32.mrb[0].mxu0
      %v2981 = vpop.f32.mrb[0].mxu0
      %v2982 = vadd.f32 0.0, %v2981
      %v2983 = vpop.f32.mrb[0].mxu0
      %2984 = vmatprep.mubr.bf16.mxu0 0
      %2985 = vmatmul.mubr.bf16.gmra.mrb[0].mxu0 %v2891
      %v2986 = vpop.f32.mrb[0].mxu0
      %v2987 = vadd.f32 0.0, %v2986
      %v2988 = vpop.f32.mrb[0].mxu0
      %v2989 = vpop.f32.mrb[0].mxu0
      %v2990 = vadd.f32 0.0, %v2989
      %v2991 = vpop.f32.mrb[0].mxu0
      %2992 = vdwg.mxu0
      %v2993 = vadd.f32 %v2747, %v2931
      %v2994 = vadd.f32 %v2748, %v2934
      %v2995 = vadd.f32 %v2749, %v2939
      %v2996 = vadd.f32 %v2750, %v2942
      %v2997 = vadd.f32 %v2751, %v2947
      %v2998 = vadd.f32 %v2752, %v2950
      %v2999 = vadd.f32 %v2753, %v2955
      %v3000 = vadd.f32 %v2754, %v2958
      %v3001 = vadd.f32 %v2755, %v2963
      %v3002 = vadd.f32 %v2756, %v2966
      %v3003 = vadd.f32 %v2757, %v2971
      %v3004 = vadd.f32 %v2758, %v2974
      %v3005 = vadd.f32 %v2759, %v2979
      %v3006 = vadd.f32 %v2760, %v2982
      %v3007 = vadd.f32 %v2761, %v2987
      %v3008 = vadd.f32 %v2762, %v2990
      %v3009 = vld [vmem:[%s4] sm:$0x1]
      %v3011 = vlaneseq
      %v3012 = vshrl.u32 %v3011, 7
      %v3013 = vsub.s32 0, %v3012
      %v3014 = vrot.slane %v3009, %v3013
      %v3016 = vmul.f32 %v2993, %v3014
      %v3017 = vmul.f32 %v2994, %v3014
      %v3018 = vmul.f32 %v2995, %v3014
      %v3019 = vmul.f32 %v2996, %v3014
      %v3020 = vmul.f32 %v2997, %v3014
      %v3021 = vmul.f32 %v2998, %v3014
      %v3022 = vmul.f32 %v2999, %v3014
      %v3023 = vmul.f32 %v3000, %v3014
      %v3024 = vmul.f32 %v3001, %v3014
      %v3025 = vmul.f32 %v3002, %v3014
      %v3026 = vmul.f32 %v3003, %v3014
      %v3027 = vmul.f32 %v3004, %v3014
      %v3028 = vmul.f32 %v3005, %v3014
      %v3029 = vmul.f32 %v3006, %v3014
      %v3030 = vmul.f32 %v3007, %v3014
      %v3031 = vmul.f32 %v3008, %v3014
      %v3032 = vld [vmem:[%s5] sm:$0x1]
      %v3034 = vlaneseq
      %v3035 = vshrl.u32 %v3034, 7
      %v3036 = vsub.s32 0, %v3035
      %v3037 = vrot.slane %v3032, %v3036
      %v3039 = vadd.f32 %v3016, %v3037
      %v3040 = vadd.f32 %v3017, %v3037
      %v3041 = vadd.f32 %v3018, %v3037
      %v3042 = vadd.f32 %v3019, %v3037
      %v3043 = vadd.f32 %v3020, %v3037
      %v3044 = vadd.f32 %v3021, %v3037
      %v3045 = vadd.f32 %v3022, %v3037
      %v3046 = vadd.f32 %v3023, %v3037
      %v3047 = vadd.f32 %v3024, %v3037
      %v3048 = vadd.f32 %v3025, %v3037
      %v3049 = vadd.f32 %v3026, %v3037
      %v3050 = vadd.f32 %v3027, %v3037
      %v3051 = vadd.f32 %v3028, %v3037
      %v3052 = vadd.f32 %v3029, %v3037
      %v3053 = vadd.f32 %v3030, %v3037
      %v3054 = vadd.f32 %v3031, %v3037
      %v3055 = vmax.f32 %v3039, 0.0
      %v3056 = vmax.f32 %v3040, 0.0
      %v3057 = vmax.f32 %v3041, 0.0
      %v3058 = vmax.f32 %v3042, 0.0
      %v3059 = vmax.f32 %v3043, 0.0
      %v3060 = vmax.f32 %v3044, 0.0
      %v3061 = vmax.f32 %v3045, 0.0
      %v3062 = vmax.f32 %v3046, 0.0
      %v3063 = vmax.f32 %v3047, 0.0
      %v3064 = vmax.f32 %v3048, 0.0
      %v3065 = vmax.f32 %v3049, 0.0
      %v3066 = vmax.f32 %v3050, 0.0
      %v3067 = vmax.f32 %v3051, 0.0
      %v3068 = vmax.f32 %v3052, 0.0
      %v3069 = vmax.f32 %v3053, 0.0
      %v3070 = vmax.f32 %v3054, 0.0
      %v3071 = vpack.c.bf16 %v3056, %v3055
      %v3072 = vpack.c.bf16 %v3058, %v3057
      %v3073 = vpack.c.bf16 %v3060, %v3059
      %v3074 = vpack.c.bf16 %v3062, %v3061
      %v3075 = vpack.c.bf16 %v3064, %v3063
      %v3076 = vpack.c.bf16 %v3066, %v3065
      %v3077 = vpack.c.bf16 %v3068, %v3067
      %v3078 = vpack.c.bf16 %v3070, %v3069
      %v3087 = vunpack.c.l.b16 %v3071
      %v3088 = vunpack.c.h.b16 %v3071
      %v3089 = vunpack.c.l.b16 %v3072
      %v3090 = vunpack.c.h.b16 %v3072
      %v3091 = vunpack.c.l.b16 %v3073
      %v3092 = vunpack.c.h.b16 %v3073
      %v3093 = vunpack.c.l.b16 %v3074
      %v3094 = vunpack.c.h.b16 %v3074
      %v3095 = vunpack.c.l.b16 %v3075
      %v3096 = vunpack.c.h.b16 %v3075
      %v3097 = vunpack.c.l.b16 %v3076
      %v3098 = vunpack.c.h.b16 %v3076
      %v3099 = vunpack.c.l.b16 %v3077
      %v3100 = vunpack.c.h.b16 %v3077
      %v3101 = vunpack.c.l.b16 %v3078
      %v3102 = vunpack.c.h.b16 %v3078
      %v3103 = vpack.c.b16 %v3087, %v3087
      %v3104 = vpack.c.b16 %v3088, %v3088
      %v3105 = vpack.c.b16 %v3089, %v3089
      %v3106 = vpack.c.b16 %v3090, %v3090
      %v3107 = vpack.c.b16 %v3091, %v3091
      %v3108 = vpack.c.b16 %v3092, %v3092
      %v3109 = vpack.c.b16 %v3093, %v3093
      %v3110 = vpack.c.b16 %v3094, %v3094
      %v3111 = vpack.c.b16 %v3095, %v3095
      %v3112 = vpack.c.b16 %v3096, %v3096
      %v3113 = vpack.c.b16 %v3097, %v3097
      %v3114 = vpack.c.b16 %v3098, %v3098
      %v3115 = vpack.c.b16 %v3099, %v3099
      %v3116 = vpack.c.b16 %v3100, %v3100
      %v3117 = vpack.c.b16 %v3101, %v3101
      %v3118 = vpack.c.b16 %v3102, %v3102
      %vm3135 = vcmask 27648
      %3136 = vst.msk [vmem:[%s273] sm:$0xf] %vm3135, %v3103
      %3137 = vst.msk [vmem:[%s273 + $0x4] sm:$0xf] %vm3135, %v3104
      %3138 = vst.msk [vmem:[%s273 + $0x8] sm:$0xf] %vm3135, %v3105
      %3139 = vst.msk [vmem:[%s273 + $0xc] sm:$0xf] %vm3135, %v3106
      %3140 = vst.msk [vmem:[%s273 + $0x10] sm:$0xf] %vm3135, %v3107
      %3141 = vst.msk [vmem:[%s273 + $0x14] sm:$0xf] %vm3135, %v3108
      %3142 = vst.msk [vmem:[%s273 + $0x18] sm:$0xf] %vm3135, %v3109
      %3143 = vst.msk [vmem:[%s273 + $0x1c] sm:$0xf] %vm3135, %v3110
      %3144 = vst.msk [vmem:[%s273 + $0x20] sm:$0xf] %vm3135, %v3111
      %3145 = vst.msk [vmem:[%s273 + $0x24] sm:$0xf] %vm3135, %v3112
      %3146 = vst.msk [vmem:[%s273 + $0x28] sm:$0xf] %vm3135, %v3113
      %3147 = vst.msk [vmem:[%s273 + $0x2c] sm:$0xf] %vm3135, %v3114
      %3148 = vst.msk [vmem:[%s273 + $0x30] sm:$0xf] %vm3135, %v3115
      %3149 = vst.msk [vmem:[%s273 + $0x34] sm:$0xf] %vm3135, %v3116
      %3150 = vst.msk [vmem:[%s273 + $0x38] sm:$0xf] %vm3135, %v3117
      %3151 = vst.msk [vmem:[%s273 + $0x3c] sm:$0xf] %vm3135, %v3118
      %s3152 = sadd.s32 %s276, 1
      %s3153 = smul.u32 %s3152, 3
      %s3154 = smul.addr %s3153, 4
      %s3155 = scalar_lea.vmem %s264, %s3154
      %v3156 = vld [vmem:[%s3155] sm:$0xf]
      %v3157 = vld [vmem:[%s3155 + $0x4] sm:$0xf]
      %v3158 = vld [vmem:[%s3155 + $0x8] sm:$0x1]
      %v3159 = vld [vmem:[%s3155 + $0xc] sm:$0xf]
      %v3160 = vld [vmem:[%s3155 + $0x10] sm:$0xf]
      %v3161 = vld [vmem:[%s3155 + $0x14] sm:$0x1]
      %v3162 = vld [vmem:[%s3155 + $0x18] sm:$0xf]
      %v3163 = vld [vmem:[%s3155 + $0x1c] sm:$0xf]
      %v3164 = vld [vmem:[%s3155 + $0x20] sm:$0x1]
      %v3165 = vld [vmem:[%s3155 + $0x24] sm:$0xf]
      %v3166 = vld [vmem:[%s3155 + $0x28] sm:$0xf]
      %v3167 = vld [vmem:[%s3155 + $0x2c] sm:$0x1]
      %v3168 = vld [vmem:[%s3155 + $0x30] sm:$0xf]
      %v3169 = vld [vmem:[%s3155 + $0x34] sm:$0xf]
      %v3170 = vld [vmem:[%s3155 + $0x38] sm:$0x1]
      %v3171 = vld [vmem:[%s3155 + $0x3c] sm:$0xf]
      %v3172 = vld [vmem:[%s3155 + $0x40] sm:$0xf]
      %v3173 = vld [vmem:[%s3155 + $0x44] sm:$0x1]
      %v3174 = vld [vmem:[%s3155 + $0x48] sm:$0xf]
      %v3175 = vld [vmem:[%s3155 + $0x4c] sm:$0xf]
      %v3176 = vld [vmem:[%s3155 + $0x50] sm:$0x1]
      %v3177 = vld [vmem:[%s3155 + $0x54] sm:$0xf]
      %v3178 = vld [vmem:[%s3155 + $0x58] sm:$0xf]
      %v3179 = vld [vmem:[%s3155 + $0x5c] sm:$0x1]
      %vm3180 = vsmask.f32 3328
      %vm3181 = vsmask.f32 7440
      %vm3182 = vmor %vm3180, %vm3181
      %v3184 = vshrl.u32 %v3156, 16
      %v3186 = vrot.slane %v3184, 4
      %v3187 = vshll.u32 %v3156, 16
      %v3189 = vrot.slane %v3187, 5
      %v3190 = vor.u32 %v3186, %v3189
      %v3191 = vrot.slane %v3190, 4
      %v3193 = vshll.u32 %v3157, 16
      %v3195 = vrot.slane %v3193, 5
      %v3196 = vsel %vm3182, %v3191, %v3195
      %v3197 = vshrl.u32 %v3157, 16
      %v3199 = vrot.slane %v3197, 4
      %v3200 = vor.u32 %v3199, %v3195
      %v3201 = vrot.slane %v3200, 4
      %v3203 = vshll.u32 %v3158, 16
      %v3205 = vrot.slane %v3203, 5
      %v3206 = vsel %vm3182, %v3201, %v3205
      %v3208 = vshrl.u32 %v3159, 16
      %v3210 = vrot.slane %v3208, 4
      %v3211 = vshll.u32 %v3159, 16
      %v3213 = vrot.slane %v3211, 5
      %v3214 = vor.u32 %v3210, %v3213
      %v3215 = vrot.slane %v3214, 4
      %v3217 = vshll.u32 %v3160, 16
      %v3219 = vrot.slane %v3217, 5
      %v3220 = vsel %vm3182, %v3215, %v3219
      %v3221 = vshrl.u32 %v3160, 16
      %v3223 = vrot.slane %v3221, 4
      %v3224 = vor.u32 %v3223, %v3219
      %v3225 = vrot.slane %v3224, 4
      %v3227 = vshll.u32 %v3161, 16
      %v3229 = vrot.slane %v3227, 5
      %v3230 = vsel %vm3182, %v3225, %v3229
      %v3232 = vshrl.u32 %v3162, 16
      %v3234 = vrot.slane %v3232, 4
      %v3235 = vshll.u32 %v3162, 16
      %v3237 = vrot.slane %v3235, 5
      %v3238 = vor.u32 %v3234, %v3237
      %v3239 = vrot.slane %v3238, 4
      %v3241 = vshll.u32 %v3163, 16
      %v3243 = vrot.slane %v3241, 5
      %v3244 = vsel %vm3182, %v3239, %v3243
      %v3245 = vshrl.u32 %v3163, 16
      %v3247 = vrot.slane %v3245, 4
      %v3248 = vor.u32 %v3247, %v3243
      %v3249 = vrot.slane %v3248, 4
      %v3251 = vshll.u32 %v3164, 16
      %v3253 = vrot.slane %v3251, 5
      %v3254 = vsel %vm3182, %v3249, %v3253
      %v3256 = vshrl.u32 %v3165, 16
      %v3258 = vrot.slane %v3256, 4
      %v3259 = vshll.u32 %v3165, 16
      %v3261 = vrot.slane %v3259, 5
      %v3262 = vor.u32 %v3258, %v3261
      %v3263 = vrot.slane %v3262, 4
      %v3265 = vshll.u32 %v3166, 16
      %v3267 = vrot.slane %v3265, 5
      %v3268 = vsel %vm3182, %v3263, %v3267
      %v3269 = vshrl.u32 %v3166, 16
      %v3271 = vrot.slane %v3269, 4
      %v3272 = vor.u32 %v3271, %v3267
      %v3273 = vrot.slane %v3272, 4
      %v3275 = vshll.u32 %v3167, 16
      %v3277 = vrot.slane %v3275, 5
      %v3278 = vsel %vm3182, %v3273, %v3277
      %v3280 = vshrl.u32 %v3168, 16
      %v3282 = vrot.slane %v3280, 4
      %v3283 = vshll.u32 %v3168, 16
      %v3285 = vrot.slane %v3283, 5
      %v3286 = vor.u32 %v3282, %v3285
      %v3287 = vrot.slane %v3286, 4
      %v3289 = vshll.u32 %v3169, 16
      %v3291 = vrot.slane %v3289, 5
      %v3292 = vsel %vm3182, %v3287, %v3291
      %v3293 = vshrl.u32 %v3169, 16
      %v3295 = vrot.slane %v3293, 4
      %v3296 = vor.u32 %v3295, %v3291
      %v3297 = vrot.slane %v3296, 4
      %v3299 = vshll.u32 %v3170, 16
      %v3301 = vrot.slane %v3299, 5
      %v3302 = vsel %vm3182, %v3297, %v3301
      %v3304 = vshrl.u32 %v3171, 16
      %v3306 = vrot.slane %v3304, 4
      %v3307 = vshll.u32 %v3171, 16
      %v3309 = vrot.slane %v3307, 5
      %v3310 = vor.u32 %v3306, %v3309
      %v3311 = vrot.slane %v3310, 4
      %v3313 = vshll.u32 %v3172, 16
      %v3315 = vrot.slane %v3313, 5
      %v3316 = vsel %vm3182, %v3311, %v3315
      %v3317 = vshrl.u32 %v3172, 16
      %v3319 = vrot.slane %v3317, 4
      %v3320 = vor.u32 %v3319, %v3315
      %v3321 = vrot.slane %v3320, 4
      %v3323 = vshll.u32 %v3173, 16
      %v3325 = vrot.slane %v3323, 5
      %v3326 = vsel %vm3182, %v3321, %v3325
      %v3328 = vshrl.u32 %v3174, 16
      %v3330 = vrot.slane %v3328, 4
      %v3331 = vshll.u32 %v3174, 16
      %v3333 = vrot.slane %v3331, 5
      %v3334 = vor.u32 %v3330, %v3333
      %v3335 = vrot.slane %v3334, 4
      %v3337 = vshll.u32 %v3175, 16
      %v3339 = vrot.slane %v3337, 5
      %v3340 = vsel %vm3182, %v3335, %v3339
      %v3341 = vshrl.u32 %v3175, 16
      %v3343 = vrot.slane %v3341, 4
      %v3344 = vor.u32 %v3343, %v3339
      %v3345 = vrot.slane %v3344, 4
      %v3347 = vshll.u32 %v3176, 16
      %v3349 = vrot.slane %v3347, 5
      %v3350 = vsel %vm3182, %v3345, %v3349
      %v3352 = vshrl.u32 %v3177, 16
      %v3354 = vrot.slane %v3352, 4
      %v3355 = vshll.u32 %v3177, 16
      %v3357 = vrot.slane %v3355, 5
      %v3358 = vor.u32 %v3354, %v3357
      %v3359 = vrot.slane %v3358, 4
      %v3361 = vshll.u32 %v3178, 16
      %v3363 = vrot.slane %v3361, 5
      %v3364 = vsel %vm3182, %v3359, %v3363
      %v3365 = vshrl.u32 %v3178, 16
      %v3367 = vrot.slane %v3365, 4
      %v3368 = vor.u32 %v3367, %v3363
      %v3369 = vrot.slane %v3368, 4
      %v3371 = vshll.u32 %v3179, 16
      %v3373 = vrot.slane %v3371, 5
      %v3374 = vsel %vm3182, %v3369, %v3373
      %v3375 = vld [vmem:[%s2] sm:$0x3]
      %v3376 = vld [vmem:[%s3155] sm:$0xe]
      %v3377 = vld [vmem:[%s3155 + $0x8] sm:$0x3]
      %v3378 = vld [vmem:[%s3155 + $0xc] sm:$0xe]
      %v3379 = vld [vmem:[%s3155 + $0x14] sm:$0x3]
      %v3380 = vld [vmem:[%s3155 + $0x18] sm:$0xe]
      %v3381 = vld [vmem:[%s3155 + $0x20] sm:$0x3]
      %v3382 = vld [vmem:[%s3155 + $0x24] sm:$0xe]
      %v3383 = vld [vmem:[%s3155 + $0x2c] sm:$0x3]
      %v3384 = vld [vmem:[%s3155 + $0x30] sm:$0xe]
      %v3385 = vld [vmem:[%s3155 + $0x38] sm:$0x3]
      %v3386 = vld [vmem:[%s3155 + $0x3c] sm:$0xe]
      %v3387 = vld [vmem:[%s3155 + $0x44] sm:$0x3]
      %v3388 = vld [vmem:[%s3155 + $0x48] sm:$0xe]
      %v3389 = vld [vmem:[%s3155 + $0x50] sm:$0x3]
      %v3390 = vld [vmem:[%s3155 + $0x54] sm:$0xe]
      %v3391 = vld [vmem:[%s3155 + $0x5c] sm:$0x3]
      %v3393 = vshrl.u32 %v3376, 16
      %v3395 = vrot.slane %v3393, 5
      %v3396 = vshll.u32 %v3376, 16
      %v3398 = vrot.slane %v3396, 6
      %v3399 = vor.u32 %v3395, %v3398
      %v3400 = vrot.slane %v3399, 4
      %v3401 = vrot.slane %v3197, 5
      %v3402 = vrot.slane %v3193, 6
      %v3403 = vor.u32 %v3401, %v3402
      %v3404 = vsel %vm399, %v3400, %v3403
      %v3405 = vrot.slane %v3403, 4
      %v3407 = vshrl.u32 %v3377, 16
      %v3409 = vrot.slane %v3407, 5
      %v3410 = vshll.u32 %v3377, 16
      %v3412 = vrot.slane %v3410, 6
      %v3413 = vor.u32 %v3409, %v3412
      %v3414 = vsel %vm399, %v3405, %v3413
      %v3416 = vshrl.u32 %v3378, 16
      %v3418 = vrot.slane %v3416, 5
      %v3419 = vshll.u32 %v3378, 16
      %v3421 = vrot.slane %v3419, 6
      %v3422 = vor.u32 %v3418, %v3421
      %v3423 = vrot.slane %v3422, 4
      %v3424 = vrot.slane %v3221, 5
      %v3425 = vrot.slane %v3217, 6
      %v3426 = vor.u32 %v3424, %v3425
      %v3427 = vsel %vm399, %v3423, %v3426
      %v3428 = vrot.slane %v3426, 4
      %v3430 = vshrl.u32 %v3379, 16
      %v3432 = vrot.slane %v3430, 5
      %v3433 = vshll.u32 %v3379, 16
      %v3435 = vrot.slane %v3433, 6
      %v3436 = vor.u32 %v3432, %v3435
      %v3437 = vsel %vm399, %v3428, %v3436
      %v3439 = vshrl.u32 %v3380, 16
      %v3441 = vrot.slane %v3439, 5
      %v3442 = vshll.u32 %v3380, 16
      %v3444 = vrot.slane %v3442, 6
      %v3445 = vor.u32 %v3441, %v3444
      %v3446 = vrot.slane %v3445, 4
      %v3447 = vrot.slane %v3245, 5
      %v3448 = vrot.slane %v3241, 6
      %v3449 = vor.u32 %v3447, %v3448
      %v3450 = vsel %vm399, %v3446, %v3449
      %v3451 = vrot.slane %v3449, 4
      %v3453 = vshrl.u32 %v3381, 16
      %v3455 = vrot.slane %v3453, 5
      %v3456 = vshll.u32 %v3381, 16
      %v3458 = vrot.slane %v3456, 6
      %v3459 = vor.u32 %v3455, %v3458
      %v3460 = vsel %vm399, %v3451, %v3459
      %v3462 = vshrl.u32 %v3382, 16
      %v3464 = vrot.slane %v3462, 5
      %v3465 = vshll.u32 %v3382, 16
      %v3467 = vrot.slane %v3465, 6
      %v3468 = vor.u32 %v3464, %v3467
      %v3469 = vrot.slane %v3468, 4
      %v3470 = vrot.slane %v3269, 5
      %v3471 = vrot.slane %v3265, 6
      %v3472 = vor.u32 %v3470, %v3471
      %v3473 = vsel %vm399, %v3469, %v3472
      %v3474 = vrot.slane %v3472, 4
      %v3476 = vshrl.u32 %v3383, 16
      %v3478 = vrot.slane %v3476, 5
      %v3479 = vshll.u32 %v3383, 16
      %v3481 = vrot.slane %v3479, 6
      %v3482 = vor.u32 %v3478, %v3481
      %v3483 = vsel %vm399, %v3474, %v3482
      %v3485 = vshrl.u32 %v3384, 16
      %v3487 = vrot.slane %v3485, 5
      %v3488 = vshll.u32 %v3384, 16
      %v3490 = vrot.slane %v3488, 6
      %v3491 = vor.u32 %v3487, %v3490
      %v3492 = vrot.slane %v3491, 4
      %v3493 = vrot.slane %v3293, 5
      %v3494 = vrot.slane %v3289, 6
      %v3495 = vor.u32 %v3493, %v3494
      %v3496 = vsel %vm399, %v3492, %v3495
      %v3497 = vrot.slane %v3495, 4
      %v3499 = vshrl.u32 %v3385, 16
      %v3501 = vrot.slane %v3499, 5
      %v3502 = vshll.u32 %v3385, 16
      %v3504 = vrot.slane %v3502, 6
      %v3505 = vor.u32 %v3501, %v3504
      %v3506 = vsel %vm399, %v3497, %v3505
      %v3508 = vshrl.u32 %v3386, 16
      %v3510 = vrot.slane %v3508, 5
      %v3511 = vshll.u32 %v3386, 16
      %v3513 = vrot.slane %v3511, 6
      %v3514 = vor.u32 %v3510, %v3513
      %v3515 = vrot.slane %v3514, 4
      %v3516 = vrot.slane %v3317, 5
      %v3517 = vrot.slane %v3313, 6
      %v3518 = vor.u32 %v3516, %v3517
      %v3519 = vsel %vm399, %v3515, %v3518
      %v3520 = vrot.slane %v3518, 4
      %v3522 = vshrl.u32 %v3387, 16
      %v3524 = vrot.slane %v3522, 5
      %v3525 = vshll.u32 %v3387, 16
      %v3527 = vrot.slane %v3525, 6
      %v3528 = vor.u32 %v3524, %v3527
      %v3529 = vsel %vm399, %v3520, %v3528
      %v3531 = vshrl.u32 %v3388, 16
      %v3533 = vrot.slane %v3531, 5
      %v3534 = vshll.u32 %v3388, 16
      %v3536 = vrot.slane %v3534, 6
      %v3537 = vor.u32 %v3533, %v3536
      %v3538 = vrot.slane %v3537, 4
      %v3539 = vrot.slane %v3341, 5
      %v3540 = vrot.slane %v3337, 6
      %v3541 = vor.u32 %v3539, %v3540
      %v3542 = vsel %vm399, %v3538, %v3541
      %v3543 = vrot.slane %v3541, 4
      %v3545 = vshrl.u32 %v3389, 16
      %v3547 = vrot.slane %v3545, 5
      %v3548 = vshll.u32 %v3389, 16
      %v3550 = vrot.slane %v3548, 6
      %v3551 = vor.u32 %v3547, %v3550
      %v3552 = vsel %vm399, %v3543, %v3551
      %v3554 = vshrl.u32 %v3390, 16
      %v3556 = vrot.slane %v3554, 5
      %v3557 = vshll.u32 %v3390, 16
      %v3559 = vrot.slane %v3557, 6
      %v3560 = vor.u32 %v3556, %v3559
      %v3561 = vrot.slane %v3560, 4
      %v3562 = vrot.slane %v3365, 5
      %v3563 = vrot.slane %v3361, 6
      %v3564 = vor.u32 %v3562, %v3563
      %v3565 = vsel %vm399, %v3561, %v3564
      %v3566 = vrot.slane %v3564, 4
      %v3568 = vshrl.u32 %v3391, 16
      %v3570 = vrot.slane %v3568, 5
      %v3571 = vshll.u32 %v3391, 16
      %v3573 = vrot.slane %v3571, 6
      %v3574 = vor.u32 %v3570, %v3573
      %v3575 = vsel %vm399, %v3566, %v3574
      %s3576 = scalar_lea.vmem %s2, 2
      %v3577 = vld [vmem:[%s3576] sm:$0x3]
      %v3578 = vunpack.c.l.b16 %v3404
      %v3579 = vunpack.c.l.b16 %v3414
      %v3580 = vunpack.c.l.b16 %v3427
      %v3581 = vunpack.c.l.b16 %v3437
      %v3582 = vunpack.c.l.b16 %v3450
      %v3583 = vunpack.c.l.b16 %v3460
      %v3584 = vunpack.c.l.b16 %v3473
      %v3585 = vunpack.c.l.b16 %v3483
      %v3586 = vunpack.c.l.b16 %v3496
      %v3587 = vunpack.c.l.b16 %v3506
      %v3588 = vunpack.c.l.b16 %v3519
      %v3589 = vunpack.c.l.b16 %v3529
      %v3590 = vunpack.c.l.b16 %v3542
      %v3591 = vunpack.c.l.b16 %v3552
      %v3592 = vunpack.c.l.b16 %v3565
      %v3593 = vunpack.c.l.b16 %v3575
      %v3594 = vpack.c.b16 %v3579, %v3578
      %v3595 = vpack.c.b16 %v3581, %v3580
      %v3596 = vpack.c.b16 %v3583, %v3582
      %v3597 = vpack.c.b16 %v3585, %v3584
      %v3598 = vpack.c.b16 %v3587, %v3586
      %v3599 = vpack.c.b16 %v3589, %v3588
      %v3600 = vpack.c.b16 %v3591, %v3590
      %v3601 = vpack.c.b16 %v3593, %v3592
      %v3603 = vsel %vm650, %v3594, 0
      %v3606 = vsel %vm650, %v3595, 0
      %v3609 = vsel %vm650, %v3596, 0
      %v3612 = vsel %vm650, %v3597, 0
      %v3615 = vsel %vm650, %v3598, 0
      %v3618 = vsel %vm650, %v3599, 0
      %v3621 = vsel %vm650, %v3600, 0
      %v3624 = vsel %vm650, %v3601, 0
      %v3627 = vsel %vm675, %v3577, 0
      %3629 = vmatprep.subr.bf16.mxu0 0
      %3630 = vmatpush1.bf16.msra.mxu0 %v3627
      %3631 = vmatprep.subr.bf16.mxu0 0
      %3632 = vmatpush1.bf16.msra.mxu0 0
      %3633 = vmatprep.subr.bf16.mxu0 0
      %3634 = vmatpush1.bf16.msra.mxu0 0
      %3635 = vmatprep.subr.bf16.mxu0 0
      %3636 = vmatpush1.bf16.msra.mxu0 0
      %3637 = vmatprep.subr.bf16.mxu0 0
      %3638 = vmatpush1.bf16.msra.mxu0 0
      %3639 = vmatprep.subr.bf16.mxu0 0
      %3640 = vmatpush1.bf16.msra.mxu0 0
      %3641 = vmatprep.subr.bf16.mxu0 0
      %3642 = vmatpush1.bf16.msra.mxu0 0
      %3643 = vmatprep.subr.bf16.mxu0 0
      %3644 = vmatpush1.bf16.msra.mxu0 0
      %3645 = vmatprep.subr.bf16.mxu0 0
      %3646 = vmatpush1.bf16.msra.mxu0 0
      %3647 = vmatprep.subr.bf16.mxu0 0
      %3648 = vmatpush1.bf16.msra.mxu0 0
      %3649 = vmatprep.subr.bf16.mxu0 0
      %3650 = vmatpush1.bf16.msra.mxu0 0
      %3651 = vmatprep.subr.bf16.mxu0 0
      %3652 = vmatpush1.bf16.msra.mxu0 0
      %3653 = vmatprep.subr.bf16.mxu0 0
      %3654 = vmatpush1.bf16.msra.mxu0 0
      %3655 = vmatprep.subr.bf16.mxu0 0
      %3656 = vmatpush1.bf16.msra.mxu0 0
      %3657 = vmatprep.subr.bf16.mxu0 0
      %3658 = vmatpush1.bf16.msra.mxu0 0
      %3659 = vmatprep.subr.bf16.mxu0 0
      %3660 = vmatpush1.bf16.msra.mxu0 0
      %3661 = vmatprep.mubr.bf16.mxu0 0
      %3662 = vmatmul.mubr.bf16.gmra.mrb[0].mxu0 %v3603
      %v3663 = vpop.f32.mrb[0].mxu0
      %v3664 = vadd.f32 0.0, %v3663
      %v3665 = vpop.f32.mrb[0].mxu0
      %v3666 = vpop.f32.mrb[0].mxu0
      %v3667 = vadd.f32 0.0, %v3666
      %v3668 = vpop.f32.mrb[0].mxu0
      %3669 = vmatprep.mubr.bf16.mxu0 0
      %3670 = vmatmul.mubr.bf16.gmra.mrb[0].mxu0 %v3606
      %v3671 = vpop.f32.mrb[0].mxu0
      %v3672 = vadd.f32 0.0, %v3671
      %v3673 = vpop.f32.mrb[0].mxu0
      %v3674 = vpop.f32.mrb[0].mxu0
      %v3675 = vadd.f32 0.0, %v3674
      %v3676 = vpop.f32.mrb[0].mxu0
      %3677 = vmatprep.mubr.bf16.mxu0 0
      %3678 = vmatmul.mubr.bf16.gmra.mrb[0].mxu0 %v3609
      %v3679 = vpop.f32.mrb[0].mxu0
      %v3680 = vadd.f32 0.0, %v3679
      %v3681 = vpop.f32.mrb[0].mxu0
      %v3682 = vpop.f32.mrb[0].mxu0
      %v3683 = vadd.f32 0.0, %v3682
      %v3684 = vpop.f32.mrb[0].mxu0
      %3685 = vmatprep.mubr.bf16.mxu0 0
      %3686 = vmatmul.mubr.bf16.gmra.mrb[0].mxu0 %v3612
      %v3687 = vpop.f32.mrb[0].mxu0
      %v3688 = vadd.f32 0.0, %v3687
      %v3689 = vpop.f32.mrb[0].mxu0
      %v3690 = vpop.f32.mrb[0].mxu0
      %v3691 = vadd.f32 0.0, %v3690
      %v3692 = vpop.f32.mrb[0].mxu0
      %3693 = vmatprep.mubr.bf16.mxu0 0
      %3694 = vmatmul.mubr.bf16.gmra.mrb[0].mxu0 %v3615
      %v3695 = vpop.f32.mrb[0].mxu0
      %v3696 = vadd.f32 0.0, %v3695
      %v3697 = vpop.f32.mrb[0].mxu0
      %v3698 = vpop.f32.mrb[0].mxu0
      %v3699 = vadd.f32 0.0, %v3698
      %v3700 = vpop.f32.mrb[0].mxu0
      %3701 = vmatprep.mubr.bf16.mxu0 0
      %3702 = vmatmul.mubr.bf16.gmra.mrb[0].mxu0 %v3618
      %v3703 = vpop.f32.mrb[0].mxu0
      %v3704 = vadd.f32 0.0, %v3703
      %v3705 = vpop.f32.mrb[0].mxu0
      %v3706 = vpop.f32.mrb[0].mxu0
      %v3707 = vadd.f32 0.0, %v3706
      %v3708 = vpop.f32.mrb[0].mxu0
      %3709 = vmatprep.mubr.bf16.mxu0 0
      %3710 = vmatmul.mubr.bf16.gmra.mrb[0].mxu0 %v3621
      %v3711 = vpop.f32.mrb[0].mxu0
      %v3712 = vadd.f32 0.0, %v3711
      %v3713 = vpop.f32.mrb[0].mxu0
      %v3714 = vpop.f32.mrb[0].mxu0
      %v3715 = vadd.f32 0.0, %v3714
      %v3716 = vpop.f32.mrb[0].mxu0
      %3717 = vmatprep.mubr.bf16.mxu0 0
      %3718 = vmatmul.mubr.bf16.gmra.mrb[0].mxu0 %v3624
      %v3719 = vpop.f32.mrb[0].mxu0
      %v3720 = vadd.f32 0.0, %v3719
      %v3721 = vpop.f32.mrb[0].mxu0
      %v3722 = vpop.f32.mrb[0].mxu0
      %v3723 = vadd.f32 0.0, %v3722
      %v3724 = vpop.f32.mrb[0].mxu0
      %3725 = vdwg.mxu0
      %v3726 = vunpack.c.l.b16 %v3196
      %v3727 = vunpack.c.l.b16 %v3206
      %v3728 = vunpack.c.l.b16 %v3220
      %v3729 = vunpack.c.l.b16 %v3230
      %v3730 = vunpack.c.l.b16 %v3244
      %v3731 = vunpack.c.l.b16 %v3254
      %v3732 = vunpack.c.l.b16 %v3268
      %v3733 = vunpack.c.l.b16 %v3278
      %v3734 = vunpack.c.l.b16 %v3292
      %v3735 = vunpack.c.l.b16 %v3302
      %v3736 = vunpack.c.l.b16 %v3316
      %v3737 = vunpack.c.l.b16 %v3326
      %v3738 = vunpack.c.l.b16 %v3340
      %v3739 = vunpack.c.l.b16 %v3350
      %v3740 = vunpack.c.l.b16 %v3364
      %v3741 = vunpack.c.l.b16 %v3374
      %v3742 = vpack.c.b16 %v3727, %v3726
      %v3743 = vpack.c.b16 %v3729, %v3728
      %v3744 = vpack.c.b16 %v3731, %v3730
      %v3745 = vpack.c.b16 %v3733, %v3732
      %v3746 = vpack.c.b16 %v3735, %v3734
      %v3747 = vpack.c.b16 %v3737, %v3736
      %v3748 = vpack.c.b16 %v3739, %v3738
      %v3749 = vpack.c.b16 %v3741, %v3740
      %v3751 = vsel %vm650, %v3742, 0
      %v3754 = vsel %vm650, %v3743, 0
      %v3757 = vsel %vm650, %v3744, 0
      %v3760 = vsel %vm650, %v3745, 0
      %v3763 = vsel %vm650, %v3746, 0
      %v3766 = vsel %vm650, %v3747, 0
      %v3769 = vsel %vm650, %v3748, 0
      %v3772 = vsel %vm650, %v3749, 0
      %v3775 = vsel %vm675, %v3375, 0
      %3777 = vmatprep.subr.bf16.mxu0 0
      %3778 = vmatpush1.bf16.msra.mxu0 %v3775
      %3779 = vmatprep.subr.bf16.mxu0 0
      %3780 = vmatpush1.bf16.msra.mxu0 0
      %3781 = vmatprep.subr.bf16.mxu0 0
      %3782 = vmatpush1.bf16.msra.mxu0 0
      %3783 = vmatprep.subr.bf16.mxu0 0
      %3784 = vmatpush1.bf16.msra.mxu0 0
      %3785 = vmatprep.subr.bf16.mxu0 0
      %3786 = vmatpush1.bf16.msra.mxu0 0
      %3787 = vmatprep.subr.bf16.mxu0 0
      %3788 = vmatpush1.bf16.msra.mxu0 0
      %3789 = vmatprep.subr.bf16.mxu0 0
      %3790 = vmatpush1.bf16.msra.mxu0 0
      %3791 = vmatprep.subr.bf16.mxu0 0
      %3792 = vmatpush1.bf16.msra.mxu0 0
      %3793 = vmatprep.subr.bf16.mxu0 0
      %3794 = vmatpush1.bf16.msra.mxu0 0
      %3795 = vmatprep.subr.bf16.mxu0 0
      %3796 = vmatpush1.bf16.msra.mxu0 0
      %3797 = vmatprep.subr.bf16.mxu0 0
      %3798 = vmatpush1.bf16.msra.mxu0 0
      %3799 = vmatprep.subr.bf16.mxu0 0
      %3800 = vmatpush1.bf16.msra.mxu0 0
      %3801 = vmatprep.subr.bf16.mxu0 0
      %3802 = vmatpush1.bf16.msra.mxu0 0
      %3803 = vmatprep.subr.bf16.mxu0 0
      %3804 = vmatpush1.bf16.msra.mxu0 0
      %3805 = vmatprep.subr.bf16.mxu0 0
      %3806 = vmatpush1.bf16.msra.mxu0 0
      %3807 = vmatprep.subr.bf16.mxu0 0
      %3808 = vmatpush1.bf16.msra.mxu0 0
      %3809 = vmatprep.mubr.bf16.mxu0 0
      %3810 = vmatmul.mubr.bf16.gmra.mrb[0].mxu0 %v3751
      %v3811 = vpop.f32.mrb[0].mxu0
      %v3812 = vadd.f32 %v3664, %v3811
      %v3813 = vpop.f32.mrb[0].mxu0
      %v3814 = vpop.f32.mrb[0].mxu0
      %v3815 = vadd.f32 %v3667, %v3814
      %v3816 = vpop.f32.mrb[0].mxu0
      %3817 = vmatprep.mubr.bf16.mxu0 0
      %3818 = vmatmul.mubr.bf16.gmra.mrb[0].mxu0 %v3754
      %v3819 = vpop.f32.mrb[0].mxu0
      %v3820 = vadd.f32 %v3672, %v3819
      %v3821 = vpop.f32.mrb[0].mxu0
      %v3822 = vpop.f32.mrb[0].mxu0
      %v3823 = vadd.f32 %v3675, %v3822
      %v3824 = vpop.f32.mrb[0].mxu0
      %3825 = vmatprep.mubr.bf16.mxu0 0
      %3826 = vmatmul.mubr.bf16.gmra.mrb[0].mxu0 %v3757
      %v3827 = vpop.f32.mrb[0].mxu0
      %v3828 = vadd.f32 %v3680, %v3827
      %v3829 = vpop.f32.mrb[0].mxu0
      %v3830 = vpop.f32.mrb[0].mxu0
      %v3831 = vadd.f32 %v3683, %v3830
      %v3832 = vpop.f32.mrb[0].mxu0
      %3833 = vmatprep.mubr.bf16.mxu0 0
      %3834 = vmatmul.mubr.bf16.gmra.mrb[0].mxu0 %v3760
      %v3835 = vpop.f32.mrb[0].mxu0
      %v3836 = vadd.f32 %v3688, %v3835
      %v3837 = vpop.f32.mrb[0].mxu0
      %v3838 = vpop.f32.mrb[0].mxu0
      %v3839 = vadd.f32 %v3691, %v3838
      %v3840 = vpop.f32.mrb[0].mxu0
      %3841 = vmatprep.mubr.bf16.mxu0 0
      %3842 = vmatmul.mubr.bf16.gmra.mrb[0].mxu0 %v3763
      %v3843 = vpop.f32.mrb[0].mxu0
      %v3844 = vadd.f32 %v3696, %v3843
      %v3845 = vpop.f32.mrb[0].mxu0
      %v3846 = vpop.f32.mrb[0].mxu0
      %v3847 = vadd.f32 %v3699, %v3846
      %v3848 = vpop.f32.mrb[0].mxu0
      %3849 = vmatprep.mubr.bf16.mxu0 0
      %3850 = vmatmul.mubr.bf16.gmra.mrb[0].mxu0 %v3766
      %v3851 = vpop.f32.mrb[0].mxu0
      %v3852 = vadd.f32 %v3704, %v3851
      %v3853 = vpop.f32.mrb[0].mxu0
      %v3854 = vpop.f32.mrb[0].mxu0
      %v3855 = vadd.f32 %v3707, %v3854
      %v3856 = vpop.f32.mrb[0].mxu0
      %3857 = vmatprep.mubr.bf16.mxu0 0
      %3858 = vmatmul.mubr.bf16.gmra.mrb[0].mxu0 %v3769
      %v3859 = vpop.f32.mrb[0].mxu0
      %v3860 = vadd.f32 %v3712, %v3859
      %v3861 = vpop.f32.mrb[0].mxu0
      %v3862 = vpop.f32.mrb[0].mxu0
      %v3863 = vadd.f32 %v3715, %v3862
      %v3864 = vpop.f32.mrb[0].mxu0
      %3865 = vmatprep.mubr.bf16.mxu0 0
      %3866 = vmatmul.mubr.bf16.gmra.mrb[0].mxu0 %v3772
      %v3867 = vpop.f32.mrb[0].mxu0
      %v3868 = vadd.f32 %v3720, %v3867
      %v3869 = vpop.f32.mrb[0].mxu0
      %v3870 = vpop.f32.mrb[0].mxu0
      %v3871 = vadd.f32 %v3723, %v3870
      %v3872 = vpop.f32.mrb[0].mxu0
      %3873 = vdwg.mxu0
      %v3874 = vld [vmem:[%s3155] sm:$0xc]
      %v3875 = vld [vmem:[%s3155 + $0x8] sm:$0x7]
      %v3876 = vld [vmem:[%s3155 + $0xc] sm:$0xc]
      %v3877 = vld [vmem:[%s3155 + $0x14] sm:$0x7]
      %v3878 = vld [vmem:[%s3155 + $0x18] sm:$0xc]
      %v3879 = vld [vmem:[%s3155 + $0x20] sm:$0x7]
      %v3880 = vld [vmem:[%s3155 + $0x24] sm:$0xc]
      %v3881 = vld [vmem:[%s3155 + $0x2c] sm:$0x7]
      %v3882 = vld [vmem:[%s3155 + $0x30] sm:$0xc]
      %v3883 = vld [vmem:[%s3155 + $0x38] sm:$0x7]
      %v3884 = vld [vmem:[%s3155 + $0x3c] sm:$0xc]
      %v3885 = vld [vmem:[%s3155 + $0x44] sm:$0x7]
      %v3886 = vld [vmem:[%s3155 + $0x48] sm:$0xc]
      %v3887 = vld [vmem:[%s3155 + $0x50] sm:$0x7]
      %v3888 = vld [vmem:[%s3155 + $0x54] sm:$0xc]
      %v3889 = vld [vmem:[%s3155 + $0x5c] sm:$0x7]
      %vm3890 = vsmask.f32 1280
      %vm3891 = vsmask.f32 5392
      %vm3892 = vmor %vm3890, %vm3891
      %v3894 = vshrl.u32 %v3874, 16
      %v3896 = vrot.slane %v3894, 6
      %v3897 = vshll.u32 %v3874, 16
      %v3899 = vrot.slane %v3897, 7
      %v3900 = vor.u32 %v3896, %v3899
      %v3901 = vrot.slane %v3900, 4
      %v3902 = vrot.slane %v3197, 6
      %v3903 = vrot.slane %v3193, 7
      %v3904 = vor.u32 %v3902, %v3903
      %v3905 = vsel %vm3892, %v3901, %v3904
      %v3906 = vrot.slane %v3904, 4
      %v3908 = vshrl.u32 %v3875, 16
      %v3910 = vrot.slane %v3908, 6
      %v3911 = vshll.u32 %v3875, 16
      %v3913 = vrot.slane %v3911, 7
      %v3914 = vor.u32 %v3910, %v3913
      %v3915 = vsel %vm3892, %v3906, %v3914
      %v3917 = vshrl.u32 %v3876, 16
      %v3919 = vrot.slane %v3917, 6
      %v3920 = vshll.u32 %v3876, 16
      %v3922 = vrot.slane %v3920, 7
      %v3923 = vor.u32 %v3919, %v3922
      %v3924 = vrot.slane %v3923, 4
      %v3925 = vrot.slane %v3221, 6
      %v3926 = vrot.slane %v3217, 7
      %v3927 = vor.u32 %v3925, %v3926
      %v3928 = vsel %vm3892, %v3924, %v3927
      %v3929 = vrot.slane %v3927, 4
      %v3931 = vshrl.u32 %v3877, 16
      %v3933 = vrot.slane %v3931, 6
      %v3934 = vshll.u32 %v3877, 16
      %v3936 = vrot.slane %v3934, 7
      %v3937 = vor.u32 %v3933, %v3936
      %v3938 = vsel %vm3892, %v3929, %v3937
      %v3940 = vshrl.u32 %v3878, 16
      %v3942 = vrot.slane %v3940, 6
      %v3943 = vshll.u32 %v3878, 16
      %v3945 = vrot.slane %v3943, 7
      %v3946 = vor.u32 %v3942, %v3945
      %v3947 = vrot.slane %v3946, 4
      %v3948 = vrot.slane %v3245, 6
      %v3949 = vrot.slane %v3241, 7
      %v3950 = vor.u32 %v3948, %v3949
      %v3951 = vsel %vm3892, %v3947, %v3950
      %v3952 = vrot.slane %v3950, 4
      %v3954 = vshrl.u32 %v3879, 16
      %v3956 = vrot.slane %v3954, 6
      %v3957 = vshll.u32 %v3879, 16
      %v3959 = vrot.slane %v3957, 7
      %v3960 = vor.u32 %v3956, %v3959
      %v3961 = vsel %vm3892, %v3952, %v3960
      %v3963 = vshrl.u32 %v3880, 16
      %v3965 = vrot.slane %v3963, 6
      %v3966 = vshll.u32 %v3880, 16
      %v3968 = vrot.slane %v3966, 7
      %v3969 = vor.u32 %v3965, %v3968
      %v3970 = vrot.slane %v3969, 4
      %v3971 = vrot.slane %v3269, 6
      %v3972 = vrot.slane %v3265, 7
      %v3973 = vor.u32 %v3971, %v3972
      %v3974 = vsel %vm3892, %v3970, %v3973
      %v3975 = vrot.slane %v3973, 4
      %v3977 = vshrl.u32 %v3881, 16
      %v3979 = vrot.slane %v3977, 6
      %v3980 = vshll.u32 %v3881, 16
      %v3982 = vrot.slane %v3980, 7
      %v3983 = vor.u32 %v3979, %v3982
      %v3984 = vsel %vm3892, %v3975, %v3983
      %v3986 = vshrl.u32 %v3882, 16
      %v3988 = vrot.slane %v3986, 6
      %v3989 = vshll.u32 %v3882, 16
      %v3991 = vrot.slane %v3989, 7
      %v3992 = vor.u32 %v3988, %v3991
      %v3993 = vrot.slane %v3992, 4
      %v3994 = vrot.slane %v3293, 6
      %v3995 = vrot.slane %v3289, 7
      %v3996 = vor.u32 %v3994, %v3995
      %v3997 = vsel %vm3892, %v3993, %v3996
      %v3998 = vrot.slane %v3996, 4
      %v4000 = vshrl.u32 %v3883, 16
      %v4002 = vrot.slane %v4000, 6
      %v4003 = vshll.u32 %v3883, 16
      %v4005 = vrot.slane %v4003, 7
      %v4006 = vor.u32 %v4002, %v4005
      %v4007 = vsel %vm3892, %v3998, %v4006
      %v4009 = vshrl.u32 %v3884, 16
      %v4011 = vrot.slane %v4009, 6
      %v4012 = vshll.u32 %v3884, 16
      %v4014 = vrot.slane %v4012, 7
      %v4015 = vor.u32 %v4011, %v4014
      %v4016 = vrot.slane %v4015, 4
      %v4017 = vrot.slane %v3317, 6
      %v4018 = vrot.slane %v3313, 7
      %v4019 = vor.u32 %v4017, %v4018
      %v4020 = vsel %vm3892, %v4016, %v4019
      %v4021 = vrot.slane %v4019, 4
      %v4023 = vshrl.u32 %v3885, 16
      %v4025 = vrot.slane %v4023, 6
      %v4026 = vshll.u32 %v3885, 16
      %v4028 = vrot.slane %v4026, 7
      %v4029 = vor.u32 %v4025, %v4028
      %v4030 = vsel %vm3892, %v4021, %v4029
      %v4032 = vshrl.u32 %v3886, 16
      %v4034 = vrot.slane %v4032, 6
      %v4035 = vshll.u32 %v3886, 16
      %v4037 = vrot.slane %v4035, 7
      %v4038 = vor.u32 %v4034, %v4037
      %v4039 = vrot.slane %v4038, 4
      %v4040 = vrot.slane %v3341, 6
      %v4041 = vrot.slane %v3337, 7
      %v4042 = vor.u32 %v4040, %v4041
      %v4043 = vsel %vm3892, %v4039, %v4042
      %v4044 = vrot.slane %v4042, 4
      %v4046 = vshrl.u32 %v3887, 16
      %v4048 = vrot.slane %v4046, 6
      %v4049 = vshll.u32 %v3887, 16
      %v4051 = vrot.slane %v4049, 7
      %v4052 = vor.u32 %v4048, %v4051
      %v4053 = vsel %vm3892, %v4044, %v4052
      %v4055 = vshrl.u32 %v3888, 16
      %v4057 = vrot.slane %v4055, 6
      %v4058 = vshll.u32 %v3888, 16
      %v4060 = vrot.slane %v4058, 7
      %v4061 = vor.u32 %v4057, %v4060
      %v4062 = vrot.slane %v4061, 4
      %v4063 = vrot.slane %v3365, 6
      %v4064 = vrot.slane %v3361, 7
      %v4065 = vor.u32 %v4063, %v4064
      %v4066 = vsel %vm3892, %v4062, %v4065
      %v4067 = vrot.slane %v4065, 4
      %v4069 = vshrl.u32 %v3889, 16
      %v4071 = vrot.slane %v4069, 6
      %v4072 = vshll.u32 %v3889, 16
      %v4074 = vrot.slane %v4072, 7
      %v4075 = vor.u32 %v4071, %v4074
      %v4076 = vsel %vm3892, %v4067, %v4075
      %s4077 = scalar_lea.vmem %s2, 4
      %v4078 = vld [vmem:[%s4077] sm:$0x3]
      %v4079 = vunpack.c.l.b16 %v3905
      %v4080 = vunpack.c.l.b16 %v3915
      %v4081 = vunpack.c.l.b16 %v3928
      %v4082 = vunpack.c.l.b16 %v3938
      %v4083 = vunpack.c.l.b16 %v3951
      %v4084 = vunpack.c.l.b16 %v3961
      %v4085 = vunpack.c.l.b16 %v3974
      %v4086 = vunpack.c.l.b16 %v3984
      %v4087 = vunpack.c.l.b16 %v3997
      %v4088 = vunpack.c.l.b16 %v4007
      %v4089 = vunpack.c.l.b16 %v4020
      %v4090 = vunpack.c.l.b16 %v4030
      %v4091 = vunpack.c.l.b16 %v4043
      %v4092 = vunpack.c.l.b16 %v4053
      %v4093 = vunpack.c.l.b16 %v4066
      %v4094 = vunpack.c.l.b16 %v4076
      %v4095 = vpack.c.b16 %v4080, %v4079
      %v4096 = vpack.c.b16 %v4082, %v4081
      %v4097 = vpack.c.b16 %v4084, %v4083
      %v4098 = vpack.c.b16 %v4086, %v4085
      %v4099 = vpack.c.b16 %v4088, %v4087
      %v4100 = vpack.c.b16 %v4090, %v4089
      %v4101 = vpack.c.b16 %v4092, %v4091
      %v4102 = vpack.c.b16 %v4094, %v4093
      %v4104 = vsel %vm650, %v4095, 0
      %v4107 = vsel %vm650, %v4096, 0
      %v4110 = vsel %vm650, %v4097, 0
      %v4113 = vsel %vm650, %v4098, 0
      %v4116 = vsel %vm650, %v4099, 0
      %v4119 = vsel %vm650, %v4100, 0
      %v4122 = vsel %vm650, %v4101, 0
      %v4125 = vsel %vm650, %v4102, 0
      %v4128 = vsel %vm675, %v4078, 0
      %4130 = vmatprep.subr.bf16.mxu0 0
      %4131 = vmatpush1.bf16.msra.mxu0 %v4128
      %4132 = vmatprep.subr.bf16.mxu0 0
      %4133 = vmatpush1.bf16.msra.mxu0 0
      %4134 = vmatprep.subr.bf16.mxu0 0
      %4135 = vmatpush1.bf16.msra.mxu0 0
      %4136 = vmatprep.subr.bf16.mxu0 0
      %4137 = vmatpush1.bf16.msra.mxu0 0
      %4138 = vmatprep.subr.bf16.mxu0 0
      %4139 = vmatpush1.bf16.msra.mxu0 0
      %4140 = vmatprep.subr.bf16.mxu0 0
      %4141 = vmatpush1.bf16.msra.mxu0 0
      %4142 = vmatprep.subr.bf16.mxu0 0
      %4143 = vmatpush1.bf16.msra.mxu0 0
      %4144 = vmatprep.subr.bf16.mxu0 0
      %4145 = vmatpush1.bf16.msra.mxu0 0
      %4146 = vmatprep.subr.bf16.mxu0 0
      %4147 = vmatpush1.bf16.msra.mxu0 0
      %4148 = vmatprep.subr.bf16.mxu0 0
      %4149 = vmatpush1.bf16.msra.mxu0 0
      %4150 = vmatprep.subr.bf16.mxu0 0
      %4151 = vmatpush1.bf16.msra.mxu0 0
      %4152 = vmatprep.subr.bf16.mxu0 0
      %4153 = vmatpush1.bf16.msra.mxu0 0
      %4154 = vmatprep.subr.bf16.mxu0 0
      %4155 = vmatpush1.bf16.msra.mxu0 0
      %4156 = vmatprep.subr.bf16.mxu0 0
      %4157 = vmatpush1.bf16.msra.mxu0 0
      %4158 = vmatprep.subr.bf16.mxu0 0
      %4159 = vmatpush1.bf16.msra.mxu0 0
      %4160 = vmatprep.subr.bf16.mxu0 0
      %4161 = vmatpush1.bf16.msra.mxu0 0
      %4162 = vmatprep.mubr.bf16.mxu0 0
      %4163 = vmatmul.mubr.bf16.gmra.mrb[0].mxu0 %v4104
      %v4164 = vpop.f32.mrb[0].mxu0
      %v4165 = vadd.f32 0.0, %v4164
      %v4166 = vpop.f32.mrb[0].mxu0
      %v4167 = vpop.f32.mrb[0].mxu0
      %v4168 = vadd.f32 0.0, %v4167
      %v4169 = vpop.f32.mrb[0].mxu0
      %4170 = vmatprep.mubr.bf16.mxu0 0
      %4171 = vmatmul.mubr.bf16.gmra.mrb[0].mxu0 %v4107
      %v4172 = vpop.f32.mrb[0].mxu0
      %v4173 = vadd.f32 0.0, %v4172
      %v4174 = vpop.f32.mrb[0].mxu0
      %v4175 = vpop.f32.mrb[0].mxu0
      %v4176 = vadd.f32 0.0, %v4175
      %v4177 = vpop.f32.mrb[0].mxu0
      %4178 = vmatprep.mubr.bf16.mxu0 0
      %4179 = vmatmul.mubr.bf16.gmra.mrb[0].mxu0 %v4110
      %v4180 = vpop.f32.mrb[0].mxu0
      %v4181 = vadd.f32 0.0, %v4180
      %v4182 = vpop.f32.mrb[0].mxu0
      %v4183 = vpop.f32.mrb[0].mxu0
      %v4184 = vadd.f32 0.0, %v4183
      %v4185 = vpop.f32.mrb[0].mxu0
      %4186 = vmatprep.mubr.bf16.mxu0 0
      %4187 = vmatmul.mubr.bf16.gmra.mrb[0].mxu0 %v4113
      %v4188 = vpop.f32.mrb[0].mxu0
      %v4189 = vadd.f32 0.0, %v4188
      %v4190 = vpop.f32.mrb[0].mxu0
      %v4191 = vpop.f32.mrb[0].mxu0
      %v4192 = vadd.f32 0.0, %v4191
      %v4193 = vpop.f32.mrb[0].mxu0
      %4194 = vmatprep.mubr.bf16.mxu0 0
      %4195 = vmatmul.mubr.bf16.gmra.mrb[0].mxu0 %v4116
      %v4196 = vpop.f32.mrb[0].mxu0
      %v4197 = vadd.f32 0.0, %v4196
      %v4198 = vpop.f32.mrb[0].mxu0
      %v4199 = vpop.f32.mrb[0].mxu0
      %v4200 = vadd.f32 0.0, %v4199
      %v4201 = vpop.f32.mrb[0].mxu0
      %4202 = vmatprep.mubr.bf16.mxu0 0
      %4203 = vmatmul.mubr.bf16.gmra.mrb[0].mxu0 %v4119
      %v4204 = vpop.f32.mrb[0].mxu0
      %v4205 = vadd.f32 0.0, %v4204
      %v4206 = vpop.f32.mrb[0].mxu0
      %v4207 = vpop.f32.mrb[0].mxu0
      %v4208 = vadd.f32 0.0, %v4207
      %v4209 = vpop.f32.mrb[0].mxu0
      %4210 = vmatprep.mubr.bf16.mxu0 0
      %4211 = vmatmul.mubr.bf16.gmra.mrb[0].mxu0 %v4122
      %v4212 = vpop.f32.mrb[0].mxu0
      %v4213 = vadd.f32 0.0, %v4212
      %v4214 = vpop.f32.mrb[0].mxu0
      %v4215 = vpop.f32.mrb[0].mxu0
      %v4216 = vadd.f32 0.0, %v4215
      %v4217 = vpop.f32.mrb[0].mxu0
      %4218 = vmatprep.mubr.bf16.mxu0 0
      %4219 = vmatmul.mubr.bf16.gmra.mrb[0].mxu0 %v4125
      %v4220 = vpop.f32.mrb[0].mxu0
      %v4221 = vadd.f32 0.0, %v4220
      %v4222 = vpop.f32.mrb[0].mxu0
      %v4223 = vpop.f32.mrb[0].mxu0
      %v4224 = vadd.f32 0.0, %v4223
      %v4225 = vpop.f32.mrb[0].mxu0
      %4226 = vdwg.mxu0
      %v4227 = vadd.f32 %v3812, %v4165
      %v4228 = vadd.f32 %v3815, %v4168
      %v4229 = vadd.f32 %v3820, %v4173
      %v4230 = vadd.f32 %v3823, %v4176
      %v4231 = vadd.f32 %v3828, %v4181
      %v4232 = vadd.f32 %v3831, %v4184
      %v4233 = vadd.f32 %v3836, %v4189
      %v4234 = vadd.f32 %v3839, %v4192
      %v4235 = vadd.f32 %v3844, %v4197
      %v4236 = vadd.f32 %v3847, %v4200
      %v4237 = vadd.f32 %v3852, %v4205
      %v4238 = vadd.f32 %v3855, %v4208
      %v4239 = vadd.f32 %v3860, %v4213
      %v4240 = vadd.f32 %v3863, %v4216
      %v4241 = vadd.f32 %v3868, %v4221
      %v4242 = vadd.f32 %v3871, %v4224
      %v4243 = vld [vmem:[%s1176] sm:$0xf]
      %v4244 = vld [vmem:[%s1176 + $0x4] sm:$0xf]
      %v4245 = vld [vmem:[%s1176 + $0x8] sm:$0x1]
      %v4246 = vld [vmem:[%s1176 + $0xc] sm:$0xf]
      %v4247 = vld [vmem:[%s1176 + $0x10] sm:$0xf]
      %v4248 = vld [vmem:[%s1176 + $0x14] sm:$0x1]
      %v4249 = vld [vmem:[%s1176 + $0x18] sm:$0xf]
      %v4250 = vld [vmem:[%s1176 + $0x1c] sm:$0xf]
      %v4251 = vld [vmem:[%s1176 + $0x20] sm:$0x1]
      %v4252 = vld [vmem:[%s1176 + $0x24] sm:$0xf]
      %v4253 = vld [vmem:[%s1176 + $0x28] sm:$0xf]
      %v4254 = vld [vmem:[%s1176 + $0x2c] sm:$0x1]
      %v4255 = vld [vmem:[%s1176 + $0x30] sm:$0xf]
      %v4256 = vld [vmem:[%s1176 + $0x34] sm:$0xf]
      %v4257 = vld [vmem:[%s1176 + $0x38] sm:$0x1]
      %v4258 = vld [vmem:[%s1176 + $0x3c] sm:$0xf]
      %v4259 = vld [vmem:[%s1176 + $0x40] sm:$0xf]
      %v4260 = vld [vmem:[%s1176 + $0x44] sm:$0x1]
      %v4261 = vld [vmem:[%s1176 + $0x48] sm:$0xf]
      %v4262 = vld [vmem:[%s1176 + $0x4c] sm:$0xf]
      %v4263 = vld [vmem:[%s1176 + $0x50] sm:$0x1]
      %v4264 = vld [vmem:[%s1176 + $0x54] sm:$0xf]
      %v4265 = vld [vmem:[%s1176 + $0x58] sm:$0xf]
      %v4266 = vld [vmem:[%s1176 + $0x5c] sm:$0x1]
      %v4268 = vshrl.u32 %v4243, 16
      %v4270 = vrot.slane %v4268, 4
      %v4271 = vshll.u32 %v4243, 16
      %v4273 = vrot.slane %v4271, 5
      %v4274 = vor.u32 %v4270, %v4273
      %v4275 = vrot.slane %v4274, 4
      %v4277 = vshll.u32 %v4244, 16
      %v4279 = vrot.slane %v4277, 5
      %v4280 = vsel %vm3182, %v4275, %v4279
      %v4281 = vshrl.u32 %v4244, 16
      %v4283 = vrot.slane %v4281, 4
      %v4284 = vor.u32 %v4283, %v4279
      %v4285 = vrot.slane %v4284, 4
      %v4287 = vshll.u32 %v4245, 16
      %v4289 = vrot.slane %v4287, 5
      %v4290 = vsel %vm3182, %v4285, %v4289
      %v4292 = vshrl.u32 %v4246, 16
      %v4294 = vrot.slane %v4292, 4
      %v4295 = vshll.u32 %v4246, 16
      %v4297 = vrot.slane %v4295, 5
      %v4298 = vor.u32 %v4294, %v4297
      %v4299 = vrot.slane %v4298, 4
      %v4301 = vshll.u32 %v4247, 16
      %v4303 = vrot.slane %v4301, 5
      %v4304 = vsel %vm3182, %v4299, %v4303
      %v4305 = vshrl.u32 %v4247, 16
      %v4307 = vrot.slane %v4305, 4
      %v4308 = vor.u32 %v4307, %v4303
      %v4309 = vrot.slane %v4308, 4
      %v4311 = vshll.u32 %v4248, 16
      %v4313 = vrot.slane %v4311, 5
      %v4314 = vsel %vm3182, %v4309, %v4313
      %v4316 = vshrl.u32 %v4249, 16
      %v4318 = vrot.slane %v4316, 4
      %v4319 = vshll.u32 %v4249, 16
      %v4321 = vrot.slane %v4319, 5
      %v4322 = vor.u32 %v4318, %v4321
      %v4323 = vrot.slane %v4322, 4
      %v4325 = vshll.u32 %v4250, 16
      %v4327 = vrot.slane %v4325, 5
      %v4328 = vsel %vm3182, %v4323, %v4327
      %v4329 = vshrl.u32 %v4250, 16
      %v4331 = vrot.slane %v4329, 4
      %v4332 = vor.u32 %v4331, %v4327
      %v4333 = vrot.slane %v4332, 4
      %v4335 = vshll.u32 %v4251, 16
      %v4337 = vrot.slane %v4335, 5
      %v4338 = vsel %vm3182, %v4333, %v4337
      %v4340 = vshrl.u32 %v4252, 16
      %v4342 = vrot.slane %v4340, 4
      %v4343 = vshll.u32 %v4252, 16
      %v4345 = vrot.slane %v4343, 5
      %v4346 = vor.u32 %v4342, %v4345
      %v4347 = vrot.slane %v4346, 4
      %v4349 = vshll.u32 %v4253, 16
      %v4351 = vrot.slane %v4349, 5
      %v4352 = vsel %vm3182, %v4347, %v4351
      %v4353 = vshrl.u32 %v4253, 16
      %v4355 = vrot.slane %v4353, 4
      %v4356 = vor.u32 %v4355, %v4351
      %v4357 = vrot.slane %v4356, 4
      %v4359 = vshll.u32 %v4254, 16
      %v4361 = vrot.slane %v4359, 5
      %v4362 = vsel %vm3182, %v4357, %v4361
      %v4364 = vshrl.u32 %v4255, 16
      %v4366 = vrot.slane %v4364, 4
      %v4367 = vshll.u32 %v4255, 16
      %v4369 = vrot.slane %v4367, 5
      %v4370 = vor.u32 %v4366, %v4369
      %v4371 = vrot.slane %v4370, 4
      %v4373 = vshll.u32 %v4256, 16
      %v4375 = vrot.slane %v4373, 5
      %v4376 = vsel %vm3182, %v4371, %v4375
      %v4377 = vshrl.u32 %v4256, 16
      %v4379 = vrot.slane %v4377, 4
      %v4380 = vor.u32 %v4379, %v4375
      %v4381 = vrot.slane %v4380, 4
      %v4383 = vshll.u32 %v4257, 16
      %v4385 = vrot.slane %v4383, 5
      %v4386 = vsel %vm3182, %v4381, %v4385
      %v4388 = vshrl.u32 %v4258, 16
      %v4390 = vrot.slane %v4388, 4
      %v4391 = vshll.u32 %v4258, 16
      %v4393 = vrot.slane %v4391, 5
      %v4394 = vor.u32 %v4390, %v4393
      %v4395 = vrot.slane %v4394, 4
      %v4397 = vshll.u32 %v4259, 16
      %v4399 = vrot.slane %v4397, 5
      %v4400 = vsel %vm3182, %v4395, %v4399
      %v4401 = vshrl.u32 %v4259, 16
      %v4403 = vrot.slane %v4401, 4
      %v4404 = vor.u32 %v4403, %v4399
      %v4405 = vrot.slane %v4404, 4
      %v4407 = vshll.u32 %v4260, 16
      %v4409 = vrot.slane %v4407, 5
      %v4410 = vsel %vm3182, %v4405, %v4409
      %v4412 = vshrl.u32 %v4261, 16
      %v4414 = vrot.slane %v4412, 4
      %v4415 = vshll.u32 %v4261, 16
      %v4417 = vrot.slane %v4415, 5
      %v4418 = vor.u32 %v4414, %v4417
      %v4419 = vrot.slane %v4418, 4
      %v4421 = vshll.u32 %v4262, 16
      %v4423 = vrot.slane %v4421, 5
      %v4424 = vsel %vm3182, %v4419, %v4423
      %v4425 = vshrl.u32 %v4262, 16
      %v4427 = vrot.slane %v4425, 4
      %v4428 = vor.u32 %v4427, %v4423
      %v4429 = vrot.slane %v4428, 4
      %v4431 = vshll.u32 %v4263, 16
      %v4433 = vrot.slane %v4431, 5
      %v4434 = vsel %vm3182, %v4429, %v4433
      %v4436 = vshrl.u32 %v4264, 16
      %v4438 = vrot.slane %v4436, 4
      %v4439 = vshll.u32 %v4264, 16
      %v4441 = vrot.slane %v4439, 5
      %v4442 = vor.u32 %v4438, %v4441
      %v4443 = vrot.slane %v4442, 4
      %v4445 = vshll.u32 %v4265, 16
      %v4447 = vrot.slane %v4445, 5
      %v4448 = vsel %vm3182, %v4443, %v4447
      %v4449 = vshrl.u32 %v4265, 16
      %v4451 = vrot.slane %v4449, 4
      %v4452 = vor.u32 %v4451, %v4447
      %v4453 = vrot.slane %v4452, 4
      %v4455 = vshll.u32 %v4266, 16
      %v4457 = vrot.slane %v4455, 5
      %v4458 = vsel %vm3182, %v4453, %v4457
      %s4459 = scalar_lea.vmem %s2, 6
      %v4460 = vld [vmem:[%s4459] sm:$0x3]
      %v4461 = vunpack.c.l.b16 %v4280
      %v4462 = vunpack.c.l.b16 %v4290
      %v4463 = vunpack.c.l.b16 %v4304
      %v4464 = vunpack.c.l.b16 %v4314
      %v4465 = vunpack.c.l.b16 %v4328
      %v4466 = vunpack.c.l.b16 %v4338
      %v4467 = vunpack.c.l.b16 %v4352
      %v4468 = vunpack.c.l.b16 %v4362
      %v4469 = vunpack.c.l.b16 %v4376
      %v4470 = vunpack.c.l.b16 %v4386
      %v4471 = vunpack.c.l.b16 %v4400
      %v4472 = vunpack.c.l.b16 %v4410
      %v4473 = vunpack.c.l.b16 %v4424
      %v4474 = vunpack.c.l.b16 %v4434
      %v4475 = vunpack.c.l.b16 %v4448
      %v4476 = vunpack.c.l.b16 %v4458
      %v4477 = vpack.c.b16 %v4462, %v4461
      %v4478 = vpack.c.b16 %v4464, %v4463
      %v4479 = vpack.c.b16 %v4466, %v4465
      %v4480 = vpack.c.b16 %v4468, %v4467
      %v4481 = vpack.c.b16 %v4470, %v4469
      %v4482 = vpack.c.b16 %v4472, %v4471
      %v4483 = vpack.c.b16 %v4474, %v4473
      %v4484 = vpack.c.b16 %v4476, %v4475
      %v4486 = vsel %vm650, %v4477, 0
      %v4489 = vsel %vm650, %v4478, 0
      %v4492 = vsel %vm650, %v4479, 0
      %v4495 = vsel %vm650, %v4480, 0
      %v4498 = vsel %vm650, %v4481, 0
      %v4501 = vsel %vm650, %v4482, 0
      %v4504 = vsel %vm650, %v4483, 0
      %v4507 = vsel %vm650, %v4484, 0
      %v4510 = vsel %vm675, %v4460, 0
      %4512 = vmatprep.subr.bf16.mxu0 0
      %4513 = vmatpush1.bf16.msra.mxu0 %v4510
      %4514 = vmatprep.subr.bf16.mxu0 0
      %4515 = vmatpush1.bf16.msra.mxu0 0
      %4516 = vmatprep.subr.bf16.mxu0 0
      %4517 = vmatpush1.bf16.msra.mxu0 0
      %4518 = vmatprep.subr.bf16.mxu0 0
      %4519 = vmatpush1.bf16.msra.mxu0 0
      %4520 = vmatprep.subr.bf16.mxu0 0
      %4521 = vmatpush1.bf16.msra.mxu0 0
      %4522 = vmatprep.subr.bf16.mxu0 0
      %4523 = vmatpush1.bf16.msra.mxu0 0
      %4524 = vmatprep.subr.bf16.mxu0 0
      %4525 = vmatpush1.bf16.msra.mxu0 0
      %4526 = vmatprep.subr.bf16.mxu0 0
      %4527 = vmatpush1.bf16.msra.mxu0 0
      %4528 = vmatprep.subr.bf16.mxu0 0
      %4529 = vmatpush1.bf16.msra.mxu0 0
      %4530 = vmatprep.subr.bf16.mxu0 0
      %4531 = vmatpush1.bf16.msra.mxu0 0
      %4532 = vmatprep.subr.bf16.mxu0 0
      %4533 = vmatpush1.bf16.msra.mxu0 0
      %4534 = vmatprep.subr.bf16.mxu0 0
      %4535 = vmatpush1.bf16.msra.mxu0 0
      %4536 = vmatprep.subr.bf16.mxu0 0
      %4537 = vmatpush1.bf16.msra.mxu0 0
      %4538 = vmatprep.subr.bf16.mxu0 0
      %4539 = vmatpush1.bf16.msra.mxu0 0
      %4540 = vmatprep.subr.bf16.mxu0 0
      %4541 = vmatpush1.bf16.msra.mxu0 0
      %4542 = vmatprep.subr.bf16.mxu0 0
      %4543 = vmatpush1.bf16.msra.mxu0 0
      %4544 = vmatprep.mubr.bf16.mxu0 0
      %4545 = vmatmul.mubr.bf16.gmra.mrb[0].mxu0 %v4486
      %v4546 = vpop.f32.mrb[0].mxu0
      %v4547 = vadd.f32 0.0, %v4546
      %v4548 = vpop.f32.mrb[0].mxu0
      %v4549 = vpop.f32.mrb[0].mxu0
      %v4550 = vadd.f32 0.0, %v4549
      %v4551 = vpop.f32.mrb[0].mxu0
      %4552 = vmatprep.mubr.bf16.mxu0 0
      %4553 = vmatmul.mubr.bf16.gmra.mrb[0].mxu0 %v4489
      %v4554 = vpop.f32.mrb[0].mxu0
      %v4555 = vadd.f32 0.0, %v4554
      %v4556 = vpop.f32.mrb[0].mxu0
      %v4557 = vpop.f32.mrb[0].mxu0
      %v4558 = vadd.f32 0.0, %v4557
      %v4559 = vpop.f32.mrb[0].mxu0
      %4560 = vmatprep.mubr.bf16.mxu0 0
      %4561 = vmatmul.mubr.bf16.gmra.mrb[0].mxu0 %v4492
      %v4562 = vpop.f32.mrb[0].mxu0
      %v4563 = vadd.f32 0.0, %v4562
      %v4564 = vpop.f32.mrb[0].mxu0
      %v4565 = vpop.f32.mrb[0].mxu0
      %v4566 = vadd.f32 0.0, %v4565
      %v4567 = vpop.f32.mrb[0].mxu0
      %4568 = vmatprep.mubr.bf16.mxu0 0
      %4569 = vmatmul.mubr.bf16.gmra.mrb[0].mxu0 %v4495
      %v4570 = vpop.f32.mrb[0].mxu0
      %v4571 = vadd.f32 0.0, %v4570
      %v4572 = vpop.f32.mrb[0].mxu0
      %v4573 = vpop.f32.mrb[0].mxu0
      %v4574 = vadd.f32 0.0, %v4573
      %v4575 = vpop.f32.mrb[0].mxu0
      %4576 = vmatprep.mubr.bf16.mxu0 0
      %4577 = vmatmul.mubr.bf16.gmra.mrb[0].mxu0 %v4498
      %v4578 = vpop.f32.mrb[0].mxu0
      %v4579 = vadd.f32 0.0, %v4578
      %v4580 = vpop.f32.mrb[0].mxu0
      %v4581 = vpop.f32.mrb[0].mxu0
      %v4582 = vadd.f32 0.0, %v4581
      %v4583 = vpop.f32.mrb[0].mxu0
      %4584 = vmatprep.mubr.bf16.mxu0 0
      %4585 = vmatmul.mubr.bf16.gmra.mrb[0].mxu0 %v4501
      %v4586 = vpop.f32.mrb[0].mxu0
      %v4587 = vadd.f32 0.0, %v4586
      %v4588 = vpop.f32.mrb[0].mxu0
      %v4589 = vpop.f32.mrb[0].mxu0
      %v4590 = vadd.f32 0.0, %v4589
      %v4591 = vpop.f32.mrb[0].mxu0
      %4592 = vmatprep.mubr.bf16.mxu0 0
      %4593 = vmatmul.mubr.bf16.gmra.mrb[0].mxu0 %v4504
      %v4594 = vpop.f32.mrb[0].mxu0
      %v4595 = vadd.f32 0.0, %v4594
      %v4596 = vpop.f32.mrb[0].mxu0
      %v4597 = vpop.f32.mrb[0].mxu0
      %v4598 = vadd.f32 0.0, %v4597
      %v4599 = vpop.f32.mrb[0].mxu0
      %4600 = vmatprep.mubr.bf16.mxu0 0
      %4601 = vmatmul.mubr.bf16.gmra.mrb[0].mxu0 %v4507
      %v4602 = vpop.f32.mrb[0].mxu0
      %v4603 = vadd.f32 0.0, %v4602
      %v4604 = vpop.f32.mrb[0].mxu0
      %v4605 = vpop.f32.mrb[0].mxu0
      %v4606 = vadd.f32 0.0, %v4605
      %v4607 = vpop.f32.mrb[0].mxu0
      %4608 = vdwg.mxu0
      %v4609 = vadd.f32 %v4227, %v4547
      %v4610 = vadd.f32 %v4228, %v4550
      %v4611 = vadd.f32 %v4229, %v4555
      %v4612 = vadd.f32 %v4230, %v4558
      %v4613 = vadd.f32 %v4231, %v4563
      %v4614 = vadd.f32 %v4232, %v4566
      %v4615 = vadd.f32 %v4233, %v4571
      %v4616 = vadd.f32 %v4234, %v4574
      %v4617 = vadd.f32 %v4235, %v4579
      %v4618 = vadd.f32 %v4236, %v4582
      %v4619 = vadd.f32 %v4237, %v4587
      %v4620 = vadd.f32 %v4238, %v4590
      %v4621 = vadd.f32 %v4239, %v4595
      %v4622 = vadd.f32 %v4240, %v4598
      %v4623 = vadd.f32 %v4241, %v4603
      %v4624 = vadd.f32 %v4242, %v4606
      %v4625 = vld [vmem:[%s1176] sm:$0xe]
      %v4626 = vld [vmem:[%s1176 + $0x8] sm:$0x3]
      %v4627 = vld [vmem:[%s1176 + $0xc] sm:$0xe]
      %v4628 = vld [vmem:[%s1176 + $0x14] sm:$0x3]
      %v4629 = vld [vmem:[%s1176 + $0x18] sm:$0xe]
      %v4630 = vld [vmem:[%s1176 + $0x20] sm:$0x3]
      %v4631 = vld [vmem:[%s1176 + $0x24] sm:$0xe]
      %v4632 = vld [vmem:[%s1176 + $0x2c] sm:$0x3]
      %v4633 = vld [vmem:[%s1176 + $0x30] sm:$0xe]
      %v4634 = vld [vmem:[%s1176 + $0x38] sm:$0x3]
      %v4635 = vld [vmem:[%s1176 + $0x3c] sm:$0xe]
      %v4636 = vld [vmem:[%s1176 + $0x44] sm:$0x3]
      %v4637 = vld [vmem:[%s1176 + $0x48] sm:$0xe]
      %v4638 = vld [vmem:[%s1176 + $0x50] sm:$0x3]
      %v4639 = vld [vmem:[%s1176 + $0x54] sm:$0xe]
      %v4640 = vld [vmem:[%s1176 + $0x5c] sm:$0x3]
      %v4642 = vshrl.u32 %v4625, 16
      %v4644 = vrot.slane %v4642, 5
      %v4645 = vshll.u32 %v4625, 16
      %v4647 = vrot.slane %v4645, 6
      %v4648 = vor.u32 %v4644, %v4647
      %v4649 = vrot.slane %v4648, 4
      %v4650 = vrot.slane %v4281, 5
      %v4651 = vrot.slane %v4277, 6
      %v4652 = vor.u32 %v4650, %v4651
      %v4653 = vsel %vm399, %v4649, %v4652
      %v4654 = vrot.slane %v4652, 4
      %v4656 = vshrl.u32 %v4626, 16
      %v4658 = vrot.slane %v4656, 5
      %v4659 = vshll.u32 %v4626, 16
      %v4661 = vrot.slane %v4659, 6
      %v4662 = vor.u32 %v4658, %v4661
      %v4663 = vsel %vm399, %v4654, %v4662
      %v4665 = vshrl.u32 %v4627, 16
      %v4667 = vrot.slane %v4665, 5
      %v4668 = vshll.u32 %v4627, 16
      %v4670 = vrot.slane %v4668, 6
      %v4671 = vor.u32 %v4667, %v4670
      %v4672 = vrot.slane %v4671, 4
      %v4673 = vrot.slane %v4305, 5
      %v4674 = vrot.slane %v4301, 6
      %v4675 = vor.u32 %v4673, %v4674
      %v4676 = vsel %vm399, %v4672, %v4675
      %v4677 = vrot.slane %v4675, 4
      %v4679 = vshrl.u32 %v4628, 16
      %v4681 = vrot.slane %v4679, 5
      %v4682 = vshll.u32 %v4628, 16
      %v4684 = vrot.slane %v4682, 6
      %v4685 = vor.u32 %v4681, %v4684
      %v4686 = vsel %vm399, %v4677, %v4685
      %v4688 = vshrl.u32 %v4629, 16
      %v4690 = vrot.slane %v4688, 5
      %v4691 = vshll.u32 %v4629, 16
      %v4693 = vrot.slane %v4691, 6
      %v4694 = vor.u32 %v4690, %v4693
      %v4695 = vrot.slane %v4694, 4
      %v4696 = vrot.slane %v4329, 5
      %v4697 = vrot.slane %v4325, 6
      %v4698 = vor.u32 %v4696, %v4697
      %v4699 = vsel %vm399, %v4695, %v4698
      %v4700 = vrot.slane %v4698, 4
      %v4702 = vshrl.u32 %v4630, 16
      %v4704 = vrot.slane %v4702, 5
      %v4705 = vshll.u32 %v4630, 16
      %v4707 = vrot.slane %v4705, 6
      %v4708 = vor.u32 %v4704, %v4707
      %v4709 = vsel %vm399, %v4700, %v4708
      %v4711 = vshrl.u32 %v4631, 16
      %v4713 = vrot.slane %v4711, 5
      %v4714 = vshll.u32 %v4631, 16
      %v4716 = vrot.slane %v4714, 6
      %v4717 = vor.u32 %v4713, %v4716
      %v4718 = vrot.slane %v4717, 4
      %v4719 = vrot.slane %v4353, 5
      %v4720 = vrot.slane %v4349, 6
      %v4721 = vor.u32 %v4719, %v4720
      %v4722 = vsel %vm399, %v4718, %v4721
      %v4723 = vrot.slane %v4721, 4
      %v4725 = vshrl.u32 %v4632, 16
      %v4727 = vrot.slane %v4725, 5
      %v4728 = vshll.u32 %v4632, 16
      %v4730 = vrot.slane %v4728, 6
      %v4731 = vor.u32 %v4727, %v4730
      %v4732 = vsel %vm399, %v4723, %v4731
      %v4734 = vshrl.u32 %v4633, 16
      %v4736 = vrot.slane %v4734, 5
      %v4737 = vshll.u32 %v4633, 16
      %v4739 = vrot.slane %v4737, 6
      %v4740 = vor.u32 %v4736, %v4739
      %v4741 = vrot.slane %v4740, 4
      %v4742 = vrot.slane %v4377, 5
      %v4743 = vrot.slane %v4373, 6
      %v4744 = vor.u32 %v4742, %v4743
      %v4745 = vsel %vm399, %v4741, %v4744
      %v4746 = vrot.slane %v4744, 4
      %v4748 = vshrl.u32 %v4634, 16
      %v4750 = vrot.slane %v4748, 5
      %v4751 = vshll.u32 %v4634, 16
      %v4753 = vrot.slane %v4751, 6
      %v4754 = vor.u32 %v4750, %v4753
      %v4755 = vsel %vm399, %v4746, %v4754
      %v4757 = vshrl.u32 %v4635, 16
      %v4759 = vrot.slane %v4757, 5
      %v4760 = vshll.u32 %v4635, 16
      %v4762 = vrot.slane %v4760, 6
      %v4763 = vor.u32 %v4759, %v4762
      %v4764 = vrot.slane %v4763, 4
      %v4765 = vrot.slane %v4401, 5
      %v4766 = vrot.slane %v4397, 6
      %v4767 = vor.u32 %v4765, %v4766
      %v4768 = vsel %vm399, %v4764, %v4767
      %v4769 = vrot.slane %v4767, 4
      %v4771 = vshrl.u32 %v4636, 16
      %v4773 = vrot.slane %v4771, 5
      %v4774 = vshll.u32 %v4636, 16
      %v4776 = vrot.slane %v4774, 6
      %v4777 = vor.u32 %v4773, %v4776
      %v4778 = vsel %vm399, %v4769, %v4777
      %v4780 = vshrl.u32 %v4637, 16
      %v4782 = vrot.slane %v4780, 5
      %v4783 = vshll.u32 %v4637, 16
      %v4785 = vrot.slane %v4783, 6
      %v4786 = vor.u32 %v4782, %v4785
      %v4787 = vrot.slane %v4786, 4
      %v4788 = vrot.slane %v4425, 5
      %v4789 = vrot.slane %v4421, 6
      %v4790 = vor.u32 %v4788, %v4789
      %v4791 = vsel %vm399, %v4787, %v4790
      %v4792 = vrot.slane %v4790, 4
      %v4794 = vshrl.u32 %v4638, 16
      %v4796 = vrot.slane %v4794, 5
      %v4797 = vshll.u32 %v4638, 16
      %v4799 = vrot.slane %v4797, 6
      %v4800 = vor.u32 %v4796, %v4799
      %v4801 = vsel %vm399, %v4792, %v4800
      %v4803 = vshrl.u32 %v4639, 16
      %v4805 = vrot.slane %v4803, 5
      %v4806 = vshll.u32 %v4639, 16
      %v4808 = vrot.slane %v4806, 6
      %v4809 = vor.u32 %v4805, %v4808
      %v4810 = vrot.slane %v4809, 4
      %v4811 = vrot.slane %v4449, 5
      %v4812 = vrot.slane %v4445, 6
      %v4813 = vor.u32 %v4811, %v4812
      %v4814 = vsel %vm399, %v4810, %v4813
      %v4815 = vrot.slane %v4813, 4
      %v4817 = vshrl.u32 %v4640, 16
      %v4819 = vrot.slane %v4817, 5
      %v4820 = vshll.u32 %v4640, 16
      %v4822 = vrot.slane %v4820, 6
      %v4823 = vor.u32 %v4819, %v4822
      %v4824 = vsel %vm399, %v4815, %v4823
      %s4825 = scalar_lea.vmem %s2, 8
      %v4826 = vld [vmem:[%s4825] sm:$0x3]
      %v4827 = vunpack.c.l.b16 %v4653
      %v4828 = vunpack.c.l.b16 %v4663
      %v4829 = vunpack.c.l.b16 %v4676
      %v4830 = vunpack.c.l.b16 %v4686
      %v4831 = vunpack.c.l.b16 %v4699
      %v4832 = vunpack.c.l.b16 %v4709
      %v4833 = vunpack.c.l.b16 %v4722
      %v4834 = vunpack.c.l.b16 %v4732
      %v4835 = vunpack.c.l.b16 %v4745
      %v4836 = vunpack.c.l.b16 %v4755
      %v4837 = vunpack.c.l.b16 %v4768
      %v4838 = vunpack.c.l.b16 %v4778
      %v4839 = vunpack.c.l.b16 %v4791
      %v4840 = vunpack.c.l.b16 %v4801
      %v4841 = vunpack.c.l.b16 %v4814
      %v4842 = vunpack.c.l.b16 %v4824
      %v4843 = vpack.c.b16 %v4828, %v4827
      %v4844 = vpack.c.b16 %v4830, %v4829
      %v4845 = vpack.c.b16 %v4832, %v4831
      %v4846 = vpack.c.b16 %v4834, %v4833
      %v4847 = vpack.c.b16 %v4836, %v4835
      %v4848 = vpack.c.b16 %v4838, %v4837
      %v4849 = vpack.c.b16 %v4840, %v4839
      %v4850 = vpack.c.b16 %v4842, %v4841
      %v4852 = vsel %vm650, %v4843, 0
      %v4855 = vsel %vm650, %v4844, 0
      %v4858 = vsel %vm650, %v4845, 0
      %v4861 = vsel %vm650, %v4846, 0
      %v4864 = vsel %vm650, %v4847, 0
      %v4867 = vsel %vm650, %v4848, 0
      %v4870 = vsel %vm650, %v4849, 0
      %v4873 = vsel %vm650, %v4850, 0
      %v4876 = vsel %vm675, %v4826, 0
      %4878 = vmatprep.subr.bf16.mxu0 0
      %4879 = vmatpush1.bf16.msra.mxu0 %v4876
      %4880 = vmatprep.subr.bf16.mxu0 0
      %4881 = vmatpush1.bf16.msra.mxu0 0
      %4882 = vmatprep.subr.bf16.mxu0 0
      %4883 = vmatpush1.bf16.msra.mxu0 0
      %4884 = vmatprep.subr.bf16.mxu0 0
      %4885 = vmatpush1.bf16.msra.mxu0 0
      %4886 = vmatprep.subr.bf16.mxu0 0
      %4887 = vmatpush1.bf16.msra.mxu0 0
      %4888 = vmatprep.subr.bf16.mxu0 0
      %4889 = vmatpush1.bf16.msra.mxu0 0
      %4890 = vmatprep.subr.bf16.mxu0 0
      %4891 = vmatpush1.bf16.msra.mxu0 0
      %4892 = vmatprep.subr.bf16.mxu0 0
      %4893 = vmatpush1.bf16.msra.mxu0 0
      %4894 = vmatprep.subr.bf16.mxu0 0
      %4895 = vmatpush1.bf16.msra.mxu0 0
      %4896 = vmatprep.subr.bf16.mxu0 0
      %4897 = vmatpush1.bf16.msra.mxu0 0
      %4898 = vmatprep.subr.bf16.mxu0 0
      %4899 = vmatpush1.bf16.msra.mxu0 0
      %4900 = vmatprep.subr.bf16.mxu0 0
      %4901 = vmatpush1.bf16.msra.mxu0 0
      %4902 = vmatprep.subr.bf16.mxu0 0
      %4903 = vmatpush1.bf16.msra.mxu0 0
      %4904 = vmatprep.subr.bf16.mxu0 0
      %4905 = vmatpush1.bf16.msra.mxu0 0
      %4906 = vmatprep.subr.bf16.mxu0 0
      %4907 = vmatpush1.bf16.msra.mxu0 0
      %4908 = vmatprep.subr.bf16.mxu0 0
      %4909 = vmatpush1.bf16.msra.mxu0 0
      %4910 = vmatprep.mubr.bf16.mxu0 0
      %4911 = vmatmul.mubr.bf16.gmra.mrb[0].mxu0 %v4852
      %v4912 = vpop.f32.mrb[0].mxu0
      %v4913 = vadd.f32 0.0, %v4912
      %v4914 = vpop.f32.mrb[0].mxu0
      %v4915 = vpop.f32.mrb[0].mxu0
      %v4916 = vadd.f32 0.0, %v4915
      %v4917 = vpop.f32.mrb[0].mxu0
      %4918 = vmatprep.mubr.bf16.mxu0 0
      %4919 = vmatmul.mubr.bf16.gmra.mrb[0].mxu0 %v4855
      %v4920 = vpop.f32.mrb[0].mxu0
      %v4921 = vadd.f32 0.0, %v4920
      %v4922 = vpop.f32.mrb[0].mxu0
      %v4923 = vpop.f32.mrb[0].mxu0
      %v4924 = vadd.f32 0.0, %v4923
      %v4925 = vpop.f32.mrb[0].mxu0
      %4926 = vmatprep.mubr.bf16.mxu0 0
      %4927 = vmatmul.mubr.bf16.gmra.mrb[0].mxu0 %v4858
      %v4928 = vpop.f32.mrb[0].mxu0
      %v4929 = vadd.f32 0.0, %v4928
      %v4930 = vpop.f32.mrb[0].mxu0
      %v4931 = vpop.f32.mrb[0].mxu0
      %v4932 = vadd.f32 0.0, %v4931
      %v4933 = vpop.f32.mrb[0].mxu0
      %4934 = vmatprep.mubr.bf16.mxu0 0
      %4935 = vmatmul.mubr.bf16.gmra.mrb[0].mxu0 %v4861
      %v4936 = vpop.f32.mrb[0].mxu0
      %v4937 = vadd.f32 0.0, %v4936
      %v4938 = vpop.f32.mrb[0].mxu0
      %v4939 = vpop.f32.mrb[0].mxu0
      %v4940 = vadd.f32 0.0, %v4939
      %v4941 = vpop.f32.mrb[0].mxu0
      %4942 = vmatprep.mubr.bf16.mxu0 0
      %4943 = vmatmul.mubr.bf16.gmra.mrb[0].mxu0 %v4864
      %v4944 = vpop.f32.mrb[0].mxu0
      %v4945 = vadd.f32 0.0, %v4944
      %v4946 = vpop.f32.mrb[0].mxu0
      %v4947 = vpop.f32.mrb[0].mxu0
      %v4948 = vadd.f32 0.0, %v4947
      %v4949 = vpop.f32.mrb[0].mxu0
      %4950 = vmatprep.mubr.bf16.mxu0 0
      %4951 = vmatmul.mubr.bf16.gmra.mrb[0].mxu0 %v4867
      %v4952 = vpop.f32.mrb[0].mxu0
      %v4953 = vadd.f32 0.0, %v4952
      %v4954 = vpop.f32.mrb[0].mxu0
      %v4955 = vpop.f32.mrb[0].mxu0
      %v4956 = vadd.f32 0.0, %v4955
      %v4957 = vpop.f32.mrb[0].mxu0
      %4958 = vmatprep.mubr.bf16.mxu0 0
      %4959 = vmatmul.mubr.bf16.gmra.mrb[0].mxu0 %v4870
      %v4960 = vpop.f32.mrb[0].mxu0
      %v4961 = vadd.f32 0.0, %v4960
      %v4962 = vpop.f32.mrb[0].mxu0
      %v4963 = vpop.f32.mrb[0].mxu0
      %v4964 = vadd.f32 0.0, %v4963
      %v4965 = vpop.f32.mrb[0].mxu0
      %4966 = vmatprep.mubr.bf16.mxu0 0
      %4967 = vmatmul.mubr.bf16.gmra.mrb[0].mxu0 %v4873
      %v4968 = vpop.f32.mrb[0].mxu0
      %v4969 = vadd.f32 0.0, %v4968
      %v4970 = vpop.f32.mrb[0].mxu0
      %v4971 = vpop.f32.mrb[0].mxu0
      %v4972 = vadd.f32 0.0, %v4971
      %v4973 = vpop.f32.mrb[0].mxu0
      %4974 = vdwg.mxu0
      %v4975 = vadd.f32 %v4609, %v4913
      %v4976 = vadd.f32 %v4610, %v4916
      %v4977 = vadd.f32 %v4611, %v4921
      %v4978 = vadd.f32 %v4612, %v4924
      %v4979 = vadd.f32 %v4613, %v4929
      %v4980 = vadd.f32 %v4614, %v4932
      %v4981 = vadd.f32 %v4615, %v4937
      %v4982 = vadd.f32 %v4616, %v4940
      %v4983 = vadd.f32 %v4617, %v4945
      %v4984 = vadd.f32 %v4618, %v4948
      %v4985 = vadd.f32 %v4619, %v4953
      %v4986 = vadd.f32 %v4620, %v4956
      %v4987 = vadd.f32 %v4621, %v4961
      %v4988 = vadd.f32 %v4622, %v4964
      %v4989 = vadd.f32 %v4623, %v4969
      %v4990 = vadd.f32 %v4624, %v4972
      %v4991 = vld [vmem:[%s1176] sm:$0xc]
      %v4992 = vld [vmem:[%s1176 + $0x8] sm:$0x7]
      %v4993 = vld [vmem:[%s1176 + $0xc] sm:$0xc]
      %v4994 = vld [vmem:[%s1176 + $0x14] sm:$0x7]
      %v4995 = vld [vmem:[%s1176 + $0x18] sm:$0xc]
      %v4996 = vld [vmem:[%s1176 + $0x20] sm:$0x7]
      %v4997 = vld [vmem:[%s1176 + $0x24] sm:$0xc]
      %v4998 = vld [vmem:[%s1176 + $0x2c] sm:$0x7]
      %v4999 = vld [vmem:[%s1176 + $0x30] sm:$0xc]
      %v5000 = vld [vmem:[%s1176 + $0x38] sm:$0x7]
      %v5001 = vld [vmem:[%s1176 + $0x3c] sm:$0xc]
      %v5002 = vld [vmem:[%s1176 + $0x44] sm:$0x7]
      %v5003 = vld [vmem:[%s1176 + $0x48] sm:$0xc]
      %v5004 = vld [vmem:[%s1176 + $0x50] sm:$0x7]
      %v5005 = vld [vmem:[%s1176 + $0x54] sm:$0xc]
      %v5006 = vld [vmem:[%s1176 + $0x5c] sm:$0x7]
      %v5008 = vshrl.u32 %v4991, 16
      %v5010 = vrot.slane %v5008, 6
      %v5011 = vshll.u32 %v4991, 16
      %v5013 = vrot.slane %v5011, 7
      %v5014 = vor.u32 %v5010, %v5013
      %v5015 = vrot.slane %v5014, 4
      %v5016 = vrot.slane %v4281, 6
      %v5017 = vrot.slane %v4277, 7
      %v5018 = vor.u32 %v5016, %v5017
      %v5019 = vsel %vm3892, %v5015, %v5018
      %v5020 = vrot.slane %v5018, 4
      %v5022 = vshrl.u32 %v4992, 16
      %v5024 = vrot.slane %v5022, 6
      %v5025 = vshll.u32 %v4992, 16
      %v5027 = vrot.slane %v5025, 7
      %v5028 = vor.u32 %v5024, %v5027
      %v5029 = vsel %vm3892, %v5020, %v5028
      %v5031 = vshrl.u32 %v4993, 16
      %v5033 = vrot.slane %v5031, 6
      %v5034 = vshll.u32 %v4993, 16
      %v5036 = vrot.slane %v5034, 7
      %v5037 = vor.u32 %v5033, %v5036
      %v5038 = vrot.slane %v5037, 4
      %v5039 = vrot.slane %v4305, 6
      %v5040 = vrot.slane %v4301, 7
      %v5041 = vor.u32 %v5039, %v5040
      %v5042 = vsel %vm3892, %v5038, %v5041
      %v5043 = vrot.slane %v5041, 4
      %v5045 = vshrl.u32 %v4994, 16
      %v5047 = vrot.slane %v5045, 6
      %v5048 = vshll.u32 %v4994, 16
      %v5050 = vrot.slane %v5048, 7
      %v5051 = vor.u32 %v5047, %v5050
      %v5052 = vsel %vm3892, %v5043, %v5051
      %v5054 = vshrl.u32 %v4995, 16
      %v5056 = vrot.slane %v5054, 6
      %v5057 = vshll.u32 %v4995, 16
      %v5059 = vrot.slane %v5057, 7
      %v5060 = vor.u32 %v5056, %v5059
      %v5061 = vrot.slane %v5060, 4
      %v5062 = vrot.slane %v4329, 6
      %v5063 = vrot.slane %v4325, 7
      %v5064 = vor.u32 %v5062, %v5063
      %v5065 = vsel %vm3892, %v5061, %v5064
      %v5066 = vrot.slane %v5064, 4
      %v5068 = vshrl.u32 %v4996, 16
      %v5070 = vrot.slane %v5068, 6
      %v5071 = vshll.u32 %v4996, 16
      %v5073 = vrot.slane %v5071, 7
      %v5074 = vor.u32 %v5070, %v5073
      %v5075 = vsel %vm3892, %v5066, %v5074
      %v5077 = vshrl.u32 %v4997, 16
      %v5079 = vrot.slane %v5077, 6
      %v5080 = vshll.u32 %v4997, 16
      %v5082 = vrot.slane %v5080, 7
      %v5083 = vor.u32 %v5079, %v5082
      %v5084 = vrot.slane %v5083, 4
      %v5085 = vrot.slane %v4353, 6
      %v5086 = vrot.slane %v4349, 7
      %v5087 = vor.u32 %v5085, %v5086
      %v5088 = vsel %vm3892, %v5084, %v5087
      %v5089 = vrot.slane %v5087, 4
      %v5091 = vshrl.u32 %v4998, 16
      %v5093 = vrot.slane %v5091, 6
      %v5094 = vshll.u32 %v4998, 16
      %v5096 = vrot.slane %v5094, 7
      %v5097 = vor.u32 %v5093, %v5096
      %v5098 = vsel %vm3892, %v5089, %v5097
      %v5100 = vshrl.u32 %v4999, 16
      %v5102 = vrot.slane %v5100, 6
      %v5103 = vshll.u32 %v4999, 16
      %v5105 = vrot.slane %v5103, 7
      %v5106 = vor.u32 %v5102, %v5105
      %v5107 = vrot.slane %v5106, 4
      %v5108 = vrot.slane %v4377, 6
      %v5109 = vrot.slane %v4373, 7
      %v5110 = vor.u32 %v5108, %v5109
      %v5111 = vsel %vm3892, %v5107, %v5110
      %v5112 = vrot.slane %v5110, 4
      %v5114 = vshrl.u32 %v5000, 16
      %v5116 = vrot.slane %v5114, 6
      %v5117 = vshll.u32 %v5000, 16
      %v5119 = vrot.slane %v5117, 7
      %v5120 = vor.u32 %v5116, %v5119
      %v5121 = vsel %vm3892, %v5112, %v5120
      %v5123 = vshrl.u32 %v5001, 16
      %v5125 = vrot.slane %v5123, 6
      %v5126 = vshll.u32 %v5001, 16
      %v5128 = vrot.slane %v5126, 7
      %v5129 = vor.u32 %v5125, %v5128
      %v5130 = vrot.slane %v5129, 4
      %v5131 = vrot.slane %v4401, 6
      %v5132 = vrot.slane %v4397, 7
      %v5133 = vor.u32 %v5131, %v5132
      %v5134 = vsel %vm3892, %v5130, %v5133
      %v5135 = vrot.slane %v5133, 4
      %v5137 = vshrl.u32 %v5002, 16
      %v5139 = vrot.slane %v5137, 6
      %v5140 = vshll.u32 %v5002, 16
      %v5142 = vrot.slane %v5140, 7
      %v5143 = vor.u32 %v5139, %v5142
      %v5144 = vsel %vm3892, %v5135, %v5143
      %v5146 = vshrl.u32 %v5003, 16
      %v5148 = vrot.slane %v5146, 6
      %v5149 = vshll.u32 %v5003, 16
      %v5151 = vrot.slane %v5149, 7
      %v5152 = vor.u32 %v5148, %v5151
      %v5153 = vrot.slane %v5152, 4
      %v5154 = vrot.slane %v4425, 6
      %v5155 = vrot.slane %v4421, 7
      %v5156 = vor.u32 %v5154, %v5155
      %v5157 = vsel %vm3892, %v5153, %v5156
      %v5158 = vrot.slane %v5156, 4
      %v5160 = vshrl.u32 %v5004, 16
      %v5162 = vrot.slane %v5160, 6
      %v5163 = vshll.u32 %v5004, 16
      %v5165 = vrot.slane %v5163, 7
      %v5166 = vor.u32 %v5162, %v5165
      %v5167 = vsel %vm3892, %v5158, %v5166
      %v5169 = vshrl.u32 %v5005, 16
      %v5171 = vrot.slane %v5169, 6
      %v5172 = vshll.u32 %v5005, 16
      %v5174 = vrot.slane %v5172, 7
      %v5175 = vor.u32 %v5171, %v5174
      %v5176 = vrot.slane %v5175, 4
      %v5177 = vrot.slane %v4449, 6
      %v5178 = vrot.slane %v4445, 7
      %v5179 = vor.u32 %v5177, %v5178
      %v5180 = vsel %vm3892, %v5176, %v5179
      %v5181 = vrot.slane %v5179, 4
      %v5183 = vshrl.u32 %v5006, 16
      %v5185 = vrot.slane %v5183, 6
      %v5186 = vshll.u32 %v5006, 16
      %v5188 = vrot.slane %v5186, 7
      %v5189 = vor.u32 %v5185, %v5188
      %v5190 = vsel %vm3892, %v5181, %v5189
      %s5191 = scalar_lea.vmem %s2, 10
      %v5192 = vld [vmem:[%s5191] sm:$0x3]
      %v5193 = vunpack.c.l.b16 %v5019
      %v5194 = vunpack.c.l.b16 %v5029
      %v5195 = vunpack.c.l.b16 %v5042
      %v5196 = vunpack.c.l.b16 %v5052
      %v5197 = vunpack.c.l.b16 %v5065
      %v5198 = vunpack.c.l.b16 %v5075
      %v5199 = vunpack.c.l.b16 %v5088
      %v5200 = vunpack.c.l.b16 %v5098
      %v5201 = vunpack.c.l.b16 %v5111
      %v5202 = vunpack.c.l.b16 %v5121
      %v5203 = vunpack.c.l.b16 %v5134
      %v5204 = vunpack.c.l.b16 %v5144
      %v5205 = vunpack.c.l.b16 %v5157
      %v5206 = vunpack.c.l.b16 %v5167
      %v5207 = vunpack.c.l.b16 %v5180
      %v5208 = vunpack.c.l.b16 %v5190
      %v5209 = vpack.c.b16 %v5194, %v5193
      %v5210 = vpack.c.b16 %v5196, %v5195
      %v5211 = vpack.c.b16 %v5198, %v5197
      %v5212 = vpack.c.b16 %v5200, %v5199
      %v5213 = vpack.c.b16 %v5202, %v5201
      %v5214 = vpack.c.b16 %v5204, %v5203
      %v5215 = vpack.c.b16 %v5206, %v5205
      %v5216 = vpack.c.b16 %v5208, %v5207
      %v5218 = vsel %vm650, %v5209, 0
      %v5221 = vsel %vm650, %v5210, 0
      %v5224 = vsel %vm650, %v5211, 0
      %v5227 = vsel %vm650, %v5212, 0
      %v5230 = vsel %vm650, %v5213, 0
      %v5233 = vsel %vm650, %v5214, 0
      %v5236 = vsel %vm650, %v5215, 0
      %v5239 = vsel %vm650, %v5216, 0
      %v5242 = vsel %vm675, %v5192, 0
      %5244 = vmatprep.subr.bf16.mxu0 0
      %5245 = vmatpush1.bf16.msra.mxu0 %v5242
      %5246 = vmatprep.subr.bf16.mxu0 0
      %5247 = vmatpush1.bf16.msra.mxu0 0
      %5248 = vmatprep.subr.bf16.mxu0 0
      %5249 = vmatpush1.bf16.msra.mxu0 0
      %5250 = vmatprep.subr.bf16.mxu0 0
      %5251 = vmatpush1.bf16.msra.mxu0 0
      %5252 = vmatprep.subr.bf16.mxu0 0
      %5253 = vmatpush1.bf16.msra.mxu0 0
      %5254 = vmatprep.subr.bf16.mxu0 0
      %5255 = vmatpush1.bf16.msra.mxu0 0
      %5256 = vmatprep.subr.bf16.mxu0 0
      %5257 = vmatpush1.bf16.msra.mxu0 0
      %5258 = vmatprep.subr.bf16.mxu0 0
      %5259 = vmatpush1.bf16.msra.mxu0 0
      %5260 = vmatprep.subr.bf16.mxu0 0
      %5261 = vmatpush1.bf16.msra.mxu0 0
      %5262 = vmatprep.subr.bf16.mxu0 0
      %5263 = vmatpush1.bf16.msra.mxu0 0
      %5264 = vmatprep.subr.bf16.mxu0 0
      %5265 = vmatpush1.bf16.msra.mxu0 0
      %5266 = vmatprep.subr.bf16.mxu0 0
      %5267 = vmatpush1.bf16.msra.mxu0 0
      %5268 = vmatprep.subr.bf16.mxu0 0
      %5269 = vmatpush1.bf16.msra.mxu0 0
      %5270 = vmatprep.subr.bf16.mxu0 0
      %5271 = vmatpush1.bf16.msra.mxu0 0
      %5272 = vmatprep.subr.bf16.mxu0 0
      %5273 = vmatpush1.bf16.msra.mxu0 0
      %5274 = vmatprep.subr.bf16.mxu0 0
      %5275 = vmatpush1.bf16.msra.mxu0 0
      %5276 = vmatprep.mubr.bf16.mxu0 0
      %5277 = vmatmul.mubr.bf16.gmra.mrb[0].mxu0 %v5218
      %v5278 = vpop.f32.mrb[0].mxu0
      %v5279 = vadd.f32 0.0, %v5278
      %v5280 = vpop.f32.mrb[0].mxu0
      %v5281 = vpop.f32.mrb[0].mxu0
      %v5282 = vadd.f32 0.0, %v5281
      %v5283 = vpop.f32.mrb[0].mxu0
      %5284 = vmatprep.mubr.bf16.mxu0 0
      %5285 = vmatmul.mubr.bf16.gmra.mrb[0].mxu0 %v5221
      %v5286 = vpop.f32.mrb[0].mxu0
      %v5287 = vadd.f32 0.0, %v5286
      %v5288 = vpop.f32.mrb[0].mxu0
      %v5289 = vpop.f32.mrb[0].mxu0
      %v5290 = vadd.f32 0.0, %v5289
      %v5291 = vpop.f32.mrb[0].mxu0
      %5292 = vmatprep.mubr.bf16.mxu0 0
      %5293 = vmatmul.mubr.bf16.gmra.mrb[0].mxu0 %v5224
      %v5294 = vpop.f32.mrb[0].mxu0
      %v5295 = vadd.f32 0.0, %v5294
      %v5296 = vpop.f32.mrb[0].mxu0
      %v5297 = vpop.f32.mrb[0].mxu0
      %v5298 = vadd.f32 0.0, %v5297
      %v5299 = vpop.f32.mrb[0].mxu0
      %5300 = vmatprep.mubr.bf16.mxu0 0
      %5301 = vmatmul.mubr.bf16.gmra.mrb[0].mxu0 %v5227
      %v5302 = vpop.f32.mrb[0].mxu0
      %v5303 = vadd.f32 0.0, %v5302
      %v5304 = vpop.f32.mrb[0].mxu0
      %v5305 = vpop.f32.mrb[0].mxu0
      %v5306 = vadd.f32 0.0, %v5305
      %v5307 = vpop.f32.mrb[0].mxu0
      %5308 = vmatprep.mubr.bf16.mxu0 0
      %5309 = vmatmul.mubr.bf16.gmra.mrb[0].mxu0 %v5230
      %v5310 = vpop.f32.mrb[0].mxu0
      %v5311 = vadd.f32 0.0, %v5310
      %v5312 = vpop.f32.mrb[0].mxu0
      %v5313 = vpop.f32.mrb[0].mxu0
      %v5314 = vadd.f32 0.0, %v5313
      %v5315 = vpop.f32.mrb[0].mxu0
      %5316 = vmatprep.mubr.bf16.mxu0 0
      %5317 = vmatmul.mubr.bf16.gmra.mrb[0].mxu0 %v5233
      %v5318 = vpop.f32.mrb[0].mxu0
      %v5319 = vadd.f32 0.0, %v5318
      %v5320 = vpop.f32.mrb[0].mxu0
      %v5321 = vpop.f32.mrb[0].mxu0
      %v5322 = vadd.f32 0.0, %v5321
      %v5323 = vpop.f32.mrb[0].mxu0
      %5324 = vmatprep.mubr.bf16.mxu0 0
      %5325 = vmatmul.mubr.bf16.gmra.mrb[0].mxu0 %v5236
      %v5326 = vpop.f32.mrb[0].mxu0
      %v5327 = vadd.f32 0.0, %v5326
      %v5328 = vpop.f32.mrb[0].mxu0
      %v5329 = vpop.f32.mrb[0].mxu0
      %v5330 = vadd.f32 0.0, %v5329
      %v5331 = vpop.f32.mrb[0].mxu0
      %5332 = vmatprep.mubr.bf16.mxu0 0
      %5333 = vmatmul.mubr.bf16.gmra.mrb[0].mxu0 %v5239
      %v5334 = vpop.f32.mrb[0].mxu0
      %v5335 = vadd.f32 0.0, %v5334
      %v5336 = vpop.f32.mrb[0].mxu0
      %v5337 = vpop.f32.mrb[0].mxu0
      %v5338 = vadd.f32 0.0, %v5337
      %v5339 = vpop.f32.mrb[0].mxu0
      %5340 = vdwg.mxu0
      %v5341 = vadd.f32 %v4975, %v5279
      %v5342 = vadd.f32 %v4976, %v5282
      %v5343 = vadd.f32 %v4977, %v5287
      %v5344 = vadd.f32 %v4978, %v5290
      %v5345 = vadd.f32 %v4979, %v5295
      %v5346 = vadd.f32 %v4980, %v5298
      %v5347 = vadd.f32 %v4981, %v5303
      %v5348 = vadd.f32 %v4982, %v5306
      %v5349 = vadd.f32 %v4983, %v5311
      %v5350 = vadd.f32 %v4984, %v5314
      %v5351 = vadd.f32 %v4985, %v5319
      %v5352 = vadd.f32 %v4986, %v5322
      %v5353 = vadd.f32 %v4987, %v5327
      %v5354 = vadd.f32 %v4988, %v5330
      %v5355 = vadd.f32 %v4989, %v5335
      %v5356 = vadd.f32 %v4990, %v5338
      %s5357 = sadd.s32 %s276, 5
      %s5358 = smul.u32 %s5357, 3
      %s5359 = smul.addr %s5358, 4
      %s5360 = scalar_lea.vmem %s264, %s5359
      %v5361 = vld [vmem:[%s5360] sm:$0xf]
      %v5362 = vld [vmem:[%s5360 + $0x4] sm:$0xf]
      %v5363 = vld [vmem:[%s5360 + $0x8] sm:$0x1]
      %v5364 = vld [vmem:[%s5360 + $0xc] sm:$0xf]
      %v5365 = vld [vmem:[%s5360 + $0x10] sm:$0xf]
      %v5366 = vld [vmem:[%s5360 + $0x14] sm:$0x1]
      %v5367 = vld [vmem:[%s5360 + $0x18] sm:$0xf]
      %v5368 = vld [vmem:[%s5360 + $0x1c] sm:$0xf]
      %v5369 = vld [vmem:[%s5360 + $0x20] sm:$0x1]
      %v5370 = vld [vmem:[%s5360 + $0x24] sm:$0xf]
      %v5371 = vld [vmem:[%s5360 + $0x28] sm:$0xf]
      %v5372 = vld [vmem:[%s5360 + $0x2c] sm:$0x1]
      %v5373 = vld [vmem:[%s5360 + $0x30] sm:$0xf]
      %v5374 = vld [vmem:[%s5360 + $0x34] sm:$0xf]
      %v5375 = vld [vmem:[%s5360 + $0x38] sm:$0x1]
      %v5376 = vld [vmem:[%s5360 + $0x3c] sm:$0xf]
      %v5377 = vld [vmem:[%s5360 + $0x40] sm:$0xf]
      %v5378 = vld [vmem:[%s5360 + $0x44] sm:$0x1]
      %v5379 = vld [vmem:[%s5360 + $0x48] sm:$0xf]
      %v5380 = vld [vmem:[%s5360 + $0x4c] sm:$0xf]
      %v5381 = vld [vmem:[%s5360 + $0x50] sm:$0x1]
      %v5382 = vld [vmem:[%s5360 + $0x54] sm:$0xf]
      %v5383 = vld [vmem:[%s5360 + $0x58] sm:$0xf]
      %v5384 = vld [vmem:[%s5360 + $0x5c] sm:$0x1]
      %v5386 = vshrl.u32 %v5361, 16
      %v5388 = vrot.slane %v5386, 4
      %v5389 = vshll.u32 %v5361, 16
      %v5391 = vrot.slane %v5389, 5
      %v5392 = vor.u32 %v5388, %v5391
      %v5393 = vrot.slane %v5392, 4
      %v5395 = vshll.u32 %v5362, 16
      %v5397 = vrot.slane %v5395, 5
      %v5398 = vsel %vm3182, %v5393, %v5397
      %v5399 = vshrl.u32 %v5362, 16
      %v5401 = vrot.slane %v5399, 4
      %v5402 = vor.u32 %v5401, %v5397
      %v5403 = vrot.slane %v5402, 4
      %v5405 = vshll.u32 %v5363, 16
      %v5407 = vrot.slane %v5405, 5
      %v5408 = vsel %vm3182, %v5403, %v5407
      %v5410 = vshrl.u32 %v5364, 16
      %v5412 = vrot.slane %v5410, 4
      %v5413 = vshll.u32 %v5364, 16
      %v5415 = vrot.slane %v5413, 5
      %v5416 = vor.u32 %v5412, %v5415
      %v5417 = vrot.slane %v5416, 4
      %v5419 = vshll.u32 %v5365, 16
      %v5421 = vrot.slane %v5419, 5
      %v5422 = vsel %vm3182, %v5417, %v5421
      %v5423 = vshrl.u32 %v5365, 16
      %v5425 = vrot.slane %v5423, 4
      %v5426 = vor.u32 %v5425, %v5421
      %v5427 = vrot.slane %v5426, 4
      %v5429 = vshll.u32 %v5366, 16
      %v5431 = vrot.slane %v5429, 5
      %v5432 = vsel %vm3182, %v5427, %v5431
      %v5434 = vshrl.u32 %v5367, 16
      %v5436 = vrot.slane %v5434, 4
      %v5437 = vshll.u32 %v5367, 16
      %v5439 = vrot.slane %v5437, 5
      %v5440 = vor.u32 %v5436, %v5439
      %v5441 = vrot.slane %v5440, 4
      %v5443 = vshll.u32 %v5368, 16
      %v5445 = vrot.slane %v5443, 5
      %v5446 = vsel %vm3182, %v5441, %v5445
      %v5447 = vshrl.u32 %v5368, 16
      %v5449 = vrot.slane %v5447, 4
      %v5450 = vor.u32 %v5449, %v5445
      %v5451 = vrot.slane %v5450, 4
      %v5453 = vshll.u32 %v5369, 16
      %v5455 = vrot.slane %v5453, 5
      %v5456 = vsel %vm3182, %v5451, %v5455
      %v5458 = vshrl.u32 %v5370, 16
      %v5460 = vrot.slane %v5458, 4
      %v5461 = vshll.u32 %v5370, 16
      %v5463 = vrot.slane %v5461, 5
      %v5464 = vor.u32 %v5460, %v5463
      %v5465 = vrot.slane %v5464, 4
      %v5467 = vshll.u32 %v5371, 16
      %v5469 = vrot.slane %v5467, 5
      %v5470 = vsel %vm3182, %v5465, %v5469
      %v5471 = vshrl.u32 %v5371, 16
      %v5473 = vrot.slane %v5471, 4
      %v5474 = vor.u32 %v5473, %v5469
      %v5475 = vrot.slane %v5474, 4
      %v5477 = vshll.u32 %v5372, 16
      %v5479 = vrot.slane %v5477, 5
      %v5480 = vsel %vm3182, %v5475, %v5479
      %v5482 = vshrl.u32 %v5373, 16
      %v5484 = vrot.slane %v5482, 4
      %v5485 = vshll.u32 %v5373, 16
      %v5487 = vrot.slane %v5485, 5
      %v5488 = vor.u32 %v5484, %v5487
      %v5489 = vrot.slane %v5488, 4
      %v5491 = vshll.u32 %v5374, 16
      %v5493 = vrot.slane %v5491, 5
      %v5494 = vsel %vm3182, %v5489, %v5493
      %v5495 = vshrl.u32 %v5374, 16
      %v5497 = vrot.slane %v5495, 4
      %v5498 = vor.u32 %v5497, %v5493
      %v5499 = vrot.slane %v5498, 4
      %v5501 = vshll.u32 %v5375, 16
      %v5503 = vrot.slane %v5501, 5
      %v5504 = vsel %vm3182, %v5499, %v5503
      %v5506 = vshrl.u32 %v5376, 16
      %v5508 = vrot.slane %v5506, 4
      %v5509 = vshll.u32 %v5376, 16
      %v5511 = vrot.slane %v5509, 5
      %v5512 = vor.u32 %v5508, %v5511
      %v5513 = vrot.slane %v5512, 4
      %v5515 = vshll.u32 %v5377, 16
      %v5517 = vrot.slane %v5515, 5
      %v5518 = vsel %vm3182, %v5513, %v5517
      %v5519 = vshrl.u32 %v5377, 16
      %v5521 = vrot.slane %v5519, 4
      %v5522 = vor.u32 %v5521, %v5517
      %v5523 = vrot.slane %v5522, 4
      %v5525 = vshll.u32 %v5378, 16
      %v5527 = vrot.slane %v5525, 5
      %v5528 = vsel %vm3182, %v5523, %v5527
      %v5530 = vshrl.u32 %v5379, 16
      %v5532 = vrot.slane %v5530, 4
      %v5533 = vshll.u32 %v5379, 16
      %v5535 = vrot.slane %v5533, 5
      %v5536 = vor.u32 %v5532, %v5535
      %v5537 = vrot.slane %v5536, 4
      %v5539 = vshll.u32 %v5380, 16
      %v5541 = vrot.slane %v5539, 5
      %v5542 = vsel %vm3182, %v5537, %v5541
      %v5543 = vshrl.u32 %v5380, 16
      %v5545 = vrot.slane %v5543, 4
      %v5546 = vor.u32 %v5545, %v5541
      %v5547 = vrot.slane %v5546, 4
      %v5549 = vshll.u32 %v5381, 16
      %v5551 = vrot.slane %v5549, 5
      %v5552 = vsel %vm3182, %v5547, %v5551
      %v5554 = vshrl.u32 %v5382, 16
      %v5556 = vrot.slane %v5554, 4
      %v5557 = vshll.u32 %v5382, 16
      %v5559 = vrot.slane %v5557, 5
      %v5560 = vor.u32 %v5556, %v5559
      %v5561 = vrot.slane %v5560, 4
      %v5563 = vshll.u32 %v5383, 16
      %v5565 = vrot.slane %v5563, 5
      %v5566 = vsel %vm3182, %v5561, %v5565
      %v5567 = vshrl.u32 %v5383, 16
      %v5569 = vrot.slane %v5567, 4
      %v5570 = vor.u32 %v5569, %v5565
      %v5571 = vrot.slane %v5570, 4
      %v5573 = vshll.u32 %v5384, 16
      %v5575 = vrot.slane %v5573, 5
      %v5576 = vsel %vm3182, %v5571, %v5575
      %s5577 = scalar_lea.vmem %s2, 12
      %v5578 = vld [vmem:[%s5577] sm:$0x3]
      %v5579 = vunpack.c.l.b16 %v5398
      %v5580 = vunpack.c.l.b16 %v5408
      %v5581 = vunpack.c.l.b16 %v5422
      %v5582 = vunpack.c.l.b16 %v5432
      %v5583 = vunpack.c.l.b16 %v5446
      %v5584 = vunpack.c.l.b16 %v5456
      %v5585 = vunpack.c.l.b16 %v5470
      %v5586 = vunpack.c.l.b16 %v5480
      %v5587 = vunpack.c.l.b16 %v5494
      %v5588 = vunpack.c.l.b16 %v5504
      %v5589 = vunpack.c.l.b16 %v5518
      %v5590 = vunpack.c.l.b16 %v5528
      %v5591 = vunpack.c.l.b16 %v5542
      %v5592 = vunpack.c.l.b16 %v5552
      %v5593 = vunpack.c.l.b16 %v5566
      %v5594 = vunpack.c.l.b16 %v5576
      %v5595 = vpack.c.b16 %v5580, %v5579
      %v5596 = vpack.c.b16 %v5582, %v5581
      %v5597 = vpack.c.b16 %v5584, %v5583
      %v5598 = vpack.c.b16 %v5586, %v5585
      %v5599 = vpack.c.b16 %v5588, %v5587
      %v5600 = vpack.c.b16 %v5590, %v5589
      %v5601 = vpack.c.b16 %v5592, %v5591
      %v5602 = vpack.c.b16 %v5594, %v5593
      %v5604 = vsel %vm650, %v5595, 0
      %v5607 = vsel %vm650, %v5596, 0
      %v5610 = vsel %vm650, %v5597, 0
      %v5613 = vsel %vm650, %v5598, 0
      %v5616 = vsel %vm650, %v5599, 0
      %v5619 = vsel %vm650, %v5600, 0
      %v5622 = vsel %vm650, %v5601, 0
      %v5625 = vsel %vm650, %v5602, 0
      %v5628 = vsel %vm675, %v5578, 0
      %5630 = vmatprep.subr.bf16.mxu0 0
      %5631 = vmatpush1.bf16.msra.mxu0 %v5628
      %5632 = vmatprep.subr.bf16.mxu0 0
      %5633 = vmatpush1.bf16.msra.mxu0 0
      %5634 = vmatprep.subr.bf16.mxu0 0
      %5635 = vmatpush1.bf16.msra.mxu0 0
      %5636 = vmatprep.subr.bf16.mxu0 0
      %5637 = vmatpush1.bf16.msra.mxu0 0
      %5638 = vmatprep.subr.bf16.mxu0 0
      %5639 = vmatpush1.bf16.msra.mxu0 0
      %5640 = vmatprep.subr.bf16.mxu0 0
      %5641 = vmatpush1.bf16.msra.mxu0 0
      %5642 = vmatprep.subr.bf16.mxu0 0
      %5643 = vmatpush1.bf16.msra.mxu0 0
      %5644 = vmatprep.subr.bf16.mxu0 0
      %5645 = vmatpush1.bf16.msra.mxu0 0
      %5646 = vmatprep.subr.bf16.mxu0 0
      %5647 = vmatpush1.bf16.msra.mxu0 0
      %5648 = vmatprep.subr.bf16.mxu0 0
      %5649 = vmatpush1.bf16.msra.mxu0 0
      %5650 = vmatprep.subr.bf16.mxu0 0
      %5651 = vmatpush1.bf16.msra.mxu0 0
      %5652 = vmatprep.subr.bf16.mxu0 0
      %5653 = vmatpush1.bf16.msra.mxu0 0
      %5654 = vmatprep.subr.bf16.mxu0 0
      %5655 = vmatpush1.bf16.msra.mxu0 0
      %5656 = vmatprep.subr.bf16.mxu0 0
      %5657 = vmatpush1.bf16.msra.mxu0 0
      %5658 = vmatprep.subr.bf16.mxu0 0
      %5659 = vmatpush1.bf16.msra.mxu0 0
      %5660 = vmatprep.subr.bf16.mxu0 0
      %5661 = vmatpush1.bf16.msra.mxu0 0
      %5662 = vmatprep.mubr.bf16.mxu0 0
      %5663 = vmatmul.mubr.bf16.gmra.mrb[0].mxu0 %v5604
      %v5664 = vpop.f32.mrb[0].mxu0
      %v5665 = vadd.f32 0.0, %v5664
      %v5666 = vpop.f32.mrb[0].mxu0
      %v5667 = vpop.f32.mrb[0].mxu0
      %v5668 = vadd.f32 0.0, %v5667
      %v5669 = vpop.f32.mrb[0].mxu0
      %5670 = vmatprep.mubr.bf16.mxu0 0
      %5671 = vmatmul.mubr.bf16.gmra.mrb[0].mxu0 %v5607
      %v5672 = vpop.f32.mrb[0].mxu0
      %v5673 = vadd.f32 0.0, %v5672
      %v5674 = vpop.f32.mrb[0].mxu0
      %v5675 = vpop.f32.mrb[0].mxu0
      %v5676 = vadd.f32 0.0, %v5675
      %v5677 = vpop.f32.mrb[0].mxu0
      %5678 = vmatprep.mubr.bf16.mxu0 0
      %5679 = vmatmul.mubr.bf16.gmra.mrb[0].mxu0 %v5610
      %v5680 = vpop.f32.mrb[0].mxu0
      %v5681 = vadd.f32 0.0, %v5680
      %v5682 = vpop.f32.mrb[0].mxu0
      %v5683 = vpop.f32.mrb[0].mxu0
      %v5684 = vadd.f32 0.0, %v5683
      %v5685 = vpop.f32.mrb[0].mxu0
      %5686 = vmatprep.mubr.bf16.mxu0 0
      %5687 = vmatmul.mubr.bf16.gmra.mrb[0].mxu0 %v5613
      %v5688 = vpop.f32.mrb[0].mxu0
      %v5689 = vadd.f32 0.0, %v5688
      %v5690 = vpop.f32.mrb[0].mxu0
      %v5691 = vpop.f32.mrb[0].mxu0
      %v5692 = vadd.f32 0.0, %v5691
      %v5693 = vpop.f32.mrb[0].mxu0
      %5694 = vmatprep.mubr.bf16.mxu0 0
      %5695 = vmatmul.mubr.bf16.gmra.mrb[0].mxu0 %v5616
      %v5696 = vpop.f32.mrb[0].mxu0
      %v5697 = vadd.f32 0.0, %v5696
      %v5698 = vpop.f32.mrb[0].mxu0
      %v5699 = vpop.f32.mrb[0].mxu0
      %v5700 = vadd.f32 0.0, %v5699
      %v5701 = vpop.f32.mrb[0].mxu0
      %5702 = vmatprep.mubr.bf16.mxu0 0
      %5703 = vmatmul.mubr.bf16.gmra.mrb[0].mxu0 %v5619
      %v5704 = vpop.f32.mrb[0].mxu0
      %v5705 = vadd.f32 0.0, %v5704
      %v5706 = vpop.f32.mrb[0].mxu0
      %v5707 = vpop.f32.mrb[0].mxu0
      %v5708 = vadd.f32 0.0, %v5707
      %v5709 = vpop.f32.mrb[0].mxu0
      %5710 = vmatprep.mubr.bf16.mxu0 0
      %5711 = vmatmul.mubr.bf16.gmra.mrb[0].mxu0 %v5622
      %v5712 = vpop.f32.mrb[0].mxu0
      %v5713 = vadd.f32 0.0, %v5712
      %v5714 = vpop.f32.mrb[0].mxu0
      %v5715 = vpop.f32.mrb[0].mxu0
      %v5716 = vadd.f32 0.0, %v5715
      %v5717 = vpop.f32.mrb[0].mxu0
      %5718 = vmatprep.mubr.bf16.mxu0 0
      %5719 = vmatmul.mubr.bf16.gmra.mrb[0].mxu0 %v5625
      %v5720 = vpop.f32.mrb[0].mxu0
      %v5721 = vadd.f32 0.0, %v5720
      %v5722 = vpop.f32.mrb[0].mxu0
      %v5723 = vpop.f32.mrb[0].mxu0
      %v5724 = vadd.f32 0.0, %v5723
      %v5725 = vpop.f32.mrb[0].mxu0
      %5726 = vdwg.mxu0
      %v5727 = vadd.f32 %v5341, %v5665
      %v5728 = vadd.f32 %v5342, %v5668
      %v5729 = vadd.f32 %v5343, %v5673
      %v5730 = vadd.f32 %v5344, %v5676
      %v5731 = vadd.f32 %v5345, %v5681
      %v5732 = vadd.f32 %v5346, %v5684
      %v5733 = vadd.f32 %v5347, %v5689
      %v5734 = vadd.f32 %v5348, %v5692
      %v5735 = vadd.f32 %v5349, %v5697
      %v5736 = vadd.f32 %v5350, %v5700
      %v5737 = vadd.f32 %v5351, %v5705
      %v5738 = vadd.f32 %v5352, %v5708
      %v5739 = vadd.f32 %v5353, %v5713
      %v5740 = vadd.f32 %v5354, %v5716
      %v5741 = vadd.f32 %v5355, %v5721
      %v5742 = vadd.f32 %v5356, %v5724
      %v5743 = vld [vmem:[%s5360] sm:$0xe]
      %v5744 = vld [vmem:[%s5360 + $0x8] sm:$0x3]
      %v5745 = vld [vmem:[%s5360 + $0xc] sm:$0xe]
      %v5746 = vld [vmem:[%s5360 + $0x14] sm:$0x3]
      %v5747 = vld [vmem:[%s5360 + $0x18] sm:$0xe]
      %v5748 = vld [vmem:[%s5360 + $0x20] sm:$0x3]
      %v5749 = vld [vmem:[%s5360 + $0x24] sm:$0xe]
      %v5750 = vld [vmem:[%s5360 + $0x2c] sm:$0x3]
      %v5751 = vld [vmem:[%s5360 + $0x30] sm:$0xe]
      %v5752 = vld [vmem:[%s5360 + $0x38] sm:$0x3]
      %v5753 = vld [vmem:[%s5360 + $0x3c] sm:$0xe]
      %v5754 = vld [vmem:[%s5360 + $0x44] sm:$0x3]
      %v5755 = vld [vmem:[%s5360 + $0x48] sm:$0xe]
      %v5756 = vld [vmem:[%s5360 + $0x50] sm:$0x3]
      %v5757 = vld [vmem:[%s5360 + $0x54] sm:$0xe]
      %v5758 = vld [vmem:[%s5360 + $0x5c] sm:$0x3]
      %v5760 = vshrl.u32 %v5743, 16
      %v5762 = vrot.slane %v5760, 5
      %v5763 = vshll.u32 %v5743, 16
      %v5765 = vrot.slane %v5763, 6
      %v5766 = vor.u32 %v5762, %v5765
      %v5767 = vrot.slane %v5766, 4
      %v5768 = vrot.slane %v5399, 5
      %v5769 = vrot.slane %v5395, 6
      %v5770 = vor.u32 %v5768, %v5769
      %v5771 = vsel %vm399, %v5767, %v5770
      %v5772 = vrot.slane %v5770, 4
      %v5774 = vshrl.u32 %v5744, 16
      %v5776 = vrot.slane %v5774, 5
      %v5777 = vshll.u32 %v5744, 16
      %v5779 = vrot.slane %v5777, 6
      %v5780 = vor.u32 %v5776, %v5779
      %v5781 = vsel %vm399, %v5772, %v5780
      %v5783 = vshrl.u32 %v5745, 16
      %v5785 = vrot.slane %v5783, 5
      %v5786 = vshll.u32 %v5745, 16
      %v5788 = vrot.slane %v5786, 6
      %v5789 = vor.u32 %v5785, %v5788
      %v5790 = vrot.slane %v5789, 4
      %v5791 = vrot.slane %v5423, 5
      %v5792 = vrot.slane %v5419, 6
      %v5793 = vor.u32 %v5791, %v5792
      %v5794 = vsel %vm399, %v5790, %v5793
      %v5795 = vrot.slane %v5793, 4
      %v5797 = vshrl.u32 %v5746, 16
      %v5799 = vrot.slane %v5797, 5
      %v5800 = vshll.u32 %v5746, 16
      %v5802 = vrot.slane %v5800, 6
      %v5803 = vor.u32 %v5799, %v5802
      %v5804 = vsel %vm399, %v5795, %v5803
      %v5806 = vshrl.u32 %v5747, 16
      %v5808 = vrot.slane %v5806, 5
      %v5809 = vshll.u32 %v5747, 16
      %v5811 = vrot.slane %v5809, 6
      %v5812 = vor.u32 %v5808, %v5811
      %v5813 = vrot.slane %v5812, 4
      %v5814 = vrot.slane %v5447, 5
      %v5815 = vrot.slane %v5443, 6
      %v5816 = vor.u32 %v5814, %v5815
      %v5817 = vsel %vm399, %v5813, %v5816
      %v5818 = vrot.slane %v5816, 4
      %v5820 = vshrl.u32 %v5748, 16
      %v5822 = vrot.slane %v5820, 5
      %v5823 = vshll.u32 %v5748, 16
      %v5825 = vrot.slane %v5823, 6
      %v5826 = vor.u32 %v5822, %v5825
      %v5827 = vsel %vm399, %v5818, %v5826
      %v5829 = vshrl.u32 %v5749, 16
      %v5831 = vrot.slane %v5829, 5
      %v5832 = vshll.u32 %v5749, 16
      %v5834 = vrot.slane %v5832, 6
      %v5835 = vor.u32 %v5831, %v5834
      %v5836 = vrot.slane %v5835, 4
      %v5837 = vrot.slane %v5471, 5
      %v5838 = vrot.slane %v5467, 6
      %v5839 = vor.u32 %v5837, %v5838
      %v5840 = vsel %vm399, %v5836, %v5839
      %v5841 = vrot.slane %v5839, 4
      %v5843 = vshrl.u32 %v5750, 16
      %v5845 = vrot.slane %v5843, 5
      %v5846 = vshll.u32 %v5750, 16
      %v5848 = vrot.slane %v5846, 6
      %v5849 = vor.u32 %v5845, %v5848
      %v5850 = vsel %vm399, %v5841, %v5849
      %v5852 = vshrl.u32 %v5751, 16
      %v5854 = vrot.slane %v5852, 5
      %v5855 = vshll.u32 %v5751, 16
      %v5857 = vrot.slane %v5855, 6
      %v5858 = vor.u32 %v5854, %v5857
      %v5859 = vrot.slane %v5858, 4
      %v5860 = vrot.slane %v5495, 5
      %v5861 = vrot.slane %v5491, 6
      %v5862 = vor.u32 %v5860, %v5861
      %v5863 = vsel %vm399, %v5859, %v5862
      %v5864 = vrot.slane %v5862, 4
      %v5866 = vshrl.u32 %v5752, 16
      %v5868 = vrot.slane %v5866, 5
      %v5869 = vshll.u32 %v5752, 16
      %v5871 = vrot.slane %v5869, 6
      %v5872 = vor.u32 %v5868, %v5871
      %v5873 = vsel %vm399, %v5864, %v5872
      %v5875 = vshrl.u32 %v5753, 16
      %v5877 = vrot.slane %v5875, 5
      %v5878 = vshll.u32 %v5753, 16
      %v5880 = vrot.slane %v5878, 6
      %v5881 = vor.u32 %v5877, %v5880
      %v5882 = vrot.slane %v5881, 4
      %v5883 = vrot.slane %v5519, 5
      %v5884 = vrot.slane %v5515, 6
      %v5885 = vor.u32 %v5883, %v5884
      %v5886 = vsel %vm399, %v5882, %v5885
      %v5887 = vrot.slane %v5885, 4
      %v5889 = vshrl.u32 %v5754, 16
      %v5891 = vrot.slane %v5889, 5
      %v5892 = vshll.u32 %v5754, 16
      %v5894 = vrot.slane %v5892, 6
      %v5895 = vor.u32 %v5891, %v5894
      %v5896 = vsel %vm399, %v5887, %v5895
      %v5898 = vshrl.u32 %v5755, 16
      %v5900 = vrot.slane %v5898, 5
      %v5901 = vshll.u32 %v5755, 16
      %v5903 = vrot.slane %v5901, 6
      %v5904 = vor.u32 %v5900, %v5903
      %v5905 = vrot.slane %v5904, 4
      %v5906 = vrot.slane %v5543, 5
      %v5907 = vrot.slane %v5539, 6
      %v5908 = vor.u32 %v5906, %v5907
      %v5909 = vsel %vm399, %v5905, %v5908
      %v5910 = vrot.slane %v5908, 4
      %v5912 = vshrl.u32 %v5756, 16
      %v5914 = vrot.slane %v5912, 5
      %v5915 = vshll.u32 %v5756, 16
      %v5917 = vrot.slane %v5915, 6
      %v5918 = vor.u32 %v5914, %v5917
      %v5919 = vsel %vm399, %v5910, %v5918
      %v5921 = vshrl.u32 %v5757, 16
      %v5923 = vrot.slane %v5921, 5
      %v5924 = vshll.u32 %v5757, 16
      %v5926 = vrot.slane %v5924, 6
      %v5927 = vor.u32 %v5923, %v5926
      %v5928 = vrot.slane %v5927, 4
      %v5929 = vrot.slane %v5567, 5
      %v5930 = vrot.slane %v5563, 6
      %v5931 = vor.u32 %v5929, %v5930
      %v5932 = vsel %vm399, %v5928, %v5931
      %v5933 = vrot.slane %v5931, 4
      %v5935 = vshrl.u32 %v5758, 16
      %v5937 = vrot.slane %v5935, 5
      %v5938 = vshll.u32 %v5758, 16
      %v5940 = vrot.slane %v5938, 6
      %v5941 = vor.u32 %v5937, %v5940
      %v5942 = vsel %vm399, %v5933, %v5941
      %s5943 = scalar_lea.vmem %s2, 14
      %v5944 = vld [vmem:[%s5943] sm:$0x3]
      %v5945 = vunpack.c.l.b16 %v5771
      %v5946 = vunpack.c.l.b16 %v5781
      %v5947 = vunpack.c.l.b16 %v5794
      %v5948 = vunpack.c.l.b16 %v5804
      %v5949 = vunpack.c.l.b16 %v5817
      %v5950 = vunpack.c.l.b16 %v5827
      %v5951 = vunpack.c.l.b16 %v5840
      %v5952 = vunpack.c.l.b16 %v5850
      %v5953 = vunpack.c.l.b16 %v5863
      %v5954 = vunpack.c.l.b16 %v5873
      %v5955 = vunpack.c.l.b16 %v5886
      %v5956 = vunpack.c.l.b16 %v5896
      %v5957 = vunpack.c.l.b16 %v5909
      %v5958 = vunpack.c.l.b16 %v5919
      %v5959 = vunpack.c.l.b16 %v5932
      %v5960 = vunpack.c.l.b16 %v5942
      %v5961 = vpack.c.b16 %v5946, %v5945
      %v5962 = vpack.c.b16 %v5948, %v5947
      %v5963 = vpack.c.b16 %v5950, %v5949
      %v5964 = vpack.c.b16 %v5952, %v5951
      %v5965 = vpack.c.b16 %v5954, %v5953
      %v5966 = vpack.c.b16 %v5956, %v5955
      %v5967 = vpack.c.b16 %v5958, %v5957
      %v5968 = vpack.c.b16 %v5960, %v5959
      %v5970 = vsel %vm650, %v5961, 0
      %v5973 = vsel %vm650, %v5962, 0
      %v5976 = vsel %vm650, %v5963, 0
      %v5979 = vsel %vm650, %v5964, 0
      %v5982 = vsel %vm650, %v5965, 0
      %v5985 = vsel %vm650, %v5966, 0
      %v5988 = vsel %vm650, %v5967, 0
      %v5991 = vsel %vm650, %v5968, 0
      %v5994 = vsel %vm675, %v5944, 0
      %5996 = vmatprep.subr.bf16.mxu0 0
      %5997 = vmatpush1.bf16.msra.mxu0 %v5994
      %5998 = vmatprep.subr.bf16.mxu0 0
      %5999 = vmatpush1.bf16.msra.mxu0 0
      %6000 = vmatprep.subr.bf16.mxu0 0
      %6001 = vmatpush1.bf16.msra.mxu0 0
      %6002 = vmatprep.subr.bf16.mxu0 0
      %6003 = vmatpush1.bf16.msra.mxu0 0
      %6004 = vmatprep.subr.bf16.mxu0 0
      %6005 = vmatpush1.bf16.msra.mxu0 0
      %6006 = vmatprep.subr.bf16.mxu0 0
      %6007 = vmatpush1.bf16.msra.mxu0 0
      %6008 = vmatprep.subr.bf16.mxu0 0
      %6009 = vmatpush1.bf16.msra.mxu0 0
      %6010 = vmatprep.subr.bf16.mxu0 0
      %6011 = vmatpush1.bf16.msra.mxu0 0
      %6012 = vmatprep.subr.bf16.mxu0 0
      %6013 = vmatpush1.bf16.msra.mxu0 0
      %6014 = vmatprep.subr.bf16.mxu0 0
      %6015 = vmatpush1.bf16.msra.mxu0 0
      %6016 = vmatprep.subr.bf16.mxu0 0
      %6017 = vmatpush1.bf16.msra.mxu0 0
      %6018 = vmatprep.subr.bf16.mxu0 0
      %6019 = vmatpush1.bf16.msra.mxu0 0
      %6020 = vmatprep.subr.bf16.mxu0 0
      %6021 = vmatpush1.bf16.msra.mxu0 0
      %6022 = vmatprep.subr.bf16.mxu0 0
      %6023 = vmatpush1.bf16.msra.mxu0 0
      %6024 = vmatprep.subr.bf16.mxu0 0
      %6025 = vmatpush1.bf16.msra.mxu0 0
      %6026 = vmatprep.subr.bf16.mxu0 0
      %6027 = vmatpush1.bf16.msra.mxu0 0
      %6028 = vmatprep.mubr.bf16.mxu0 0
      %6029 = vmatmul.mubr.bf16.gmra.mrb[0].mxu0 %v5970
      %v6030 = vpop.f32.mrb[0].mxu0
      %v6031 = vadd.f32 0.0, %v6030
      %v6032 = vpop.f32.mrb[0].mxu0
      %v6033 = vpop.f32.mrb[0].mxu0
      %v6034 = vadd.f32 0.0, %v6033
      %v6035 = vpop.f32.mrb[0].mxu0
      %6036 = vmatprep.mubr.bf16.mxu0 0
      %6037 = vmatmul.mubr.bf16.gmra.mrb[0].mxu0 %v5973
      %v6038 = vpop.f32.mrb[0].mxu0
      %v6039 = vadd.f32 0.0, %v6038
      %v6040 = vpop.f32.mrb[0].mxu0
      %v6041 = vpop.f32.mrb[0].mxu0
      %v6042 = vadd.f32 0.0, %v6041
      %v6043 = vpop.f32.mrb[0].mxu0
      %6044 = vmatprep.mubr.bf16.mxu0 0
      %6045 = vmatmul.mubr.bf16.gmra.mrb[0].mxu0 %v5976
      %v6046 = vpop.f32.mrb[0].mxu0
      %v6047 = vadd.f32 0.0, %v6046
      %v6048 = vpop.f32.mrb[0].mxu0
      %v6049 = vpop.f32.mrb[0].mxu0
      %v6050 = vadd.f32 0.0, %v6049
      %v6051 = vpop.f32.mrb[0].mxu0
      %6052 = vmatprep.mubr.bf16.mxu0 0
      %6053 = vmatmul.mubr.bf16.gmra.mrb[0].mxu0 %v5979
      %v6054 = vpop.f32.mrb[0].mxu0
      %v6055 = vadd.f32 0.0, %v6054
      %v6056 = vpop.f32.mrb[0].mxu0
      %v6057 = vpop.f32.mrb[0].mxu0
      %v6058 = vadd.f32 0.0, %v6057
      %v6059 = vpop.f32.mrb[0].mxu0
      %6060 = vmatprep.mubr.bf16.mxu0 0
      %6061 = vmatmul.mubr.bf16.gmra.mrb[0].mxu0 %v5982
      %v6062 = vpop.f32.mrb[0].mxu0
      %v6063 = vadd.f32 0.0, %v6062
      %v6064 = vpop.f32.mrb[0].mxu0
      %v6065 = vpop.f32.mrb[0].mxu0
      %v6066 = vadd.f32 0.0, %v6065
      %v6067 = vpop.f32.mrb[0].mxu0
      %6068 = vmatprep.mubr.bf16.mxu0 0
      %6069 = vmatmul.mubr.bf16.gmra.mrb[0].mxu0 %v5985
      %v6070 = vpop.f32.mrb[0].mxu0
      %v6071 = vadd.f32 0.0, %v6070
      %v6072 = vpop.f32.mrb[0].mxu0
      %v6073 = vpop.f32.mrb[0].mxu0
      %v6074 = vadd.f32 0.0, %v6073
      %v6075 = vpop.f32.mrb[0].mxu0
      %6076 = vmatprep.mubr.bf16.mxu0 0
      %6077 = vmatmul.mubr.bf16.gmra.mrb[0].mxu0 %v5988
      %v6078 = vpop.f32.mrb[0].mxu0
      %v6079 = vadd.f32 0.0, %v6078
      %v6080 = vpop.f32.mrb[0].mxu0
      %v6081 = vpop.f32.mrb[0].mxu0
      %v6082 = vadd.f32 0.0, %v6081
      %v6083 = vpop.f32.mrb[0].mxu0
      %6084 = vmatprep.mubr.bf16.mxu0 0
      %6085 = vmatmul.mubr.bf16.gmra.mrb[0].mxu0 %v5991
      %v6086 = vpop.f32.mrb[0].mxu0
      %v6087 = vadd.f32 0.0, %v6086
      %v6088 = vpop.f32.mrb[0].mxu0
      %v6089 = vpop.f32.mrb[0].mxu0
      %v6090 = vadd.f32 0.0, %v6089
      %v6091 = vpop.f32.mrb[0].mxu0
      %6092 = vdwg.mxu0
      %v6093 = vadd.f32 %v5727, %v6031
      %v6094 = vadd.f32 %v5728, %v6034
      %v6095 = vadd.f32 %v5729, %v6039
      %v6096 = vadd.f32 %v5730, %v6042
      %v6097 = vadd.f32 %v5731, %v6047
      %v6098 = vadd.f32 %v5732, %v6050
      %v6099 = vadd.f32 %v5733, %v6055
      %v6100 = vadd.f32 %v5734, %v6058
      %v6101 = vadd.f32 %v5735, %v6063
      %v6102 = vadd.f32 %v5736, %v6066
      %v6103 = vadd.f32 %v5737, %v6071
      %v6104 = vadd.f32 %v5738, %v6074
      %v6105 = vadd.f32 %v5739, %v6079
      %v6106 = vadd.f32 %v5740, %v6082
      %v6107 = vadd.f32 %v5741, %v6087
      %v6108 = vadd.f32 %v5742, %v6090
      %v6109 = vld [vmem:[%s5360] sm:$0xc]
      %v6110 = vld [vmem:[%s5360 + $0x8] sm:$0x7]
      %v6111 = vld [vmem:[%s5360 + $0xc] sm:$0xc]
      %v6112 = vld [vmem:[%s5360 + $0x14] sm:$0x7]
      %v6113 = vld [vmem:[%s5360 + $0x18] sm:$0xc]
      %v6114 = vld [vmem:[%s5360 + $0x20] sm:$0x7]
      %v6115 = vld [vmem:[%s5360 + $0x24] sm:$0xc]
      %v6116 = vld [vmem:[%s5360 + $0x2c] sm:$0x7]
      %v6117 = vld [vmem:[%s5360 + $0x30] sm:$0xc]
      %v6118 = vld [vmem:[%s5360 + $0x38] sm:$0x7]
      %v6119 = vld [vmem:[%s5360 + $0x3c] sm:$0xc]
      %v6120 = vld [vmem:[%s5360 + $0x44] sm:$0x7]
      %v6121 = vld [vmem:[%s5360 + $0x48] sm:$0xc]
      %v6122 = vld [vmem:[%s5360 + $0x50] sm:$0x7]
      %v6123 = vld [vmem:[%s5360 + $0x54] sm:$0xc]
      %v6124 = vld [vmem:[%s5360 + $0x5c] sm:$0x7]
      %v6126 = vshrl.u32 %v6109, 16
      %v6128 = vrot.slane %v6126, 6
      %v6129 = vshll.u32 %v6109, 16
      %v6131 = vrot.slane %v6129, 7
      %v6132 = vor.u32 %v6128, %v6131
      %v6133 = vrot.slane %v6132, 4
      %v6134 = vrot.slane %v5399, 6
      %v6135 = vrot.slane %v5395, 7
      %v6136 = vor.u32 %v6134, %v6135
      %v6137 = vsel %vm3892, %v6133, %v6136
      %v6138 = vrot.slane %v6136, 4
      %v6140 = vshrl.u32 %v6110, 16
      %v6142 = vrot.slane %v6140, 6
      %v6143 = vshll.u32 %v6110, 16
      %v6145 = vrot.slane %v6143, 7
      %v6146 = vor.u32 %v6142, %v6145
      %v6147 = vsel %vm3892, %v6138, %v6146
      %v6149 = vshrl.u32 %v6111, 16
      %v6151 = vrot.slane %v6149, 6
      %v6152 = vshll.u32 %v6111, 16
      %v6154 = vrot.slane %v6152, 7
      %v6155 = vor.u32 %v6151, %v6154
      %v6156 = vrot.slane %v6155, 4
      %v6157 = vrot.slane %v5423, 6
      %v6158 = vrot.slane %v5419, 7
      %v6159 = vor.u32 %v6157, %v6158
      %v6160 = vsel %vm3892, %v6156, %v6159
      %v6161 = vrot.slane %v6159, 4
      %v6163 = vshrl.u32 %v6112, 16
      %v6165 = vrot.slane %v6163, 6
      %v6166 = vshll.u32 %v6112, 16
      %v6168 = vrot.slane %v6166, 7
      %v6169 = vor.u32 %v6165, %v6168
      %v6170 = vsel %vm3892, %v6161, %v6169
      %v6172 = vshrl.u32 %v6113, 16
      %v6174 = vrot.slane %v6172, 6
      %v6175 = vshll.u32 %v6113, 16
      %v6177 = vrot.slane %v6175, 7
      %v6178 = vor.u32 %v6174, %v6177
      %v6179 = vrot.slane %v6178, 4
      %v6180 = vrot.slane %v5447, 6
      %v6181 = vrot.slane %v5443, 7
      %v6182 = vor.u32 %v6180, %v6181
      %v6183 = vsel %vm3892, %v6179, %v6182
      %v6184 = vrot.slane %v6182, 4
      %v6186 = vshrl.u32 %v6114, 16
      %v6188 = vrot.slane %v6186, 6
      %v6189 = vshll.u32 %v6114, 16
      %v6191 = vrot.slane %v6189, 7
      %v6192 = vor.u32 %v6188, %v6191
      %v6193 = vsel %vm3892, %v6184, %v6192
      %v6195 = vshrl.u32 %v6115, 16
      %v6197 = vrot.slane %v6195, 6
      %v6198 = vshll.u32 %v6115, 16
      %v6200 = vrot.slane %v6198, 7
      %v6201 = vor.u32 %v6197, %v6200
      %v6202 = vrot.slane %v6201, 4
      %v6203 = vrot.slane %v5471, 6
      %v6204 = vrot.slane %v5467, 7
      %v6205 = vor.u32 %v6203, %v6204
      %v6206 = vsel %vm3892, %v6202, %v6205
      %v6207 = vrot.slane %v6205, 4
      %v6209 = vshrl.u32 %v6116, 16
      %v6211 = vrot.slane %v6209, 6
      %v6212 = vshll.u32 %v6116, 16
      %v6214 = vrot.slane %v6212, 7
      %v6215 = vor.u32 %v6211, %v6214
      %v6216 = vsel %vm3892, %v6207, %v6215
      %v6218 = vshrl.u32 %v6117, 16
      %v6220 = vrot.slane %v6218, 6
      %v6221 = vshll.u32 %v6117, 16
      %v6223 = vrot.slane %v6221, 7
      %v6224 = vor.u32 %v6220, %v6223
      %v6225 = vrot.slane %v6224, 4
      %v6226 = vrot.slane %v5495, 6
      %v6227 = vrot.slane %v5491, 7
      %v6228 = vor.u32 %v6226, %v6227
      %v6229 = vsel %vm3892, %v6225, %v6228
      %v6230 = vrot.slane %v6228, 4
      %v6232 = vshrl.u32 %v6118, 16
      %v6234 = vrot.slane %v6232, 6
      %v6235 = vshll.u32 %v6118, 16
      %v6237 = vrot.slane %v6235, 7
      %v6238 = vor.u32 %v6234, %v6237
      %v6239 = vsel %vm3892, %v6230, %v6238
      %v6241 = vshrl.u32 %v6119, 16
      %v6243 = vrot.slane %v6241, 6
      %v6244 = vshll.u32 %v6119, 16
      %v6246 = vrot.slane %v6244, 7
      %v6247 = vor.u32 %v6243, %v6246
      %v6248 = vrot.slane %v6247, 4
      %v6249 = vrot.slane %v5519, 6
      %v6250 = vrot.slane %v5515, 7
      %v6251 = vor.u32 %v6249, %v6250
      %v6252 = vsel %vm3892, %v6248, %v6251
      %v6253 = vrot.slane %v6251, 4
      %v6255 = vshrl.u32 %v6120, 16
      %v6257 = vrot.slane %v6255, 6
      %v6258 = vshll.u32 %v6120, 16
      %v6260 = vrot.slane %v6258, 7
      %v6261 = vor.u32 %v6257, %v6260
      %v6262 = vsel %vm3892, %v6253, %v6261
      %v6264 = vshrl.u32 %v6121, 16
      %v6266 = vrot.slane %v6264, 6
      %v6267 = vshll.u32 %v6121, 16
      %v6269 = vrot.slane %v6267, 7
      %v6270 = vor.u32 %v6266, %v6269
      %v6271 = vrot.slane %v6270, 4
      %v6272 = vrot.slane %v5543, 6
      %v6273 = vrot.slane %v5539, 7
      %v6274 = vor.u32 %v6272, %v6273
      %v6275 = vsel %vm3892, %v6271, %v6274
      %v6276 = vrot.slane %v6274, 4
      %v6278 = vshrl.u32 %v6122, 16
      %v6280 = vrot.slane %v6278, 6
      %v6281 = vshll.u32 %v6122, 16
      %v6283 = vrot.slane %v6281, 7
      %v6284 = vor.u32 %v6280, %v6283
      %v6285 = vsel %vm3892, %v6276, %v6284
      %v6287 = vshrl.u32 %v6123, 16
      %v6289 = vrot.slane %v6287, 6
      %v6290 = vshll.u32 %v6123, 16
      %v6292 = vrot.slane %v6290, 7
      %v6293 = vor.u32 %v6289, %v6292
      %v6294 = vrot.slane %v6293, 4
      %v6295 = vrot.slane %v5567, 6
      %v6296 = vrot.slane %v5563, 7
      %v6297 = vor.u32 %v6295, %v6296
      %v6298 = vsel %vm3892, %v6294, %v6297
      %v6299 = vrot.slane %v6297, 4
      %v6301 = vshrl.u32 %v6124, 16
      %v6303 = vrot.slane %v6301, 6
      %v6304 = vshll.u32 %v6124, 16
      %v6306 = vrot.slane %v6304, 7
      %v6307 = vor.u32 %v6303, %v6306
      %v6308 = vsel %vm3892, %v6299, %v6307
      %s6309 = scalar_lea.vmem %s2, 16
      %v6310 = vld [vmem:[%s6309] sm:$0x3]
      %v6311 = vunpack.c.l.b16 %v6137
      %v6312 = vunpack.c.l.b16 %v6147
      %v6313 = vunpack.c.l.b16 %v6160
      %v6314 = vunpack.c.l.b16 %v6170
      %v6315 = vunpack.c.l.b16 %v6183
      %v6316 = vunpack.c.l.b16 %v6193
      %v6317 = vunpack.c.l.b16 %v6206
      %v6318 = vunpack.c.l.b16 %v6216
      %v6319 = vunpack.c.l.b16 %v6229
      %v6320 = vunpack.c.l.b16 %v6239
      %v6321 = vunpack.c.l.b16 %v6252
      %v6322 = vunpack.c.l.b16 %v6262
      %v6323 = vunpack.c.l.b16 %v6275
      %v6324 = vunpack.c.l.b16 %v6285
      %v6325 = vunpack.c.l.b16 %v6298
      %v6326 = vunpack.c.l.b16 %v6308
      %v6327 = vpack.c.b16 %v6312, %v6311
      %v6328 = vpack.c.b16 %v6314, %v6313
      %v6329 = vpack.c.b16 %v6316, %v6315
      %v6330 = vpack.c.b16 %v6318, %v6317
      %v6331 = vpack.c.b16 %v6320, %v6319
      %v6332 = vpack.c.b16 %v6322, %v6321
      %v6333 = vpack.c.b16 %v6324, %v6323
      %v6334 = vpack.c.b16 %v6326, %v6325
      %v6336 = vsel %vm650, %v6327, 0
      %v6339 = vsel %vm650, %v6328, 0
      %v6342 = vsel %vm650, %v6329, 0
      %v6345 = vsel %vm650, %v6330, 0
      %v6348 = vsel %vm650, %v6331, 0
      %v6351 = vsel %vm650, %v6332, 0
      %v6354 = vsel %vm650, %v6333, 0
      %v6357 = vsel %vm650, %v6334, 0
      %v6360 = vsel %vm675, %v6310, 0
      %6362 = vmatprep.subr.bf16.mxu0 0
      %6363 = vmatpush1.bf16.msra.mxu0 %v6360
      %6364 = vmatprep.subr.bf16.mxu0 0
      %6365 = vmatpush1.bf16.msra.mxu0 0
      %6366 = vmatprep.subr.bf16.mxu0 0
      %6367 = vmatpush1.bf16.msra.mxu0 0
      %6368 = vmatprep.subr.bf16.mxu0 0
      %6369 = vmatpush1.bf16.msra.mxu0 0
      %6370 = vmatprep.subr.bf16.mxu0 0
      %6371 = vmatpush1.bf16.msra.mxu0 0
      %6372 = vmatprep.subr.bf16.mxu0 0
      %6373 = vmatpush1.bf16.msra.mxu0 0
      %6374 = vmatprep.subr.bf16.mxu0 0
      %6375 = vmatpush1.bf16.msra.mxu0 0
      %6376 = vmatprep.subr.bf16.mxu0 0
      %6377 = vmatpush1.bf16.msra.mxu0 0
      %6378 = vmatprep.subr.bf16.mxu0 0
      %6379 = vmatpush1.bf16.msra.mxu0 0
      %6380 = vmatprep.subr.bf16.mxu0 0
      %6381 = vmatpush1.bf16.msra.mxu0 0
      %6382 = vmatprep.subr.bf16.mxu0 0
      %6383 = vmatpush1.bf16.msra.mxu0 0
      %6384 = vmatprep.subr.bf16.mxu0 0
      %6385 = vmatpush1.bf16.msra.mxu0 0
      %6386 = vmatprep.subr.bf16.mxu0 0
      %6387 = vmatpush1.bf16.msra.mxu0 0
      %6388 = vmatprep.subr.bf16.mxu0 0
      %6389 = vmatpush1.bf16.msra.mxu0 0
      %6390 = vmatprep.subr.bf16.mxu0 0
      %6391 = vmatpush1.bf16.msra.mxu0 0
      %6392 = vmatprep.subr.bf16.mxu0 0
      %6393 = vmatpush1.bf16.msra.mxu0 0
      %6394 = vmatprep.mubr.bf16.mxu0 0
      %6395 = vmatmul.mubr.bf16.gmra.mrb[0].mxu0 %v6336
      %v6396 = vpop.f32.mrb[0].mxu0
      %v6397 = vadd.f32 0.0, %v6396
      %v6398 = vpop.f32.mrb[0].mxu0
      %v6399 = vpop.f32.mrb[0].mxu0
      %v6400 = vadd.f32 0.0, %v6399
      %v6401 = vpop.f32.mrb[0].mxu0
      %6402 = vmatprep.mubr.bf16.mxu0 0
      %6403 = vmatmul.mubr.bf16.gmra.mrb[0].mxu0 %v6339
      %v6404 = vpop.f32.mrb[0].mxu0
      %v6405 = vadd.f32 0.0, %v6404
      %v6406 = vpop.f32.mrb[0].mxu0
      %v6407 = vpop.f32.mrb[0].mxu0
      %v6408 = vadd.f32 0.0, %v6407
      %v6409 = vpop.f32.mrb[0].mxu0
      %6410 = vmatprep.mubr.bf16.mxu0 0
      %6411 = vmatmul.mubr.bf16.gmra.mrb[0].mxu0 %v6342
      %v6412 = vpop.f32.mrb[0].mxu0
      %v6413 = vadd.f32 0.0, %v6412
      %v6414 = vpop.f32.mrb[0].mxu0
      %v6415 = vpop.f32.mrb[0].mxu0
      %v6416 = vadd.f32 0.0, %v6415
      %v6417 = vpop.f32.mrb[0].mxu0
      %6418 = vmatprep.mubr.bf16.mxu0 0
      %6419 = vmatmul.mubr.bf16.gmra.mrb[0].mxu0 %v6345
      %v6420 = vpop.f32.mrb[0].mxu0
      %v6421 = vadd.f32 0.0, %v6420
      %v6422 = vpop.f32.mrb[0].mxu0
      %v6423 = vpop.f32.mrb[0].mxu0
      %v6424 = vadd.f32 0.0, %v6423
      %v6425 = vpop.f32.mrb[0].mxu0
      %6426 = vmatprep.mubr.bf16.mxu0 0
      %6427 = vmatmul.mubr.bf16.gmra.mrb[0].mxu0 %v6348
      %v6428 = vpop.f32.mrb[0].mxu0
      %v6429 = vadd.f32 0.0, %v6428
      %v6430 = vpop.f32.mrb[0].mxu0
      %v6431 = vpop.f32.mrb[0].mxu0
      %v6432 = vadd.f32 0.0, %v6431
      %v6433 = vpop.f32.mrb[0].mxu0
      %6434 = vmatprep.mubr.bf16.mxu0 0
      %6435 = vmatmul.mubr.bf16.gmra.mrb[0].mxu0 %v6351
      %v6436 = vpop.f32.mrb[0].mxu0
      %v6437 = vadd.f32 0.0, %v6436
      %v6438 = vpop.f32.mrb[0].mxu0
      %v6439 = vpop.f32.mrb[0].mxu0
      %v6440 = vadd.f32 0.0, %v6439
      %v6441 = vpop.f32.mrb[0].mxu0
      %6442 = vmatprep.mubr.bf16.mxu0 0
      %6443 = vmatmul.mubr.bf16.gmra.mrb[0].mxu0 %v6354
      %v6444 = vpop.f32.mrb[0].mxu0
      %v6445 = vadd.f32 0.0, %v6444
      %v6446 = vpop.f32.mrb[0].mxu0
      %v6447 = vpop.f32.mrb[0].mxu0
      %v6448 = vadd.f32 0.0, %v6447
      %v6449 = vpop.f32.mrb[0].mxu0
      %6450 = vmatprep.mubr.bf16.mxu0 0
      %6451 = vmatmul.mubr.bf16.gmra.mrb[0].mxu0 %v6357
      %v6452 = vpop.f32.mrb[0].mxu0
      %v6453 = vadd.f32 0.0, %v6452
      %v6454 = vpop.f32.mrb[0].mxu0
      %v6455 = vpop.f32.mrb[0].mxu0
      %v6456 = vadd.f32 0.0, %v6455
      %v6457 = vpop.f32.mrb[0].mxu0
      %6458 = vdwg.mxu0
      %v6459 = vadd.f32 %v6093, %v6397
      %v6460 = vadd.f32 %v6094, %v6400
      %v6461 = vadd.f32 %v6095, %v6405
      %v6462 = vadd.f32 %v6096, %v6408
      %v6463 = vadd.f32 %v6097, %v6413
      %v6464 = vadd.f32 %v6098, %v6416
      %v6465 = vadd.f32 %v6099, %v6421
      %v6466 = vadd.f32 %v6100, %v6424
      %v6467 = vadd.f32 %v6101, %v6429
      %v6468 = vadd.f32 %v6102, %v6432
      %v6469 = vadd.f32 %v6103, %v6437
      %v6470 = vadd.f32 %v6104, %v6440
      %v6471 = vadd.f32 %v6105, %v6445
      %v6472 = vadd.f32 %v6106, %v6448
      %v6473 = vadd.f32 %v6107, %v6453
      %v6474 = vadd.f32 %v6108, %v6456
      %v6475 = vld [vmem:[%s4] sm:$0x1]
      %v6477 = vlaneseq
      %v6478 = vshrl.u32 %v6477, 7
      %v6479 = vsub.s32 0, %v6478
      %v6480 = vrot.slane %v6475, %v6479
      %6481 = vrot.lane.b32.xlu0 %v6480, 124
      %v6482 = vpop.permute.xlu0 %6481
      %v6484 = vmul.f32 %v6459, %v6482
      %v6485 = vmul.f32 %v6460, %v6482
      %v6486 = vmul.f32 %v6461, %v6482
      %v6487 = vmul.f32 %v6462, %v6482
      %v6488 = vmul.f32 %v6463, %v6482
      %v6489 = vmul.f32 %v6464, %v6482
      %v6490 = vmul.f32 %v6465, %v6482
      %v6491 = vmul.f32 %v6466, %v6482
      %v6492 = vmul.f32 %v6467, %v6482
      %v6493 = vmul.f32 %v6468, %v6482
      %v6494 = vmul.f32 %v6469, %v6482
      %v6495 = vmul.f32 %v6470, %v6482
      %v6496 = vmul.f32 %v6471, %v6482
      %v6497 = vmul.f32 %v6472, %v6482
      %v6498 = vmul.f32 %v6473, %v6482
      %v6499 = vmul.f32 %v6474, %v6482
      %v6500 = vld [vmem:[%s5] sm:$0x1]
      %v6502 = vlaneseq
      %v6503 = vshrl.u32 %v6502, 7
      %v6504 = vsub.s32 0, %v6503
      %v6505 = vrot.slane %v6500, %v6504
      %6506 = vrot.lane.b32.xlu0 %v6505, 124
      %v6507 = vpop.permute.xlu0 %6506
      %v6509 = vadd.f32 %v6484, %v6507
      %v6510 = vadd.f32 %v6485, %v6507
      %v6511 = vadd.f32 %v6486, %v6507
      %v6512 = vadd.f32 %v6487, %v6507
      %v6513 = vadd.f32 %v6488, %v6507
      %v6514 = vadd.f32 %v6489, %v6507
      %v6515 = vadd.f32 %v6490, %v6507
      %v6516 = vadd.f32 %v6491, %v6507
      %v6517 = vadd.f32 %v6492, %v6507
      %v6518 = vadd.f32 %v6493, %v6507
      %v6519 = vadd.f32 %v6494, %v6507
      %v6520 = vadd.f32 %v6495, %v6507
      %v6521 = vadd.f32 %v6496, %v6507
      %v6522 = vadd.f32 %v6497, %v6507
      %v6523 = vadd.f32 %v6498, %v6507
      %v6524 = vadd.f32 %v6499, %v6507
      %v6525 = vmax.f32 %v6509, 0.0
      %v6526 = vmax.f32 %v6510, 0.0
      %v6527 = vmax.f32 %v6511, 0.0
      %v6528 = vmax.f32 %v6512, 0.0
      %v6529 = vmax.f32 %v6513, 0.0
      %v6530 = vmax.f32 %v6514, 0.0
      %v6531 = vmax.f32 %v6515, 0.0
      %v6532 = vmax.f32 %v6516, 0.0
      %v6533 = vmax.f32 %v6517, 0.0
      %v6534 = vmax.f32 %v6518, 0.0
      %v6535 = vmax.f32 %v6519, 0.0
      %v6536 = vmax.f32 %v6520, 0.0
      %v6537 = vmax.f32 %v6521, 0.0
      %v6538 = vmax.f32 %v6522, 0.0
      %v6539 = vmax.f32 %v6523, 0.0
      %v6540 = vmax.f32 %v6524, 0.0
      %v6541 = vpack.c.bf16 %v6526, %v6525
      %v6542 = vpack.c.bf16 %v6528, %v6527
      %v6543 = vpack.c.bf16 %v6530, %v6529
      %v6544 = vpack.c.bf16 %v6532, %v6531
      %v6545 = vpack.c.bf16 %v6534, %v6533
      %v6546 = vpack.c.bf16 %v6536, %v6535
      %v6547 = vpack.c.bf16 %v6538, %v6537
      %v6548 = vpack.c.bf16 %v6540, %v6539
      %v6557 = vunpack.c.l.b16 %v6541
      %v6558 = vunpack.c.h.b16 %v6541
      %v6559 = vunpack.c.l.b16 %v6542
      %v6560 = vunpack.c.h.b16 %v6542
      %v6561 = vunpack.c.l.b16 %v6543
      %v6562 = vunpack.c.h.b16 %v6543
      %v6563 = vunpack.c.l.b16 %v6544
      %v6564 = vunpack.c.h.b16 %v6544
      %v6565 = vunpack.c.l.b16 %v6545
      %v6566 = vunpack.c.h.b16 %v6545
      %v6567 = vunpack.c.l.b16 %v6546
      %v6568 = vunpack.c.h.b16 %v6546
      %v6569 = vunpack.c.l.b16 %v6547
      %v6570 = vunpack.c.h.b16 %v6547
      %v6571 = vunpack.c.l.b16 %v6548
      %v6572 = vunpack.c.h.b16 %v6548
      %v6573 = vpack.c.b16 %v6557, %v6557
      %v6574 = vpack.c.b16 %v6558, %v6558
      %v6575 = vpack.c.b16 %v6559, %v6559
      %v6576 = vpack.c.b16 %v6560, %v6560
      %v6577 = vpack.c.b16 %v6561, %v6561
      %v6578 = vpack.c.b16 %v6562, %v6562
      %v6579 = vpack.c.b16 %v6563, %v6563
      %v6580 = vpack.c.b16 %v6564, %v6564
      %v6581 = vpack.c.b16 %v6565, %v6565
      %v6582 = vpack.c.b16 %v6566, %v6566
      %v6583 = vpack.c.b16 %v6567, %v6567
      %v6584 = vpack.c.b16 %v6568, %v6568
      %v6585 = vpack.c.b16 %v6569, %v6569
      %v6586 = vpack.c.b16 %v6570, %v6570
      %v6587 = vpack.c.b16 %v6571, %v6571
      %v6588 = vpack.c.b16 %v6572, %v6572
      %6589 = vrot.lane.b32.xlu0 %v6573, 4
      %v6590 = vpop.permute.xlu0 %6589
      %6591 = vrot.lane.b32.xlu0 %v6574, 4
      %v6592 = vpop.permute.xlu0 %6591
      %6593 = vrot.lane.b32.xlu0 %v6575, 4
      %v6594 = vpop.permute.xlu0 %6593
      %6595 = vrot.lane.b32.xlu0 %v6576, 4
      %v6596 = vpop.permute.xlu0 %6595
      %6597 = vrot.lane.b32.xlu0 %v6577, 4
      %v6598 = vpop.permute.xlu0 %6597
      %6599 = vrot.lane.b32.xlu0 %v6578, 4
      %v6600 = vpop.permute.xlu0 %6599
      %6601 = vrot.lane.b32.xlu0 %v6579, 4
      %v6602 = vpop.permute.xlu0 %6601
      %6603 = vrot.lane.b32.xlu0 %v6580, 4
      %v6604 = vpop.permute.xlu0 %6603
      %6605 = vrot.lane.b32.xlu0 %v6581, 4
      %v6606 = vpop.permute.xlu0 %6605
      %6607 = vrot.lane.b32.xlu0 %v6582, 4
      %v6608 = vpop.permute.xlu0 %6607
      %6609 = vrot.lane.b32.xlu0 %v6583, 4
      %v6610 = vpop.permute.xlu0 %6609
      %6611 = vrot.lane.b32.xlu0 %v6584, 4
      %v6612 = vpop.permute.xlu0 %6611
      %6613 = vrot.lane.b32.xlu0 %v6585, 4
      %v6614 = vpop.permute.xlu0 %6613
      %6615 = vrot.lane.b32.xlu0 %v6586, 4
      %v6616 = vpop.permute.xlu0 %6615
      %6617 = vrot.lane.b32.xlu0 %v6587, 4
      %v6618 = vpop.permute.xlu0 %6617
      %6619 = vrot.lane.b32.xlu0 %v6588, 4
      %v6620 = vpop.permute.xlu0 %6619
      %vm6637 = vcmask 44064
      %6638 = vst.msk [vmem:[%s273] sm:$0xf] %vm6637, %v6590
      %6639 = vst.msk [vmem:[%s273 + $0x4] sm:$0xf] %vm6637, %v6592
      %6640 = vst.msk [vmem:[%s273 + $0x8] sm:$0xf] %vm6637, %v6594
      %6641 = vst.msk [vmem:[%s273 + $0xc] sm:$0xf] %vm6637, %v6596
      %6642 = vst.msk [vmem:[%s273 + $0x10] sm:$0xf] %vm6637, %v6598
      %6643 = vst.msk [vmem:[%s273 + $0x14] sm:$0xf] %vm6637, %v6600
      %6644 = vst.msk [vmem:[%s273 + $0x18] sm:$0xf] %vm6637, %v6602
      %6645 = vst.msk [vmem:[%s273 + $0x1c] sm:$0xf] %vm6637, %v6604
      %6646 = vst.msk [vmem:[%s273 + $0x20] sm:$0xf] %vm6637, %v6606
      %6647 = vst.msk [vmem:[%s273 + $0x24] sm:$0xf] %vm6637, %v6608
      %6648 = vst.msk [vmem:[%s273 + $0x28] sm:$0xf] %vm6637, %v6610
      %6649 = vst.msk [vmem:[%s273 + $0x2c] sm:$0xf] %vm6637, %v6612
      %6650 = vst.msk [vmem:[%s273 + $0x30] sm:$0xf] %vm6637, %v6614
      %6651 = vst.msk [vmem:[%s273 + $0x34] sm:$0xf] %vm6637, %v6616
      %6652 = vst.msk [vmem:[%s273 + $0x38] sm:$0xf] %vm6637, %v6618
      %6653 = vst.msk [vmem:[%s273 + $0x3c] sm:$0xf] %vm6637, %v6620
      %s6654 = smul.u32 %s276, 3
      %s6655 = smul.addr %s6654, 4
      %s6656 = scalar_lea.vmem %s264, %s6655
      %v6657 = vld [vmem:[%s6656] sm:$0xf]
      %v6658 = vld [vmem:[%s6656 + $0x4] sm:$0xf]
      %v6659 = vld [vmem:[%s6656 + $0xc] sm:$0xf]
      %v6660 = vld [vmem:[%s6656 + $0x10] sm:$0xf]
      %v6661 = vld [vmem:[%s6656 + $0x18] sm:$0xf]
      %v6662 = vld [vmem:[%s6656 + $0x1c] sm:$0xf]
      %v6663 = vld [vmem:[%s6656 + $0x24] sm:$0xf]
      %v6664 = vld [vmem:[%s6656 + $0x28] sm:$0xf]
      %v6665 = vld [vmem:[%s6656 + $0x30] sm:$0xf]
      %v6666 = vld [vmem:[%s6656 + $0x34] sm:$0xf]
      %v6667 = vld [vmem:[%s6656 + $0x3c] sm:$0xf]
      %v6668 = vld [vmem:[%s6656 + $0x40] sm:$0xf]
      %v6669 = vld [vmem:[%s6656 + $0x48] sm:$0xf]
      %v6670 = vld [vmem:[%s6656 + $0x4c] sm:$0xf]
      %v6671 = vld [vmem:[%s6656 + $0x54] sm:$0xf]
      %v6672 = vld [vmem:[%s6656 + $0x58] sm:$0xf]
      %v6673 = vld [vmem:[%s3] sm:$0x3]
      %v6674 = vld [vmem:[%s6656] sm:$0xe]
      %v6675 = vld [vmem:[%s6656 + $0x8] sm:$0x3]
      %v6676 = vld [vmem:[%s6656 + $0xc] sm:$0xe]
      %v6677 = vld [vmem:[%s6656 + $0x14] sm:$0x3]
      %v6678 = vld [vmem:[%s6656 + $0x18] sm:$0xe]
      %v6679 = vld [vmem:[%s6656 + $0x20] sm:$0x3]
      %v6680 = vld [vmem:[%s6656 + $0x24] sm:$0xe]
      %v6681 = vld [vmem:[%s6656 + $0x2c] sm:$0x3]
      %v6682 = vld [vmem:[%s6656 + $0x30] sm:$0xe]
      %v6683 = vld [vmem:[%s6656 + $0x38] sm:$0x3]
      %v6684 = vld [vmem:[%s6656 + $0x3c] sm:$0xe]
      %v6685 = vld [vmem:[%s6656 + $0x44] sm:$0x3]
      %v6686 = vld [vmem:[%s6656 + $0x48] sm:$0xe]
      %v6687 = vld [vmem:[%s6656 + $0x50] sm:$0x3]
      %v6688 = vld [vmem:[%s6656 + $0x54] sm:$0xe]
      %v6689 = vld [vmem:[%s6656 + $0x5c] sm:$0x3]
      %v6691 = vshrl.u32 %v6674, 16
      %v6693 = vrot.slane %v6691, 5
      %v6694 = vshll.u32 %v6674, 16
      %v6696 = vrot.slane %v6694, 6
      %v6697 = vor.u32 %v6693, %v6696
      %v6698 = vrot.slane %v6697, 4
      %v6700 = vshrl.u32 %v6658, 16
      %v6702 = vrot.slane %v6700, 5
      %v6703 = vshll.u32 %v6658, 16
      %v6705 = vrot.slane %v6703, 6
      %v6706 = vor.u32 %v6702, %v6705
      %v6707 = vsel %vm399, %v6698, %v6706
      %v6708 = vrot.slane %v6706, 4
      %v6710 = vshrl.u32 %v6675, 16
      %v6712 = vrot.slane %v6710, 5
      %v6713 = vshll.u32 %v6675, 16
      %v6715 = vrot.slane %v6713, 6
      %v6716 = vor.u32 %v6712, %v6715
      %v6717 = vsel %vm399, %v6708, %v6716
      %v6719 = vshrl.u32 %v6676, 16
      %v6721 = vrot.slane %v6719, 5
      %v6722 = vshll.u32 %v6676, 16
      %v6724 = vrot.slane %v6722, 6
      %v6725 = vor.u32 %v6721, %v6724
      %v6726 = vrot.slane %v6725, 4
      %v6728 = vshrl.u32 %v6660, 16
      %v6730 = vrot.slane %v6728, 5
      %v6731 = vshll.u32 %v6660, 16
      %v6733 = vrot.slane %v6731, 6
      %v6734 = vor.u32 %v6730, %v6733
      %v6735 = vsel %vm399, %v6726, %v6734
      %v6736 = vrot.slane %v6734, 4
      %v6738 = vshrl.u32 %v6677, 16
      %v6740 = vrot.slane %v6738, 5
      %v6741 = vshll.u32 %v6677, 16
      %v6743 = vrot.slane %v6741, 6
      %v6744 = vor.u32 %v6740, %v6743
      %v6745 = vsel %vm399, %v6736, %v6744
      %v6747 = vshrl.u32 %v6678, 16
      %v6749 = vrot.slane %v6747, 5
      %v6750 = vshll.u32 %v6678, 16
      %v6752 = vrot.slane %v6750, 6
      %v6753 = vor.u32 %v6749, %v6752
      %v6754 = vrot.slane %v6753, 4
      %v6756 = vshrl.u32 %v6662, 16
      %v6758 = vrot.slane %v6756, 5
      %v6759 = vshll.u32 %v6662, 16
      %v6761 = vrot.slane %v6759, 6
      %v6762 = vor.u32 %v6758, %v6761
      %v6763 = vsel %vm399, %v6754, %v6762
      %v6764 = vrot.slane %v6762, 4
      %v6766 = vshrl.u32 %v6679, 16
      %v6768 = vrot.slane %v6766, 5
      %v6769 = vshll.u32 %v6679, 16
      %v6771 = vrot.slane %v6769, 6
      %v6772 = vor.u32 %v6768, %v6771
      %v6773 = vsel %vm399, %v6764, %v6772
      %v6775 = vshrl.u32 %v6680, 16
      %v6777 = vrot.slane %v6775, 5
      %v6778 = vshll.u32 %v6680, 16
      %v6780 = vrot.slane %v6778, 6
      %v6781 = vor.u32 %v6777, %v6780
      %v6782 = vrot.slane %v6781, 4
      %v6784 = vshrl.u32 %v6664, 16
      %v6786 = vrot.slane %v6784, 5
      %v6787 = vshll.u32 %v6664, 16
      %v6789 = vrot.slane %v6787, 6
      %v6790 = vor.u32 %v6786, %v6789
      %v6791 = vsel %vm399, %v6782, %v6790
      %v6792 = vrot.slane %v6790, 4
      %v6794 = vshrl.u32 %v6681, 16
      %v6796 = vrot.slane %v6794, 5
      %v6797 = vshll.u32 %v6681, 16
      %v6799 = vrot.slane %v6797, 6
      %v6800 = vor.u32 %v6796, %v6799
      %v6801 = vsel %vm399, %v6792, %v6800
      %v6803 = vshrl.u32 %v6682, 16
      %v6805 = vrot.slane %v6803, 5
      %v6806 = vshll.u32 %v6682, 16
      %v6808 = vrot.slane %v6806, 6
      %v6809 = vor.u32 %v6805, %v6808
      %v6810 = vrot.slane %v6809, 4
      %v6812 = vshrl.u32 %v6666, 16
      %v6814 = vrot.slane %v6812, 5
      %v6815 = vshll.u32 %v6666, 16
      %v6817 = vrot.slane %v6815, 6
      %v6818 = vor.u32 %v6814, %v6817
      %v6819 = vsel %vm399, %v6810, %v6818
      %v6820 = vrot.slane %v6818, 4
      %v6822 = vshrl.u32 %v6683, 16
      %v6824 = vrot.slane %v6822, 5
      %v6825 = vshll.u32 %v6683, 16
      %v6827 = vrot.slane %v6825, 6
      %v6828 = vor.u32 %v6824, %v6827
      %v6829 = vsel %vm399, %v6820, %v6828
      %v6831 = vshrl.u32 %v6684, 16
      %v6833 = vrot.slane %v6831, 5
      %v6834 = vshll.u32 %v6684, 16
      %v6836 = vrot.slane %v6834, 6
      %v6837 = vor.u32 %v6833, %v6836
      %v6838 = vrot.slane %v6837, 4
      %v6840 = vshrl.u32 %v6668, 16
      %v6842 = vrot.slane %v6840, 5
      %v6843 = vshll.u32 %v6668, 16
      %v6845 = vrot.slane %v6843, 6
      %v6846 = vor.u32 %v6842, %v6845
      %v6847 = vsel %vm399, %v6838, %v6846
      %v6848 = vrot.slane %v6846, 4
      %v6850 = vshrl.u32 %v6685, 16
      %v6852 = vrot.slane %v6850, 5
      %v6853 = vshll.u32 %v6685, 16
      %v6855 = vrot.slane %v6853, 6
      %v6856 = vor.u32 %v6852, %v6855
      %v6857 = vsel %vm399, %v6848, %v6856
      %v6859 = vshrl.u32 %v6686, 16
      %v6861 = vrot.slane %v6859, 5
      %v6862 = vshll.u32 %v6686, 16
      %v6864 = vrot.slane %v6862, 6
      %v6865 = vor.u32 %v6861, %v6864
      %v6866 = vrot.slane %v6865, 4
      %v6868 = vshrl.u32 %v6670, 16
      %v6870 = vrot.slane %v6868, 5
      %v6871 = vshll.u32 %v6670, 16
      %v6873 = vrot.slane %v6871, 6
      %v6874 = vor.u32 %v6870, %v6873
      %v6875 = vsel %vm399, %v6866, %v6874
      %v6876 = vrot.slane %v6874, 4
      %v6878 = vshrl.u32 %v6687, 16
      %v6880 = vrot.slane %v6878, 5
      %v6881 = vshll.u32 %v6687, 16
      %v6883 = vrot.slane %v6881, 6
      %v6884 = vor.u32 %v6880, %v6883
      %v6885 = vsel %vm399, %v6876, %v6884
      %v6887 = vshrl.u32 %v6688, 16
      %v6889 = vrot.slane %v6887, 5
      %v6890 = vshll.u32 %v6688, 16
      %v6892 = vrot.slane %v6890, 6
      %v6893 = vor.u32 %v6889, %v6892
      %v6894 = vrot.slane %v6893, 4
      %v6896 = vshrl.u32 %v6672, 16
      %v6898 = vrot.slane %v6896, 5
      %v6899 = vshll.u32 %v6672, 16
      %v6901 = vrot.slane %v6899, 6
      %v6902 = vor.u32 %v6898, %v6901
      %v6903 = vsel %vm399, %v6894, %v6902
      %v6904 = vrot.slane %v6902, 4
      %v6906 = vshrl.u32 %v6689, 16
      %v6908 = vrot.slane %v6906, 5
      %v6909 = vshll.u32 %v6689, 16
      %v6911 = vrot.slane %v6909, 6
      %v6912 = vor.u32 %v6908, %v6911
      %v6913 = vsel %vm399, %v6904, %v6912
      %s6914 = scalar_lea.vmem %s3, 2
      %v6915 = vld [vmem:[%s6914] sm:$0x3]
      %v6916 = vunpack.c.l.b16 %v6707
      %v6917 = vunpack.c.l.b16 %v6717
      %v6918 = vunpack.c.l.b16 %v6735
      %v6919 = vunpack.c.l.b16 %v6745
      %v6920 = vunpack.c.l.b16 %v6763
      %v6921 = vunpack.c.l.b16 %v6773
      %v6922 = vunpack.c.l.b16 %v6791
      %v6923 = vunpack.c.l.b16 %v6801
      %v6924 = vunpack.c.l.b16 %v6819
      %v6925 = vunpack.c.l.b16 %v6829
      %v6926 = vunpack.c.l.b16 %v6847
      %v6927 = vunpack.c.l.b16 %v6857
      %v6928 = vunpack.c.l.b16 %v6875
      %v6929 = vunpack.c.l.b16 %v6885
      %v6930 = vunpack.c.l.b16 %v6903
      %v6931 = vunpack.c.l.b16 %v6913
      %v6932 = vpack.c.b16 %v6917, %v6916
      %v6933 = vpack.c.b16 %v6919, %v6918
      %v6934 = vpack.c.b16 %v6921, %v6920
      %v6935 = vpack.c.b16 %v6923, %v6922
      %v6936 = vpack.c.b16 %v6925, %v6924
      %v6937 = vpack.c.b16 %v6927, %v6926
      %v6938 = vpack.c.b16 %v6929, %v6928
      %v6939 = vpack.c.b16 %v6931, %v6930
      %v6941 = vsel %vm650, %v6932, 0
      %v6944 = vsel %vm650, %v6933, 0
      %v6947 = vsel %vm650, %v6934, 0
      %v6950 = vsel %vm650, %v6935, 0
      %v6953 = vsel %vm650, %v6936, 0
      %v6956 = vsel %vm650, %v6937, 0
      %v6959 = vsel %vm650, %v6938, 0
      %v6962 = vsel %vm650, %v6939, 0
      %v6965 = vsel %vm675, %v6915, 0
      %6967 = vmatprep.subr.bf16.mxu0 0
      %6968 = vmatpush1.bf16.msra.mxu0 %v6965
      %6969 = vmatprep.subr.bf16.mxu0 0
      %6970 = vmatpush1.bf16.msra.mxu0 0
      %6971 = vmatprep.subr.bf16.mxu0 0
      %6972 = vmatpush1.bf16.msra.mxu0 0
      %6973 = vmatprep.subr.bf16.mxu0 0
      %6974 = vmatpush1.bf16.msra.mxu0 0
      %6975 = vmatprep.subr.bf16.mxu0 0
      %6976 = vmatpush1.bf16.msra.mxu0 0
      %6977 = vmatprep.subr.bf16.mxu0 0
      %6978 = vmatpush1.bf16.msra.mxu0 0
      %6979 = vmatprep.subr.bf16.mxu0 0
      %6980 = vmatpush1.bf16.msra.mxu0 0
      %6981 = vmatprep.subr.bf16.mxu0 0
      %6982 = vmatpush1.bf16.msra.mxu0 0
      %6983 = vmatprep.subr.bf16.mxu0 0
      %6984 = vmatpush1.bf16.msra.mxu0 0
      %6985 = vmatprep.subr.bf16.mxu0 0
      %6986 = vmatpush1.bf16.msra.mxu0 0
      %6987 = vmatprep.subr.bf16.mxu0 0
      %6988 = vmatpush1.bf16.msra.mxu0 0
      %6989 = vmatprep.subr.bf16.mxu0 0
      %6990 = vmatpush1.bf16.msra.mxu0 0
      %6991 = vmatprep.subr.bf16.mxu0 0
      %6992 = vmatpush1.bf16.msra.mxu0 0
      %6993 = vmatprep.subr.bf16.mxu0 0
      %6994 = vmatpush1.bf16.msra.mxu0 0
      %6995 = vmatprep.subr.bf16.mxu0 0
      %6996 = vmatpush1.bf16.msra.mxu0 0
      %6997 = vmatprep.subr.bf16.mxu0 0
      %6998 = vmatpush1.bf16.msra.mxu0 0
      %6999 = vmatprep.mubr.bf16.mxu0 0
      %7000 = vmatmul.mubr.bf16.gmra.mrb[0].mxu0 %v6941
      %v7001 = vpop.f32.mrb[0].mxu0
      %v7002 = vadd.f32 0.0, %v7001
      %v7003 = vpop.f32.mrb[0].mxu0
      %v7004 = vpop.f32.mrb[0].mxu0
      %v7005 = vadd.f32 0.0, %v7004
      %v7006 = vpop.f32.mrb[0].mxu0
      %7007 = vmatprep.mubr.bf16.mxu0 0
      %7008 = vmatmul.mubr.bf16.gmra.mrb[0].mxu0 %v6944
      %v7009 = vpop.f32.mrb[0].mxu0
      %v7010 = vadd.f32 0.0, %v7009
      %v7011 = vpop.f32.mrb[0].mxu0
      %v7012 = vpop.f32.mrb[0].mxu0
      %v7013 = vadd.f32 0.0, %v7012
      %v7014 = vpop.f32.mrb[0].mxu0
      %7015 = vmatprep.mubr.bf16.mxu0 0
      %7016 = vmatmul.mubr.bf16.gmra.mrb[0].mxu0 %v6947
      %v7017 = vpop.f32.mrb[0].mxu0
      %v7018 = vadd.f32 0.0, %v7017
      %v7019 = vpop.f32.mrb[0].mxu0
      %v7020 = vpop.f32.mrb[0].mxu0
      %v7021 = vadd.f32 0.0, %v7020
      %v7022 = vpop.f32.mrb[0].mxu0
      %7023 = vmatprep.mubr.bf16.mxu0 0
      %7024 = vmatmul.mubr.bf16.gmra.mrb[0].mxu0 %v6950
      %v7025 = vpop.f32.mrb[0].mxu0
      %v7026 = vadd.f32 0.0, %v7025
      %v7027 = vpop.f32.mrb[0].mxu0
      %v7028 = vpop.f32.mrb[0].mxu0
      %v7029 = vadd.f32 0.0, %v7028
      %v7030 = vpop.f32.mrb[0].mxu0
      %7031 = vmatprep.mubr.bf16.mxu0 0
      %7032 = vmatmul.mubr.bf16.gmra.mrb[0].mxu0 %v6953
      %v7033 = vpop.f32.mrb[0].mxu0
      %v7034 = vadd.f32 0.0, %v7033
      %v7035 = vpop.f32.mrb[0].mxu0
      %v7036 = vpop.f32.mrb[0].mxu0
      %v7037 = vadd.f32 0.0, %v7036
      %v7038 = vpop.f32.mrb[0].mxu0
      %7039 = vmatprep.mubr.bf16.mxu0 0
      %7040 = vmatmul.mubr.bf16.gmra.mrb[0].mxu0 %v6956
      %v7041 = vpop.f32.mrb[0].mxu0
      %v7042 = vadd.f32 0.0, %v7041
      %v7043 = vpop.f32.mrb[0].mxu0
      %v7044 = vpop.f32.mrb[0].mxu0
      %v7045 = vadd.f32 0.0, %v7044
      %v7046 = vpop.f32.mrb[0].mxu0
      %7047 = vmatprep.mubr.bf16.mxu0 0
      %7048 = vmatmul.mubr.bf16.gmra.mrb[0].mxu0 %v6959
      %v7049 = vpop.f32.mrb[0].mxu0
      %v7050 = vadd.f32 0.0, %v7049
      %v7051 = vpop.f32.mrb[0].mxu0
      %v7052 = vpop.f32.mrb[0].mxu0
      %v7053 = vadd.f32 0.0, %v7052
      %v7054 = vpop.f32.mrb[0].mxu0
      %7055 = vmatprep.mubr.bf16.mxu0 0
      %7056 = vmatmul.mubr.bf16.gmra.mrb[0].mxu0 %v6962
      %v7057 = vpop.f32.mrb[0].mxu0
      %v7058 = vadd.f32 0.0, %v7057
      %v7059 = vpop.f32.mrb[0].mxu0
      %v7060 = vpop.f32.mrb[0].mxu0
      %v7061 = vadd.f32 0.0, %v7060
      %v7062 = vpop.f32.mrb[0].mxu0
      %7063 = vdwg.mxu0
      %v7080 = vunpack.c.l.b16 %v6657
      %v7081 = vunpack.c.l.b16 %v6658
      %v7082 = vunpack.c.l.b16 %v6659
      %v7083 = vunpack.c.l.b16 %v6660
      %v7084 = vunpack.c.l.b16 %v6661
      %v7085 = vunpack.c.l.b16 %v6662
      %v7086 = vunpack.c.l.b16 %v6663
      %v7087 = vunpack.c.l.b16 %v6664
      %v7088 = vunpack.c.l.b16 %v6665
      %v7089 = vunpack.c.l.b16 %v6666
      %v7090 = vunpack.c.l.b16 %v6667
      %v7091 = vunpack.c.l.b16 %v6668
      %v7092 = vunpack.c.l.b16 %v6669
      %v7093 = vunpack.c.l.b16 %v6670
      %v7094 = vunpack.c.l.b16 %v6671
      %v7095 = vunpack.c.l.b16 %v6672
      %v7096 = vpack.c.b16 %v7081, %v7080
      %v7097 = vpack.c.b16 %v7083, %v7082
      %v7098 = vpack.c.b16 %v7085, %v7084
      %v7099 = vpack.c.b16 %v7087, %v7086
      %v7100 = vpack.c.b16 %v7089, %v7088
      %v7101 = vpack.c.b16 %v7091, %v7090
      %v7102 = vpack.c.b16 %v7093, %v7092
      %v7103 = vpack.c.b16 %v7095, %v7094
      %v7105 = vsel %vm650, %v7096, 0
      %v7108 = vsel %vm650, %v7097, 0
      %v7111 = vsel %vm650, %v7098, 0
      %v7114 = vsel %vm650, %v7099, 0
      %v7117 = vsel %vm650, %v7100, 0
      %v7120 = vsel %vm650, %v7101, 0
      %v7123 = vsel %vm650, %v7102, 0
      %v7126 = vsel %vm650, %v7103, 0
      %v7129 = vsel %vm675, %v6673, 0
      %7131 = vmatprep.subr.bf16.mxu0 0
      %7132 = vmatpush1.bf16.msra.mxu0 %v7129
      %7133 = vmatprep.subr.bf16.mxu0 0
      %7134 = vmatpush1.bf16.msra.mxu0 0
      %7135 = vmatprep.subr.bf16.mxu0 0
      %7136 = vmatpush1.bf16.msra.mxu0 0
      %7137 = vmatprep.subr.bf16.mxu0 0
      %7138 = vmatpush1.bf16.msra.mxu0 0
      %7139 = vmatprep.subr.bf16.mxu0 0
      %7140 = vmatpush1.bf16.msra.mxu0 0
      %7141 = vmatprep.subr.bf16.mxu0 0
      %7142 = vmatpush1.bf16.msra.mxu0 0
      %7143 = vmatprep.subr.bf16.mxu0 0
      %7144 = vmatpush1.bf16.msra.mxu0 0
      %7145 = vmatprep.subr.bf16.mxu0 0
      %7146 = vmatpush1.bf16.msra.mxu0 0
      %7147 = vmatprep.subr.bf16.mxu0 0
      %7148 = vmatpush1.bf16.msra.mxu0 0
      %7149 = vmatprep.subr.bf16.mxu0 0
      %7150 = vmatpush1.bf16.msra.mxu0 0
      %7151 = vmatprep.subr.bf16.mxu0 0
      %7152 = vmatpush1.bf16.msra.mxu0 0
      %7153 = vmatprep.subr.bf16.mxu0 0
      %7154 = vmatpush1.bf16.msra.mxu0 0
      %7155 = vmatprep.subr.bf16.mxu0 0
      %7156 = vmatpush1.bf16.msra.mxu0 0
      %7157 = vmatprep.subr.bf16.mxu0 0
      %7158 = vmatpush1.bf16.msra.mxu0 0
      %7159 = vmatprep.subr.bf16.mxu0 0
      %7160 = vmatpush1.bf16.msra.mxu0 0
      %7161 = vmatprep.subr.bf16.mxu0 0
      %7162 = vmatpush1.bf16.msra.mxu0 0
      %7163 = vmatprep.mubr.bf16.mxu0 0
      %7164 = vmatmul.mubr.bf16.gmra.mrb[0].mxu0 %v7105
      %v7165 = vpop.f32.mrb[0].mxu0
      %v7166 = vadd.f32 %v7002, %v7165
      %v7167 = vpop.f32.mrb[0].mxu0
      %v7168 = vpop.f32.mrb[0].mxu0
      %v7169 = vadd.f32 %v7005, %v7168
      %v7170 = vpop.f32.mrb[0].mxu0
      %7171 = vmatprep.mubr.bf16.mxu0 0
      %7172 = vmatmul.mubr.bf16.gmra.mrb[0].mxu0 %v7108
      %v7173 = vpop.f32.mrb[0].mxu0
      %v7174 = vadd.f32 %v7010, %v7173
      %v7175 = vpop.f32.mrb[0].mxu0
      %v7176 = vpop.f32.mrb[0].mxu0
      %v7177 = vadd.f32 %v7013, %v7176
      %v7178 = vpop.f32.mrb[0].mxu0
      %7179 = vmatprep.mubr.bf16.mxu0 0
      %7180 = vmatmul.mubr.bf16.gmra.mrb[0].mxu0 %v7111
      %v7181 = vpop.f32.mrb[0].mxu0
      %v7182 = vadd.f32 %v7018, %v7181
      %v7183 = vpop.f32.mrb[0].mxu0
      %v7184 = vpop.f32.mrb[0].mxu0
      %v7185 = vadd.f32 %v7021, %v7184
      %v7186 = vpop.f32.mrb[0].mxu0
      %7187 = vmatprep.mubr.bf16.mxu0 0
      %7188 = vmatmul.mubr.bf16.gmra.mrb[0].mxu0 %v7114
      %v7189 = vpop.f32.mrb[0].mxu0
      %v7190 = vadd.f32 %v7026, %v7189
      %v7191 = vpop.f32.mrb[0].mxu0
      %v7192 = vpop.f32.mrb[0].mxu0
      %v7193 = vadd.f32 %v7029, %v7192
      %v7194 = vpop.f32.mrb[0].mxu0
      %7195 = vmatprep.mubr.bf16.mxu0 0
      %7196 = vmatmul.mubr.bf16.gmra.mrb[0].mxu0 %v7117
      %v7197 = vpop.f32.mrb[0].mxu0
      %v7198 = vadd.f32 %v7034, %v7197
      %v7199 = vpop.f32.mrb[0].mxu0
      %v7200 = vpop.f32.mrb[0].mxu0
      %v7201 = vadd.f32 %v7037, %v7200
      %v7202 = vpop.f32.mrb[0].mxu0
      %7203 = vmatprep.mubr.bf16.mxu0 0
      %7204 = vmatmul.mubr.bf16.gmra.mrb[0].mxu0 %v7120
      %v7205 = vpop.f32.mrb[0].mxu0
      %v7206 = vadd.f32 %v7042, %v7205
      %v7207 = vpop.f32.mrb[0].mxu0
      %v7208 = vpop.f32.mrb[0].mxu0
      %v7209 = vadd.f32 %v7045, %v7208
      %v7210 = vpop.f32.mrb[0].mxu0
      %7211 = vmatprep.mubr.bf16.mxu0 0
      %7212 = vmatmul.mubr.bf16.gmra.mrb[0].mxu0 %v7123
      %v7213 = vpop.f32.mrb[0].mxu0
      %v7214 = vadd.f32 %v7050, %v7213
      %v7215 = vpop.f32.mrb[0].mxu0
      %v7216 = vpop.f32.mrb[0].mxu0
      %v7217 = vadd.f32 %v7053, %v7216
      %v7218 = vpop.f32.mrb[0].mxu0
      %7219 = vmatprep.mubr.bf16.mxu0 0
      %7220 = vmatmul.mubr.bf16.gmra.mrb[0].mxu0 %v7126
      %v7221 = vpop.f32.mrb[0].mxu0
      %v7222 = vadd.f32 %v7058, %v7221
      %v7223 = vpop.f32.mrb[0].mxu0
      %v7224 = vpop.f32.mrb[0].mxu0
      %v7225 = vadd.f32 %v7061, %v7224
      %v7226 = vpop.f32.mrb[0].mxu0
      %7227 = vdwg.mxu0
      %v7228 = vld [vmem:[%s6656] sm:$0x8]
      %v7229 = vld [vmem:[%s6656 + $0x8] sm:$0x7]
      %v7230 = vld [vmem:[%s6656 + $0xc] sm:$0x8]
      %v7231 = vld [vmem:[%s6656 + $0x14] sm:$0x7]
      %v7232 = vld [vmem:[%s6656 + $0x18] sm:$0x8]
      %v7233 = vld [vmem:[%s6656 + $0x20] sm:$0x7]
      %v7234 = vld [vmem:[%s6656 + $0x24] sm:$0x8]
      %v7235 = vld [vmem:[%s6656 + $0x2c] sm:$0x7]
      %v7236 = vld [vmem:[%s6656 + $0x30] sm:$0x8]
      %v7237 = vld [vmem:[%s6656 + $0x38] sm:$0x7]
      %v7238 = vld [vmem:[%s6656 + $0x3c] sm:$0x8]
      %v7239 = vld [vmem:[%s6656 + $0x44] sm:$0x7]
      %v7240 = vld [vmem:[%s6656 + $0x48] sm:$0x8]
      %v7241 = vld [vmem:[%s6656 + $0x50] sm:$0x7]
      %v7242 = vld [vmem:[%s6656 + $0x54] sm:$0x8]
      %v7243 = vld [vmem:[%s6656 + $0x5c] sm:$0x7]
      %vm7260 = vcmask 1040384
      %vm7261 = vcmask 1044484
      %vm7262 = vmor %vm7260, %vm7261
      %v7263 = vrot.slane %v7228, 7
      %v7264 = vrot.slane %v7263, 4
      %v7265 = vrot.slane %v6658, 7
      %v7266 = vsel %vm7262, %v7264, %v7265
      %v7267 = vrot.slane %v7265, 4
      %v7268 = vrot.slane %v7229, 7
      %v7269 = vsel %vm7262, %v7267, %v7268
      %v7270 = vrot.slane %v7230, 7
      %v7271 = vrot.slane %v7270, 4
      %v7272 = vrot.slane %v6660, 7
      %v7273 = vsel %vm7262, %v7271, %v7272
      %v7274 = vrot.slane %v7272, 4
      %v7275 = vrot.slane %v7231, 7
      %v7276 = vsel %vm7262, %v7274, %v7275
      %v7277 = vrot.slane %v7232, 7
      %v7278 = vrot.slane %v7277, 4
      %v7279 = vrot.slane %v6662, 7
      %v7280 = vsel %vm7262, %v7278, %v7279
      %v7281 = vrot.slane %v7279, 4
      %v7282 = vrot.slane %v7233, 7
      %v7283 = vsel %vm7262, %v7281, %v7282
      %v7284 = vrot.slane %v7234, 7
      %v7285 = vrot.slane %v7284, 4
      %v7286 = vrot.slane %v6664, 7
      %v7287 = vsel %vm7262, %v7285, %v7286
      %v7288 = vrot.slane %v7286, 4
      %v7289 = vrot.slane %v7235, 7
      %v7290 = vsel %vm7262, %v7288, %v7289
      %v7291 = vrot.slane %v7236, 7
      %v7292 = vrot.slane %v7291, 4
      %v7293 = vrot.slane %v6666, 7
      %v7294 = vsel %vm7262, %v7292, %v7293
      %v7295 = vrot.slane %v7293, 4
      %v7296 = vrot.slane %v7237, 7
      %v7297 = vsel %vm7262, %v7295, %v7296
      %v7298 = vrot.slane %v7238, 7
      %v7299 = vrot.slane %v7298, 4
      %v7300 = vrot.slane %v6668, 7
      %v7301 = vsel %vm7262, %v7299, %v7300
      %v7302 = vrot.slane %v7300, 4
      %v7303 = vrot.slane %v7239, 7
      %v7304 = vsel %vm7262, %v7302, %v7303
      %v7305 = vrot.slane %v7240, 7
      %v7306 = vrot.slane %v7305, 4
      %v7307 = vrot.slane %v6670, 7
      %v7308 = vsel %vm7262, %v7306, %v7307
      %v7309 = vrot.slane %v7307, 4
      %v7310 = vrot.slane %v7241, 7
      %v7311 = vsel %vm7262, %v7309, %v7310
      %v7312 = vrot.slane %v7242, 7
      %v7313 = vrot.slane %v7312, 4
      %v7314 = vrot.slane %v6672, 7
      %v7315 = vsel %vm7262, %v7313, %v7314
      %v7316 = vrot.slane %v7314, 4
      %v7317 = vrot.slane %v7243, 7
      %v7318 = vsel %vm7262, %v7316, %v7317
      %s7319 = scalar_lea.vmem %s3, 4
      %v7320 = vld [vmem:[%s7319] sm:$0x3]
      %v7321 = vunpack.c.l.b16 %v7266
      %v7322 = vunpack.c.l.b16 %v7269
      %v7323 = vunpack.c.l.b16 %v7273
      %v7324 = vunpack.c.l.b16 %v7276
      %v7325 = vunpack.c.l.b16 %v7280
      %v7326 = vunpack.c.l.b16 %v7283
      %v7327 = vunpack.c.l.b16 %v7287
      %v7328 = vunpack.c.l.b16 %v7290
      %v7329 = vunpack.c.l.b16 %v7294
      %v7330 = vunpack.c.l.b16 %v7297
      %v7331 = vunpack.c.l.b16 %v7301
      %v7332 = vunpack.c.l.b16 %v7304
      %v7333 = vunpack.c.l.b16 %v7308
      %v7334 = vunpack.c.l.b16 %v7311
      %v7335 = vunpack.c.l.b16 %v7315
      %v7336 = vunpack.c.l.b16 %v7318
      %v7337 = vpack.c.b16 %v7322, %v7321
      %v7338 = vpack.c.b16 %v7324, %v7323
      %v7339 = vpack.c.b16 %v7326, %v7325
      %v7340 = vpack.c.b16 %v7328, %v7327
      %v7341 = vpack.c.b16 %v7330, %v7329
      %v7342 = vpack.c.b16 %v7332, %v7331
      %v7343 = vpack.c.b16 %v7334, %v7333
      %v7344 = vpack.c.b16 %v7336, %v7335
      %v7346 = vsel %vm650, %v7337, 0
      %v7349 = vsel %vm650, %v7338, 0
      %v7352 = vsel %vm650, %v7339, 0
      %v7355 = vsel %vm650, %v7340, 0
      %v7358 = vsel %vm650, %v7341, 0
      %v7361 = vsel %vm650, %v7342, 0
      %v7364 = vsel %vm650, %v7343, 0
      %v7367 = vsel %vm650, %v7344, 0
      %v7370 = vsel %vm675, %v7320, 0
      %7372 = vmatprep.subr.bf16.mxu0 0
      %7373 = vmatpush1.bf16.msra.mxu0 %v7370
      %7374 = vmatprep.subr.bf16.mxu0 0
      %7375 = vmatpush1.bf16.msra.mxu0 0
      %7376 = vmatprep.subr.bf16.mxu0 0
      %7377 = vmatpush1.bf16.msra.mxu0 0
      %7378 = vmatprep.subr.bf16.mxu0 0
      %7379 = vmatpush1.bf16.msra.mxu0 0
      %7380 = vmatprep.subr.bf16.mxu0 0
      %7381 = vmatpush1.bf16.msra.mxu0 0
      %7382 = vmatprep.subr.bf16.mxu0 0
      %7383 = vmatpush1.bf16.msra.mxu0 0
      %7384 = vmatprep.subr.bf16.mxu0 0
      %7385 = vmatpush1.bf16.msra.mxu0 0
      %7386 = vmatprep.subr.bf16.mxu0 0
      %7387 = vmatpush1.bf16.msra.mxu0 0
      %7388 = vmatprep.subr.bf16.mxu0 0
      %7389 = vmatpush1.bf16.msra.mxu0 0
      %7390 = vmatprep.subr.bf16.mxu0 0
      %7391 = vmatpush1.bf16.msra.mxu0 0
      %7392 = vmatprep.subr.bf16.mxu0 0
      %7393 = vmatpush1.bf16.msra.mxu0 0
      %7394 = vmatprep.subr.bf16.mxu0 0
      %7395 = vmatpush1.bf16.msra.mxu0 0
      %7396 = vmatprep.subr.bf16.mxu0 0
      %7397 = vmatpush1.bf16.msra.mxu0 0
      %7398 = vmatprep.subr.bf16.mxu0 0
      %7399 = vmatpush1.bf16.msra.mxu0 0
      %7400 = vmatprep.subr.bf16.mxu0 0
      %7401 = vmatpush1.bf16.msra.mxu0 0
      %7402 = vmatprep.subr.bf16.mxu0 0
      %7403 = vmatpush1.bf16.msra.mxu0 0
      %7404 = vmatprep.mubr.bf16.mxu0 0
      %7405 = vmatmul.mubr.bf16.gmra.mrb[0].mxu0 %v7346
      %v7406 = vpop.f32.mrb[0].mxu0
      %v7407 = vadd.f32 0.0, %v7406
      %v7408 = vpop.f32.mrb[0].mxu0
      %v7409 = vpop.f32.mrb[0].mxu0
      %v7410 = vadd.f32 0.0, %v7409
      %v7411 = vpop.f32.mrb[0].mxu0
      %7412 = vmatprep.mubr.bf16.mxu0 0
      %7413 = vmatmul.mubr.bf16.gmra.mrb[0].mxu0 %v7349
      %v7414 = vpop.f32.mrb[0].mxu0
      %v7415 = vadd.f32 0.0, %v7414
      %v7416 = vpop.f32.mrb[0].mxu0
      %v7417 = vpop.f32.mrb[0].mxu0
      %v7418 = vadd.f32 0.0, %v7417
      %v7419 = vpop.f32.mrb[0].mxu0
      %7420 = vmatprep.mubr.bf16.mxu0 0
      %7421 = vmatmul.mubr.bf16.gmra.mrb[0].mxu0 %v7352
      %v7422 = vpop.f32.mrb[0].mxu0
      %v7423 = vadd.f32 0.0, %v7422
      %v7424 = vpop.f32.mrb[0].mxu0
      %v7425 = vpop.f32.mrb[0].mxu0
      %v7426 = vadd.f32 0.0, %v7425
      %v7427 = vpop.f32.mrb[0].mxu0
      %7428 = vmatprep.mubr.bf16.mxu0 0
      %7429 = vmatmul.mubr.bf16.gmra.mrb[0].mxu0 %v7355
      %v7430 = vpop.f32.mrb[0].mxu0
      %v7431 = vadd.f32 0.0, %v7430
      %v7432 = vpop.f32.mrb[0].mxu0
      %v7433 = vpop.f32.mrb[0].mxu0
      %v7434 = vadd.f32 0.0, %v7433
      %v7435 = vpop.f32.mrb[0].mxu0
      %7436 = vmatprep.mubr.bf16.mxu0 0
      %7437 = vmatmul.mubr.bf16.gmra.mrb[0].mxu0 %v7358
      %v7438 = vpop.f32.mrb[0].mxu0
      %v7439 = vadd.f32 0.0, %v7438
      %v7440 = vpop.f32.mrb[0].mxu0
      %v7441 = vpop.f32.mrb[0].mxu0
      %v7442 = vadd.f32 0.0, %v7441
      %v7443 = vpop.f32.mrb[0].mxu0
      %7444 = vmatprep.mubr.bf16.mxu0 0
      %7445 = vmatmul.mubr.bf16.gmra.mrb[0].mxu0 %v7361
      %v7446 = vpop.f32.mrb[0].mxu0
      %v7447 = vadd.f32 0.0, %v7446
      %v7448 = vpop.f32.mrb[0].mxu0
      %v7449 = vpop.f32.mrb[0].mxu0
      %v7450 = vadd.f32 0.0, %v7449
      %v7451 = vpop.f32.mrb[0].mxu0
      %7452 = vmatprep.mubr.bf16.mxu0 0
      %7453 = vmatmul.mubr.bf16.gmra.mrb[0].mxu0 %v7364
      %v7454 = vpop.f32.mrb[0].mxu0
      %v7455 = vadd.f32 0.0, %v7454
      %v7456 = vpop.f32.mrb[0].mxu0
      %v7457 = vpop.f32.mrb[0].mxu0
      %v7458 = vadd.f32 0.0, %v7457
      %v7459 = vpop.f32.mrb[0].mxu0
      %7460 = vmatprep.mubr.bf16.mxu0 0
      %7461 = vmatmul.mubr.bf16.gmra.mrb[0].mxu0 %v7367
      %v7462 = vpop.f32.mrb[0].mxu0
      %v7463 = vadd.f32 0.0, %v7462
      %v7464 = vpop.f32.mrb[0].mxu0
      %v7465 = vpop.f32.mrb[0].mxu0
      %v7466 = vadd.f32 0.0, %v7465
      %v7467 = vpop.f32.mrb[0].mxu0
      %7468 = vdwg.mxu0
      %v7469 = vadd.f32 %v7166, %v7407
      %v7470 = vadd.f32 %v7169, %v7410
      %v7471 = vadd.f32 %v7174, %v7415
      %v7472 = vadd.f32 %v7177, %v7418
      %v7473 = vadd.f32 %v7182, %v7423
      %v7474 = vadd.f32 %v7185, %v7426
      %v7475 = vadd.f32 %v7190, %v7431
      %v7476 = vadd.f32 %v7193, %v7434
      %v7477 = vadd.f32 %v7198, %v7439
      %v7478 = vadd.f32 %v7201, %v7442
      %v7479 = vadd.f32 %v7206, %v7447
      %v7480 = vadd.f32 %v7209, %v7450
      %v7481 = vadd.f32 %v7214, %v7455
      %v7482 = vadd.f32 %v7217, %v7458
      %v7483 = vadd.f32 %v7222, %v7463
      %v7484 = vadd.f32 %v7225, %v7466
      %v7485 = vld [vmem:[%s1176] sm:$0xf]
      %v7486 = vld [vmem:[%s1176 + $0x4] sm:$0xf]
      %v7487 = vld [vmem:[%s1176 + $0xc] sm:$0xf]
      %v7488 = vld [vmem:[%s1176 + $0x10] sm:$0xf]
      %v7489 = vld [vmem:[%s1176 + $0x18] sm:$0xf]
      %v7490 = vld [vmem:[%s1176 + $0x1c] sm:$0xf]
      %v7491 = vld [vmem:[%s1176 + $0x24] sm:$0xf]
      %v7492 = vld [vmem:[%s1176 + $0x28] sm:$0xf]
      %v7493 = vld [vmem:[%s1176 + $0x30] sm:$0xf]
      %v7494 = vld [vmem:[%s1176 + $0x34] sm:$0xf]
      %v7495 = vld [vmem:[%s1176 + $0x3c] sm:$0xf]
      %v7496 = vld [vmem:[%s1176 + $0x40] sm:$0xf]
      %v7497 = vld [vmem:[%s1176 + $0x48] sm:$0xf]
      %v7498 = vld [vmem:[%s1176 + $0x4c] sm:$0xf]
      %v7499 = vld [vmem:[%s1176 + $0x54] sm:$0xf]
      %v7500 = vld [vmem:[%s1176 + $0x58] sm:$0xf]
      %s7501 = scalar_lea.vmem %s3, 6
      %v7502 = vld [vmem:[%s7501] sm:$0x3]
      %v7519 = vunpack.c.l.b16 %v7485
      %v7520 = vunpack.c.l.b16 %v7486
      %v7521 = vunpack.c.l.b16 %v7487
      %v7522 = vunpack.c.l.b16 %v7488
      %v7523 = vunpack.c.l.b16 %v7489
      %v7524 = vunpack.c.l.b16 %v7490
      %v7525 = vunpack.c.l.b16 %v7491
      %v7526 = vunpack.c.l.b16 %v7492
      %v7527 = vunpack.c.l.b16 %v7493
      %v7528 = vunpack.c.l.b16 %v7494
      %v7529 = vunpack.c.l.b16 %v7495
      %v7530 = vunpack.c.l.b16 %v7496
      %v7531 = vunpack.c.l.b16 %v7497
      %v7532 = vunpack.c.l.b16 %v7498
      %v7533 = vunpack.c.l.b16 %v7499
      %v7534 = vunpack.c.l.b16 %v7500
      %v7535 = vpack.c.b16 %v7520, %v7519
      %v7536 = vpack.c.b16 %v7522, %v7521
      %v7537 = vpack.c.b16 %v7524, %v7523
      %v7538 = vpack.c.b16 %v7526, %v7525
      %v7539 = vpack.c.b16 %v7528, %v7527
      %v7540 = vpack.c.b16 %v7530, %v7529
      %v7541 = vpack.c.b16 %v7532, %v7531
      %v7542 = vpack.c.b16 %v7534, %v7533
      %v7544 = vsel %vm650, %v7535, 0
      %v7547 = vsel %vm650, %v7536, 0
      %v7550 = vsel %vm650, %v7537, 0
      %v7553 = vsel %vm650, %v7538, 0
      %v7556 = vsel %vm650, %v7539, 0
      %v7559 = vsel %vm650, %v7540, 0
      %v7562 = vsel %vm650, %v7541, 0
      %v7565 = vsel %vm650, %v7542, 0
      %v7568 = vsel %vm675, %v7502, 0
      %7570 = vmatprep.subr.bf16.mxu0 0
      %7571 = vmatpush1.bf16.msra.mxu0 %v7568
      %7572 = vmatprep.subr.bf16.mxu0 0
      %7573 = vmatpush1.bf16.msra.mxu0 0
      %7574 = vmatprep.subr.bf16.mxu0 0
      %7575 = vmatpush1.bf16.msra.mxu0 0
      %7576 = vmatprep.subr.bf16.mxu0 0
      %7577 = vmatpush1.bf16.msra.mxu0 0
      %7578 = vmatprep.subr.bf16.mxu0 0
      %7579 = vmatpush1.bf16.msra.mxu0 0
      %7580 = vmatprep.subr.bf16.mxu0 0
      %7581 = vmatpush1.bf16.msra.mxu0 0
      %7582 = vmatprep.subr.bf16.mxu0 0
      %7583 = vmatpush1.bf16.msra.mxu0 0
      %7584 = vmatprep.subr.bf16.mxu0 0
      %7585 = vmatpush1.bf16.msra.mxu0 0
      %7586 = vmatprep.subr.bf16.mxu0 0
      %7587 = vmatpush1.bf16.msra.mxu0 0
      %7588 = vmatprep.subr.bf16.mxu0 0
      %7589 = vmatpush1.bf16.msra.mxu0 0
      %7590 = vmatprep.subr.bf16.mxu0 0
      %7591 = vmatpush1.bf16.msra.mxu0 0
      %7592 = vmatprep.subr.bf16.mxu0 0
      %7593 = vmatpush1.bf16.msra.mxu0 0
      %7594 = vmatprep.subr.bf16.mxu0 0
      %7595 = vmatpush1.bf16.msra.mxu0 0
      %7596 = vmatprep.subr.bf16.mxu0 0
      %7597 = vmatpush1.bf16.msra.mxu0 0
      %7598 = vmatprep.subr.bf16.mxu0 0
      %7599 = vmatpush1.bf16.msra.mxu0 0
      %7600 = vmatprep.subr.bf16.mxu0 0
      %7601 = vmatpush1.bf16.msra.mxu0 0
      %7602 = vmatprep.mubr.bf16.mxu0 0
      %7603 = vmatmul.mubr.bf16.gmra.mrb[0].mxu0 %v7544
      %v7604 = vpop.f32.mrb[0].mxu0
      %v7605 = vadd.f32 0.0, %v7604
      %v7606 = vpop.f32.mrb[0].mxu0
      %v7607 = vpop.f32.mrb[0].mxu0
      %v7608 = vadd.f32 0.0, %v7607
      %v7609 = vpop.f32.mrb[0].mxu0
      %7610 = vmatprep.mubr.bf16.mxu0 0
      %7611 = vmatmul.mubr.bf16.gmra.mrb[0].mxu0 %v7547
      %v7612 = vpop.f32.mrb[0].mxu0
      %v7613 = vadd.f32 0.0, %v7612
      %v7614 = vpop.f32.mrb[0].mxu0
      %v7615 = vpop.f32.mrb[0].mxu0
      %v7616 = vadd.f32 0.0, %v7615
      %v7617 = vpop.f32.mrb[0].mxu0
      %7618 = vmatprep.mubr.bf16.mxu0 0
      %7619 = vmatmul.mubr.bf16.gmra.mrb[0].mxu0 %v7550
      %v7620 = vpop.f32.mrb[0].mxu0
      %v7621 = vadd.f32 0.0, %v7620
      %v7622 = vpop.f32.mrb[0].mxu0
      %v7623 = vpop.f32.mrb[0].mxu0
      %v7624 = vadd.f32 0.0, %v7623
      %v7625 = vpop.f32.mrb[0].mxu0
      %7626 = vmatprep.mubr.bf16.mxu0 0
      %7627 = vmatmul.mubr.bf16.gmra.mrb[0].mxu0 %v7553
      %v7628 = vpop.f32.mrb[0].mxu0
      %v7629 = vadd.f32 0.0, %v7628
      %v7630 = vpop.f32.mrb[0].mxu0
      %v7631 = vpop.f32.mrb[0].mxu0
      %v7632 = vadd.f32 0.0, %v7631
      %v7633 = vpop.f32.mrb[0].mxu0
      %7634 = vmatprep.mubr.bf16.mxu0 0
      %7635 = vmatmul.mubr.bf16.gmra.mrb[0].mxu0 %v7556
      %v7636 = vpop.f32.mrb[0].mxu0
      %v7637 = vadd.f32 0.0, %v7636
      %v7638 = vpop.f32.mrb[0].mxu0
      %v7639 = vpop.f32.mrb[0].mxu0
      %v7640 = vadd.f32 0.0, %v7639
      %v7641 = vpop.f32.mrb[0].mxu0
      %7642 = vmatprep.mubr.bf16.mxu0 0
      %7643 = vmatmul.mubr.bf16.gmra.mrb[0].mxu0 %v7559
      %v7644 = vpop.f32.mrb[0].mxu0
      %v7645 = vadd.f32 0.0, %v7644
      %v7646 = vpop.f32.mrb[0].mxu0
      %v7647 = vpop.f32.mrb[0].mxu0
      %v7648 = vadd.f32 0.0, %v7647
      %v7649 = vpop.f32.mrb[0].mxu0
      %7650 = vmatprep.mubr.bf16.mxu0 0
      %7651 = vmatmul.mubr.bf16.gmra.mrb[0].mxu0 %v7562
      %v7652 = vpop.f32.mrb[0].mxu0
      %v7653 = vadd.f32 0.0, %v7652
      %v7654 = vpop.f32.mrb[0].mxu0
      %v7655 = vpop.f32.mrb[0].mxu0
      %v7656 = vadd.f32 0.0, %v7655
      %v7657 = vpop.f32.mrb[0].mxu0
      %7658 = vmatprep.mubr.bf16.mxu0 0
      %7659 = vmatmul.mubr.bf16.gmra.mrb[0].mxu0 %v7565
      %v7660 = vpop.f32.mrb[0].mxu0
      %v7661 = vadd.f32 0.0, %v7660
      %v7662 = vpop.f32.mrb[0].mxu0
      %v7663 = vpop.f32.mrb[0].mxu0
      %v7664 = vadd.f32 0.0, %v7663
      %v7665 = vpop.f32.mrb[0].mxu0
      %7666 = vdwg.mxu0
      %v7667 = vadd.f32 %v7469, %v7605
      %v7668 = vadd.f32 %v7470, %v7608
      %v7669 = vadd.f32 %v7471, %v7613
      %v7670 = vadd.f32 %v7472, %v7616
      %v7671 = vadd.f32 %v7473, %v7621
      %v7672 = vadd.f32 %v7474, %v7624
      %v7673 = vadd.f32 %v7475, %v7629
      %v7674 = vadd.f32 %v7476, %v7632
      %v7675 = vadd.f32 %v7477, %v7637
      %v7676 = vadd.f32 %v7478, %v7640
      %v7677 = vadd.f32 %v7479, %v7645
      %v7678 = vadd.f32 %v7480, %v7648
      %v7679 = vadd.f32 %v7481, %v7653
      %v7680 = vadd.f32 %v7482, %v7656
      %v7681 = vadd.f32 %v7483, %v7661
      %v7682 = vadd.f32 %v7484, %v7664
      %v7683 = vld [vmem:[%s1176] sm:$0xe]
      %v7684 = vld [vmem:[%s1176 + $0x4] sm:$0xf]
      %v7685 = vld [vmem:[%s1176 + $0x8] sm:$0x3]
      %v7686 = vld [vmem:[%s1176 + $0xc] sm:$0xe]
      %v7687 = vld [vmem:[%s1176 + $0x10] sm:$0xf]
      %v7688 = vld [vmem:[%s1176 + $0x14] sm:$0x3]
      %v7689 = vld [vmem:[%s1176 + $0x18] sm:$0xe]
      %v7690 = vld [vmem:[%s1176 + $0x1c] sm:$0xf]
      %v7691 = vld [vmem:[%s1176 + $0x20] sm:$0x3]
      %v7692 = vld [vmem:[%s1176 + $0x24] sm:$0xe]
      %v7693 = vld [vmem:[%s1176 + $0x28] sm:$0xf]
      %v7694 = vld [vmem:[%s1176 + $0x2c] sm:$0x3]
      %v7695 = vld [vmem:[%s1176 + $0x30] sm:$0xe]
      %v7696 = vld [vmem:[%s1176 + $0x34] sm:$0xf]
      %v7697 = vld [vmem:[%s1176 + $0x38] sm:$0x3]
      %v7698 = vld [vmem:[%s1176 + $0x3c] sm:$0xe]
      %v7699 = vld [vmem:[%s1176 + $0x40] sm:$0xf]
      %v7700 = vld [vmem:[%s1176 + $0x44] sm:$0x3]
      %v7701 = vld [vmem:[%s1176 + $0x48] sm:$0xe]
      %v7702 = vld [vmem:[%s1176 + $0x4c] sm:$0xf]
      %v7703 = vld [vmem:[%s1176 + $0x50] sm:$0x3]
      %v7704 = vld [vmem:[%s1176 + $0x54] sm:$0xe]
      %v7705 = vld [vmem:[%s1176 + $0x58] sm:$0xf]
      %v7706 = vld [vmem:[%s1176 + $0x5c] sm:$0x3]
      %v7708 = vshrl.u32 %v7683, 16
      %v7710 = vrot.slane %v7708, 5
      %v7711 = vshll.u32 %v7683, 16
      %v7713 = vrot.slane %v7711, 6
      %v7714 = vor.u32 %v7710, %v7713
      %v7715 = vrot.slane %v7714, 4
      %v7717 = vshrl.u32 %v7684, 16
      %v7719 = vrot.slane %v7717, 5
      %v7720 = vshll.u32 %v7684, 16
      %v7722 = vrot.slane %v7720, 6
      %v7723 = vor.u32 %v7719, %v7722
      %v7724 = vsel %vm399, %v7715, %v7723
      %v7725 = vrot.slane %v7723, 4
      %v7727 = vshrl.u32 %v7685, 16
      %v7729 = vrot.slane %v7727, 5
      %v7730 = vshll.u32 %v7685, 16
      %v7732 = vrot.slane %v7730, 6
      %v7733 = vor.u32 %v7729, %v7732
      %v7734 = vsel %vm399, %v7725, %v7733
      %v7736 = vshrl.u32 %v7686, 16
      %v7738 = vrot.slane %v7736, 5
      %v7739 = vshll.u32 %v7686, 16
      %v7741 = vrot.slane %v7739, 6
      %v7742 = vor.u32 %v7738, %v7741
      %v7743 = vrot.slane %v7742, 4
      %v7745 = vshrl.u32 %v7687, 16
      %v7747 = vrot.slane %v7745, 5
      %v7748 = vshll.u32 %v7687, 16
      %v7750 = vrot.slane %v7748, 6
      %v7751 = vor.u32 %v7747, %v7750
      %v7752 = vsel %vm399, %v7743, %v7751
      %v7753 = vrot.slane %v7751, 4
      %v7755 = vshrl.u32 %v7688, 16
      %v7757 = vrot.slane %v7755, 5
      %v7758 = vshll.u32 %v7688, 16
      %v7760 = vrot.slane %v7758, 6
      %v7761 = vor.u32 %v7757, %v7760
      %v7762 = vsel %vm399, %v7753, %v7761
      %v7764 = vshrl.u32 %v7689, 16
      %v7766 = vrot.slane %v7764, 5
      %v7767 = vshll.u32 %v7689, 16
      %v7769 = vrot.slane %v7767, 6
      %v7770 = vor.u32 %v7766, %v7769
      %v7771 = vrot.slane %v7770, 4
      %v7773 = vshrl.u32 %v7690, 16
      %v7775 = vrot.slane %v7773, 5
      %v7776 = vshll.u32 %v7690, 16
      %v7778 = vrot.slane %v7776, 6
      %v7779 = vor.u32 %v7775, %v7778
      %v7780 = vsel %vm399, %v7771, %v7779
      %v7781 = vrot.slane %v7779, 4
      %v7783 = vshrl.u32 %v7691, 16
      %v7785 = vrot.slane %v7783, 5
      %v7786 = vshll.u32 %v7691, 16
      %v7788 = vrot.slane %v7786, 6
      %v7789 = vor.u32 %v7785, %v7788
      %v7790 = vsel %vm399, %v7781, %v7789
      %v7792 = vshrl.u32 %v7692, 16
      %v7794 = vrot.slane %v7792, 5
      %v7795 = vshll.u32 %v7692, 16
      %v7797 = vrot.slane %v7795, 6
      %v7798 = vor.u32 %v7794, %v7797
      %v7799 = vrot.slane %v7798, 4
      %v7801 = vshrl.u32 %v7693, 16
      %v7803 = vrot.slane %v7801, 5
      %v7804 = vshll.u32 %v7693, 16
      %v7806 = vrot.slane %v7804, 6
      %v7807 = vor.u32 %v7803, %v7806
      %v7808 = vsel %vm399, %v7799, %v7807
      %v7809 = vrot.slane %v7807, 4
      %v7811 = vshrl.u32 %v7694, 16
      %v7813 = vrot.slane %v7811, 5
      %v7814 = vshll.u32 %v7694, 16
      %v7816 = vrot.slane %v7814, 6
      %v7817 = vor.u32 %v7813, %v7816
      %v7818 = vsel %vm399, %v7809, %v7817
      %v7820 = vshrl.u32 %v7695, 16
      %v7822 = vrot.slane %v7820, 5
      %v7823 = vshll.u32 %v7695, 16
      %v7825 = vrot.slane %v7823, 6
      %v7826 = vor.u32 %v7822, %v7825
      %v7827 = vrot.slane %v7826, 4
      %v7829 = vshrl.u32 %v7696, 16
      %v7831 = vrot.slane %v7829, 5
      %v7832 = vshll.u32 %v7696, 16
      %v7834 = vrot.slane %v7832, 6
      %v7835 = vor.u32 %v7831, %v7834
      %v7836 = vsel %vm399, %v7827, %v7835
      %v7837 = vrot.slane %v7835, 4
      %v7839 = vshrl.u32 %v7697, 16
      %v7841 = vrot.slane %v7839, 5
      %v7842 = vshll.u32 %v7697, 16
      %v7844 = vrot.slane %v7842, 6
      %v7845 = vor.u32 %v7841, %v7844
      %v7846 = vsel %vm399, %v7837, %v7845
      %v7848 = vshrl.u32 %v7698, 16
      %v7850 = vrot.slane %v7848, 5
      %v7851 = vshll.u32 %v7698, 16
      %v7853 = vrot.slane %v7851, 6
      %v7854 = vor.u32 %v7850, %v7853
      %v7855 = vrot.slane %v7854, 4
      %v7857 = vshrl.u32 %v7699, 16
      %v7859 = vrot.slane %v7857, 5
      %v7860 = vshll.u32 %v7699, 16
      %v7862 = vrot.slane %v7860, 6
      %v7863 = vor.u32 %v7859, %v7862
      %v7864 = vsel %vm399, %v7855, %v7863
      %v7865 = vrot.slane %v7863, 4
      %v7867 = vshrl.u32 %v7700, 16
      %v7869 = vrot.slane %v7867, 5
      %v7870 = vshll.u32 %v7700, 16
      %v7872 = vrot.slane %v7870, 6
      %v7873 = vor.u32 %v7869, %v7872
      %v7874 = vsel %vm399, %v7865, %v7873
      %v7876 = vshrl.u32 %v7701, 16
      %v7878 = vrot.slane %v7876, 5
      %v7879 = vshll.u32 %v7701, 16
      %v7881 = vrot.slane %v7879, 6
      %v7882 = vor.u32 %v7878, %v7881
      %v7883 = vrot.slane %v7882, 4
      %v7885 = vshrl.u32 %v7702, 16
      %v7887 = vrot.slane %v7885, 5
      %v7888 = vshll.u32 %v7702, 16
      %v7890 = vrot.slane %v7888, 6
      %v7891 = vor.u32 %v7887, %v7890
      %v7892 = vsel %vm399, %v7883, %v7891
      %v7893 = vrot.slane %v7891, 4
      %v7895 = vshrl.u32 %v7703, 16
      %v7897 = vrot.slane %v7895, 5
      %v7898 = vshll.u32 %v7703, 16
      %v7900 = vrot.slane %v7898, 6
      %v7901 = vor.u32 %v7897, %v7900
      %v7902 = vsel %vm399, %v7893, %v7901
      %v7904 = vshrl.u32 %v7704, 16
      %v7906 = vrot.slane %v7904, 5
      %v7907 = vshll.u32 %v7704, 16
      %v7909 = vrot.slane %v7907, 6
      %v7910 = vor.u32 %v7906, %v7909
      %v7911 = vrot.slane %v7910, 4
      %v7913 = vshrl.u32 %v7705, 16
      %v7915 = vrot.slane %v7913, 5
      %v7916 = vshll.u32 %v7705, 16
      %v7918 = vrot.slane %v7916, 6
      %v7919 = vor.u32 %v7915, %v7918
      %v7920 = vsel %vm399, %v7911, %v7919
      %v7921 = vrot.slane %v7919, 4
      %v7923 = vshrl.u32 %v7706, 16
      %v7925 = vrot.slane %v7923, 5
      %v7926 = vshll.u32 %v7706, 16
      %v7928 = vrot.slane %v7926, 6
      %v7929 = vor.u32 %v7925, %v7928
      %v7930 = vsel %vm399, %v7921, %v7929
      %s7931 = scalar_lea.vmem %s3, 8
      %v7932 = vld [vmem:[%s7931] sm:$0x3]
      %v7933 = vunpack.c.l.b16 %v7724
      %v7934 = vunpack.c.l.b16 %v7734
      %v7935 = vunpack.c.l.b16 %v7752
      %v7936 = vunpack.c.l.b16 %v7762
      %v7937 = vunpack.c.l.b16 %v7780
      %v7938 = vunpack.c.l.b16 %v7790
      %v7939 = vunpack.c.l.b16 %v7808
      %v7940 = vunpack.c.l.b16 %v7818
      %v7941 = vunpack.c.l.b16 %v7836
      %v7942 = vunpack.c.l.b16 %v7846
      %v7943 = vunpack.c.l.b16 %v7864
      %v7944 = vunpack.c.l.b16 %v7874
      %v7945 = vunpack.c.l.b16 %v7892
      %v7946 = vunpack.c.l.b16 %v7902
      %v7947 = vunpack.c.l.b16 %v7920
      %v7948 = vunpack.c.l.b16 %v7930
      %v7949 = vpack.c.b16 %v7934, %v7933
      %v7950 = vpack.c.b16 %v7936, %v7935
      %v7951 = vpack.c.b16 %v7938, %v7937
      %v7952 = vpack.c.b16 %v7940, %v7939
      %v7953 = vpack.c.b16 %v7942, %v7941
      %v7954 = vpack.c.b16 %v7944, %v7943
      %v7955 = vpack.c.b16 %v7946, %v7945
      %v7956 = vpack.c.b16 %v7948, %v7947
      %v7958 = vsel %vm650, %v7949, 0
      %v7961 = vsel %vm650, %v7950, 0
      %v7964 = vsel %vm650, %v7951, 0
      %v7967 = vsel %vm650, %v7952, 0
      %v7970 = vsel %vm650, %v7953, 0
      %v7973 = vsel %vm650, %v7954, 0
      %v7976 = vsel %vm650, %v7955, 0
      %v7979 = vsel %vm650, %v7956, 0
      %v7982 = vsel %vm675, %v7932, 0
      %7984 = vmatprep.subr.bf16.mxu0 0
      %7985 = vmatpush1.bf16.msra.mxu0 %v7982
      %7986 = vmatprep.subr.bf16.mxu0 0
      %7987 = vmatpush1.bf16.msra.mxu0 0
      %7988 = vmatprep.subr.bf16.mxu0 0
      %7989 = vmatpush1.bf16.msra.mxu0 0
      %7990 = vmatprep.subr.bf16.mxu0 0
      %7991 = vmatpush1.bf16.msra.mxu0 0
      %7992 = vmatprep.subr.bf16.mxu0 0
      %7993 = vmatpush1.bf16.msra.mxu0 0
      %7994 = vmatprep.subr.bf16.mxu0 0
      %7995 = vmatpush1.bf16.msra.mxu0 0
      %7996 = vmatprep.subr.bf16.mxu0 0
      %7997 = vmatpush1.bf16.msra.mxu0 0
      %7998 = vmatprep.subr.bf16.mxu0 0
      %7999 = vmatpush1.bf16.msra.mxu0 0
      %8000 = vmatprep.subr.bf16.mxu0 0
      %8001 = vmatpush1.bf16.msra.mxu0 0
      %8002 = vmatprep.subr.bf16.mxu0 0
      %8003 = vmatpush1.bf16.msra.mxu0 0
      %8004 = vmatprep.subr.bf16.mxu0 0
      %8005 = vmatpush1.bf16.msra.mxu0 0
      %8006 = vmatprep.subr.bf16.mxu0 0
      %8007 = vmatpush1.bf16.msra.mxu0 0
      %8008 = vmatprep.subr.bf16.mxu0 0
      %8009 = vmatpush1.bf16.msra.mxu0 0
      %8010 = vmatprep.subr.bf16.mxu0 0
      %8011 = vmatpush1.bf16.msra.mxu0 0
      %8012 = vmatprep.subr.bf16.mxu0 0
      %8013 = vmatpush1.bf16.msra.mxu0 0
      %8014 = vmatprep.subr.bf16.mxu0 0
      %8015 = vmatpush1.bf16.msra.mxu0 0
      %8016 = vmatprep.mubr.bf16.mxu0 0
      %8017 = vmatmul.mubr.bf16.gmra.mrb[0].mxu0 %v7958
      %v8018 = vpop.f32.mrb[0].mxu0
      %v8019 = vadd.f32 0.0, %v8018
      %v8020 = vpop.f32.mrb[0].mxu0
      %v8021 = vpop.f32.mrb[0].mxu0
      %v8022 = vadd.f32 0.0, %v8021
      %v8023 = vpop.f32.mrb[0].mxu0
      %8024 = vmatprep.mubr.bf16.mxu0 0
      %8025 = vmatmul.mubr.bf16.gmra.mrb[0].mxu0 %v7961
      %v8026 = vpop.f32.mrb[0].mxu0
      %v8027 = vadd.f32 0.0, %v8026
      %v8028 = vpop.f32.mrb[0].mxu0
      %v8029 = vpop.f32.mrb[0].mxu0
      %v8030 = vadd.f32 0.0, %v8029
      %v8031 = vpop.f32.mrb[0].mxu0
      %8032 = vmatprep.mubr.bf16.mxu0 0
      %8033 = vmatmul.mubr.bf16.gmra.mrb[0].mxu0 %v7964
      %v8034 = vpop.f32.mrb[0].mxu0
      %v8035 = vadd.f32 0.0, %v8034
      %v8036 = vpop.f32.mrb[0].mxu0
      %v8037 = vpop.f32.mrb[0].mxu0
      %v8038 = vadd.f32 0.0, %v8037
      %v8039 = vpop.f32.mrb[0].mxu0
      %8040 = vmatprep.mubr.bf16.mxu0 0
      %8041 = vmatmul.mubr.bf16.gmra.mrb[0].mxu0 %v7967
      %v8042 = vpop.f32.mrb[0].mxu0
      %v8043 = vadd.f32 0.0, %v8042
      %v8044 = vpop.f32.mrb[0].mxu0
      %v8045 = vpop.f32.mrb[0].mxu0
      %v8046 = vadd.f32 0.0, %v8045
      %v8047 = vpop.f32.mrb[0].mxu0
      %8048 = vmatprep.mubr.bf16.mxu0 0
      %8049 = vmatmul.mubr.bf16.gmra.mrb[0].mxu0 %v7970
      %v8050 = vpop.f32.mrb[0].mxu0
      %v8051 = vadd.f32 0.0, %v8050
      %v8052 = vpop.f32.mrb[0].mxu0
      %v8053 = vpop.f32.mrb[0].mxu0
      %v8054 = vadd.f32 0.0, %v8053
      %v8055 = vpop.f32.mrb[0].mxu0
      %8056 = vmatprep.mubr.bf16.mxu0 0
      %8057 = vmatmul.mubr.bf16.gmra.mrb[0].mxu0 %v7973
      %v8058 = vpop.f32.mrb[0].mxu0
      %v8059 = vadd.f32 0.0, %v8058
      %v8060 = vpop.f32.mrb[0].mxu0
      %v8061 = vpop.f32.mrb[0].mxu0
      %v8062 = vadd.f32 0.0, %v8061
      %v8063 = vpop.f32.mrb[0].mxu0
      %8064 = vmatprep.mubr.bf16.mxu0 0
      %8065 = vmatmul.mubr.bf16.gmra.mrb[0].mxu0 %v7976
      %v8066 = vpop.f32.mrb[0].mxu0
      %v8067 = vadd.f32 0.0, %v8066
      %v8068 = vpop.f32.mrb[0].mxu0
      %v8069 = vpop.f32.mrb[0].mxu0
      %v8070 = vadd.f32 0.0, %v8069
      %v8071 = vpop.f32.mrb[0].mxu0
      %8072 = vmatprep.mubr.bf16.mxu0 0
      %8073 = vmatmul.mubr.bf16.gmra.mrb[0].mxu0 %v7979
      %v8074 = vpop.f32.mrb[0].mxu0
      %v8075 = vadd.f32 0.0, %v8074
      %v8076 = vpop.f32.mrb[0].mxu0
      %v8077 = vpop.f32.mrb[0].mxu0
      %v8078 = vadd.f32 0.0, %v8077
      %v8079 = vpop.f32.mrb[0].mxu0
      %8080 = vdwg.mxu0
      %v8081 = vadd.f32 %v7667, %v8019
      %v8082 = vadd.f32 %v7668, %v8022
      %v8083 = vadd.f32 %v7669, %v8027
      %v8084 = vadd.f32 %v7670, %v8030
      %v8085 = vadd.f32 %v7671, %v8035
      %v8086 = vadd.f32 %v7672, %v8038
      %v8087 = vadd.f32 %v7673, %v8043
      %v8088 = vadd.f32 %v7674, %v8046
      %v8089 = vadd.f32 %v7675, %v8051
      %v8090 = vadd.f32 %v7676, %v8054
      %v8091 = vadd.f32 %v7677, %v8059
      %v8092 = vadd.f32 %v7678, %v8062
      %v8093 = vadd.f32 %v7679, %v8067
      %v8094 = vadd.f32 %v7680, %v8070
      %v8095 = vadd.f32 %v7681, %v8075
      %v8096 = vadd.f32 %v7682, %v8078
      %v8097 = vld [vmem:[%s1176] sm:$0x8]
      %v8098 = vld [vmem:[%s1176 + $0x8] sm:$0x7]
      %v8099 = vld [vmem:[%s1176 + $0xc] sm:$0x8]
      %v8100 = vld [vmem:[%s1176 + $0x14] sm:$0x7]
      %v8101 = vld [vmem:[%s1176 + $0x18] sm:$0x8]
      %v8102 = vld [vmem:[%s1176 + $0x20] sm:$0x7]
      %v8103 = vld [vmem:[%s1176 + $0x24] sm:$0x8]
      %v8104 = vld [vmem:[%s1176 + $0x2c] sm:$0x7]
      %v8105 = vld [vmem:[%s1176 + $0x30] sm:$0x8]
      %v8106 = vld [vmem:[%s1176 + $0x38] sm:$0x7]
      %v8107 = vld [vmem:[%s1176 + $0x3c] sm:$0x8]
      %v8108 = vld [vmem:[%s1176 + $0x44] sm:$0x7]
      %v8109 = vld [vmem:[%s1176 + $0x48] sm:$0x8]
      %v8110 = vld [vmem:[%s1176 + $0x50] sm:$0x7]
      %v8111 = vld [vmem:[%s1176 + $0x54] sm:$0x8]
      %v8112 = vld [vmem:[%s1176 + $0x5c] sm:$0x7]
      %v8137 = vrot.slane %v8097, 7
      %v8138 = vrot.slane %v8137, 4
      %v8139 = vrot.slane %v7684, 7
      %v8140 = vsel %vm7262, %v8138, %v8139
      %v8141 = vrot.slane %v8139, 4
      %v8142 = vrot.slane %v8098, 7
      %v8143 = vsel %vm7262, %v8141, %v8142
      %v8144 = vrot.slane %v8099, 7
      %v8145 = vrot.slane %v8144, 4
      %v8146 = vrot.slane %v7687, 7
      %v8147 = vsel %vm7262, %v8145, %v8146
      %v8148 = vrot.slane %v8146, 4
      %v8149 = vrot.slane %v8100, 7
      %v8150 = vsel %vm7262, %v8148, %v8149
      %v8151 = vrot.slane %v8101, 7
      %v8152 = vrot.slane %v8151, 4
      %v8153 = vrot.slane %v7690, 7
      %v8154 = vsel %vm7262, %v8152, %v8153
      %v8155 = vrot.slane %v8153, 4
      %v8156 = vrot.slane %v8102, 7
      %v8157 = vsel %vm7262, %v8155, %v8156
      %v8158 = vrot.slane %v8103, 7
      %v8159 = vrot.slane %v8158, 4
      %v8160 = vrot.slane %v7693, 7
      %v8161 = vsel %vm7262, %v8159, %v8160
      %v8162 = vrot.slane %v8160, 4
      %v8163 = vrot.slane %v8104, 7
      %v8164 = vsel %vm7262, %v8162, %v8163
      %v8165 = vrot.slane %v8105, 7
      %v8166 = vrot.slane %v8165, 4
      %v8167 = vrot.slane %v7696, 7
      %v8168 = vsel %vm7262, %v8166, %v8167
      %v8169 = vrot.slane %v8167, 4
      %v8170 = vrot.slane %v8106, 7
      %v8171 = vsel %vm7262, %v8169, %v8170
      %v8172 = vrot.slane %v8107, 7
      %v8173 = vrot.slane %v8172, 4
      %v8174 = vrot.slane %v7699, 7
      %v8175 = vsel %vm7262, %v8173, %v8174
      %v8176 = vrot.slane %v8174, 4
      %v8177 = vrot.slane %v8108, 7
      %v8178 = vsel %vm7262, %v8176, %v8177
      %v8179 = vrot.slane %v8109, 7
      %v8180 = vrot.slane %v8179, 4
      %v8181 = vrot.slane %v7702, 7
      %v8182 = vsel %vm7262, %v8180, %v8181
      %v8183 = vrot.slane %v8181, 4
      %v8184 = vrot.slane %v8110, 7
      %v8185 = vsel %vm7262, %v8183, %v8184
      %v8186 = vrot.slane %v8111, 7
      %v8187 = vrot.slane %v8186, 4
      %v8188 = vrot.slane %v7705, 7
      %v8189 = vsel %vm7262, %v8187, %v8188
      %v8190 = vrot.slane %v8188, 4
      %v8191 = vrot.slane %v8112, 7
      %v8192 = vsel %vm7262, %v8190, %v8191
      %s8193 = scalar_lea.vmem %s3, 10
      %v8194 = vld [vmem:[%s8193] sm:$0x3]
      %v8195 = vunpack.c.l.b16 %v8140
      %v8196 = vunpack.c.l.b16 %v8143
      %v8197 = vunpack.c.l.b16 %v8147
      %v8198 = vunpack.c.l.b16 %v8150
      %v8199 = vunpack.c.l.b16 %v8154
      %v8200 = vunpack.c.l.b16 %v8157
      %v8201 = vunpack.c.l.b16 %v8161
      %v8202 = vunpack.c.l.b16 %v8164
      %v8203 = vunpack.c.l.b16 %v8168
      %v8204 = vunpack.c.l.b16 %v8171
      %v8205 = vunpack.c.l.b16 %v8175
      %v8206 = vunpack.c.l.b16 %v8178
      %v8207 = vunpack.c.l.b16 %v8182
      %v8208 = vunpack.c.l.b16 %v8185
      %v8209 = vunpack.c.l.b16 %v8189
      %v8210 = vunpack.c.l.b16 %v8192
      %v8211 = vpack.c.b16 %v8196, %v8195
      %v8212 = vpack.c.b16 %v8198, %v8197
      %v8213 = vpack.c.b16 %v8200, %v8199
      %v8214 = vpack.c.b16 %v8202, %v8201
      %v8215 = vpack.c.b16 %v8204, %v8203
      %v8216 = vpack.c.b16 %v8206, %v8205
      %v8217 = vpack.c.b16 %v8208, %v8207
      %v8218 = vpack.c.b16 %v8210, %v8209
      %v8220 = vsel %vm650, %v8211, 0
      %v8223 = vsel %vm650, %v8212, 0
      %v8226 = vsel %vm650, %v8213, 0
      %v8229 = vsel %vm650, %v8214, 0
      %v8232 = vsel %vm650, %v8215, 0
      %v8235 = vsel %vm650, %v8216, 0
      %v8238 = vsel %vm650, %v8217, 0
      %v8241 = vsel %vm650, %v8218, 0
      %v8244 = vsel %vm675, %v8194, 0
      %8246 = vmatprep.subr.bf16.mxu0 0
      %8247 = vmatpush1.bf16.msra.mxu0 %v8244
      %8248 = vmatprep.subr.bf16.mxu0 0
      %8249 = vmatpush1.bf16.msra.mxu0 0
      %8250 = vmatprep.subr.bf16.mxu0 0
      %8251 = vmatpush1.bf16.msra.mxu0 0
      %8252 = vmatprep.subr.bf16.mxu0 0
      %8253 = vmatpush1.bf16.msra.mxu0 0
      %8254 = vmatprep.subr.bf16.mxu0 0
      %8255 = vmatpush1.bf16.msra.mxu0 0
      %8256 = vmatprep.subr.bf16.mxu0 0
      %8257 = vmatpush1.bf16.msra.mxu0 0
      %8258 = vmatprep.subr.bf16.mxu0 0
      %8259 = vmatpush1.bf16.msra.mxu0 0
      %8260 = vmatprep.subr.bf16.mxu0 0
      %8261 = vmatpush1.bf16.msra.mxu0 0
      %8262 = vmatprep.subr.bf16.mxu0 0
      %8263 = vmatpush1.bf16.msra.mxu0 0
      %8264 = vmatprep.subr.bf16.mxu0 0
      %8265 = vmatpush1.bf16.msra.mxu0 0
      %8266 = vmatprep.subr.bf16.mxu0 0
      %8267 = vmatpush1.bf16.msra.mxu0 0
      %8268 = vmatprep.subr.bf16.mxu0 0
      %8269 = vmatpush1.bf16.msra.mxu0 0
      %8270 = vmatprep.subr.bf16.mxu0 0
      %8271 = vmatpush1.bf16.msra.mxu0 0
      %8272 = vmatprep.subr.bf16.mxu0 0
      %8273 = vmatpush1.bf16.msra.mxu0 0
      %8274 = vmatprep.subr.bf16.mxu0 0
      %8275 = vmatpush1.bf16.msra.mxu0 0
      %8276 = vmatprep.subr.bf16.mxu0 0
      %8277 = vmatpush1.bf16.msra.mxu0 0
      %8278 = vmatprep.mubr.bf16.mxu0 0
      %8279 = vmatmul.mubr.bf16.gmra.mrb[0].mxu0 %v8220
      %v8280 = vpop.f32.mrb[0].mxu0
      %v8281 = vadd.f32 0.0, %v8280
      %v8282 = vpop.f32.mrb[0].mxu0
      %v8283 = vpop.f32.mrb[0].mxu0
      %v8284 = vadd.f32 0.0, %v8283
      %v8285 = vpop.f32.mrb[0].mxu0
      %8286 = vmatprep.mubr.bf16.mxu0 0
      %8287 = vmatmul.mubr.bf16.gmra.mrb[0].mxu0 %v8223
      %v8288 = vpop.f32.mrb[0].mxu0
      %v8289 = vadd.f32 0.0, %v8288
      %v8290 = vpop.f32.mrb[0].mxu0
      %v8291 = vpop.f32.mrb[0].mxu0
      %v8292 = vadd.f32 0.0, %v8291
      %v8293 = vpop.f32.mrb[0].mxu0
      %8294 = vmatprep.mubr.bf16.mxu0 0
      %8295 = vmatmul.mubr.bf16.gmra.mrb[0].mxu0 %v8226
      %v8296 = vpop.f32.mrb[0].mxu0
      %v8297 = vadd.f32 0.0, %v8296
      %v8298 = vpop.f32.mrb[0].mxu0
      %v8299 = vpop.f32.mrb[0].mxu0
      %v8300 = vadd.f32 0.0, %v8299
      %v8301 = vpop.f32.mrb[0].mxu0
      %8302 = vmatprep.mubr.bf16.mxu0 0
      %8303 = vmatmul.mubr.bf16.gmra.mrb[0].mxu0 %v8229
      %v8304 = vpop.f32.mrb[0].mxu0
      %v8305 = vadd.f32 0.0, %v8304
      %v8306 = vpop.f32.mrb[0].mxu0
      %v8307 = vpop.f32.mrb[0].mxu0
      %v8308 = vadd.f32 0.0, %v8307
      %v8309 = vpop.f32.mrb[0].mxu0
      %8310 = vmatprep.mubr.bf16.mxu0 0
      %8311 = vmatmul.mubr.bf16.gmra.mrb[0].mxu0 %v8232
      %v8312 = vpop.f32.mrb[0].mxu0
      %v8313 = vadd.f32 0.0, %v8312
      %v8314 = vpop.f32.mrb[0].mxu0
      %v8315 = vpop.f32.mrb[0].mxu0
      %v8316 = vadd.f32 0.0, %v8315
      %v8317 = vpop.f32.mrb[0].mxu0
      %8318 = vmatprep.mubr.bf16.mxu0 0
      %8319 = vmatmul.mubr.bf16.gmra.mrb[0].mxu0 %v8235
      %v8320 = vpop.f32.mrb[0].mxu0
      %v8321 = vadd.f32 0.0, %v8320
      %v8322 = vpop.f32.mrb[0].mxu0
      %v8323 = vpop.f32.mrb[0].mxu0
      %v8324 = vadd.f32 0.0, %v8323
      %v8325 = vpop.f32.mrb[0].mxu0
      %8326 = vmatprep.mubr.bf16.mxu0 0
      %8327 = vmatmul.mubr.bf16.gmra.mrb[0].mxu0 %v8238
      %v8328 = vpop.f32.mrb[0].mxu0
      %v8329 = vadd.f32 0.0, %v8328
      %v8330 = vpop.f32.mrb[0].mxu0
      %v8331 = vpop.f32.mrb[0].mxu0
      %v8332 = vadd.f32 0.0, %v8331
      %v8333 = vpop.f32.mrb[0].mxu0
      %8334 = vmatprep.mubr.bf16.mxu0 0
      %8335 = vmatmul.mubr.bf16.gmra.mrb[0].mxu0 %v8241
      %v8336 = vpop.f32.mrb[0].mxu0
      %v8337 = vadd.f32 0.0, %v8336
      %v8338 = vpop.f32.mrb[0].mxu0
      %v8339 = vpop.f32.mrb[0].mxu0
      %v8340 = vadd.f32 0.0, %v8339
      %v8341 = vpop.f32.mrb[0].mxu0
      %8342 = vdwg.mxu0
      %v8343 = vadd.f32 %v8081, %v8281
      %v8344 = vadd.f32 %v8082, %v8284
      %v8345 = vadd.f32 %v8083, %v8289
      %v8346 = vadd.f32 %v8084, %v8292
      %v8347 = vadd.f32 %v8085, %v8297
      %v8348 = vadd.f32 %v8086, %v8300
      %v8349 = vadd.f32 %v8087, %v8305
      %v8350 = vadd.f32 %v8088, %v8308
      %v8351 = vadd.f32 %v8089, %v8313
      %v8352 = vadd.f32 %v8090, %v8316
      %v8353 = vadd.f32 %v8091, %v8321
      %v8354 = vadd.f32 %v8092, %v8324
      %v8355 = vadd.f32 %v8093, %v8329
      %v8356 = vadd.f32 %v8094, %v8332
      %v8357 = vadd.f32 %v8095, %v8337
      %v8358 = vadd.f32 %v8096, %v8340
      %s8359 = sadd.s32 %s276, 6
      %s8360 = smul.u32 %s8359, 3
      %s8361 = smul.addr %s8360, 4
      %s8362 = scalar_lea.vmem %s264, %s8361
      %v8363 = vld [vmem:[%s8362] sm:$0xf]
      %v8364 = vld [vmem:[%s8362 + $0x4] sm:$0xf]
      %v8365 = vld [vmem:[%s8362 + $0xc] sm:$0xf]
      %v8366 = vld [vmem:[%s8362 + $0x10] sm:$0xf]
      %v8367 = vld [vmem:[%s8362 + $0x18] sm:$0xf]
      %v8368 = vld [vmem:[%s8362 + $0x1c] sm:$0xf]
      %v8369 = vld [vmem:[%s8362 + $0x24] sm:$0xf]
      %v8370 = vld [vmem:[%s8362 + $0x28] sm:$0xf]
      %v8371 = vld [vmem:[%s8362 + $0x30] sm:$0xf]
      %v8372 = vld [vmem:[%s8362 + $0x34] sm:$0xf]
      %v8373 = vld [vmem:[%s8362 + $0x3c] sm:$0xf]
      %v8374 = vld [vmem:[%s8362 + $0x40] sm:$0xf]
      %v8375 = vld [vmem:[%s8362 + $0x48] sm:$0xf]
      %v8376 = vld [vmem:[%s8362 + $0x4c] sm:$0xf]
      %v8377 = vld [vmem:[%s8362 + $0x54] sm:$0xf]
      %v8378 = vld [vmem:[%s8362 + $0x58] sm:$0xf]
      %s8379 = scalar_lea.vmem %s3, 12
      %v8380 = vld [vmem:[%s8379] sm:$0x3]
      %v8397 = vunpack.c.l.b16 %v8363
      %v8398 = vunpack.c.l.b16 %v8364
      %v8399 = vunpack.c.l.b16 %v8365
      %v8400 = vunpack.c.l.b16 %v8366
      %v8401 = vunpack.c.l.b16 %v8367
      %v8402 = vunpack.c.l.b16 %v8368
      %v8403 = vunpack.c.l.b16 %v8369
      %v8404 = vunpack.c.l.b16 %v8370
      %v8405 = vunpack.c.l.b16 %v8371
      %v8406 = vunpack.c.l.b16 %v8372
      %v8407 = vunpack.c.l.b16 %v8373
      %v8408 = vunpack.c.l.b16 %v8374
      %v8409 = vunpack.c.l.b16 %v8375
      %v8410 = vunpack.c.l.b16 %v8376
      %v8411 = vunpack.c.l.b16 %v8377
      %v8412 = vunpack.c.l.b16 %v8378
      %v8413 = vpack.c.b16 %v8398, %v8397
      %v8414 = vpack.c.b16 %v8400, %v8399
      %v8415 = vpack.c.b16 %v8402, %v8401
      %v8416 = vpack.c.b16 %v8404, %v8403
      %v8417 = vpack.c.b16 %v8406, %v8405
      %v8418 = vpack.c.b16 %v8408, %v8407
      %v8419 = vpack.c.b16 %v8410, %v8409
      %v8420 = vpack.c.b16 %v8412, %v8411
      %v8422 = vsel %vm650, %v8413, 0
      %v8425 = vsel %vm650, %v8414, 0
      %v8428 = vsel %vm650, %v8415, 0
      %v8431 = vsel %vm650, %v8416, 0
      %v8434 = vsel %vm650, %v8417, 0
      %v8437 = vsel %vm650, %v8418, 0
      %v8440 = vsel %vm650, %v8419, 0
      %v8443 = vsel %vm650, %v8420, 0
      %v8446 = vsel %vm675, %v8380, 0
      %8448 = vmatprep.subr.bf16.mxu0 0
      %8449 = vmatpush1.bf16.msra.mxu0 %v8446
      %8450 = vmatprep.subr.bf16.mxu0 0
      %8451 = vmatpush1.bf16.msra.mxu0 0
      %8452 = vmatprep.subr.bf16.mxu0 0
      %8453 = vmatpush1.bf16.msra.mxu0 0
      %8454 = vmatprep.subr.bf16.mxu0 0
      %8455 = vmatpush1.bf16.msra.mxu0 0
      %8456 = vmatprep.subr.bf16.mxu0 0
      %8457 = vmatpush1.bf16.msra.mxu0 0
      %8458 = vmatprep.subr.bf16.mxu0 0
      %8459 = vmatpush1.bf16.msra.mxu0 0
      %8460 = vmatprep.subr.bf16.mxu0 0
      %8461 = vmatpush1.bf16.msra.mxu0 0
      %8462 = vmatprep.subr.bf16.mxu0 0
      %8463 = vmatpush1.bf16.msra.mxu0 0
      %8464 = vmatprep.subr.bf16.mxu0 0
      %8465 = vmatpush1.bf16.msra.mxu0 0
      %8466 = vmatprep.subr.bf16.mxu0 0
      %8467 = vmatpush1.bf16.msra.mxu0 0
      %8468 = vmatprep.subr.bf16.mxu0 0
      %8469 = vmatpush1.bf16.msra.mxu0 0
      %8470 = vmatprep.subr.bf16.mxu0 0
      %8471 = vmatpush1.bf16.msra.mxu0 0
      %8472 = vmatprep.subr.bf16.mxu0 0
      %8473 = vmatpush1.bf16.msra.mxu0 0
      %8474 = vmatprep.subr.bf16.mxu0 0
      %8475 = vmatpush1.bf16.msra.mxu0 0
      %8476 = vmatprep.subr.bf16.mxu0 0
      %8477 = vmatpush1.bf16.msra.mxu0 0
      %8478 = vmatprep.subr.bf16.mxu0 0
      %8479 = vmatpush1.bf16.msra.mxu0 0
      %8480 = vmatprep.mubr.bf16.mxu0 0
      %8481 = vmatmul.mubr.bf16.gmra.mrb[0].mxu0 %v8422
      %v8482 = vpop.f32.mrb[0].mxu0
      %v8483 = vadd.f32 0.0, %v8482
      %v8484 = vpop.f32.mrb[0].mxu0
      %v8485 = vpop.f32.mrb[0].mxu0
      %v8486 = vadd.f32 0.0, %v8485
      %v8487 = vpop.f32.mrb[0].mxu0
      %8488 = vmatprep.mubr.bf16.mxu0 0
      %8489 = vmatmul.mubr.bf16.gmra.mrb[0].mxu0 %v8425
      %v8490 = vpop.f32.mrb[0].mxu0
      %v8491 = vadd.f32 0.0, %v8490
      %v8492 = vpop.f32.mrb[0].mxu0
      %v8493 = vpop.f32.mrb[0].mxu0
      %v8494 = vadd.f32 0.0, %v8493
      %v8495 = vpop.f32.mrb[0].mxu0
      %8496 = vmatprep.mubr.bf16.mxu0 0
      %8497 = vmatmul.mubr.bf16.gmra.mrb[0].mxu0 %v8428
      %v8498 = vpop.f32.mrb[0].mxu0
      %v8499 = vadd.f32 0.0, %v8498
      %v8500 = vpop.f32.mrb[0].mxu0
      %v8501 = vpop.f32.mrb[0].mxu0
      %v8502 = vadd.f32 0.0, %v8501
      %v8503 = vpop.f32.mrb[0].mxu0
      %8504 = vmatprep.mubr.bf16.mxu0 0
      %8505 = vmatmul.mubr.bf16.gmra.mrb[0].mxu0 %v8431
      %v8506 = vpop.f32.mrb[0].mxu0
      %v8507 = vadd.f32 0.0, %v8506
      %v8508 = vpop.f32.mrb[0].mxu0
      %v8509 = vpop.f32.mrb[0].mxu0
      %v8510 = vadd.f32 0.0, %v8509
      %v8511 = vpop.f32.mrb[0].mxu0
      %8512 = vmatprep.mubr.bf16.mxu0 0
      %8513 = vmatmul.mubr.bf16.gmra.mrb[0].mxu0 %v8434
      %v8514 = vpop.f32.mrb[0].mxu0
      %v8515 = vadd.f32 0.0, %v8514
      %v8516 = vpop.f32.mrb[0].mxu0
      %v8517 = vpop.f32.mrb[0].mxu0
      %v8518 = vadd.f32 0.0, %v8517
      %v8519 = vpop.f32.mrb[0].mxu0
      %8520 = vmatprep.mubr.bf16.mxu0 0
      %8521 = vmatmul.mubr.bf16.gmra.mrb[0].mxu0 %v8437
      %v8522 = vpop.f32.mrb[0].mxu0
      %v8523 = vadd.f32 0.0, %v8522
      %v8524 = vpop.f32.mrb[0].mxu0
      %v8525 = vpop.f32.mrb[0].mxu0
      %v8526 = vadd.f32 0.0, %v8525
      %v8527 = vpop.f32.mrb[0].mxu0
      %8528 = vmatprep.mubr.bf16.mxu0 0
      %8529 = vmatmul.mubr.bf16.gmra.mrb[0].mxu0 %v8440
      %v8530 = vpop.f32.mrb[0].mxu0
      %v8531 = vadd.f32 0.0, %v8530
      %v8532 = vpop.f32.mrb[0].mxu0
      %v8533 = vpop.f32.mrb[0].mxu0
      %v8534 = vadd.f32 0.0, %v8533
      %v8535 = vpop.f32.mrb[0].mxu0
      %8536 = vmatprep.mubr.bf16.mxu0 0
      %8537 = vmatmul.mubr.bf16.gmra.mrb[0].mxu0 %v8443
      %v8538 = vpop.f32.mrb[0].mxu0
      %v8539 = vadd.f32 0.0, %v8538
      %v8540 = vpop.f32.mrb[0].mxu0
      %v8541 = vpop.f32.mrb[0].mxu0
      %v8542 = vadd.f32 0.0, %v8541
      %v8543 = vpop.f32.mrb[0].mxu0
      %8544 = vdwg.mxu0
      %v8545 = vadd.f32 %v8343, %v8483
      %v8546 = vadd.f32 %v8344, %v8486
      %v8547 = vadd.f32 %v8345, %v8491
      %v8548 = vadd.f32 %v8346, %v8494
      %v8549 = vadd.f32 %v8347, %v8499
      %v8550 = vadd.f32 %v8348, %v8502
      %v8551 = vadd.f32 %v8349, %v8507
      %v8552 = vadd.f32 %v8350, %v8510
      %v8553 = vadd.f32 %v8351, %v8515
      %v8554 = vadd.f32 %v8352, %v8518
      %v8555 = vadd.f32 %v8353, %v8523
      %v8556 = vadd.f32 %v8354, %v8526
      %v8557 = vadd.f32 %v8355, %v8531
      %v8558 = vadd.f32 %v8356, %v8534
      %v8559 = vadd.f32 %v8357, %v8539
      %v8560 = vadd.f32 %v8358, %v8542
      %v8561 = vld [vmem:[%s8362] sm:$0xe]
      %v8562 = vld [vmem:[%s8362 + $0x4] sm:$0xf]
      %v8563 = vld [vmem:[%s8362 + $0x8] sm:$0x3]
      %v8564 = vld [vmem:[%s8362 + $0xc] sm:$0xe]
      %v8565 = vld [vmem:[%s8362 + $0x10] sm:$0xf]
      %v8566 = vld [vmem:[%s8362 + $0x14] sm:$0x3]
      %v8567 = vld [vmem:[%s8362 + $0x18] sm:$0xe]
      %v8568 = vld [vmem:[%s8362 + $0x1c] sm:$0xf]
      %v8569 = vld [vmem:[%s8362 + $0x20] sm:$0x3]
      %v8570 = vld [vmem:[%s8362 + $0x24] sm:$0xe]
      %v8571 = vld [vmem:[%s8362 + $0x28] sm:$0xf]
      %v8572 = vld [vmem:[%s8362 + $0x2c] sm:$0x3]
      %v8573 = vld [vmem:[%s8362 + $0x30] sm:$0xe]
      %v8574 = vld [vmem:[%s8362 + $0x34] sm:$0xf]
      %v8575 = vld [vmem:[%s8362 + $0x38] sm:$0x3]
      %v8576 = vld [vmem:[%s8362 + $0x3c] sm:$0xe]
      %v8577 = vld [vmem:[%s8362 + $0x40] sm:$0xf]
      %v8578 = vld [vmem:[%s8362 + $0x44] sm:$0x3]
      %v8579 = vld [vmem:[%s8362 + $0x48] sm:$0xe]
      %v8580 = vld [vmem:[%s8362 + $0x4c] sm:$0xf]
      %v8581 = vld [vmem:[%s8362 + $0x50] sm:$0x3]
      %v8582 = vld [vmem:[%s8362 + $0x54] sm:$0xe]
      %v8583 = vld [vmem:[%s8362 + $0x58] sm:$0xf]
      %v8584 = vld [vmem:[%s8362 + $0x5c] sm:$0x3]
      %v8586 = vshrl.u32 %v8561, 16
      %v8588 = vrot.slane %v8586, 5
      %v8589 = vshll.u32 %v8561, 16
      %v8591 = vrot.slane %v8589, 6
      %v8592 = vor.u32 %v8588, %v8591
      %v8593 = vrot.slane %v8592, 4
      %v8595 = vshrl.u32 %v8562, 16
      %v8597 = vrot.slane %v8595, 5
      %v8598 = vshll.u32 %v8562, 16
      %v8600 = vrot.slane %v8598, 6
      %v8601 = vor.u32 %v8597, %v8600
      %v8602 = vsel %vm399, %v8593, %v8601
      %v8603 = vrot.slane %v8601, 4
      %v8605 = vshrl.u32 %v8563, 16
      %v8607 = vrot.slane %v8605, 5
      %v8608 = vshll.u32 %v8563, 16
      %v8610 = vrot.slane %v8608, 6
      %v8611 = vor.u32 %v8607, %v8610
      %v8612 = vsel %vm399, %v8603, %v8611
      %v8614 = vshrl.u32 %v8564, 16
      %v8616 = vrot.slane %v8614, 5
      %v8617 = vshll.u32 %v8564, 16
      %v8619 = vrot.slane %v8617, 6
      %v8620 = vor.u32 %v8616, %v8619
      %v8621 = vrot.slane %v8620, 4
      %v8623 = vshrl.u32 %v8565, 16
      %v8625 = vrot.slane %v8623, 5
      %v8626 = vshll.u32 %v8565, 16
      %v8628 = vrot.slane %v8626, 6
      %v8629 = vor.u32 %v8625, %v8628
      %v8630 = vsel %vm399, %v8621, %v8629
      %v8631 = vrot.slane %v8629, 4
      %v8633 = vshrl.u32 %v8566, 16
      %v8635 = vrot.slane %v8633, 5
      %v8636 = vshll.u32 %v8566, 16
      %v8638 = vrot.slane %v8636, 6
      %v8639 = vor.u32 %v8635, %v8638
      %v8640 = vsel %vm399, %v8631, %v8639
      %v8642 = vshrl.u32 %v8567, 16
      %v8644 = vrot.slane %v8642, 5
      %v8645 = vshll.u32 %v8567, 16
      %v8647 = vrot.slane %v8645, 6
      %v8648 = vor.u32 %v8644, %v8647
      %v8649 = vrot.slane %v8648, 4
      %v8651 = vshrl.u32 %v8568, 16
      %v8653 = vrot.slane %v8651, 5
      %v8654 = vshll.u32 %v8568, 16
      %v8656 = vrot.slane %v8654, 6
      %v8657 = vor.u32 %v8653, %v8656
      %v8658 = vsel %vm399, %v8649, %v8657
      %v8659 = vrot.slane %v8657, 4
      %v8661 = vshrl.u32 %v8569, 16
      %v8663 = vrot.slane %v8661, 5
      %v8664 = vshll.u32 %v8569, 16
      %v8666 = vrot.slane %v8664, 6
      %v8667 = vor.u32 %v8663, %v8666
      %v8668 = vsel %vm399, %v8659, %v8667
      %v8670 = vshrl.u32 %v8570, 16
      %v8672 = vrot.slane %v8670, 5
      %v8673 = vshll.u32 %v8570, 16
      %v8675 = vrot.slane %v8673, 6
      %v8676 = vor.u32 %v8672, %v8675
      %v8677 = vrot.slane %v8676, 4
      %v8679 = vshrl.u32 %v8571, 16
      %v8681 = vrot.slane %v8679, 5
      %v8682 = vshll.u32 %v8571, 16
      %v8684 = vrot.slane %v8682, 6
      %v8685 = vor.u32 %v8681, %v8684
      %v8686 = vsel %vm399, %v8677, %v8685
      %v8687 = vrot.slane %v8685, 4
      %v8689 = vshrl.u32 %v8572, 16
      %v8691 = vrot.slane %v8689, 5
      %v8692 = vshll.u32 %v8572, 16
      %v8694 = vrot.slane %v8692, 6
      %v8695 = vor.u32 %v8691, %v8694
      %v8696 = vsel %vm399, %v8687, %v8695
      %v8698 = vshrl.u32 %v8573, 16
      %v8700 = vrot.slane %v8698, 5
      %v8701 = vshll.u32 %v8573, 16
      %v8703 = vrot.slane %v8701, 6
      %v8704 = vor.u32 %v8700, %v8703
      %v8705 = vrot.slane %v8704, 4
      %v8707 = vshrl.u32 %v8574, 16
      %v8709 = vrot.slane %v8707, 5
      %v8710 = vshll.u32 %v8574, 16
      %v8712 = vrot.slane %v8710, 6
      %v8713 = vor.u32 %v8709, %v8712
      %v8714 = vsel %vm399, %v8705, %v8713
      %v8715 = vrot.slane %v8713, 4
      %v8717 = vshrl.u32 %v8575, 16
      %v8719 = vrot.slane %v8717, 5
      %v8720 = vshll.u32 %v8575, 16
      %v8722 = vrot.slane %v8720, 6
      %v8723 = vor.u32 %v8719, %v8722
      %v8724 = vsel %vm399, %v8715, %v8723
      %v8726 = vshrl.u32 %v8576, 16
      %v8728 = vrot.slane %v8726, 5
      %v8729 = vshll.u32 %v8576, 16
      %v8731 = vrot.slane %v8729, 6
      %v8732 = vor.u32 %v8728, %v8731
      %v8733 = vrot.slane %v8732, 4
      %v8735 = vshrl.u32 %v8577, 16
      %v8737 = vrot.slane %v8735, 5
      %v8738 = vshll.u32 %v8577, 16
      %v8740 = vrot.slane %v8738, 6
      %v8741 = vor.u32 %v8737, %v8740
      %v8742 = vsel %vm399, %v8733, %v8741
      %v8743 = vrot.slane %v8741, 4
      %v8745 = vshrl.u32 %v8578, 16
      %v8747 = vrot.slane %v8745, 5
      %v8748 = vshll.u32 %v8578, 16
      %v8750 = vrot.slane %v8748, 6
      %v8751 = vor.u32 %v8747, %v8750
      %v8752 = vsel %vm399, %v8743, %v8751
      %v8754 = vshrl.u32 %v8579, 16
      %v8756 = vrot.slane %v8754, 5
      %v8757 = vshll.u32 %v8579, 16
      %v8759 = vrot.slane %v8757, 6
      %v8760 = vor.u32 %v8756, %v8759
      %v8761 = vrot.slane %v8760, 4
      %v8763 = vshrl.u32 %v8580, 16
      %v8765 = vrot.slane %v8763, 5
      %v8766 = vshll.u32 %v8580, 16
      %v8768 = vrot.slane %v8766, 6
      %v8769 = vor.u32 %v8765, %v8768
      %v8770 = vsel %vm399, %v8761, %v8769
      %v8771 = vrot.slane %v8769, 4
      %v8773 = vshrl.u32 %v8581, 16
      %v8775 = vrot.slane %v8773, 5
      %v8776 = vshll.u32 %v8581, 16
      %v8778 = vrot.slane %v8776, 6
      %v8779 = vor.u32 %v8775, %v8778
      %v8780 = vsel %vm399, %v8771, %v8779
      %v8782 = vshrl.u32 %v8582, 16
      %v8784 = vrot.slane %v8782, 5
      %v8785 = vshll.u32 %v8582, 16
      %v8787 = vrot.slane %v8785, 6
      %v8788 = vor.u32 %v8784, %v8787
      %v8789 = vrot.slane %v8788, 4
      %v8791 = vshrl.u32 %v8583, 16
      %v8793 = vrot.slane %v8791, 5
      %v8794 = vshll.u32 %v8583, 16
      %v8796 = vrot.slane %v8794, 6
      %v8797 = vor.u32 %v8793, %v8796
      %v8798 = vsel %vm399, %v8789, %v8797
      %v8799 = vrot.slane %v8797, 4
      %v8801 = vshrl.u32 %v8584, 16
      %v8803 = vrot.slane %v8801, 5
      %v8804 = vshll.u32 %v8584, 16
      %v8806 = vrot.slane %v8804, 6
      %v8807 = vor.u32 %v8803, %v8806
      %v8808 = vsel %vm399, %v8799, %v8807
      %s8809 = scalar_lea.vmem %s3, 14
      %v8810 = vld [vmem:[%s8809] sm:$0x3]
      %v8811 = vunpack.c.l.b16 %v8602
      %v8812 = vunpack.c.l.b16 %v8612
      %v8813 = vunpack.c.l.b16 %v8630
      %v8814 = vunpack.c.l.b16 %v8640
      %v8815 = vunpack.c.l.b16 %v8658
      %v8816 = vunpack.c.l.b16 %v8668
      %v8817 = vunpack.c.l.b16 %v8686
      %v8818 = vunpack.c.l.b16 %v8696
      %v8819 = vunpack.c.l.b16 %v8714
      %v8820 = vunpack.c.l.b16 %v8724
      %v8821 = vunpack.c.l.b16 %v8742
      %v8822 = vunpack.c.l.b16 %v8752
      %v8823 = vunpack.c.l.b16 %v8770
      %v8824 = vunpack.c.l.b16 %v8780
      %v8825 = vunpack.c.l.b16 %v8798
      %v8826 = vunpack.c.l.b16 %v8808
      %v8827 = vpack.c.b16 %v8812, %v8811
      %v8828 = vpack.c.b16 %v8814, %v8813
      %v8829 = vpack.c.b16 %v8816, %v8815
      %v8830 = vpack.c.b16 %v8818, %v8817
      %v8831 = vpack.c.b16 %v8820, %v8819
      %v8832 = vpack.c.b16 %v8822, %v8821
      %v8833 = vpack.c.b16 %v8824, %v8823
      %v8834 = vpack.c.b16 %v8826, %v8825
      %v8836 = vsel %vm650, %v8827, 0
      %v8839 = vsel %vm650, %v8828, 0
      %v8842 = vsel %vm650, %v8829, 0
      %v8845 = vsel %vm650, %v8830, 0
      %v8848 = vsel %vm650, %v8831, 0
      %v8851 = vsel %vm650, %v8832, 0
      %v8854 = vsel %vm650, %v8833, 0
      %v8857 = vsel %vm650, %v8834, 0
      %v8860 = vsel %vm675, %v8810, 0
      %8862 = vmatprep.subr.bf16.mxu0 0
      %8863 = vmatpush1.bf16.msra.mxu0 %v8860
      %8864 = vmatprep.subr.bf16.mxu0 0
      %8865 = vmatpush1.bf16.msra.mxu0 0
      %8866 = vmatprep.subr.bf16.mxu0 0
      %8867 = vmatpush1.bf16.msra.mxu0 0
      %8868 = vmatprep.subr.bf16.mxu0 0
      %8869 = vmatpush1.bf16.msra.mxu0 0
      %8870 = vmatprep.subr.bf16.mxu0 0
      %8871 = vmatpush1.bf16.msra.mxu0 0
      %8872 = vmatprep.subr.bf16.mxu0 0
      %8873 = vmatpush1.bf16.msra.mxu0 0
      %8874 = vmatprep.subr.bf16.mxu0 0
      %8875 = vmatpush1.bf16.msra.mxu0 0
      %8876 = vmatprep.subr.bf16.mxu0 0
      %8877 = vmatpush1.bf16.msra.mxu0 0
      %8878 = vmatprep.subr.bf16.mxu0 0
      %8879 = vmatpush1.bf16.msra.mxu0 0
      %8880 = vmatprep.subr.bf16.mxu0 0
      %8881 = vmatpush1.bf16.msra.mxu0 0
      %8882 = vmatprep.subr.bf16.mxu0 0
      %8883 = vmatpush1.bf16.msra.mxu0 0
      %8884 = vmatprep.subr.bf16.mxu0 0
      %8885 = vmatpush1.bf16.msra.mxu0 0
      %8886 = vmatprep.subr.bf16.mxu0 0
      %8887 = vmatpush1.bf16.msra.mxu0 0
      %8888 = vmatprep.subr.bf16.mxu0 0
      %8889 = vmatpush1.bf16.msra.mxu0 0
      %8890 = vmatprep.subr.bf16.mxu0 0
      %8891 = vmatpush1.bf16.msra.mxu0 0
      %8892 = vmatprep.subr.bf16.mxu0 0
      %8893 = vmatpush1.bf16.msra.mxu0 0
      %8894 = vmatprep.mubr.bf16.mxu0 0
      %8895 = vmatmul.mubr.bf16.gmra.mrb[0].mxu0 %v8836
      %v8896 = vpop.f32.mrb[0].mxu0
      %v8897 = vadd.f32 0.0, %v8896
      %v8898 = vpop.f32.mrb[0].mxu0
      %v8899 = vpop.f32.mrb[0].mxu0
      %v8900 = vadd.f32 0.0, %v8899
      %v8901 = vpop.f32.mrb[0].mxu0
      %8902 = vmatprep.mubr.bf16.mxu0 0
      %8903 = vmatmul.mubr.bf16.gmra.mrb[0].mxu0 %v8839
      %v8904 = vpop.f32.mrb[0].mxu0
      %v8905 = vadd.f32 0.0, %v8904
      %v8906 = vpop.f32.mrb[0].mxu0
      %v8907 = vpop.f32.mrb[0].mxu0
      %v8908 = vadd.f32 0.0, %v8907
      %v8909 = vpop.f32.mrb[0].mxu0
      %8910 = vmatprep.mubr.bf16.mxu0 0
      %8911 = vmatmul.mubr.bf16.gmra.mrb[0].mxu0 %v8842
      %v8912 = vpop.f32.mrb[0].mxu0
      %v8913 = vadd.f32 0.0, %v8912
      %v8914 = vpop.f32.mrb[0].mxu0
      %v8915 = vpop.f32.mrb[0].mxu0
      %v8916 = vadd.f32 0.0, %v8915
      %v8917 = vpop.f32.mrb[0].mxu0
      %8918 = vmatprep.mubr.bf16.mxu0 0
      %8919 = vmatmul.mubr.bf16.gmra.mrb[0].mxu0 %v8845
      %v8920 = vpop.f32.mrb[0].mxu0
      %v8921 = vadd.f32 0.0, %v8920
      %v8922 = vpop.f32.mrb[0].mxu0
      %v8923 = vpop.f32.mrb[0].mxu0
      %v8924 = vadd.f32 0.0, %v8923
      %v8925 = vpop.f32.mrb[0].mxu0
      %8926 = vmatprep.mubr.bf16.mxu0 0
      %8927 = vmatmul.mubr.bf16.gmra.mrb[0].mxu0 %v8848
      %v8928 = vpop.f32.mrb[0].mxu0
      %v8929 = vadd.f32 0.0, %v8928
      %v8930 = vpop.f32.mrb[0].mxu0
      %v8931 = vpop.f32.mrb[0].mxu0
      %v8932 = vadd.f32 0.0, %v8931
      %v8933 = vpop.f32.mrb[0].mxu0
      %8934 = vmatprep.mubr.bf16.mxu0 0
      %8935 = vmatmul.mubr.bf16.gmra.mrb[0].mxu0 %v8851
      %v8936 = vpop.f32.mrb[0].mxu0
      %v8937 = vadd.f32 0.0, %v8936
      %v8938 = vpop.f32.mrb[0].mxu0
      %v8939 = vpop.f32.mrb[0].mxu0
      %v8940 = vadd.f32 0.0, %v8939
      %v8941 = vpop.f32.mrb[0].mxu0
      %8942 = vmatprep.mubr.bf16.mxu0 0
      %8943 = vmatmul.mubr.bf16.gmra.mrb[0].mxu0 %v8854
      %v8944 = vpop.f32.mrb[0].mxu0
      %v8945 = vadd.f32 0.0, %v8944
      %v8946 = vpop.f32.mrb[0].mxu0
      %v8947 = vpop.f32.mrb[0].mxu0
      %v8948 = vadd.f32 0.0, %v8947
      %v8949 = vpop.f32.mrb[0].mxu0
      %8950 = vmatprep.mubr.bf16.mxu0 0
      %8951 = vmatmul.mubr.bf16.gmra.mrb[0].mxu0 %v8857
      %v8952 = vpop.f32.mrb[0].mxu0
      %v8953 = vadd.f32 0.0, %v8952
      %v8954 = vpop.f32.mrb[0].mxu0
      %v8955 = vpop.f32.mrb[0].mxu0
      %v8956 = vadd.f32 0.0, %v8955
      %v8957 = vpop.f32.mrb[0].mxu0
      %8958 = vdwg.mxu0
      %v8959 = vadd.f32 %v8545, %v8897
      %v8960 = vadd.f32 %v8546, %v8900
      %v8961 = vadd.f32 %v8547, %v8905
      %v8962 = vadd.f32 %v8548, %v8908
      %v8963 = vadd.f32 %v8549, %v8913
      %v8964 = vadd.f32 %v8550, %v8916
      %v8965 = vadd.f32 %v8551, %v8921
      %v8966 = vadd.f32 %v8552, %v8924
      %v8967 = vadd.f32 %v8553, %v8929
      %v8968 = vadd.f32 %v8554, %v8932
      %v8969 = vadd.f32 %v8555, %v8937
      %v8970 = vadd.f32 %v8556, %v8940
      %v8971 = vadd.f32 %v8557, %v8945
      %v8972 = vadd.f32 %v8558, %v8948
      %v8973 = vadd.f32 %v8559, %v8953
      %v8974 = vadd.f32 %v8560, %v8956
      %v8975 = vld [vmem:[%s8362] sm:$0x8]
      %v8976 = vld [vmem:[%s8362 + $0x8] sm:$0x7]
      %v8977 = vld [vmem:[%s8362 + $0xc] sm:$0x8]
      %v8978 = vld [vmem:[%s8362 + $0x14] sm:$0x7]
      %v8979 = vld [vmem:[%s8362 + $0x18] sm:$0x8]
      %v8980 = vld [vmem:[%s8362 + $0x20] sm:$0x7]
      %v8981 = vld [vmem:[%s8362 + $0x24] sm:$0x8]
      %v8982 = vld [vmem:[%s8362 + $0x2c] sm:$0x7]
      %v8983 = vld [vmem:[%s8362 + $0x30] sm:$0x8]
      %v8984 = vld [vmem:[%s8362 + $0x38] sm:$0x7]
      %v8985 = vld [vmem:[%s8362 + $0x3c] sm:$0x8]
      %v8986 = vld [vmem:[%s8362 + $0x44] sm:$0x7]
      %v8987 = vld [vmem:[%s8362 + $0x48] sm:$0x8]
      %v8988 = vld [vmem:[%s8362 + $0x50] sm:$0x7]
      %v8989 = vld [vmem:[%s8362 + $0x54] sm:$0x8]
      %v8990 = vld [vmem:[%s8362 + $0x5c] sm:$0x7]
      %v9015 = vrot.slane %v8975, 7
      %v9016 = vrot.slane %v9015, 4
      %v9017 = vrot.slane %v8562, 7
      %v9018 = vsel %vm7262, %v9016, %v9017
      %v9019 = vrot.slane %v9017, 4
      %v9020 = vrot.slane %v8976, 7
      %v9021 = vsel %vm7262, %v9019, %v9020
      %v9022 = vrot.slane %v8977, 7
      %v9023 = vrot.slane %v9022, 4
      %v9024 = vrot.slane %v8565, 7
      %v9025 = vsel %vm7262, %v9023, %v9024
      %v9026 = vrot.slane %v9024, 4
      %v9027 = vrot.slane %v8978, 7
      %v9028 = vsel %vm7262, %v9026, %v9027
      %v9029 = vrot.slane %v8979, 7
      %v9030 = vrot.slane %v9029, 4
      %v9031 = vrot.slane %v8568, 7
      %v9032 = vsel %vm7262, %v9030, %v9031
      %v9033 = vrot.slane %v9031, 4
      %v9034 = vrot.slane %v8980, 7
      %v9035 = vsel %vm7262, %v9033, %v9034
      %v9036 = vrot.slane %v8981, 7
      %v9037 = vrot.slane %v9036, 4
      %v9038 = vrot.slane %v8571, 7
      %v9039 = vsel %vm7262, %v9037, %v9038
      %v9040 = vrot.slane %v9038, 4
      %v9041 = vrot.slane %v8982, 7
      %v9042 = vsel %vm7262, %v9040, %v9041
      %v9043 = vrot.slane %v8983, 7
      %v9044 = vrot.slane %v9043, 4
      %v9045 = vrot.slane %v8574, 7
      %v9046 = vsel %vm7262, %v9044, %v9045
      %v9047 = vrot.slane %v9045, 4
      %v9048 = vrot.slane %v8984, 7
      %v9049 = vsel %vm7262, %v9047, %v9048
      %v9050 = vrot.slane %v8985, 7
      %v9051 = vrot.slane %v9050, 4
      %v9052 = vrot.slane %v8577, 7
      %v9053 = vsel %vm7262, %v9051, %v9052
      %v9054 = vrot.slane %v9052, 4
      %v9055 = vrot.slane %v8986, 7
      %v9056 = vsel %vm7262, %v9054, %v9055
      %v9057 = vrot.slane %v8987, 7
      %v9058 = vrot.slane %v9057, 4
      %v9059 = vrot.slane %v8580, 7
      %v9060 = vsel %vm7262, %v9058, %v9059
      %v9061 = vrot.slane %v9059, 4
      %v9062 = vrot.slane %v8988, 7
      %v9063 = vsel %vm7262, %v9061, %v9062
      %v9064 = vrot.slane %v8989, 7
      %v9065 = vrot.slane %v9064, 4
      %v9066 = vrot.slane %v8583, 7
      %v9067 = vsel %vm7262, %v9065, %v9066
      %v9068 = vrot.slane %v9066, 4
      %v9069 = vrot.slane %v8990, 7
      %v9070 = vsel %vm7262, %v9068, %v9069
      %s9071 = scalar_lea.vmem %s3, 16
      %v9072 = vld [vmem:[%s9071] sm:$0x3]
      %v9073 = vunpack.c.l.b16 %v9018
      %v9074 = vunpack.c.l.b16 %v9021
      %v9075 = vunpack.c.l.b16 %v9025
      %v9076 = vunpack.c.l.b16 %v9028
      %v9077 = vunpack.c.l.b16 %v9032
      %v9078 = vunpack.c.l.b16 %v9035
      %v9079 = vunpack.c.l.b16 %v9039
      %v9080 = vunpack.c.l.b16 %v9042
      %v9081 = vunpack.c.l.b16 %v9046
      %v9082 = vunpack.c.l.b16 %v9049
      %v9083 = vunpack.c.l.b16 %v9053
      %v9084 = vunpack.c.l.b16 %v9056
      %v9085 = vunpack.c.l.b16 %v9060
      %v9086 = vunpack.c.l.b16 %v9063
      %v9087 = vunpack.c.l.b16 %v9067
      %v9088 = vunpack.c.l.b16 %v9070
      %v9089 = vpack.c.b16 %v9074, %v9073
      %v9090 = vpack.c.b16 %v9076, %v9075
      %v9091 = vpack.c.b16 %v9078, %v9077
      %v9092 = vpack.c.b16 %v9080, %v9079
      %v9093 = vpack.c.b16 %v9082, %v9081
      %v9094 = vpack.c.b16 %v9084, %v9083
      %v9095 = vpack.c.b16 %v9086, %v9085
      %v9096 = vpack.c.b16 %v9088, %v9087
      %v9098 = vsel %vm650, %v9089, 0
      %v9101 = vsel %vm650, %v9090, 0
      %v9104 = vsel %vm650, %v9091, 0
      %v9107 = vsel %vm650, %v9092, 0
      %v9110 = vsel %vm650, %v9093, 0
      %v9113 = vsel %vm650, %v9094, 0
      %v9116 = vsel %vm650, %v9095, 0
      %v9119 = vsel %vm650, %v9096, 0
      %v9122 = vsel %vm675, %v9072, 0
      %9124 = vmatprep.subr.bf16.mxu0 0
      %9125 = vmatpush1.bf16.msra.mxu0 %v9122
      %9126 = vmatprep.subr.bf16.mxu0 0
      %9127 = vmatpush1.bf16.msra.mxu0 0
      %9128 = vmatprep.subr.bf16.mxu0 0
      %9129 = vmatpush1.bf16.msra.mxu0 0
      %9130 = vmatprep.subr.bf16.mxu0 0
      %9131 = vmatpush1.bf16.msra.mxu0 0
      %9132 = vmatprep.subr.bf16.mxu0 0
      %9133 = vmatpush1.bf16.msra.mxu0 0
      %9134 = vmatprep.subr.bf16.mxu0 0
      %9135 = vmatpush1.bf16.msra.mxu0 0
      %9136 = vmatprep.subr.bf16.mxu0 0
      %9137 = vmatpush1.bf16.msra.mxu0 0
      %9138 = vmatprep.subr.bf16.mxu0 0
      %9139 = vmatpush1.bf16.msra.mxu0 0
      %9140 = vmatprep.subr.bf16.mxu0 0
      %9141 = vmatpush1.bf16.msra.mxu0 0
      %9142 = vmatprep.subr.bf16.mxu0 0
      %9143 = vmatpush1.bf16.msra.mxu0 0
      %9144 = vmatprep.subr.bf16.mxu0 0
      %9145 = vmatpush1.bf16.msra.mxu0 0
      %9146 = vmatprep.subr.bf16.mxu0 0
      %9147 = vmatpush1.bf16.msra.mxu0 0
      %9148 = vmatprep.subr.bf16.mxu0 0
      %9149 = vmatpush1.bf16.msra.mxu0 0
      %9150 = vmatprep.subr.bf16.mxu0 0
      %9151 = vmatpush1.bf16.msra.mxu0 0
      %9152 = vmatprep.subr.bf16.mxu0 0
      %9153 = vmatpush1.bf16.msra.mxu0 0
      %9154 = vmatprep.subr.bf16.mxu0 0
      %9155 = vmatpush1.bf16.msra.mxu0 0
      %9156 = vmatprep.mubr.bf16.mxu0 0
      %9157 = vmatmul.mubr.bf16.gmra.mrb[0].mxu0 %v9098
      %v9158 = vpop.f32.mrb[0].mxu0
      %v9159 = vadd.f32 0.0, %v9158
      %v9160 = vpop.f32.mrb[0].mxu0
      %v9161 = vpop.f32.mrb[0].mxu0
      %v9162 = vadd.f32 0.0, %v9161
      %v9163 = vpop.f32.mrb[0].mxu0
      %9164 = vmatprep.mubr.bf16.mxu0 0
      %9165 = vmatmul.mubr.bf16.gmra.mrb[0].mxu0 %v9101
      %v9166 = vpop.f32.mrb[0].mxu0
      %v9167 = vadd.f32 0.0, %v9166
      %v9168 = vpop.f32.mrb[0].mxu0
      %v9169 = vpop.f32.mrb[0].mxu0
      %v9170 = vadd.f32 0.0, %v9169
      %v9171 = vpop.f32.mrb[0].mxu0
      %9172 = vmatprep.mubr.bf16.mxu0 0
      %9173 = vmatmul.mubr.bf16.gmra.mrb[0].mxu0 %v9104
      %v9174 = vpop.f32.mrb[0].mxu0
      %v9175 = vadd.f32 0.0, %v9174
      %v9176 = vpop.f32.mrb[0].mxu0
      %v9177 = vpop.f32.mrb[0].mxu0
      %v9178 = vadd.f32 0.0, %v9177
      %v9179 = vpop.f32.mrb[0].mxu0
      %9180 = vmatprep.mubr.bf16.mxu0 0
      %9181 = vmatmul.mubr.bf16.gmra.mrb[0].mxu0 %v9107
      %v9182 = vpop.f32.mrb[0].mxu0
      %v9183 = vadd.f32 0.0, %v9182
      %v9184 = vpop.f32.mrb[0].mxu0
      %v9185 = vpop.f32.mrb[0].mxu0
      %v9186 = vadd.f32 0.0, %v9185
      %v9187 = vpop.f32.mrb[0].mxu0
      %9188 = vmatprep.mubr.bf16.mxu0 0
      %9189 = vmatmul.mubr.bf16.gmra.mrb[0].mxu0 %v9110
      %v9190 = vpop.f32.mrb[0].mxu0
      %v9191 = vadd.f32 0.0, %v9190
      %v9192 = vpop.f32.mrb[0].mxu0
      %v9193 = vpop.f32.mrb[0].mxu0
      %v9194 = vadd.f32 0.0, %v9193
      %v9195 = vpop.f32.mrb[0].mxu0
      %9196 = vmatprep.mubr.bf16.mxu0 0
      %9197 = vmatmul.mubr.bf16.gmra.mrb[0].mxu0 %v9113
      %v9198 = vpop.f32.mrb[0].mxu0
      %v9199 = vadd.f32 0.0, %v9198
      %v9200 = vpop.f32.mrb[0].mxu0
      %v9201 = vpop.f32.mrb[0].mxu0
      %v9202 = vadd.f32 0.0, %v9201
      %v9203 = vpop.f32.mrb[0].mxu0
      %9204 = vmatprep.mubr.bf16.mxu0 0
      %9205 = vmatmul.mubr.bf16.gmra.mrb[0].mxu0 %v9116
      %v9206 = vpop.f32.mrb[0].mxu0
      %v9207 = vadd.f32 0.0, %v9206
      %v9208 = vpop.f32.mrb[0].mxu0
      %v9209 = vpop.f32.mrb[0].mxu0
      %v9210 = vadd.f32 0.0, %v9209
      %v9211 = vpop.f32.mrb[0].mxu0
      %9212 = vmatprep.mubr.bf16.mxu0 0
      %9213 = vmatmul.mubr.bf16.gmra.mrb[0].mxu0 %v9119
      %v9214 = vpop.f32.mrb[0].mxu0
      %v9215 = vadd.f32 0.0, %v9214
      %v9216 = vpop.f32.mrb[0].mxu0
      %v9217 = vpop.f32.mrb[0].mxu0
      %v9218 = vadd.f32 0.0, %v9217
      %v9219 = vpop.f32.mrb[0].mxu0
      %9220 = vdwg.mxu0
      %v9221 = vadd.f32 %v8959, %v9159
      %v9222 = vadd.f32 %v8960, %v9162
      %v9223 = vadd.f32 %v8961, %v9167
      %v9224 = vadd.f32 %v8962, %v9170
      %v9225 = vadd.f32 %v8963, %v9175
      %v9226 = vadd.f32 %v8964, %v9178
      %v9227 = vadd.f32 %v8965, %v9183
      %v9228 = vadd.f32 %v8966, %v9186
      %v9229 = vadd.f32 %v8967, %v9191
      %v9230 = vadd.f32 %v8968, %v9194
      %v9231 = vadd.f32 %v8969, %v9199
      %v9232 = vadd.f32 %v8970, %v9202
      %v9233 = vadd.f32 %v8971, %v9207
      %v9234 = vadd.f32 %v8972, %v9210
      %v9235 = vadd.f32 %v8973, %v9215
      %v9236 = vadd.f32 %v8974, %v9218
      %v9237 = vld [vmem:[%s4] sm:$0x1]
      %v9239 = vlaneseq
      %v9240 = vshrl.u32 %v9239, 7
      %v9241 = vsub.s32 0, %v9240
      %v9242 = vrot.slane %v9237, %v9241
      %9243 = vrot.lane.b32.xlu0 %v9242, 122
      %v9244 = vpop.permute.xlu0 %9243
      %v9246 = vmul.f32 %v9221, %v9244
      %v9247 = vmul.f32 %v9222, %v9244
      %v9248 = vmul.f32 %v9223, %v9244
      %v9249 = vmul.f32 %v9224, %v9244
      %v9250 = vmul.f32 %v9225, %v9244
      %v9251 = vmul.f32 %v9226, %v9244
      %v9252 = vmul.f32 %v9227, %v9244
      %v9253 = vmul.f32 %v9228, %v9244
      %v9254 = vmul.f32 %v9229, %v9244
      %v9255 = vmul.f32 %v9230, %v9244
      %v9256 = vmul.f32 %v9231, %v9244
      %v9257 = vmul.f32 %v9232, %v9244
      %v9258 = vmul.f32 %v9233, %v9244
      %v9259 = vmul.f32 %v9234, %v9244
      %v9260 = vmul.f32 %v9235, %v9244
      %v9261 = vmul.f32 %v9236, %v9244
      %v9262 = vld [vmem:[%s5] sm:$0x1]
      %v9264 = vlaneseq
      %v9265 = vshrl.u32 %v9264, 7
      %v9266 = vsub.s32 0, %v9265
      %v9267 = vrot.slane %v9262, %v9266
      %9268 = vrot.lane.b32.xlu0 %v9267, 122
      %v9269 = vpop.permute.xlu0 %9268
      %v9271 = vadd.f32 %v9246, %v9269
      %v9272 = vadd.f32 %v9247, %v9269
      %v9273 = vadd.f32 %v9248, %v9269
      %v9274 = vadd.f32 %v9249, %v9269
      %v9275 = vadd.f32 %v9250, %v9269
      %v9276 = vadd.f32 %v9251, %v9269
      %v9277 = vadd.f32 %v9252, %v9269
      %v9278 = vadd.f32 %v9253, %v9269
      %v9279 = vadd.f32 %v9254, %v9269
      %v9280 = vadd.f32 %v9255, %v9269
      %v9281 = vadd.f32 %v9256, %v9269
      %v9282 = vadd.f32 %v9257, %v9269
      %v9283 = vadd.f32 %v9258, %v9269
      %v9284 = vadd.f32 %v9259, %v9269
      %v9285 = vadd.f32 %v9260, %v9269
      %v9286 = vadd.f32 %v9261, %v9269
      %v9287 = vmax.f32 %v9271, 0.0
      %v9288 = vmax.f32 %v9272, 0.0
      %v9289 = vmax.f32 %v9273, 0.0
      %v9290 = vmax.f32 %v9274, 0.0
      %v9291 = vmax.f32 %v9275, 0.0
      %v9292 = vmax.f32 %v9276, 0.0
      %v9293 = vmax.f32 %v9277, 0.0
      %v9294 = vmax.f32 %v9278, 0.0
      %v9295 = vmax.f32 %v9279, 0.0
      %v9296 = vmax.f32 %v9280, 0.0
      %v9297 = vmax.f32 %v9281, 0.0
      %v9298 = vmax.f32 %v9282, 0.0
      %v9299 = vmax.f32 %v9283, 0.0
      %v9300 = vmax.f32 %v9284, 0.0
      %v9301 = vmax.f32 %v9285, 0.0
      %v9302 = vmax.f32 %v9286, 0.0
      %v9303 = vpack.c.bf16 %v9288, %v9287
      %v9304 = vpack.c.bf16 %v9290, %v9289
      %v9305 = vpack.c.bf16 %v9292, %v9291
      %v9306 = vpack.c.bf16 %v9294, %v9293
      %v9307 = vpack.c.bf16 %v9296, %v9295
      %v9308 = vpack.c.bf16 %v9298, %v9297
      %v9309 = vpack.c.bf16 %v9300, %v9299
      %v9310 = vpack.c.bf16 %v9302, %v9301
      %v9319 = vunpack.c.l.b16 %v9303
      %v9320 = vunpack.c.h.b16 %v9303
      %v9321 = vunpack.c.l.b16 %v9304
      %v9322 = vunpack.c.h.b16 %v9304
      %v9323 = vunpack.c.l.b16 %v9305
      %v9324 = vunpack.c.h.b16 %v9305
      %v9325 = vunpack.c.l.b16 %v9306
      %v9326 = vunpack.c.h.b16 %v9306
      %v9327 = vunpack.c.l.b16 %v9307
      %v9328 = vunpack.c.h.b16 %v9307
      %v9329 = vunpack.c.l.b16 %v9308
      %v9330 = vunpack.c.h.b16 %v9308
      %v9331 = vunpack.c.l.b16 %v9309
      %v9332 = vunpack.c.h.b16 %v9309
      %v9333 = vunpack.c.l.b16 %v9310
      %v9334 = vunpack.c.h.b16 %v9310
      %v9335 = vpack.c.b16 %v9319, %v9319
      %v9336 = vpack.c.b16 %v9320, %v9320
      %v9337 = vpack.c.b16 %v9321, %v9321
      %v9338 = vpack.c.b16 %v9322, %v9322
      %v9339 = vpack.c.b16 %v9323, %v9323
      %v9340 = vpack.c.b16 %v9324, %v9324
      %v9341 = vpack.c.b16 %v9325, %v9325
      %v9342 = vpack.c.b16 %v9326, %v9326
      %v9343 = vpack.c.b16 %v9327, %v9327
      %v9344 = vpack.c.b16 %v9328, %v9328
      %v9345 = vpack.c.b16 %v9329, %v9329
      %v9346 = vpack.c.b16 %v9330, %v9330
      %v9347 = vpack.c.b16 %v9331, %v9331
      %v9348 = vpack.c.b16 %v9332, %v9332
      %v9349 = vpack.c.b16 %v9333, %v9333
      %v9350 = vpack.c.b16 %v9334, %v9334
      %9351 = vrot.lane.b32.xlu0 %v9335, 6
      %v9352 = vpop.permute.xlu0 %9351
      %9353 = vrot.lane.b32.xlu0 %v9336, 6
      %v9354 = vpop.permute.xlu0 %9353
      %9355 = vrot.lane.b32.xlu0 %v9337, 6
      %v9356 = vpop.permute.xlu0 %9355
      %9357 = vrot.lane.b32.xlu0 %v9338, 6
      %v9358 = vpop.permute.xlu0 %9357
      %9359 = vrot.lane.b32.xlu0 %v9339, 6
      %v9360 = vpop.permute.xlu0 %9359
      %9361 = vrot.lane.b32.xlu0 %v9340, 6
      %v9362 = vpop.permute.xlu0 %9361
      %9363 = vrot.lane.b32.xlu0 %v9341, 6
      %v9364 = vpop.permute.xlu0 %9363
      %9365 = vrot.lane.b32.xlu0 %v9342, 6
      %v9366 = vpop.permute.xlu0 %9365
      %9367 = vrot.lane.b32.xlu0 %v9343, 6
      %v9368 = vpop.permute.xlu0 %9367
      %9369 = vrot.lane.b32.xlu0 %v9344, 6
      %v9370 = vpop.permute.xlu0 %9369
      %9371 = vrot.lane.b32.xlu0 %v9345, 6
      %v9372 = vpop.permute.xlu0 %9371
      %9373 = vrot.lane.b32.xlu0 %v9346, 6
      %v9374 = vpop.permute.xlu0 %9373
      %9375 = vrot.lane.b32.xlu0 %v9347, 6
      %v9376 = vpop.permute.xlu0 %9375
      %9377 = vrot.lane.b32.xlu0 %v9348, 6
      %v9378 = vpop.permute.xlu0 %9377
      %9379 = vrot.lane.b32.xlu0 %v9349, 6
      %v9380 = vpop.permute.xlu0 %9379
      %9381 = vrot.lane.b32.xlu0 %v9350, 6
      %v9382 = vpop.permute.xlu0 %9381
      %vm9399 = vcmask 60464
      %9400 = vst.msk [vmem:[%s273] sm:$0xf] %vm9399, %v9352
      %9401 = vst.msk [vmem:[%s273 + $0x4] sm:$0xf] %vm9399, %v9354
      %9402 = vst.msk [vmem:[%s273 + $0x8] sm:$0xf] %vm9399, %v9356
      %9403 = vst.msk [vmem:[%s273 + $0xc] sm:$0xf] %vm9399, %v9358
      %9404 = vst.msk [vmem:[%s273 + $0x10] sm:$0xf] %vm9399, %v9360
      %9405 = vst.msk [vmem:[%s273 + $0x14] sm:$0xf] %vm9399, %v9362
      %9406 = vst.msk [vmem:[%s273 + $0x18] sm:$0xf] %vm9399, %v9364
      %9407 = vst.msk [vmem:[%s273 + $0x1c] sm:$0xf] %vm9399, %v9366
      %9408 = vst.msk [vmem:[%s273 + $0x20] sm:$0xf] %vm9399, %v9368
      %9409 = vst.msk [vmem:[%s273 + $0x24] sm:$0xf] %vm9399, %v9370
      %9410 = vst.msk [vmem:[%s273 + $0x28] sm:$0xf] %vm9399, %v9372
      %9411 = vst.msk [vmem:[%s273 + $0x2c] sm:$0xf] %vm9399, %v9374
      %9412 = vst.msk [vmem:[%s273 + $0x30] sm:$0xf] %vm9399, %v9376
      %9413 = vst.msk [vmem:[%s273 + $0x34] sm:$0xf] %vm9399, %v9378
      %9414 = vst.msk [vmem:[%s273 + $0x38] sm:$0xf] %vm9399, %v9380
      %9415 = vst.msk [vmem:[%s273 + $0x3c] sm:$0xf] %vm9399, %v9382
      %s9416 = smul.u32 16, %s22
      %p9417 = scmp.lt.s32.totalorder %s21, 1
      %s9418 = scalar_select %p9417, %s21, 1
      %p9419 = scmp.lt.s32.totalorder %s9416, 31
      %s9420 = scalar_select %p9419, %s9416, 31
      %s9421 = smul.addr %s9418, 32
      %s9422 = sadd.s32 %s9420, %s9421
      %s9423 = smul.addr %s9422, 4
      %s9424 = scalar_lea.vmem %s6, %s9423
      // Predicated region
      $region45: #{tpu_custom_call.1} parent=43 // pred_check
        %p9425 = pneg %p180
      $region46: #{tpu_custom_call.1} parent=43 // pred_check_branch
        %9427 = sbr.rel (%p9425) target = $region48
      $region47: #{tpu_custom_call.1} parent=43 // pred_region
        %s9428 = smul.u32 16, %s22
      $region48: #{tpu_custom_call.1} parent=43 // pred_fallthru
        _
    $region44: #{tpu_custom_call.1} parent=5 // pred_fallthru
      _
    %p9429 = scmp.le.s32.totalorder 2, %s12
    // Predicated region
    $region49: #{tpu_custom_call.1} parent=5 // pred_check
      %p9430 = pneg %p9429
    $region50: #{tpu_custom_call.1} parent=5 // pred_check_branch
      %9432 = sbr.rel (%p9430) target = $region52
    $region51: #{tpu_custom_call.1} parent=5 // pred_region
      %s9433 = ssub.s32 %s12, 2
      // Predicated region
      $region53: #{tpu_custom_call.1} parent=51 // pred_check
        %p9434 = pneg %p186
      $region54: #{tpu_custom_call.1} parent=51 // pred_check_branch
        %9436 = sbr.rel (%p9434) target = $region56
      $region55: #{tpu_custom_call.1} parent=51 // pred_region
        %s9437 = smul.u32 16, %s24
        %p9438 = scmp.lt.s32.totalorder %s23, 1
        %s9439 = scalar_select %p9438, %s23, 1
        %p9440 = scmp.lt.s32.totalorder %s9437, 31
        %s9441 = scalar_select %p9440, %s9437, 31
        %s9442 = smul.addr %s9439, 32
        %s9443 = sadd.s32 %s9441, %s9442
        %s9444 = smul.addr %s9443, 4
        %s9445 = scalar_lea.vmem %s6, %s9444
      $region56: #{tpu_custom_call.1} parent=51 // pred_fallthru
        _
    $region52: #{tpu_custom_call.1} parent=5 // pred_fallthru
      _
  $region6: #{tpu_custom_call.1} parent=0 // loop_footer
    %s16 = sadd.s32 1, %s12
  $region7: #{tpu_custom_call.1} parent=0 // loop_footer_branch
    %11 = sbr.rel target = $region3
  $region8: #{tpu_custom_call.1} parent=0 // loop_exit
    _

</llo_original>
